<compile_context>
chip_gen: v7x
topology: tpu7x:2x2x1
jax: 0.10.0
libtpu: 0.0.40
codegen_flags: <defaults>
</compile_context>

<pallas_src>
import jax
import jax.numpy as jnp
from jax.experimental import pallas as pl
from jax.experimental.pallas import tpu as pltpu

# Module hyper-parameters (defaults of ConditionalNormalizingFlow.__init__)
INPUT_DIM = 2
SPLIT_DIM = 1
CONTEXT_DIM = 1
HIDDEN_DIM = 128
NUM_LAYERS = 1          # hidden layers of the ConditionalDenseNN (hard-wired to 1 below)
FLOW_LENGTH = 10
LOG_SCALE_MIN = -5.0    # pyro AffineCoupling defaults
LOG_SCALE_MAX = 3.0
NUM_FLOWS = 2 * FLOW_LENGTH - 1     # couplings interleaved with permutes, last permute dropped
NUM_STORED = FLOW_LENGTH + 1        # input + one state per coupling (kernel stores only these)


def flow_kernel(ht_ref, zt_ref, w1c_ref, w1x_ref, b1_ref, w2m_ref, w2s_ref, b2_ref,
                zs_ref):
    """One batch tile (TN lanes). Features on sublanes, batch on lanes.

    ht_ref : (1, TN)            context, transposed
    zt_ref : (2, TN)            input state, transposed
    w1c_ref: (L, H, 1)          first-layer weights for the context column
    w1x_ref: (L, H, 1)          first-layer weights for the x1 column
    b1_ref : (L, H, 1)          first-layer bias
    w2m_ref: (L, H, 1)          second-layer weights producing `mean`
    w2s_ref: (L, H, 1)          second-layer weights producing `log_scale`
    b2_ref : (L, 2, 1)          second-layer bias
    zs_ref : (2*(L+1), TN)      flat lane-dense slab of coupling states
    """
    ctx = ht_ref[...]                  # (1, TN)
    a = zt_ref[0:1, :]                 # (1, TN) feature 0 (pass-through half)
    b = zt_ref[1:2, :]                 # (1, TN) feature 1 (transformed half)

    # state 0 = input
    zs_ref[0:1, :] = a
    zs_ref[1:2, :] = b

    # FLOW_LENGTH is small & static -> unrolled Python loop, static weight indexing.
    for i in range(FLOW_LENGTH):
        # ---- ConditionalAffineCoupling conditioned on ctx ----
        # First Linear of ConditionalDenseNN takes concat([H, x1]) (K=2):
        # two VPU broadcast-FMAs instead of an MXU matmul + concat.
        hid = jnp.maximum(
            w1c_ref[i] * ctx + w1x_ref[i] * a + b1_ref[i], 0.0)          # (H, TN)
        # Second Linear (HIDDEN -> 2): broadcast-multiply + sublane reduction.
        mean = (jnp.sum(w2m_ref[i] * hid, axis=0, keepdims=True)
                + b2_ref[i, 0:1, :])                                     # (1, TN)
        log_scale = (jnp.sum(w2s_ref[i] * hid, axis=0, keepdims=True)
                     + b2_ref[i, 1:2, :])                                # (1, TN)
        log_scale = jnp.clip(log_scale, LOG_SCALE_MIN, LOG_SCALE_MAX)
        y2 = jnp.exp(log_scale) * b + mean                               # (1, TN)

        # store the state after coupling i (pre-permute): rows [2(i+1), 2(i+1)+1]
        row = 2 * (i + 1)
        zs_ref[row:row + 1, :] = a
        zs_ref[row + 1:row + 2, :] = y2

        # ---- permute([1, 0]) : pure register rename, no data movement ----
        if i < FLOW_LENGTH - 1:
            a, b = y2, a


def conditional_normalizing_flow_forward(z, H, w1, b1, w2, b2, *, tile_n=None):
    """Equivalent of ConditionalNormalizingFlow.forward(z, H) -> (zs, z_final).

    z : (N, 2), H : (N, 1)
    w1: (L, 2, HIDDEN), b1: (L, 1, HIDDEN), w2: (L, HIDDEN, 2), b2: (L, 1, 2)
    """
    N = z.shape[0]
    if tile_n is None:
        # Lane-block size: small batches get one/few 128-lane tiles; larger
        # batches use 512-lane tiles (per-tile temporaries are only a few
        # hundred KiB, far under the v7x 64 MiB VMEM budget).
        tile_n = 128 if N <= 1024 else 512
    n_pad = pl.cdiv(N, tile_n) * tile_n
    grid = (n_pad // tile_n,)

    # Lane-dense layout: batch on lanes (last dim), features on sublanes.
    zt = jnp.transpose(z.astype(jnp.float32))                 # (2, N)
    ht = jnp.transpose(H.astype(jnp.float32))                 # (1, N)
    if n_pad != N:
        zt = jnp.pad(zt, ((0, 0), (0, n_pad - N)))
        ht = jnp.pad(ht, ((0, 0), (0, n_pad - N)))

    w1t = jnp.transpose(w1.astype(jnp.float32), (0, 2, 1))    # (L, H, 2)
    w1c = w1t[:, :, 0:1]                                      # (L, H, 1) context weights
    w1x = w1t[:, :, 1:2]                                      # (L, H, 1) x1 weights
    b1t = jnp.transpose(b1.astype(jnp.float32), (0, 2, 1))    # (L, H, 1)
    w2f = w2.astype(jnp.float32)
    w2m = w2f[:, :, 0:1]                                      # (L, H, 1) -> mean
    w2s = w2f[:, :, 1:2]                                      # (L, H, 1) -> log_scale
    b2t = jnp.transpose(b2.astype(jnp.float32), (0, 2, 1))    # (L, 2, 1)

    out_rows = 2 * NUM_STORED                                 # 22
    out_shape = jax.ShapeDtypeStruct((out_rows, n_pad), jnp.float32)

    def whole(shape):
        return pl.BlockSpec(shape, lambda i, _nd=len(shape): (0,) * _nd)

    zs_flat = pl.pallas_call(
        flow_kernel,
        out_shape=out_shape,
        grid=grid,
        in_specs=[
            pl.BlockSpec((CONTEXT_DIM, tile_n), lambda i: (0, i)),   # ht
            pl.BlockSpec((INPUT_DIM, tile_n), lambda i: (0, i)),     # zt
            whole(w1c.shape),
            whole(w1x.shape),
            whole(b1t.shape),
            whole(w2m.shape),
            whole(w2s.shape),
            whole(b2t.shape),
        ],
        out_specs=pl.BlockSpec((out_rows, tile_n), lambda i: (0, i)),
        compiler_params=pltpu.CompilerParams(
            dimension_semantics=("parallel",)),
    )(ht, zt, w1c, w1x, b1t, w2m, w2s, b2t)

    # Back to (NUM_STORED, N, 2) features-last.
    stored = zs_flat[:, :N].reshape(NUM_STORED, INPUT_DIM, N)
    stored = jnp.transpose(stored, (0, 2, 1))                 # (11, N, 2)

    # Rebuild the full 20-entry zs list: the 9 permuted intermediates are
    # trivial column swaps of the preceding coupling output (not stored by the
    # kernel, saving ~45% of the output HBM writeback).
    zs = [stored[0]]
    for k in range(1, FLOW_LENGTH + 1):
        zs.append(stored[k])
        if k < FLOW_LENGTH:
            zs.append(stored[k][:, ::-1])
    return zs, zs[-1]


def reference_forward(z, H, w1, b1, w2, b2):
    """Pure-JAX reference of the same semantics (for correctness check).

    Uses Precision.HIGHEST so the f32 matmuls are not silently downcast to bf16
    by the backend's default matmul policy.
    """
    hp = jax.lax.Precision.HIGHEST
    zs = [z]
    cur = z
    for i in range(FLOW_LENGTH):
        x1 = cur[:, :SPLIT_DIM]
        x2 = cur[:, SPLIT_DIM:]
        inp = jnp.concatenate([H, x1], axis=-1)
        hid = jax.nn.relu(jnp.dot(inp, w1[i], precision=hp) + b1[i])
        out = jnp.dot(hid, w2[i], precision=hp) + b2[i]
        mean = out[:, 0:1]
        log_scale = jnp.clip(out[:, 1:2], LOG_SCALE_MIN, LOG_SCALE_MAX)
        cur = jnp.concatenate([x1, jnp.exp(log_scale) * x2 + mean], axis=-1)
        zs.append(cur)
        if i < FLOW_LENGTH - 1:
            cur = cur[:, ::-1]
            zs.append(cur)
    return zs, cur


if __name__ == "__main__":
    key = jax.random.PRNGKey(0)
    kz, kh, k1, k2, k3, k4 = jax.random.split(key, 6)

    N = 256  # small batch; with tile_n=128 this exercises a 2-tile "parallel" grid

    # Inputs
    z = jax.random.normal(kz, (N, INPUT_DIM), dtype=jnp.float32)
    H = jax.random.normal(kh, (N, CONTEXT_DIM), dtype=jnp.float32)

    # Deterministic synthetic parameters (shapes follow ConditionalDenseNN with
    # param_dims=[1,1]; stacked over flow_length).  Scales are kept small so the
    # 10-layer flow of exp(clamp(log_scale)) stays well-conditioned (values O(1))
    # and the correctness check is not dominated by f32 rounding amplification.
    w1 = 0.1 * jax.random.normal(
        k1, (FLOW_LENGTH, CONTEXT_DIM + SPLIT_DIM, HIDDEN_DIM), dtype=jnp.float32)
    b1 = 0.05 * jax.random.normal(
        k2, (FLOW_LENGTH, 1, HIDDEN_DIM), dtype=jnp.float32)
    w2 = 0.1 * jax.random.normal(
        k3, (FLOW_LENGTH, HIDDEN_DIM, INPUT_DIM), dtype=jnp.float32)
    b2 = 0.05 * jax.random.normal(
        k4, (FLOW_LENGTH, 1, INPUT_DIM), dtype=jnp.float32)

    zs, z_final = conditional_normalizing_flow_forward(z, H, w1, b1, w2, b2)
    z_final = jax.block_until_ready(z_final)

    zs_ref, z_final_ref = reference_forward(z, H, w1, b1, w2, b2)
    assert len(zs) == len(zs_ref) == NUM_FLOWS + 1
    # Kernel is exact elementwise f32; reference is HIGHEST-precision f32 matmuls.
    # Expected agreement ~1e-6; tolerance leaves headroom for reduction-order and
    # matmul-pass differences across backends.
    TOL = 1e-3
    ok = all(
        bool(jnp.allclose(a, b, atol=TOL, rtol=TOL))
        for a, b in zip(zs, zs_ref)
    ) and bool(jnp.allclose(z_final, z_final_ref, atol=TOL, rtol=TOL))
    assert ok, "Pallas kernel output does not match JAX reference"

    # TODO(synk): only forward() is implemented; pyro's clamp_preserve_gradients
    # differs from jnp.clip only for gradients (not computed here), and the unused
    # BatchNorm transforms from __init__ are dropped by _condition() before forward().
    print("KERNEL_OK")
</pallas_src>

<mosaic_0001>
module attributes {stable_mosaic.version = 11 : i64} {
  func.func @flow_kernel(%arg0: i32, %arg1: memref<1x128xf32, #tpu.memory_space<vmem>>, %arg2: memref<2x128xf32, #tpu.memory_space<vmem>>, %arg3: memref<10x128x1xf32, #tpu.memory_space<vmem>>, %arg4: memref<10x128x1xf32, #tpu.memory_space<vmem>>, %arg5: memref<10x128x1xf32, #tpu.memory_space<vmem>>, %arg6: memref<10x128x1xf32, #tpu.memory_space<vmem>>, %arg7: memref<10x128x1xf32, #tpu.memory_space<vmem>>, %arg8: memref<10x2x1xf32, #tpu.memory_space<vmem>>, %arg9: memref<22x128xf32, #tpu.memory_space<vmem>>) attributes {dimension_semantics = [#tpu.dimension_semantics<parallel>], iteration_bounds = array<i64: 2>, scalar_prefetch = 0 : i64, scratch_operands = 0 : i64, tpu.core_type = #tpu.core_type<tc>, window_params = [{transform_indices = @transform_0, window_bounds = array<i64: 1, 128>}, {transform_indices = @transform_1, window_bounds = array<i64: 2, 128>}, {pipeline_mode = #tpu.pipeline_mode<synchronous>, transform_indices = @transform_2, window_bounds = array<i64: 10, 128, 1>}, {pipeline_mode = #tpu.pipeline_mode<synchronous>, transform_indices = @transform_3, window_bounds = array<i64: 10, 128, 1>}, {pipeline_mode = #tpu.pipeline_mode<synchronous>, transform_indices = @transform_4, window_bounds = array<i64: 10, 128, 1>}, {pipeline_mode = #tpu.pipeline_mode<synchronous>, transform_indices = @transform_5, window_bounds = array<i64: 10, 128, 1>}, {pipeline_mode = #tpu.pipeline_mode<synchronous>, transform_indices = @transform_6, window_bounds = array<i64: 10, 128, 1>}, {pipeline_mode = #tpu.pipeline_mode<synchronous>, transform_indices = @transform_7, window_bounds = array<i64: 10, 2, 1>}, {transform_indices = @transform_8, window_bounds = array<i64: 22, 128>}]} {
    %c0 = arith.constant 0 : index
    %c0_0 = arith.constant 0 : index
    %0 = vector.load %arg1[%c0, %c0_0] : memref<1x128xf32, #tpu.memory_space<vmem>>, vector<1x128xf32>
    %c0_1 = arith.constant 0 : index
    %c0_2 = arith.constant 0 : index
    %1 = vector.load %arg2[%c0_1, %c0_2] : memref<2x128xf32, #tpu.memory_space<vmem>>, vector<1x128xf32>
    %c1 = arith.constant 1 : index
    %c0_3 = arith.constant 0 : index
    %2 = vector.load %arg2[%c1, %c0_3] : memref<2x128xf32, #tpu.memory_space<vmem>>, vector<1x128xf32>
    %c0_4 = arith.constant 0 : index
    %c0_5 = arith.constant 0 : index
    %3 = vector.load %arg9[%c0_4, %c0_5] : memref<22x128xf32, #tpu.memory_space<vmem>>, vector<1x128xf32>
    tpu.vector_store %arg9[%c0_4, %c0_5], %1 {strides = array<i32>} : memref<22x128xf32, #tpu.memory_space<vmem>>, vector<1x128xf32>,
    %c1_6 = arith.constant 1 : index
    %c0_7 = arith.constant 0 : index
    %4 = vector.load %arg9[%c1_6, %c0_7] : memref<22x128xf32, #tpu.memory_space<vmem>>, vector<1x128xf32>
    tpu.vector_store %arg9[%c1_6, %c0_7], %2 {strides = array<i32>} : memref<22x128xf32, #tpu.memory_space<vmem>>, vector<1x128xf32>,
    %c0_8 = arith.constant 0 : index
    %c0_9 = arith.constant 0 : index
    %c0_10 = arith.constant 0 : index
    %5 = vector.load %arg3[%c0_8, %c0_9, %c0_10] : memref<10x128x1xf32, #tpu.memory_space<vmem>>, vector<1x128x1xf32>
    %6 = vector.shape_cast %5 : vector<1x128x1xf32> to vector<128x1xf32>
    %7 = vector.broadcast %6 : vector<128x1xf32> to vector<128x128xf32>
    %8 = vector.broadcast %0 : vector<1x128xf32> to vector<128x128xf32>
    %9 = arith.mulf %7, %8 : vector<128x128xf32>
    %c0_11 = arith.constant 0 : index
    %c0_12 = arith.constant 0 : index
    %c0_13 = arith.constant 0 : index
    %10 = vector.load %arg4[%c0_11, %c0_12, %c0_13] : memref<10x128x1xf32, #tpu.memory_space<vmem>>, vector<1x128x1xf32>
    %11 = vector.shape_cast %10 : vector<1x128x1xf32> to vector<128x1xf32>
    %12 = vector.broadcast %11 : vector<128x1xf32> to vector<128x128xf32>
    %13 = vector.broadcast %1 : vector<1x128xf32> to vector<128x128xf32>
    %14 = arith.mulf %12, %13 : vector<128x128xf32>
    %15 = arith.addf %9, %14 : vector<128x128xf32>
    %c0_14 = arith.constant 0 : index
    %c0_15 = arith.constant 0 : index
    %c0_16 = arith.constant 0 : index
    %16 = vector.load %arg5[%c0_14, %c0_15, %c0_16] : memref<10x128x1xf32, #tpu.memory_space<vmem>>, vector<1x128x1xf32>
    %17 = vector.shape_cast %16 : vector<1x128x1xf32> to vector<128x1xf32>
    %18 = vector.broadcast %17 : vector<128x1xf32> to vector<128x128xf32>
    %19 = arith.addf %15, %18 : vector<128x128xf32>
    %cst = arith.constant 0.000000e+00 : f32
    %20 = vector.broadcast %cst : f32 to vector<128x128xf32>
    %21 = arith.maximumf %19, %20 : vector<128x128xf32>
    %c0_17 = arith.constant 0 : index
    %c0_18 = arith.constant 0 : index
    %c0_19 = arith.constant 0 : index
    %22 = vector.load %arg6[%c0_17, %c0_18, %c0_19] : memref<10x128x1xf32, #tpu.memory_space<vmem>>, vector<1x128x1xf32>
    %23 = vector.shape_cast %22 : vector<1x128x1xf32> to vector<128x1xf32>
    %24 = vector.broadcast %23 : vector<128x1xf32> to vector<128x128xf32>
    %25 = arith.mulf %24, %21 : vector<128x128xf32>
    %cst_20 = arith.constant dense<0.000000e+00> : vector<128xf32>
    %26 = vector.multi_reduction <add>, %25, %cst_20 [0] : vector<128x128xf32> to vector<128xf32>
    %27 = vector.shape_cast %26 : vector<128xf32> to vector<1x128xf32>
    %c0_21 = arith.constant 0 : index
    %c0_22 = arith.constant 0 : index
    %c0_23 = arith.constant 0 : index
    %28 = vector.load %arg8[%c0_21, %c0_22, %c0_23] : memref<10x2x1xf32, #tpu.memory_space<vmem>>, vector<1x1x1xf32>
    %29 = vector.shape_cast %28 : vector<1x1x1xf32> to vector<1x1xf32>
    %30 = vector.broadcast %29 : vector<1x1xf32> to vector<1x128xf32>
    %31 = arith.addf %27, %30 : vector<1x128xf32>
    %c0_24 = arith.constant 0 : index
    %c0_25 = arith.constant 0 : index
    %c0_26 = arith.constant 0 : index
    %32 = vector.load %arg7[%c0_24, %c0_25, %c0_26] : memref<10x128x1xf32, #tpu.memory_space<vmem>>, vector<1x128x1xf32>
    %33 = vector.shape_cast %32 : vector<1x128x1xf32> to vector<128x1xf32>
    %34 = vector.broadcast %33 : vector<128x1xf32> to vector<128x128xf32>
    %35 = arith.mulf %34, %21 : vector<128x128xf32>
    %cst_27 = arith.constant dense<0.000000e+00> : vector<128xf32>
    %36 = vector.multi_reduction <add>, %35, %cst_27 [0] : vector<128x128xf32> to vector<128xf32>
    %37 = vector.shape_cast %36 : vector<128xf32> to vector<1x128xf32>
    %c0_28 = arith.constant 0 : index
    %c1_29 = arith.constant 1 : index
    %c0_30 = arith.constant 0 : index
    %38 = vector.load %arg8[%c0_28, %c1_29, %c0_30] : memref<10x2x1xf32, #tpu.memory_space<vmem>>, vector<1x1x1xf32>
    %39 = vector.shape_cast %38 : vector<1x1x1xf32> to vector<1x1xf32>
    %40 = vector.broadcast %39 : vector<1x1xf32> to vector<1x128xf32>
    %41 = arith.addf %37, %40 : vector<1x128xf32>
    %cst_31 = arith.constant -5.000000e+00 : f32
    %cst_32 = arith.constant 3.000000e+00 : f32
    %42 = vector.broadcast %cst_31 : f32 to vector<1x128xf32>
    %43 = arith.maximumf %42, %41 : vector<1x128xf32>
    %44 = vector.broadcast %cst_32 : f32 to vector<1x128xf32>
    %45 = arith.minimumf %44, %43 : vector<1x128xf32>
    %46 = math.exp %45 : vector<1x128xf32>
    %47 = arith.mulf %46, %2 : vector<1x128xf32>
    %48 = arith.addf %47, %31 : vector<1x128xf32>
    %c2 = arith.constant 2 : index
    %c0_33 = arith.constant 0 : index
    %49 = vector.load %arg9[%c2, %c0_33] : memref<22x128xf32, #tpu.memory_space<vmem>>, vector<1x128xf32>
    tpu.vector_store %arg9[%c2, %c0_33], %1 {strides = array<i32>} : memref<22x128xf32, #tpu.memory_space<vmem>>, vector<1x128xf32>,
    %c3 = arith.constant 3 : index
    %c0_34 = arith.constant 0 : index
    %50 = vector.load %arg9[%c3, %c0_34] : memref<22x128xf32, #tpu.memory_space<vmem>>, vector<1x128xf32>
    tpu.vector_store %arg9[%c3, %c0_34], %48 {strides = array<i32>} : memref<22x128xf32, #tpu.memory_space<vmem>>, vector<1x128xf32>,
    %c1_35 = arith.constant 1 : index
    %c0_36 = arith.constant 0 : index
    %c0_37 = arith.constant 0 : index
    %51 = vector.load %arg3[%c1_35, %c0_36, %c0_37] : memref<10x128x1xf32, #tpu.memory_space<vmem>>, vector<1x128x1xf32>
    %52 = vector.shape_cast %51 : vector<1x128x1xf32> to vector<128x1xf32>
    %53 = vector.broadcast %52 : vector<128x1xf32> to vector<128x128xf32>
    %54 = vector.broadcast %0 : vector<1x128xf32> to vector<128x128xf32>
    %55 = arith.mulf %53, %54 : vector<128x128xf32>
    %c1_38 = arith.constant 1 : index
    %c0_39 = arith.constant 0 : index
    %c0_40 = arith.constant 0 : index
    %56 = vector.load %arg4[%c1_38, %c0_39, %c0_40] : memref<10x128x1xf32, #tpu.memory_space<vmem>>, vector<1x128x1xf32>
    %57 = vector.shape_cast %56 : vector<1x128x1xf32> to vector<128x1xf32>
    %58 = vector.broadcast %57 : vector<128x1xf32> to vector<128x128xf32>
    %59 = vector.broadcast %48 : vector<1x128xf32> to vector<128x128xf32>
    %60 = arith.mulf %58, %59 : vector<128x128xf32>
    %61 = arith.addf %55, %60 : vector<128x128xf32>
    %c1_41 = arith.constant 1 : index
    %c0_42 = arith.constant 0 : index
    %c0_43 = arith.constant 0 : index
    %62 = vector.load %arg5[%c1_41, %c0_42, %c0_43] : memref<10x128x1xf32, #tpu.memory_space<vmem>>, vector<1x128x1xf32>
    %63 = vector.shape_cast %62 : vector<1x128x1xf32> to vector<128x1xf32>
    %64 = vector.broadcast %63 : vector<128x1xf32> to vector<128x128xf32>
    %65 = arith.addf %61, %64 : vector<128x128xf32>
    %cst_44 = arith.constant 0.000000e+00 : f32
    %66 = vector.broadcast %cst_44 : f32 to vector<128x128xf32>
    %67 = arith.maximumf %65, %66 : vector<128x128xf32>
    %c1_45 = arith.constant 1 : index
    %c0_46 = arith.constant 0 : index
    %c0_47 = arith.constant 0 : index
    %68 = vector.load %arg6[%c1_45, %c0_46, %c0_47] : memref<10x128x1xf32, #tpu.memory_space<vmem>>, vector<1x128x1xf32>
    %69 = vector.shape_cast %68 : vector<1x128x1xf32> to vector<128x1xf32>
    %70 = vector.broadcast %69 : vector<128x1xf32> to vector<128x128xf32>
    %71 = arith.mulf %70, %67 : vector<128x128xf32>
    %cst_48 = arith.constant dense<0.000000e+00> : vector<128xf32>
    %72 = vector.multi_reduction <add>, %71, %cst_48 [0] : vector<128x128xf32> to vector<128xf32>
    %73 = vector.shape_cast %72 : vector<128xf32> to vector<1x128xf32>
    %c1_49 = arith.constant 1 : index
    %c0_50 = arith.constant 0 : index
    %c0_51 = arith.constant 0 : index
    %74 = vector.load %arg8[%c1_49, %c0_50, %c0_51] : memref<10x2x1xf32, #tpu.memory_space<vmem>>, vector<1x1x1xf32>
    %75 = vector.shape_cast %74 : vector<1x1x1xf32> to vector<1x1xf32>
    %76 = vector.broadcast %75 : vector<1x1xf32> to vector<1x128xf32>
    %77 = arith.addf %73, %76 : vector<1x128xf32>
    %c1_52 = arith.constant 1 : index
    %c0_53 = arith.constant 0 : index
    %c0_54 = arith.constant 0 : index
    %78 = vector.load %arg7[%c1_52, %c0_53, %c0_54] : memref<10x128x1xf32, #tpu.memory_space<vmem>>, vector<1x128x1xf32>
    %79 = vector.shape_cast %78 : vector<1x128x1xf32> to vector<128x1xf32>
    %80 = vector.broadcast %79 : vector<128x1xf32> to vector<128x128xf32>
    %81 = arith.mulf %80, %67 : vector<128x128xf32>
    %cst_55 = arith.constant dense<0.000000e+00> : vector<128xf32>
    %82 = vector.multi_reduction <add>, %81, %cst_55 [0] : vector<128x128xf32> to vector<128xf32>
    %83 = vector.shape_cast %82 : vector<128xf32> to vector<1x128xf32>
    %c1_56 = arith.constant 1 : index
    %c1_57 = arith.constant 1 : index
    %c0_58 = arith.constant 0 : index
    %84 = vector.load %arg8[%c1_56, %c1_57, %c0_58] : memref<10x2x1xf32, #tpu.memory_space<vmem>>, vector<1x1x1xf32>
    %85 = vector.shape_cast %84 : vector<1x1x1xf32> to vector<1x1xf32>
    %86 = vector.broadcast %85 : vector<1x1xf32> to vector<1x128xf32>
    %87 = arith.addf %83, %86 : vector<1x128xf32>
    %cst_59 = arith.constant -5.000000e+00 : f32
    %cst_60 = arith.constant 3.000000e+00 : f32
    %88 = vector.broadcast %cst_59 : f32 to vector<1x128xf32>
    %89 = arith.maximumf %88, %87 : vector<1x128xf32>
    %90 = vector.broadcast %cst_60 : f32 to vector<1x128xf32>
    %91 = arith.minimumf %90, %89 : vector<1x128xf32>
    %92 = math.exp %91 : vector<1x128xf32>
    %93 = arith.mulf %92, %1 : vector<1x128xf32>
    %94 = arith.addf %93, %77 : vector<1x128xf32>
    %c4 = arith.constant 4 : index
    %c0_61 = arith.constant 0 : index
    %95 = vector.load %arg9[%c4, %c0_61] : memref<22x128xf32, #tpu.memory_space<vmem>>, vector<1x128xf32>
    tpu.vector_store %arg9[%c4, %c0_61], %48 {strides = array<i32>} : memref<22x128xf32, #tpu.memory_space<vmem>>, vector<1x128xf32>,
    %c5 = arith.constant 5 : index
    %c0_62 = arith.constant 0 : index
    %96 = vector.load %arg9[%c5, %c0_62] : memref<22x128xf32, #tpu.memory_space<vmem>>, vector<1x128xf32>
    tpu.vector_store %arg9[%c5, %c0_62], %94 {strides = array<i32>} : memref<22x128xf32, #tpu.memory_space<vmem>>, vector<1x128xf32>,
    %c2_63 = arith.constant 2 : index
    %c0_64 = arith.constant 0 : index
    %c0_65 = arith.constant 0 : index
    %97 = vector.load %arg3[%c2_63, %c0_64, %c0_65] : memref<10x128x1xf32, #tpu.memory_space<vmem>>, vector<1x128x1xf32>
    %98 = vector.shape_cast %97 : vector<1x128x1xf32> to vector<128x1xf32>
    %99 = vector.broadcast %98 : vector<128x1xf32> to vector<128x128xf32>
    %100 = vector.broadcast %0 : vector<1x128xf32> to vector<128x128xf32>
    %101 = arith.mulf %99, %100 : vector<128x128xf32>
    %c2_66 = arith.constant 2 : index
    %c0_67 = arith.constant 0 : index
    %c0_68 = arith.constant 0 : index
    %102 = vector.load %arg4[%c2_66, %c0_67, %c0_68] : memref<10x128x1xf32, #tpu.memory_space<vmem>>, vector<1x128x1xf32>
    %103 = vector.shape_cast %102 : vector<1x128x1xf32> to vector<128x1xf32>
    %104 = vector.broadcast %103 : vector<128x1xf32> to vector<128x128xf32>
    %105 = vector.broadcast %94 : vector<1x128xf32> to vector<128x128xf32>
    %106 = arith.mulf %104, %105 : vector<128x128xf32>
    %107 = arith.addf %101, %106 : vector<128x128xf32>
    %c2_69 = arith.constant 2 : index
    %c0_70 = arith.constant 0 : index
    %c0_71 = arith.constant 0 : index
    %108 = vector.load %arg5[%c2_69, %c0_70, %c0_71] : memref<10x128x1xf32, #tpu.memory_space<vmem>>, vector<1x128x1xf32>
    %109 = vector.shape_cast %108 : vector<1x128x1xf32> to vector<128x1xf32>
    %110 = vector.broadcast %109 : vector<128x1xf32> to vector<128x128xf32>
    %111 = arith.addf %107, %110 : vector<128x128xf32>
    %cst_72 = arith.constant 0.000000e+00 : f32
    %112 = vector.broadcast %cst_72 : f32 to vector<128x128xf32>
    %113 = arith.maximumf %111, %112 : vector<128x128xf32>
    %c2_73 = arith.constant 2 : index
    %c0_74 = arith.constant 0 : index
    %c0_75 = arith.constant 0 : index
    %114 = vector.load %arg6[%c2_73, %c0_74, %c0_75] : memref<10x128x1xf32, #tpu.memory_space<vmem>>, vector<1x128x1xf32>
    %115 = vector.shape_cast %114 : vector<1x128x1xf32> to vector<128x1xf32>
    %116 = vector.broadcast %115 : vector<128x1xf32> to vector<128x128xf32>
    %117 = arith.mulf %116, %113 : vector<128x128xf32>
    %cst_76 = arith.constant dense<0.000000e+00> : vector<128xf32>
    %118 = vector.multi_reduction <add>, %117, %cst_76 [0] : vector<128x128xf32> to vector<128xf32>
    %119 = vector.shape_cast %118 : vector<128xf32> to vector<1x128xf32>
    %c2_77 = arith.constant 2 : index
    %c0_78 = arith.constant 0 : index
    %c0_79 = arith.constant 0 : index
    %120 = vector.load %arg8[%c2_77, %c0_78, %c0_79] : memref<10x2x1xf32, #tpu.memory_space<vmem>>, vector<1x1x1xf32>
    %121 = vector.shape_cast %120 : vector<1x1x1xf32> to vector<1x1xf32>
    %122 = vector.broadcast %121 : vector<1x1xf32> to vector<1x128xf32>
    %123 = arith.addf %119, %122 : vector<1x128xf32>
    %c2_80 = arith.constant 2 : index
    %c0_81 = arith.constant 0 : index
    %c0_82 = arith.constant 0 : index
    %124 = vector.load %arg7[%c2_80, %c0_81, %c0_82] : memref<10x128x1xf32, #tpu.memory_space<vmem>>, vector<1x128x1xf32>
    %125 = vector.shape_cast %124 : vector<1x128x1xf32> to vector<128x1xf32>
    %126 = vector.broadcast %125 : vector<128x1xf32> to vector<128x128xf32>
    %127 = arith.mulf %126, %113 : vector<128x128xf32>
    %cst_83 = arith.constant dense<0.000000e+00> : vector<128xf32>
    %128 = vector.multi_reduction <add>, %127, %cst_83 [0] : vector<128x128xf32> to vector<128xf32>
    %129 = vector.shape_cast %128 : vector<128xf32> to vector<1x128xf32>
    %c2_84 = arith.constant 2 : index
    %c1_85 = arith.constant 1 : index
    %c0_86 = arith.constant 0 : index
    %130 = vector.load %arg8[%c2_84, %c1_85, %c0_86] : memref<10x2x1xf32, #tpu.memory_space<vmem>>, vector<1x1x1xf32>
    %131 = vector.shape_cast %130 : vector<1x1x1xf32> to vector<1x1xf32>
    %132 = vector.broadcast %131 : vector<1x1xf32> to vector<1x128xf32>
    %133 = arith.addf %129, %132 : vector<1x128xf32>
    %cst_87 = arith.constant -5.000000e+00 : f32
    %cst_88 = arith.constant 3.000000e+00 : f32
    %134 = vector.broadcast %cst_87 : f32 to vector<1x128xf32>
    %135 = arith.maximumf %134, %133 : vector<1x128xf32>
    %136 = vector.broadcast %cst_88 : f32 to vector<1x128xf32>
    %137 = arith.minimumf %136, %135 : vector<1x128xf32>
    %138 = math.exp %137 : vector<1x128xf32>
    %139 = arith.mulf %138, %48 : vector<1x128xf32>
    %140 = arith.addf %139, %123 : vector<1x128xf32>
    %c6 = arith.constant 6 : index
    %c0_89 = arith.constant 0 : index
    %141 = vector.load %arg9[%c6, %c0_89] : memref<22x128xf32, #tpu.memory_space<vmem>>, vector<1x128xf32>
    tpu.vector_store %arg9[%c6, %c0_89], %94 {strides = array<i32>} : memref<22x128xf32, #tpu.memory_space<vmem>>, vector<1x128xf32>,
    %c7 = arith.constant 7 : index
    %c0_90 = arith.constant 0 : index
    %142 = vector.load %arg9[%c7, %c0_90] : memref<22x128xf32, #tpu.memory_space<vmem>>, vector<1x128xf32>
    tpu.vector_store %arg9[%c7, %c0_90], %140 {strides = array<i32>} : memref<22x128xf32, #tpu.memory_space<vmem>>, vector<1x128xf32>,
    %c3_91 = arith.constant 3 : index
    %c0_92 = arith.constant 0 : index
    %c0_93 = arith.constant 0 : index
    %143 = vector.load %arg3[%c3_91, %c0_92, %c0_93] : memref<10x128x1xf32, #tpu.memory_space<vmem>>, vector<1x128x1xf32>
    %144 = vector.shape_cast %143 : vector<1x128x1xf32> to vector<128x1xf32>
    %145 = vector.broadcast %144 : vector<128x1xf32> to vector<128x128xf32>
    %146 = vector.broadcast %0 : vector<1x128xf32> to vector<128x128xf32>
    %147 = arith.mulf %145, %146 : vector<128x128xf32>
    %c3_94 = arith.constant 3 : index
    %c0_95 = arith.constant 0 : index
    %c0_96 = arith.constant 0 : index
    %148 = vector.load %arg4[%c3_94, %c0_95, %c0_96] : memref<10x128x1xf32, #tpu.memory_space<vmem>>, vector<1x128x1xf32>
    %149 = vector.shape_cast %148 : vector<1x128x1xf32> to vector<128x1xf32>
    %150 = vector.broadcast %149 : vector<128x1xf32> to vector<128x128xf32>
    %151 = vector.broadcast %140 : vector<1x128xf32> to vector<128x128xf32>
    %152 = arith.mulf %150, %151 : vector<128x128xf32>
    %153 = arith.addf %147, %152 : vector<128x128xf32>
    %c3_97 = arith.constant 3 : index
    %c0_98 = arith.constant 0 : index
    %c0_99 = arith.constant 0 : index
    %154 = vector.load %arg5[%c3_97, %c0_98, %c0_99] : memref<10x128x1xf32, #tpu.memory_space<vmem>>, vector<1x128x1xf32>
    %155 = vector.shape_cast %154 : vector<1x128x1xf32> to vector<128x1xf32>
    %156 = vector.broadcast %155 : vector<128x1xf32> to vector<128x128xf32>
    %157 = arith.addf %153, %156 : vector<128x128xf32>
    %cst_100 = arith.constant 0.000000e+00 : f32
    %158 = vector.broadcast %cst_100 : f32 to vector<128x128xf32>
    %159 = arith.maximumf %157, %158 : vector<128x128xf32>
    %c3_101 = arith.constant 3 : index
    %c0_102 = arith.constant 0 : index
    %c0_103 = arith.constant 0 : index
    %160 = vector.load %arg6[%c3_101, %c0_102, %c0_103] : memref<10x128x1xf32, #tpu.memory_space<vmem>>, vector<1x128x1xf32>
    %161 = vector.shape_cast %160 : vector<1x128x1xf32> to vector<128x1xf32>
    %162 = vector.broadcast %161 : vector<128x1xf32> to vector<128x128xf32>
    %163 = arith.mulf %162, %159 : vector<128x128xf32>
    %cst_104 = arith.constant dense<0.000000e+00> : vector<128xf32>
    %164 = vector.multi_reduction <add>, %163, %cst_104 [0] : vector<128x128xf32> to vector<128xf32>
    %165 = vector.shape_cast %164 : vector<128xf32> to vector<1x128xf32>
    %c3_105 = arith.constant 3 : index
    %c0_106 = arith.constant 0 : index
    %c0_107 = arith.constant 0 : index
    %166 = vector.load %arg8[%c3_105, %c0_106, %c0_107] : memref<10x2x1xf32, #tpu.memory_space<vmem>>, vector<1x1x1xf32>
    %167 = vector.shape_cast %166 : vector<1x1x1xf32> to vector<1x1xf32>
    %168 = vector.broadcast %167 : vector<1x1xf32> to vector<1x128xf32>
    %169 = arith.addf %165, %168 : vector<1x128xf32>
    %c3_108 = arith.constant 3 : index
    %c0_109 = arith.constant 0 : index
    %c0_110 = arith.constant 0 : index
    %170 = vector.load %arg7[%c3_108, %c0_109, %c0_110] : memref<10x128x1xf32, #tpu.memory_space<vmem>>, vector<1x128x1xf32>
    %171 = vector.shape_cast %170 : vector<1x128x1xf32> to vector<128x1xf32>
    %172 = vector.broadcast %171 : vector<128x1xf32> to vector<128x128xf32>
    %173 = arith.mulf %172, %159 : vector<128x128xf32>
    %cst_111 = arith.constant dense<0.000000e+00> : vector<128xf32>
    %174 = vector.multi_reduction <add>, %173, %cst_111 [0] : vector<128x128xf32> to vector<128xf32>
    %175 = vector.shape_cast %174 : vector<128xf32> to vector<1x128xf32>
    %c3_112 = arith.constant 3 : index
    %c1_113 = arith.constant 1 : index
    %c0_114 = arith.constant 0 : index
    %176 = vector.load %arg8[%c3_112, %c1_113, %c0_114] : memref<10x2x1xf32, #tpu.memory_space<vmem>>, vector<1x1x1xf32>
    %177 = vector.shape_cast %176 : vector<1x1x1xf32> to vector<1x1xf32>
    %178 = vector.broadcast %177 : vector<1x1xf32> to vector<1x128xf32>
    %179 = arith.addf %175, %178 : vector<1x128xf32>
    %cst_115 = arith.constant -5.000000e+00 : f32
    %cst_116 = arith.constant 3.000000e+00 : f32
    %180 = vector.broadcast %cst_115 : f32 to vector<1x128xf32>
    %181 = arith.maximumf %180, %179 : vector<1x128xf32>
    %182 = vector.broadcast %cst_116 : f32 to vector<1x128xf32>
    %183 = arith.minimumf %182, %181 : vector<1x128xf32>
    %184 = math.exp %183 : vector<1x128xf32>
    %185 = arith.mulf %184, %94 : vector<1x128xf32>
    %186 = arith.addf %185, %169 : vector<1x128xf32>
    %c8 = arith.constant 8 : index
    %c0_117 = arith.constant 0 : index
    %187 = vector.load %arg9[%c8, %c0_117] : memref<22x128xf32, #tpu.memory_space<vmem>>, vector<1x128xf32>
    tpu.vector_store %arg9[%c8, %c0_117], %140 {strides = array<i32>} : memref<22x128xf32, #tpu.memory_space<vmem>>, vector<1x128xf32>,
    %c9 = arith.constant 9 : index
    %c0_118 = arith.constant 0 : index
    %188 = vector.load %arg9[%c9, %c0_118] : memref<22x128xf32, #tpu.memory_space<vmem>>, vector<1x128xf32>
    tpu.vector_store %arg9[%c9, %c0_118], %186 {strides = array<i32>} : memref<22x128xf32, #tpu.memory_space<vmem>>, vector<1x128xf32>,
    %c4_119 = arith.constant 4 : index
    %c0_120 = arith.constant 0 : index
    %c0_121 = arith.constant 0 : index
    %189 = vector.load %arg3[%c4_119, %c0_120, %c0_121] : memref<10x128x1xf32, #tpu.memory_space<vmem>>, vector<1x128x1xf32>
    %190 = vector.shape_cast %189 : vector<1x128x1xf32> to vector<128x1xf32>
    %191 = vector.broadcast %190 : vector<128x1xf32> to vector<128x128xf32>
    %192 = vector.broadcast %0 : vector<1x128xf32> to vector<128x128xf32>
    %193 = arith.mulf %191, %192 : vector<128x128xf32>
    %c4_122 = arith.constant 4 : index
    %c0_123 = arith.constant 0 : index
    %c0_124 = arith.constant 0 : index
    %194 = vector.load %arg4[%c4_122, %c0_123, %c0_124] : memref<10x128x1xf32, #tpu.memory_space<vmem>>, vector<1x128x1xf32>
    %195 = vector.shape_cast %194 : vector<1x128x1xf32> to vector<128x1xf32>
    %196 = vector.broadcast %195 : vector<128x1xf32> to vector<128x128xf32>
    %197 = vector.broadcast %186 : vector<1x128xf32> to vector<128x128xf32>
    %198 = arith.mulf %196, %197 : vector<128x128xf32>
    %199 = arith.addf %193, %198 : vector<128x128xf32>
    %c4_125 = arith.constant 4 : index
    %c0_126 = arith.constant 0 : index
    %c0_127 = arith.constant 0 : index
    %200 = vector.load %arg5[%c4_125, %c0_126, %c0_127] : memref<10x128x1xf32, #tpu.memory_space<vmem>>, vector<1x128x1xf32>
    %201 = vector.shape_cast %200 : vector<1x128x1xf32> to vector<128x1xf32>
    %202 = vector.broadcast %201 : vector<128x1xf32> to vector<128x128xf32>
    %203 = arith.addf %199, %202 : vector<128x128xf32>
    %cst_128 = arith.constant 0.000000e+00 : f32
    %204 = vector.broadcast %cst_128 : f32 to vector<128x128xf32>
    %205 = arith.maximumf %203, %204 : vector<128x128xf32>
    %c4_129 = arith.constant 4 : index
    %c0_130 = arith.constant 0 : index
    %c0_131 = arith.constant 0 : index
    %206 = vector.load %arg6[%c4_129, %c0_130, %c0_131] : memref<10x128x1xf32, #tpu.memory_space<vmem>>, vector<1x128x1xf32>
    %207 = vector.shape_cast %206 : vector<1x128x1xf32> to vector<128x1xf32>
    %208 = vector.broadcast %207 : vector<128x1xf32> to vector<128x128xf32>
    %209 = arith.mulf %208, %205 : vector<128x128xf32>
    %cst_132 = arith.constant dense<0.000000e+00> : vector<128xf32>
    %210 = vector.multi_reduction <add>, %209, %cst_132 [0] : vector<128x128xf32> to vector<128xf32>
    %211 = vector.shape_cast %210 : vector<128xf32> to vector<1x128xf32>
    %c4_133 = arith.constant 4 : index
    %c0_134 = arith.constant 0 : index
    %c0_135 = arith.constant 0 : index
    %212 = vector.load %arg8[%c4_133, %c0_134, %c0_135] : memref<10x2x1xf32, #tpu.memory_space<vmem>>, vector<1x1x1xf32>
    %213 = vector.shape_cast %212 : vector<1x1x1xf32> to vector<1x1xf32>
    %214 = vector.broadcast %213 : vector<1x1xf32> to vector<1x128xf32>
    %215 = arith.addf %211, %214 : vector<1x128xf32>
    %c4_136 = arith.constant 4 : index
    %c0_137 = arith.constant 0 : index
    %c0_138 = arith.constant 0 : index
    %216 = vector.load %arg7[%c4_136, %c0_137, %c0_138] : memref<10x128x1xf32, #tpu.memory_space<vmem>>, vector<1x128x1xf32>
    %217 = vector.shape_cast %216 : vector<1x128x1xf32> to vector<128x1xf32>
    %218 = vector.broadcast %217 : vector<128x1xf32> to vector<128x128xf32>
    %219 = arith.mulf %218, %205 : vector<128x128xf32>
    %cst_139 = arith.constant dense<0.000000e+00> : vector<128xf32>
    %220 = vector.multi_reduction <add>, %219, %cst_139 [0] : vector<128x128xf32> to vector<128xf32>
    %221 = vector.shape_cast %220 : vector<128xf32> to vector<1x128xf32>
    %c4_140 = arith.constant 4 : index
    %c1_141 = arith.constant 1 : index
    %c0_142 = arith.constant 0 : index
    %222 = vector.load %arg8[%c4_140, %c1_141, %c0_142] : memref<10x2x1xf32, #tpu.memory_space<vmem>>, vector<1x1x1xf32>
    %223 = vector.shape_cast %222 : vector<1x1x1xf32> to vector<1x1xf32>
    %224 = vector.broadcast %223 : vector<1x1xf32> to vector<1x128xf32>
    %225 = arith.addf %221, %224 : vector<1x128xf32>
    %cst_143 = arith.constant -5.000000e+00 : f32
    %cst_144 = arith.constant 3.000000e+00 : f32
    %226 = vector.broadcast %cst_143 : f32 to vector<1x128xf32>
    %227 = arith.maximumf %226, %225 : vector<1x128xf32>
    %228 = vector.broadcast %cst_144 : f32 to vector<1x128xf32>
    %229 = arith.minimumf %228, %227 : vector<1x128xf32>
    %230 = math.exp %229 : vector<1x128xf32>
    %231 = arith.mulf %230, %140 : vector<1x128xf32>
    %232 = arith.addf %231, %215 : vector<1x128xf32>
    %c10 = arith.constant 10 : index
    %c0_145 = arith.constant 0 : index
    %233 = vector.load %arg9[%c10, %c0_145] : memref<22x128xf32, #tpu.memory_space<vmem>>, vector<1x128xf32>
    tpu.vector_store %arg9[%c10, %c0_145], %186 {strides = array<i32>} : memref<22x128xf32, #tpu.memory_space<vmem>>, vector<1x128xf32>,
    %c11 = arith.constant 11 : index
    %c0_146 = arith.constant 0 : index
    %234 = vector.load %arg9[%c11, %c0_146] : memref<22x128xf32, #tpu.memory_space<vmem>>, vector<1x128xf32>
    tpu.vector_store %arg9[%c11, %c0_146], %232 {strides = array<i32>} : memref<22x128xf32, #tpu.memory_space<vmem>>, vector<1x128xf32>,
    %c5_147 = arith.constant 5 : index
    %c0_148 = arith.constant 0 : index
    %c0_149 = arith.constant 0 : index
    %235 = vector.load %arg3[%c5_147, %c0_148, %c0_149] : memref<10x128x1xf32, #tpu.memory_space<vmem>>, vector<1x128x1xf32>
    %236 = vector.shape_cast %235 : vector<1x128x1xf32> to vector<128x1xf32>
    %237 = vector.broadcast %236 : vector<128x1xf32> to vector<128x128xf32>
    %238 = vector.broadcast %0 : vector<1x128xf32> to vector<128x128xf32>
    %239 = arith.mulf %237, %238 : vector<128x128xf32>
    %c5_150 = arith.constant 5 : index
    %c0_151 = arith.constant 0 : index
    %c0_152 = arith.constant 0 : index
    %240 = vector.load %arg4[%c5_150, %c0_151, %c0_152] : memref<10x128x1xf32, #tpu.memory_space<vmem>>, vector<1x128x1xf32>
    %241 = vector.shape_cast %240 : vector<1x128x1xf32> to vector<128x1xf32>
    %242 = vector.broadcast %241 : vector<128x1xf32> to vector<128x128xf32>
    %243 = vector.broadcast %232 : vector<1x128xf32> to vector<128x128xf32>
    %244 = arith.mulf %242, %243 : vector<128x128xf32>
    %245 = arith.addf %239, %244 : vector<128x128xf32>
    %c5_153 = arith.constant 5 : index
    %c0_154 = arith.constant 0 : index
    %c0_155 = arith.constant 0 : index
    %246 = vector.load %arg5[%c5_153, %c0_154, %c0_155] : memref<10x128x1xf32, #tpu.memory_space<vmem>>, vector<1x128x1xf32>
    %247 = vector.shape_cast %246 : vector<1x128x1xf32> to vector<128x1xf32>
    %248 = vector.broadcast %247 : vector<128x1xf32> to vector<128x128xf32>
    %249 = arith.addf %245, %248 : vector<128x128xf32>
    %cst_156 = arith.constant 0.000000e+00 : f32
    %250 = vector.broadcast %cst_156 : f32 to vector<128x128xf32>
    %251 = arith.maximumf %249, %250 : vector<128x128xf32>
    %c5_157 = arith.constant 5 : index
    %c0_158 = arith.constant 0 : index
    %c0_159 = arith.constant 0 : index
    %252 = vector.load %arg6[%c5_157, %c0_158, %c0_159] : memref<10x128x1xf32, #tpu.memory_space<vmem>>, vector<1x128x1xf32>
    %253 = vector.shape_cast %252 : vector<1x128x1xf32> to vector<128x1xf32>
    %254 = vector.broadcast %253 : vector<128x1xf32> to vector<128x128xf32>
    %255 = arith.mulf %254, %251 : vector<128x128xf32>
    %cst_160 = arith.constant dense<0.000000e+00> : vector<128xf32>
    %256 = vector.multi_reduction <add>, %255, %cst_160 [0] : vector<128x128xf32> to vector<128xf32>
    %257 = vector.shape_cast %256 : vector<128xf32> to vector<1x128xf32>
    %c5_161 = arith.constant 5 : index
    %c0_162 = arith.constant 0 : index
    %c0_163 = arith.constant 0 : index
    %258 = vector.load %arg8[%c5_161, %c0_162, %c0_163] : memref<10x2x1xf32, #tpu.memory_space<vmem>>, vector<1x1x1xf32>
    %259 = vector.shape_cast %258 : vector<1x1x1xf32> to vector<1x1xf32>
    %260 = vector.broadcast %259 : vector<1x1xf32> to vector<1x128xf32>
    %261 = arith.addf %257, %260 : vector<1x128xf32>
    %c5_164 = arith.constant 5 : index
    %c0_165 = arith.constant 0 : index
    %c0_166 = arith.constant 0 : index
    %262 = vector.load %arg7[%c5_164, %c0_165, %c0_166] : memref<10x128x1xf32, #tpu.memory_space<vmem>>, vector<1x128x1xf32>
    %263 = vector.shape_cast %262 : vector<1x128x1xf32> to vector<128x1xf32>
    %264 = vector.broadcast %263 : vector<128x1xf32> to vector<128x128xf32>
    %265 = arith.mulf %264, %251 : vector<128x128xf32>
    %cst_167 = arith.constant dense<0.000000e+00> : vector<128xf32>
    %266 = vector.multi_reduction <add>, %265, %cst_167 [0] : vector<128x128xf32> to vector<128xf32>
    %267 = vector.shape_cast %266 : vector<128xf32> to vector<1x128xf32>
    %c5_168 = arith.constant 5 : index
    %c1_169 = arith.constant 1 : index
    %c0_170 = arith.constant 0 : index
    %268 = vector.load %arg8[%c5_168, %c1_169, %c0_170] : memref<10x2x1xf32, #tpu.memory_space<vmem>>, vector<1x1x1xf32>
    %269 = vector.shape_cast %268 : vector<1x1x1xf32> to vector<1x1xf32>
    %270 = vector.broadcast %269 : vector<1x1xf32> to vector<1x128xf32>
    %271 = arith.addf %267, %270 : vector<1x128xf32>
    %cst_171 = arith.constant -5.000000e+00 : f32
    %cst_172 = arith.constant 3.000000e+00 : f32
    %272 = vector.broadcast %cst_171 : f32 to vector<1x128xf32>
    %273 = arith.maximumf %272, %271 : vector<1x128xf32>
    %274 = vector.broadcast %cst_172 : f32 to vector<1x128xf32>
    %275 = arith.minimumf %274, %273 : vector<1x128xf32>
    %276 = math.exp %275 : vector<1x128xf32>
    %277 = arith.mulf %276, %186 : vector<1x128xf32>
    %278 = arith.addf %277, %261 : vector<1x128xf32>
    %c12 = arith.constant 12 : index
    %c0_173 = arith.constant 0 : index
    %279 = vector.load %arg9[%c12, %c0_173] : memref<22x128xf32, #tpu.memory_space<vmem>>, vector<1x128xf32>
    tpu.vector_store %arg9[%c12, %c0_173], %232 {strides = array<i32>} : memref<22x128xf32, #tpu.memory_space<vmem>>, vector<1x128xf32>,
    %c13 = arith.constant 13 : index
    %c0_174 = arith.constant 0 : index
    %280 = vector.load %arg9[%c13, %c0_174] : memref<22x128xf32, #tpu.memory_space<vmem>>, vector<1x128xf32>
    tpu.vector_store %arg9[%c13, %c0_174], %278 {strides = array<i32>} : memref<22x128xf32, #tpu.memory_space<vmem>>, vector<1x128xf32>,
    %c6_175 = arith.constant 6 : index
    %c0_176 = arith.constant 0 : index
    %c0_177 = arith.constant 0 : index
    %281 = vector.load %arg3[%c6_175, %c0_176, %c0_177] : memref<10x128x1xf32, #tpu.memory_space<vmem>>, vector<1x128x1xf32>
    %282 = vector.shape_cast %281 : vector<1x128x1xf32> to vector<128x1xf32>
    %283 = vector.broadcast %282 : vector<128x1xf32> to vector<128x128xf32>
    %284 = vector.broadcast %0 : vector<1x128xf32> to vector<128x128xf32>
    %285 = arith.mulf %283, %284 : vector<128x128xf32>
    %c6_178 = arith.constant 6 : index
    %c0_179 = arith.constant 0 : index
    %c0_180 = arith.constant 0 : index
    %286 = vector.load %arg4[%c6_178, %c0_179, %c0_180] : memref<10x128x1xf32, #tpu.memory_space<vmem>>, vector<1x128x1xf32>
    %287 = vector.shape_cast %286 : vector<1x128x1xf32> to vector<128x1xf32>
    %288 = vector.broadcast %287 : vector<128x1xf32> to vector<128x128xf32>
    %289 = vector.broadcast %278 : vector<1x128xf32> to vector<128x128xf32>
    %290 = arith.mulf %288, %289 : vector<128x128xf32>
    %291 = arith.addf %285, %290 : vector<128x128xf32>
    %c6_181 = arith.constant 6 : index
    %c0_182 = arith.constant 0 : index
    %c0_183 = arith.constant 0 : index
    %292 = vector.load %arg5[%c6_181, %c0_182, %c0_183] : memref<10x128x1xf32, #tpu.memory_space<vmem>>, vector<1x128x1xf32>
    %293 = vector.shape_cast %292 : vector<1x128x1xf32> to vector<128x1xf32>
    %294 = vector.broadcast %293 : vector<128x1xf32> to vector<128x128xf32>
    %295 = arith.addf %291, %294 : vector<128x128xf32>
    %cst_184 = arith.constant 0.000000e+00 : f32
    %296 = vector.broadcast %cst_184 : f32 to vector<128x128xf32>
    %297 = arith.maximumf %295, %296 : vector<128x128xf32>
    %c6_185 = arith.constant 6 : index
    %c0_186 = arith.constant 0 : index
    %c0_187 = arith.constant 0 : index
    %298 = vector.load %arg6[%c6_185, %c0_186, %c0_187] : memref<10x128x1xf32, #tpu.memory_space<vmem>>, vector<1x128x1xf32>
    %299 = vector.shape_cast %298 : vector<1x128x1xf32> to vector<128x1xf32>
    %300 = vector.broadcast %299 : vector<128x1xf32> to vector<128x128xf32>
    %301 = arith.mulf %300, %297 : vector<128x128xf32>
    %cst_188 = arith.constant dense<0.000000e+00> : vector<128xf32>
    %302 = vector.multi_reduction <add>, %301, %cst_188 [0] : vector<128x128xf32> to vector<128xf32>
    %303 = vector.shape_cast %302 : vector<128xf32> to vector<1x128xf32>
    %c6_189 = arith.constant 6 : index
    %c0_190 = arith.constant 0 : index
    %c0_191 = arith.constant 0 : index
    %304 = vector.load %arg8[%c6_189, %c0_190, %c0_191] : memref<10x2x1xf32, #tpu.memory_space<vmem>>, vector<1x1x1xf32>
    %305 = vector.shape_cast %304 : vector<1x1x1xf32> to vector<1x1xf32>
    %306 = vector.broadcast %305 : vector<1x1xf32> to vector<1x128xf32>
    %307 = arith.addf %303, %306 : vector<1x128xf32>
    %c6_192 = arith.constant 6 : index
    %c0_193 = arith.constant 0 : index
    %c0_194 = arith.constant 0 : index
    %308 = vector.load %arg7[%c6_192, %c0_193, %c0_194] : memref<10x128x1xf32, #tpu.memory_space<vmem>>, vector<1x128x1xf32>
    %309 = vector.shape_cast %308 : vector<1x128x1xf32> to vector<128x1xf32>
    %310 = vector.broadcast %309 : vector<128x1xf32> to vector<128x128xf32>
    %311 = arith.mulf %310, %297 : vector<128x128xf32>
    %cst_195 = arith.constant dense<0.000000e+00> : vector<128xf32>
    %312 = vector.multi_reduction <add>, %311, %cst_195 [0] : vector<128x128xf32> to vector<128xf32>
    %313 = vector.shape_cast %312 : vector<128xf32> to vector<1x128xf32>
    %c6_196 = arith.constant 6 : index
    %c1_197 = arith.constant 1 : index
    %c0_198 = arith.constant 0 : index
    %314 = vector.load %arg8[%c6_196, %c1_197, %c0_198] : memref<10x2x1xf32, #tpu.memory_space<vmem>>, vector<1x1x1xf32>
    %315 = vector.shape_cast %314 : vector<1x1x1xf32> to vector<1x1xf32>
    %316 = vector.broadcast %315 : vector<1x1xf32> to vector<1x128xf32>
    %317 = arith.addf %313, %316 : vector<1x128xf32>
    %cst_199 = arith.constant -5.000000e+00 : f32
    %cst_200 = arith.constant 3.000000e+00 : f32
    %318 = vector.broadcast %cst_199 : f32 to vector<1x128xf32>
    %319 = arith.maximumf %318, %317 : vector<1x128xf32>
    %320 = vector.broadcast %cst_200 : f32 to vector<1x128xf32>
    %321 = arith.minimumf %320, %319 : vector<1x128xf32>
    %322 = math.exp %321 : vector<1x128xf32>
    %323 = arith.mulf %322, %232 : vector<1x128xf32>
    %324 = arith.addf %323, %307 : vector<1x128xf32>
    %c14 = arith.constant 14 : index
    %c0_201 = arith.constant 0 : index
    %325 = vector.load %arg9[%c14, %c0_201] : memref<22x128xf32, #tpu.memory_space<vmem>>, vector<1x128xf32>
    tpu.vector_store %arg9[%c14, %c0_201], %278 {strides = array<i32>} : memref<22x128xf32, #tpu.memory_space<vmem>>, vector<1x128xf32>,
    %c15 = arith.constant 15 : index
    %c0_202 = arith.constant 0 : index
    %326 = vector.load %arg9[%c15, %c0_202] : memref<22x128xf32, #tpu.memory_space<vmem>>, vector<1x128xf32>
    tpu.vector_store %arg9[%c15, %c0_202], %324 {strides = array<i32>} : memref<22x128xf32, #tpu.memory_space<vmem>>, vector<1x128xf32>,
    %c7_203 = arith.constant 7 : index
    %c0_204 = arith.constant 0 : index
    %c0_205 = arith.constant 0 : index
    %327 = vector.load %arg3[%c7_203, %c0_204, %c0_205] : memref<10x128x1xf32, #tpu.memory_space<vmem>>, vector<1x128x1xf32>
    %328 = vector.shape_cast %327 : vector<1x128x1xf32> to vector<128x1xf32>
    %329 = vector.broadcast %328 : vector<128x1xf32> to vector<128x128xf32>
    %330 = vector.broadcast %0 : vector<1x128xf32> to vector<128x128xf32>
    %331 = arith.mulf %329, %330 : vector<128x128xf32>
    %c7_206 = arith.constant 7 : index
    %c0_207 = arith.constant 0 : index
    %c0_208 = arith.constant 0 : index
    %332 = vector.load %arg4[%c7_206, %c0_207, %c0_208] : memref<10x128x1xf32, #tpu.memory_space<vmem>>, vector<1x128x1xf32>
    %333 = vector.shape_cast %332 : vector<1x128x1xf32> to vector<128x1xf32>
    %334 = vector.broadcast %333 : vector<128x1xf32> to vector<128x128xf32>
    %335 = vector.broadcast %324 : vector<1x128xf32> to vector<128x128xf32>
    %336 = arith.mulf %334, %335 : vector<128x128xf32>
    %337 = arith.addf %331, %336 : vector<128x128xf32>
    %c7_209 = arith.constant 7 : index
    %c0_210 = arith.constant 0 : index
    %c0_211 = arith.constant 0 : index
    %338 = vector.load %arg5[%c7_209, %c0_210, %c0_211] : memref<10x128x1xf32, #tpu.memory_space<vmem>>, vector<1x128x1xf32>
    %339 = vector.shape_cast %338 : vector<1x128x1xf32> to vector<128x1xf32>
    %340 = vector.broadcast %339 : vector<128x1xf32> to vector<128x128xf32>
    %341 = arith.addf %337, %340 : vector<128x128xf32>
    %cst_212 = arith.constant 0.000000e+00 : f32
    %342 = vector.broadcast %cst_212 : f32 to vector<128x128xf32>
    %343 = arith.maximumf %341, %342 : vector<128x128xf32>
    %c7_213 = arith.constant 7 : index
    %c0_214 = arith.constant 0 : index
    %c0_215 = arith.constant 0 : index
    %344 = vector.load %arg6[%c7_213, %c0_214, %c0_215] : memref<10x128x1xf32, #tpu.memory_space<vmem>>, vector<1x128x1xf32>
    %345 = vector.shape_cast %344 : vector<1x128x1xf32> to vector<128x1xf32>
    %346 = vector.broadcast %345 : vector<128x1xf32> to vector<128x128xf32>
    %347 = arith.mulf %346, %343 : vector<128x128xf32>
    %cst_216 = arith.constant dense<0.000000e+00> : vector<128xf32>
    %348 = vector.multi_reduction <add>, %347, %cst_216 [0] : vector<128x128xf32> to vector<128xf32>
    %349 = vector.shape_cast %348 : vector<128xf32> to vector<1x128xf32>
    %c7_217 = arith.constant 7 : index
    %c0_218 = arith.constant 0 : index
    %c0_219 = arith.constant 0 : index
    %350 = vector.load %arg8[%c7_217, %c0_218, %c0_219] : memref<10x2x1xf32, #tpu.memory_space<vmem>>, vector<1x1x1xf32>
    %351 = vector.shape_cast %350 : vector<1x1x1xf32> to vector<1x1xf32>
    %352 = vector.broadcast %351 : vector<1x1xf32> to vector<1x128xf32>
    %353 = arith.addf %349, %352 : vector<1x128xf32>
    %c7_220 = arith.constant 7 : index
    %c0_221 = arith.constant 0 : index
    %c0_222 = arith.constant 0 : index
    %354 = vector.load %arg7[%c7_220, %c0_221, %c0_222] : memref<10x128x1xf32, #tpu.memory_space<vmem>>, vector<1x128x1xf32>
    %355 = vector.shape_cast %354 : vector<1x128x1xf32> to vector<128x1xf32>
    %356 = vector.broadcast %355 : vector<128x1xf32> to vector<128x128xf32>
    %357 = arith.mulf %356, %343 : vector<128x128xf32>
    %cst_223 = arith.constant dense<0.000000e+00> : vector<128xf32>
    %358 = vector.multi_reduction <add>, %357, %cst_223 [0] : vector<128x128xf32> to vector<128xf32>
    %359 = vector.shape_cast %358 : vector<128xf32> to vector<1x128xf32>
    %c7_224 = arith.constant 7 : index
    %c1_225 = arith.constant 1 : index
    %c0_226 = arith.constant 0 : index
    %360 = vector.load %arg8[%c7_224, %c1_225, %c0_226] : memref<10x2x1xf32, #tpu.memory_space<vmem>>, vector<1x1x1xf32>
    %361 = vector.shape_cast %360 : vector<1x1x1xf32> to vector<1x1xf32>
    %362 = vector.broadcast %361 : vector<1x1xf32> to vector<1x128xf32>
    %363 = arith.addf %359, %362 : vector<1x128xf32>
    %cst_227 = arith.constant -5.000000e+00 : f32
    %cst_228 = arith.constant 3.000000e+00 : f32
    %364 = vector.broadcast %cst_227 : f32 to vector<1x128xf32>
    %365 = arith.maximumf %364, %363 : vector<1x128xf32>
    %366 = vector.broadcast %cst_228 : f32 to vector<1x128xf32>
    %367 = arith.minimumf %366, %365 : vector<1x128xf32>
    %368 = math.exp %367 : vector<1x128xf32>
    %369 = arith.mulf %368, %278 : vector<1x128xf32>
    %370 = arith.addf %369, %353 : vector<1x128xf32>
    %c16 = arith.constant 16 : index
    %c0_229 = arith.constant 0 : index
    %371 = vector.load %arg9[%c16, %c0_229] : memref<22x128xf32, #tpu.memory_space<vmem>>, vector<1x128xf32>
    tpu.vector_store %arg9[%c16, %c0_229], %324 {strides = array<i32>} : memref<22x128xf32, #tpu.memory_space<vmem>>, vector<1x128xf32>,
    %c17 = arith.constant 17 : index
    %c0_230 = arith.constant 0 : index
    %372 = vector.load %arg9[%c17, %c0_230] : memref<22x128xf32, #tpu.memory_space<vmem>>, vector<1x128xf32>
    tpu.vector_store %arg9[%c17, %c0_230], %370 {strides = array<i32>} : memref<22x128xf32, #tpu.memory_space<vmem>>, vector<1x128xf32>,
    %c8_231 = arith.constant 8 : index
    %c0_232 = arith.constant 0 : index
    %c0_233 = arith.constant 0 : index
    %373 = vector.load %arg3[%c8_231, %c0_232, %c0_233] : memref<10x128x1xf32, #tpu.memory_space<vmem>>, vector<1x128x1xf32>
    %374 = vector.shape_cast %373 : vector<1x128x1xf32> to vector<128x1xf32>
    %375 = vector.broadcast %374 : vector<128x1xf32> to vector<128x128xf32>
    %376 = vector.broadcast %0 : vector<1x128xf32> to vector<128x128xf32>
    %377 = arith.mulf %375, %376 : vector<128x128xf32>
    %c8_234 = arith.constant 8 : index
    %c0_235 = arith.constant 0 : index
    %c0_236 = arith.constant 0 : index
    %378 = vector.load %arg4[%c8_234, %c0_235, %c0_236] : memref<10x128x1xf32, #tpu.memory_space<vmem>>, vector<1x128x1xf32>
    %379 = vector.shape_cast %378 : vector<1x128x1xf32> to vector<128x1xf32>
    %380 = vector.broadcast %379 : vector<128x1xf32> to vector<128x128xf32>
    %381 = vector.broadcast %370 : vector<1x128xf32> to vector<128x128xf32>
    %382 = arith.mulf %380, %381 : vector<128x128xf32>
    %383 = arith.addf %377, %382 : vector<128x128xf32>
    %c8_237 = arith.constant 8 : index
    %c0_238 = arith.constant 0 : index
    %c0_239 = arith.constant 0 : index
    %384 = vector.load %arg5[%c8_237, %c0_238, %c0_239] : memref<10x128x1xf32, #tpu.memory_space<vmem>>, vector<1x128x1xf32>
    %385 = vector.shape_cast %384 : vector<1x128x1xf32> to vector<128x1xf32>
    %386 = vector.broadcast %385 : vector<128x1xf32> to vector<128x128xf32>
    %387 = arith.addf %383, %386 : vector<128x128xf32>
    %cst_240 = arith.constant 0.000000e+00 : f32
    %388 = vector.broadcast %cst_240 : f32 to vector<128x128xf32>
    %389 = arith.maximumf %387, %388 : vector<128x128xf32>
    %c8_241 = arith.constant 8 : index
    %c0_242 = arith.constant 0 : index
    %c0_243 = arith.constant 0 : index
    %390 = vector.load %arg6[%c8_241, %c0_242, %c0_243] : memref<10x128x1xf32, #tpu.memory_space<vmem>>, vector<1x128x1xf32>
    %391 = vector.shape_cast %390 : vector<1x128x1xf32> to vector<128x1xf32>
    %392 = vector.broadcast %391 : vector<128x1xf32> to vector<128x128xf32>
    %393 = arith.mulf %392, %389 : vector<128x128xf32>
    %cst_244 = arith.constant dense<0.000000e+00> : vector<128xf32>
    %394 = vector.multi_reduction <add>, %393, %cst_244 [0] : vector<128x128xf32> to vector<128xf32>
    %395 = vector.shape_cast %394 : vector<128xf32> to vector<1x128xf32>
    %c8_245 = arith.constant 8 : index
    %c0_246 = arith.constant 0 : index
    %c0_247 = arith.constant 0 : index
    %396 = vector.load %arg8[%c8_245, %c0_246, %c0_247] : memref<10x2x1xf32, #tpu.memory_space<vmem>>, vector<1x1x1xf32>
    %397 = vector.shape_cast %396 : vector<1x1x1xf32> to vector<1x1xf32>
    %398 = vector.broadcast %397 : vector<1x1xf32> to vector<1x128xf32>
    %399 = arith.addf %395, %398 : vector<1x128xf32>
    %c8_248 = arith.constant 8 : index
    %c0_249 = arith.constant 0 : index
    %c0_250 = arith.constant 0 : index
    %400 = vector.load %arg7[%c8_248, %c0_249, %c0_250] : memref<10x128x1xf32, #tpu.memory_space<vmem>>, vector<1x128x1xf32>
    %401 = vector.shape_cast %400 : vector<1x128x1xf32> to vector<128x1xf32>
    %402 = vector.broadcast %401 : vector<128x1xf32> to vector<128x128xf32>
    %403 = arith.mulf %402, %389 : vector<128x128xf32>
    %cst_251 = arith.constant dense<0.000000e+00> : vector<128xf32>
    %404 = vector.multi_reduction <add>, %403, %cst_251 [0] : vector<128x128xf32> to vector<128xf32>
    %405 = vector.shape_cast %404 : vector<128xf32> to vector<1x128xf32>
    %c8_252 = arith.constant 8 : index
    %c1_253 = arith.constant 1 : index
    %c0_254 = arith.constant 0 : index
    %406 = vector.load %arg8[%c8_252, %c1_253, %c0_254] : memref<10x2x1xf32, #tpu.memory_space<vmem>>, vector<1x1x1xf32>
    %407 = vector.shape_cast %406 : vector<1x1x1xf32> to vector<1x1xf32>
    %408 = vector.broadcast %407 : vector<1x1xf32> to vector<1x128xf32>
    %409 = arith.addf %405, %408 : vector<1x128xf32>
    %cst_255 = arith.constant -5.000000e+00 : f32
    %cst_256 = arith.constant 3.000000e+00 : f32
    %410 = vector.broadcast %cst_255 : f32 to vector<1x128xf32>
    %411 = arith.maximumf %410, %409 : vector<1x128xf32>
    %412 = vector.broadcast %cst_256 : f32 to vector<1x128xf32>
    %413 = arith.minimumf %412, %411 : vector<1x128xf32>
    %414 = math.exp %413 : vector<1x128xf32>
    %415 = arith.mulf %414, %324 : vector<1x128xf32>
    %416 = arith.addf %415, %399 : vector<1x128xf32>
    %c18 = arith.constant 18 : index
    %c0_257 = arith.constant 0 : index
    %417 = vector.load %arg9[%c18, %c0_257] : memref<22x128xf32, #tpu.memory_space<vmem>>, vector<1x128xf32>
    tpu.vector_store %arg9[%c18, %c0_257], %370 {strides = array<i32>} : memref<22x128xf32, #tpu.memory_space<vmem>>, vector<1x128xf32>,
    %c19 = arith.constant 19 : index
    %c0_258 = arith.constant 0 : index
    %418 = vector.load %arg9[%c19, %c0_258] : memref<22x128xf32, #tpu.memory_space<vmem>>, vector<1x128xf32>
    tpu.vector_store %arg9[%c19, %c0_258], %416 {strides = array<i32>} : memref<22x128xf32, #tpu.memory_space<vmem>>, vector<1x128xf32>,
    %c9_259 = arith.constant 9 : index
    %c0_260 = arith.constant 0 : index
    %c0_261 = arith.constant 0 : index
    %419 = vector.load %arg3[%c9_259, %c0_260, %c0_261] : memref<10x128x1xf32, #tpu.memory_space<vmem>>, vector<1x128x1xf32>
    %420 = vector.shape_cast %419 : vector<1x128x1xf32> to vector<128x1xf32>
    %421 = vector.broadcast %420 : vector<128x1xf32> to vector<128x128xf32>
    %422 = vector.broadcast %0 : vector<1x128xf32> to vector<128x128xf32>
    %423 = arith.mulf %421, %422 : vector<128x128xf32>
    %c9_262 = arith.constant 9 : index
    %c0_263 = arith.constant 0 : index
    %c0_264 = arith.constant 0 : index
    %424 = vector.load %arg4[%c9_262, %c0_263, %c0_264] : memref<10x128x1xf32, #tpu.memory_space<vmem>>, vector<1x128x1xf32>
    %425 = vector.shape_cast %424 : vector<1x128x1xf32> to vector<128x1xf32>
    %426 = vector.broadcast %425 : vector<128x1xf32> to vector<128x128xf32>
    %427 = vector.broadcast %416 : vector<1x128xf32> to vector<128x128xf32>
    %428 = arith.mulf %426, %427 : vector<128x128xf32>
    %429 = arith.addf %423, %428 : vector<128x128xf32>
    %c9_265 = arith.constant 9 : index
    %c0_266 = arith.constant 0 : index
    %c0_267 = arith.constant 0 : index
    %430 = vector.load %arg5[%c9_265, %c0_266, %c0_267] : memref<10x128x1xf32, #tpu.memory_space<vmem>>, vector<1x128x1xf32>
    %431 = vector.shape_cast %430 : vector<1x128x1xf32> to vector<128x1xf32>
    %432 = vector.broadcast %431 : vector<128x1xf32> to vector<128x128xf32>
    %433 = arith.addf %429, %432 : vector<128x128xf32>
    %cst_268 = arith.constant 0.000000e+00 : f32
    %434 = vector.broadcast %cst_268 : f32 to vector<128x128xf32>
    %435 = arith.maximumf %433, %434 : vector<128x128xf32>
    %c9_269 = arith.constant 9 : index
    %c0_270 = arith.constant 0 : index
    %c0_271 = arith.constant 0 : index
    %436 = vector.load %arg6[%c9_269, %c0_270, %c0_271] : memref<10x128x1xf32, #tpu.memory_space<vmem>>, vector<1x128x1xf32>
    %437 = vector.shape_cast %436 : vector<1x128x1xf32> to vector<128x1xf32>
    %438 = vector.broadcast %437 : vector<128x1xf32> to vector<128x128xf32>
    %439 = arith.mulf %438, %435 : vector<128x128xf32>
    %cst_272 = arith.constant dense<0.000000e+00> : vector<128xf32>
    %440 = vector.multi_reduction <add>, %439, %cst_272 [0] : vector<128x128xf32> to vector<128xf32>
    %441 = vector.shape_cast %440 : vector<128xf32> to vector<1x128xf32>
    %c9_273 = arith.constant 9 : index
    %c0_274 = arith.constant 0 : index
    %c0_275 = arith.constant 0 : index
    %442 = vector.load %arg8[%c9_273, %c0_274, %c0_275] : memref<10x2x1xf32, #tpu.memory_space<vmem>>, vector<1x1x1xf32>
    %443 = vector.shape_cast %442 : vector<1x1x1xf32> to vector<1x1xf32>
    %444 = vector.broadcast %443 : vector<1x1xf32> to vector<1x128xf32>
    %445 = arith.addf %441, %444 : vector<1x128xf32>
    %c9_276 = arith.constant 9 : index
    %c0_277 = arith.constant 0 : index
    %c0_278 = arith.constant 0 : index
    %446 = vector.load %arg7[%c9_276, %c0_277, %c0_278] : memref<10x128x1xf32, #tpu.memory_space<vmem>>, vector<1x128x1xf32>
    %447 = vector.shape_cast %446 : vector<1x128x1xf32> to vector<128x1xf32>
    %448 = vector.broadcast %447 : vector<128x1xf32> to vector<128x128xf32>
    %449 = arith.mulf %448, %435 : vector<128x128xf32>
    %cst_279 = arith.constant dense<0.000000e+00> : vector<128xf32>
    %450 = vector.multi_reduction <add>, %449, %cst_279 [0] : vector<128x128xf32> to vector<128xf32>
    %451 = vector.shape_cast %450 : vector<128xf32> to vector<1x128xf32>
    %c9_280 = arith.constant 9 : index
    %c1_281 = arith.constant 1 : index
    %c0_282 = arith.constant 0 : index
    %452 = vector.load %arg8[%c9_280, %c1_281, %c0_282] : memref<10x2x1xf32, #tpu.memory_space<vmem>>, vector<1x1x1xf32>
    %453 = vector.shape_cast %452 : vector<1x1x1xf32> to vector<1x1xf32>
    %454 = vector.broadcast %453 : vector<1x1xf32> to vector<1x128xf32>
    %455 = arith.addf %451, %454 : vector<1x128xf32>
    %cst_283 = arith.constant -5.000000e+00 : f32
    %cst_284 = arith.constant 3.000000e+00 : f32
    %456 = vector.broadcast %cst_283 : f32 to vector<1x128xf32>
    %457 = arith.maximumf %456, %455 : vector<1x128xf32>
    %458 = vector.broadcast %cst_284 : f32 to vector<1x128xf32>
    %459 = arith.minimumf %458, %457 : vector<1x128xf32>
    %460 = math.exp %459 : vector<1x128xf32>
    %461 = arith.mulf %460, %370 : vector<1x128xf32>
    %462 = arith.addf %461, %445 : vector<1x128xf32>
    %c20 = arith.constant 20 : index
    %c0_285 = arith.constant 0 : index
    %463 = vector.load %arg9[%c20, %c0_285] : memref<22x128xf32, #tpu.memory_space<vmem>>, vector<1x128xf32>
    tpu.vector_store %arg9[%c20, %c0_285], %416 {strides = array<i32>} : memref<22x128xf32, #tpu.memory_space<vmem>>, vector<1x128xf32>,
    %c21 = arith.constant 21 : index
    %c0_286 = arith.constant 0 : index
    %464 = vector.load %arg9[%c21, %c0_286] : memref<22x128xf32, #tpu.memory_space<vmem>>, vector<1x128xf32>
    tpu.vector_store %arg9[%c21, %c0_286], %462 {strides = array<i32>} : memref<22x128xf32, #tpu.memory_space<vmem>>, vector<1x128xf32>,
    return
  }
  func.func @transform_0(%arg0: i32) -> (i32, i32) {
    %c0_i32 = arith.constant 0 : i32
    %c0_i32_0 = arith.constant 0 : i32
    return %c0_i32, %arg0 : i32, i32
  }
  func.func @transform_1(%arg0: i32) -> (i32, i32) {
    %c0_i32 = arith.constant 0 : i32
    %c0_i32_0 = arith.constant 0 : i32
    return %c0_i32, %arg0 : i32, i32
  }
  func.func @transform_2(%arg0: i32) -> (i32, i32, i32) {
    %c0_i32 = arith.constant 0 : i32
    %c0_i32_0 = arith.constant 0 : i32
    %c0_i32_1 = arith.constant 0 : i32
    %c0_i32_2 = arith.constant 0 : i32
    return %c0_i32, %c0_i32_0, %c0_i32_1 : i32, i32, i32
  }
  func.func @transform_3(%arg0: i32) -> (i32, i32, i32) {
    %c0_i32 = arith.constant 0 : i32
    %c0_i32_0 = arith.constant 0 : i32
    %c0_i32_1 = arith.constant 0 : i32
    %c0_i32_2 = arith.constant 0 : i32
    return %c0_i32, %c0_i32_0, %c0_i32_1 : i32, i32, i32
  }
  func.func @transform_4(%arg0: i32) -> (i32, i32, i32) {
    %c0_i32 = arith.constant 0 : i32
    %c0_i32_0 = arith.constant 0 : i32
    %c0_i32_1 = arith.constant 0 : i32
    %c0_i32_2 = arith.constant 0 : i32
    return %c0_i32, %c0_i32_0, %c0_i32_1 : i32, i32, i32
  }
  func.func @transform_5(%arg0: i32) -> (i32, i32, i32) {
    %c0_i32 = arith.constant 0 : i32
    %c0_i32_0 = arith.constant 0 : i32
    %c0_i32_1 = arith.constant 0 : i32
    %c0_i32_2 = arith.constant 0 : i32
    return %c0_i32, %c0_i32_0, %c0_i32_1 : i32, i32, i32
  }
  func.func @transform_6(%arg0: i32) -> (i32, i32, i32) {
    %c0_i32 = arith.constant 0 : i32
    %c0_i32_0 = arith.constant 0 : i32
    %c0_i32_1 = arith.constant 0 : i32
    %c0_i32_2 = arith.constant 0 : i32
    return %c0_i32, %c0_i32_0, %c0_i32_1 : i32, i32, i32
  }
  func.func @transform_7(%arg0: i32) -> (i32, i32, i32) {
    %c0_i32 = arith.constant 0 : i32
    %c0_i32_0 = arith.constant 0 : i32
    %c0_i32_1 = arith.constant 0 : i32
    %c0_i32_2 = arith.constant 0 : i32
    return %c0_i32, %c0_i32_0, %c0_i32_1 : i32, i32, i32
  }
  func.func @transform_8(%arg0: i32) -> (i32, i32) {
    %c0_i32 = arith.constant 0 : i32
    %c0_i32_0 = arith.constant 0 : i32
    return %c0_i32, %arg0 : i32, i32
  }
}

</mosaic_0001>

<llo_original>
// kernel: tpu_custom_call.1
$region0: #{tpu_custom_call.1}
  #allocation0 [shape = 'u32[]', space=smem, size = 0x4, offset = 0x4, fixed_abs, tag = 'smem constant byte address 0x4 - core index']
  #allocation1 [shape = 'u32[144,128]{1,0:T(1,128)}', space=vmem, size = 0x12000, scoped, tag = 'internal scratch']
  %s0 = inlined_call_operand.vmem [shape: f32[1,256], index: 0, kind: input, shape index: {}]
  %s1 = inlined_call_operand.vmem [shape: f32[2,256], index: 1, kind: input, shape index: {}]
  %s2 = inlined_call_operand.vmem [shape: f32[10,128,1], index: 2, kind: input, shape index: {}]
  %s3 = inlined_call_operand.vmem [shape: f32[10,128,1], index: 3, kind: input, shape index: {}]
  %s4 = inlined_call_operand.vmem [shape: f32[10,128,1], index: 4, kind: input, shape index: {}]
  %s5 = inlined_call_operand.vmem [shape: f32[10,128,1], index: 5, kind: input, shape index: {}]
  %s6 = inlined_call_operand.vmem [shape: f32[10,128,1], index: 6, kind: input, shape index: {}]
  %s7 = inlined_call_operand.vmem [shape: f32[10,2,1], index: 7, kind: input, shape index: {}]
  %s8 = inlined_call_operand.hbm [shape: f32[22,256], index: 8, kind: output, shape index: {}]
  %s9 = sld [smem:[#allocation0]]
  $region65: #{tpu_custom_call.1} parent=0
    _
  %s11 = ssub.s32 1, %s9
  %s12 = scalar_select 0, %s11, %s9
  $region1: #{tpu_custom_call.1} parent=0
    #allocation2 [shape = 'u8[24576]{0}', space=vmem, size = 0x6000, scoped, tag = 'output window, operand 0']
    #allocation3 [shape = 's32[2]{0}', space=sflag, size = 0x8, scoped, tag = 'scoped memory for tpu_custom_call.1']
    %13 = vsyncpa [#allocation3], 0
    %s14 = scalar_lea.sflag [#allocation3], 1
    %15 = vsyncpa %s14, 0
    loop: start=0, step=1, limit=4
    $region2: #{tpu_custom_call.1} parent=1 // loop_pre_header
      _
    $region3: #{tpu_custom_call.1} parent=1 // loop_header
      %s17 = sphi 0, %s21
      %p18 = scmp.ge.s32.totalorder %s17, 4
      %s27 = sphi 0, %s29
      %s30 = sphi 0, %s27
      %s31 = sphi 0, %s30
      %s47 = sphi 0, %s31
      %s53 = sphi 0, %s55
      %s56 = sphi 0, %s53
      %s57 = sphi 0, %s56
      %s73 = sphi 0, %s57
      %s77 = sphi 0, %s77
      %s79 = sphi 0, %s77
      %s80 = sphi 0, %s79
      %s94 = sphi 0, %s80
      %s98 = sphi 0, %s98
      %s100 = sphi 0, %s98
      %s101 = sphi 0, %s100
      %s115 = sphi 0, %s101
      %s119 = sphi 0, %s119
      %s121 = sphi 0, %s119
      %s122 = sphi 0, %s121
      %s136 = sphi 0, %s122
      %s140 = sphi 0, %s140
      %s142 = sphi 0, %s140
      %s143 = sphi 0, %s142
      %s157 = sphi 0, %s143
      %s161 = sphi 0, %s161
      %s163 = sphi 0, %s161
      %s164 = sphi 0, %s163
      %s178 = sphi 0, %s164
      %s182 = sphi 0, %s182
      %s184 = sphi 0, %s182
      %s185 = sphi 0, %s184
      %s199 = sphi 0, %s185
      %s205 = sphi 0, %s207
      %s208 = sphi 0, %s205
      %s209 = sphi 0, %s208
      %s225 = sphi 0, %s209
    $region4: #{tpu_custom_call.1} parent=1 // loop_header_branch
      %20 = sbr.rel (%p18) target = $region8
    $region5: #{tpu_custom_call.1} parent=1 // loop_body
      %s22 = ssub.s32 %s17, 1
      %s23 = ssub.s32 %s17, 2
      %s24 = sadd.s32 %s17, 1
      %s25 = ssub.s32 %s17, %s24
      %p26 = scmp.eq.s32.totalorder %s25, 0
      %s28 = sadd.s32 %s27, 1
      %s29 = scalar_select %p26, %s27, %s28
      %p32 = pneg %p26
      %p33 = scmp.eq.s32.totalorder %s17, 1
      %p34 = por %p32, %p33
      %p35 = scmp.ne.s32.totalorder %s27, %s30
      %p36 = scmp.eq.s32.totalorder %s17, 0
      %p37 = por %p35, %p36
      %p38 = scmp.ne.s32.totalorder %s27, %s30
      %p39 = scmp.eq.s32.totalorder %s22, 1
      %p40 = por %p38, %p39
      %p41 = scmp.ne.s32.totalorder %s30, %s31
      %p42 = scmp.eq.s32.totalorder %s22, 0
      %p43 = por %p41, %p42
      %p44 = scmp.ne.s32.totalorder %s30, %s31
      %p45 = scmp.eq.s32.totalorder %s23, 1
      %p46 = por %p44, %p45
      %p48 = scmp.ne.s32.totalorder %s31, %s47
      %p49 = scmp.eq.s32.totalorder %s23, 0
      %p50 = por %p48, %p49
      %s51 = ssub.s32 %s17, %s24
      %p52 = scmp.eq.s32.totalorder %s51, 0
      %s54 = sadd.s32 %s53, 1
      %s55 = scalar_select %p52, %s53, %s54
      %p58 = pneg %p52
      %p59 = scmp.eq.s32.totalorder %s17, 1
      %p60 = por %p58, %p59
      %p61 = scmp.ne.s32.totalorder %s53, %s56
      %p62 = scmp.eq.s32.totalorder %s17, 0
      %p63 = por %p61, %p62
      %p64 = scmp.ne.s32.totalorder %s53, %s56
      %p65 = scmp.eq.s32.totalorder %s22, 1
      %p66 = por %p64, %p65
      %p67 = scmp.ne.s32.totalorder %s56, %s57
      %p68 = scmp.eq.s32.totalorder %s22, 0
      %p69 = por %p67, %p68
      %p70 = scmp.ne.s32.totalorder %s56, %s57
      %p71 = scmp.eq.s32.totalorder %s23, 1
      %p72 = por %p70, %p71
      %p74 = scmp.ne.s32.totalorder %s57, %s73
      %p75 = scmp.eq.s32.totalorder %s23, 0
      %p76 = por %p74, %p75
      %s78 = sadd.s32 %s77, 1
      %p81 = scmp.eq.s32.totalorder %s17, 1
      %p82 = scmp.ne.s32.totalorder %s77, %s79
      %p83 = scmp.eq.s32.totalorder %s17, 0
      %p84 = por %p82, %p83
      %p85 = scmp.ne.s32.totalorder %s77, %s79
      %p86 = scmp.eq.s32.totalorder %s22, 1
      %p87 = por %p85, %p86
      %p88 = scmp.ne.s32.totalorder %s79, %s80
      %p89 = scmp.eq.s32.totalorder %s22, 0
      %p90 = por %p88, %p89
      %p91 = scmp.ne.s32.totalorder %s79, %s80
      %p92 = scmp.eq.s32.totalorder %s23, 1
      %p93 = por %p91, %p92
      %p95 = scmp.ne.s32.totalorder %s80, %s94
      %p96 = scmp.eq.s32.totalorder %s23, 0
      %p97 = por %p95, %p96
      %s99 = sadd.s32 %s98, 1
      %p102 = scmp.eq.s32.totalorder %s17, 1
      %p103 = scmp.ne.s32.totalorder %s98, %s100
      %p104 = scmp.eq.s32.totalorder %s17, 0
      %p105 = por %p103, %p104
      %p106 = scmp.ne.s32.totalorder %s98, %s100
      %p107 = scmp.eq.s32.totalorder %s22, 1
      %p108 = por %p106, %p107
      %p109 = scmp.ne.s32.totalorder %s100, %s101
      %p110 = scmp.eq.s32.totalorder %s22, 0
      %p111 = por %p109, %p110
      %p112 = scmp.ne.s32.totalorder %s100, %s101
      %p113 = scmp.eq.s32.totalorder %s23, 1
      %p114 = por %p112, %p113
      %p116 = scmp.ne.s32.totalorder %s101, %s115
      %p117 = scmp.eq.s32.totalorder %s23, 0
      %p118 = por %p116, %p117
      %s120 = sadd.s32 %s119, 1
      %p123 = scmp.eq.s32.totalorder %s17, 1
      %p124 = scmp.ne.s32.totalorder %s119, %s121
      %p125 = scmp.eq.s32.totalorder %s17, 0
      %p126 = por %p124, %p125
      %p127 = scmp.ne.s32.totalorder %s119, %s121
      %p128 = scmp.eq.s32.totalorder %s22, 1
      %p129 = por %p127, %p128
      %p130 = scmp.ne.s32.totalorder %s121, %s122
      %p131 = scmp.eq.s32.totalorder %s22, 0
      %p132 = por %p130, %p131
      %p133 = scmp.ne.s32.totalorder %s121, %s122
      %p134 = scmp.eq.s32.totalorder %s23, 1
      %p135 = por %p133, %p134
      %p137 = scmp.ne.s32.totalorder %s122, %s136
      %p138 = scmp.eq.s32.totalorder %s23, 0
      %p139 = por %p137, %p138
      %s141 = sadd.s32 %s140, 1
      %p144 = scmp.eq.s32.totalorder %s17, 1
      %p145 = scmp.ne.s32.totalorder %s140, %s142
      %p146 = scmp.eq.s32.totalorder %s17, 0
      %p147 = por %p145, %p146
      %p148 = scmp.ne.s32.totalorder %s140, %s142
      %p149 = scmp.eq.s32.totalorder %s22, 1
      %p150 = por %p148, %p149
      %p151 = scmp.ne.s32.totalorder %s142, %s143
      %p152 = scmp.eq.s32.totalorder %s22, 0
      %p153 = por %p151, %p152
      %p154 = scmp.ne.s32.totalorder %s142, %s143
      %p155 = scmp.eq.s32.totalorder %s23, 1
      %p156 = por %p154, %p155
      %p158 = scmp.ne.s32.totalorder %s143, %s157
      %p159 = scmp.eq.s32.totalorder %s23, 0
      %p160 = por %p158, %p159
      %s162 = sadd.s32 %s161, 1
      %p165 = scmp.eq.s32.totalorder %s17, 1
      %p166 = scmp.ne.s32.totalorder %s161, %s163
      %p167 = scmp.eq.s32.totalorder %s17, 0
      %p168 = por %p166, %p167
      %p169 = scmp.ne.s32.totalorder %s161, %s163
      %p170 = scmp.eq.s32.totalorder %s22, 1
      %p171 = por %p169, %p170
      %p172 = scmp.ne.s32.totalorder %s163, %s164
      %p173 = scmp.eq.s32.totalorder %s22, 0
      %p174 = por %p172, %p173
      %p175 = scmp.ne.s32.totalorder %s163, %s164
      %p176 = scmp.eq.s32.totalorder %s23, 1
      %p177 = por %p175, %p176
      %p179 = scmp.ne.s32.totalorder %s164, %s178
      %p180 = scmp.eq.s32.totalorder %s23, 0
      %p181 = por %p179, %p180
      %s183 = sadd.s32 %s182, 1
      %p186 = scmp.eq.s32.totalorder %s17, 1
      %p187 = scmp.ne.s32.totalorder %s182, %s184
      %p188 = scmp.eq.s32.totalorder %s17, 0
      %p189 = por %p187, %p188
      %p190 = scmp.ne.s32.totalorder %s182, %s184
      %p191 = scmp.eq.s32.totalorder %s22, 1
      %p192 = por %p190, %p191
      %p193 = scmp.ne.s32.totalorder %s184, %s185
      %p194 = scmp.eq.s32.totalorder %s22, 0
      %p195 = por %p193, %p194
      %p196 = scmp.ne.s32.totalorder %s184, %s185
      %p197 = scmp.eq.s32.totalorder %s23, 1
      %p198 = por %p196, %p197
      %p200 = scmp.ne.s32.totalorder %s185, %s199
      %p201 = scmp.eq.s32.totalorder %s23, 0
      %p202 = por %p200, %p201
      %s203 = ssub.s32 %s17, %s24
      %p204 = scmp.eq.s32.totalorder %s203, 0
      %s206 = sadd.s32 %s205, 1
      %s207 = scalar_select %p204, %s205, %s206
      %p210 = pneg %p204
      %p211 = scmp.eq.s32.totalorder %s17, 1
      %p212 = por %p210, %p211
      %p213 = scmp.ne.s32.totalorder %s205, %s208
      %p214 = scmp.eq.s32.totalorder %s17, 0
      %p215 = por %p213, %p214
      %p216 = scmp.ne.s32.totalorder %s205, %s208
      %p217 = scmp.eq.s32.totalorder %s22, 1
      %p218 = por %p216, %p217
      %p219 = scmp.ne.s32.totalorder %s208, %s209
      %p220 = scmp.eq.s32.totalorder %s22, 0
      %p221 = por %p219, %p220
      %p222 = scmp.ne.s32.totalorder %s208, %s209
      %p223 = scmp.eq.s32.totalorder %s23, 1
      %p224 = por %p222, %p223
      %p226 = scmp.ne.s32.totalorder %s209, %s225
      %p227 = scmp.eq.s32.totalorder %s23, 0
      %p228 = por %p226, %p227
      %p229 = scmp.le.s32.totalorder 1, %s17
      %p230 = scmp.lt.s32.totalorder %s17, 3
      %p231 = pnand %p229, %p230
      %p232 = pneg %p231
      // Predicated region
      $region9: #{tpu_custom_call.1} parent=5 // pred_check
        _
      $region10: #{tpu_custom_call.1} parent=5 // pred_check_branch
        %234 = sbr.rel (%p231) target = $region12
      $region11: #{tpu_custom_call.1} parent=5 // pred_region
        %s235 = ssub.s32 %s17, 1
        // Predicated region
        $region13: #{tpu_custom_call.1} parent=11 // pred_check
          %p236 = pneg %p90
        $region14: #{tpu_custom_call.1} parent=11 // pred_check_branch
          %238 = sbr.rel (%p236) target = $region16
        $region15: #{tpu_custom_call.1} parent=11 // pred_region
          _
        $region16: #{tpu_custom_call.1} parent=11 // pred_fallthru
          _
        // Predicated region
        $region17: #{tpu_custom_call.1} parent=11 // pred_check
          %p239 = pneg %p111
        $region18: #{tpu_custom_call.1} parent=11 // pred_check_branch
          %241 = sbr.rel (%p239) target = $region20
        $region19: #{tpu_custom_call.1} parent=11 // pred_region
          _
        $region20: #{tpu_custom_call.1} parent=11 // pred_fallthru
          _
        // Predicated region
        $region21: #{tpu_custom_call.1} parent=11 // pred_check
          %p242 = pneg %p132
        $region22: #{tpu_custom_call.1} parent=11 // pred_check_branch
          %244 = sbr.rel (%p242) target = $region24
        $region23: #{tpu_custom_call.1} parent=11 // pred_region
          _
        $region24: #{tpu_custom_call.1} parent=11 // pred_fallthru
          _
        // Predicated region
        $region25: #{tpu_custom_call.1} parent=11 // pred_check
          %p245 = pneg %p153
        $region26: #{tpu_custom_call.1} parent=11 // pred_check_branch
          %247 = sbr.rel (%p245) target = $region28
        $region27: #{tpu_custom_call.1} parent=11 // pred_region
          _
        $region28: #{tpu_custom_call.1} parent=11 // pred_fallthru
          _
        // Predicated region
        $region29: #{tpu_custom_call.1} parent=11 // pred_check
          %p248 = pneg %p174
        $region30: #{tpu_custom_call.1} parent=11 // pred_check_branch
          %250 = sbr.rel (%p248) target = $region32
        $region31: #{tpu_custom_call.1} parent=11 // pred_region
          _
        $region32: #{tpu_custom_call.1} parent=11 // pred_fallthru
          _
        // Predicated region
        $region33: #{tpu_custom_call.1} parent=11 // pred_check
          %p251 = pneg %p195
        $region34: #{tpu_custom_call.1} parent=11 // pred_check_branch
          %253 = sbr.rel (%p251) target = $region36
        $region35: #{tpu_custom_call.1} parent=11 // pred_region
          _
        $region36: #{tpu_custom_call.1} parent=11 // pred_fallthru
          _
      $region12: #{tpu_custom_call.1} parent=5 // pred_fallthru
        _
      %p254 = scmp.lt.s32.totalorder %s17, 2
      // Predicated region
      $region37: #{tpu_custom_call.1} parent=5 // pred_check
        %p255 = pneg %p254
      $region38: #{tpu_custom_call.1} parent=5 // pred_check_branch
        %257 = sbr.rel (%p255) target = $region40
      $region39: #{tpu_custom_call.1} parent=5 // pred_region
        // Predicated region
        $region41: #{tpu_custom_call.1} parent=39 // pred_check
          %p258 = pneg %p37
        $region42: #{tpu_custom_call.1} parent=39 // pred_check_branch
          %260 = sbr.rel (%p258) target = $region44
        $region43: #{tpu_custom_call.1} parent=39 // pred_region
          %p261 = scmp.lt.s32.totalorder %s17, 1
          %s262 = scalar_select %p261, %s17, 1
          %s263 = scalar_lea.vmem %s0, %s262
        $region44: #{tpu_custom_call.1} parent=39 // pred_fallthru
          _
        // Predicated region
        $region45: #{tpu_custom_call.1} parent=39 // pred_check
          %p264 = pneg %p63
        $region46: #{tpu_custom_call.1} parent=39 // pred_check_branch
          %266 = sbr.rel (%p264) target = $region48
        $region47: #{tpu_custom_call.1} parent=39 // pred_region
          %p267 = scmp.lt.s32.totalorder %s17, 1
          %s268 = scalar_select %p267, %s17, 1
          %s269 = smul.addr %s268, 2
          %s270 = scalar_lea.vmem %s1, %s269
        $region48: #{tpu_custom_call.1} parent=39 // pred_fallthru
          _
      $region40: #{tpu_custom_call.1} parent=5 // pred_fallthru
        _
      %p271 = scmp.le.s32.totalorder 1, %s17
      %p272 = scmp.lt.s32.totalorder %s17, 3
      %p273 = pnand %p271, %p272
      %p274 = pneg %p273
      // Predicated region
      $region49: #{tpu_custom_call.1} parent=5 // pred_check
        _
      $region50: #{tpu_custom_call.1} parent=5 // pred_check_branch
        %276 = sbr.rel (%p273) target = $region52
      $region51: #{tpu_custom_call.1} parent=5 // pred_region
        %s277 = ssub.s32 %s17, 1
        %p278 = scmp.lt.s32.totalorder %s22, 1
        %s279 = scalar_select %p278, %s22, 1
        %s280 = scalar_lea.vmem %s0, %s279
        %p281 = pneg %p43
        %p282 = pneg %p40
        %p283 = scmp.lt.s32.totalorder %s22, 1
        %s284 = scalar_select %p283, %s22, 1
        %s285 = smul.addr %s284, 2
        %s286 = scalar_lea.vmem %s1, %s285
        %p287 = pneg %p69
        %p288 = pneg %p66
        %p289 = pneg %p90
        %p290 = pneg %p87
        %p291 = pneg %p111
        %p292 = pneg %p108
        %p293 = pneg %p132
        %p294 = pneg %p129
        %p295 = pneg %p153
        %p296 = pneg %p150
        %p297 = pneg %p174
        %p298 = pneg %p171
        %p299 = pneg %p195
        %p300 = pneg %p192
        %p301 = pneg %p221
        %p302 = pneg %p218
        %s303 = sand.u32 %s208, 1
        %s304 = scalar_lea.sflag [#allocation3], %s303
        %s305 = sand.u32 %s208, 1
        %s306 = smul.addr %s305, 24
        %s307 = scalar_lea.vmem [#allocation2], %s306
        %p308 = scmp.lt.s32.totalorder %s22, 1
        %s309 = scalar_select %p308, %s22, 1
        %s310 = scalar_lea.vmem %s0, %s309
        %p311 = scmp.lt.s32.totalorder %s22, 1
        %s312 = scalar_select %p311, %s22, 1
        %s313 = smul.addr %s312, 2
        %s314 = scalar_lea.vmem %s1, %s313
        %v315 = vld [vmem:[%s310] sm:$0x1]
        %v316 = vld [vmem:[%s314] sm:$0x1]
        %v317 = vld [vmem:[%s314 + $0x1] sm:$0x1]
        %318 = vst [vmem:[%s307] sm:$0x1] %v316
        %319 = vst [vmem:[%s307 + $0x1] sm:$0x1] %v317
        %v320 = vld [vmem:[%s2] sm:$0xff]
        %v321 = vld [vmem:[%s2 + $0x8] sm:$0xff]
        %v322 = vld [vmem:[%s2 + $0x10] sm:$0xff]
        %v323 = vld [vmem:[%s2 + $0x18] sm:$0xff]
        %v324 = vld [vmem:[%s2 + $0x20] sm:$0xff]
        %v325 = vld [vmem:[%s2 + $0x28] sm:$0xff]
        %v326 = vld [vmem:[%s2 + $0x30] sm:$0xff]
        %v327 = vld [vmem:[%s2 + $0x38] sm:$0xff]
        %v328 = vld [vmem:[%s2 + $0x40] sm:$0xff]
        %v329 = vld [vmem:[%s2 + $0x48] sm:$0xff]
        %v330 = vld [vmem:[%s2 + $0x50] sm:$0xff]
        %v331 = vld [vmem:[%s2 + $0x58] sm:$0xff]
        %v332 = vld [vmem:[%s2 + $0x60] sm:$0xff]
        %v333 = vld [vmem:[%s2 + $0x68] sm:$0xff]
        %v334 = vld [vmem:[%s2 + $0x70] sm:$0xff]
        %v335 = vld [vmem:[%s2 + $0x78] sm:$0xff]
        %337 = vset.pattern.permute.xlu0 0
        %338 = vperm.xlu0 %337, %v320
        %v339 = vpop.permute.xlu0 %338
        %342 = vset.pattern.permute.xlu0 0
        %343 = vperm.xlu0 %342, %v321
        %v344 = vpop.permute.xlu0 %343
        %347 = vset.pattern.permute.xlu0 0
        %348 = vperm.xlu0 %347, %v322
        %v349 = vpop.permute.xlu0 %348
        %352 = vset.pattern.permute.xlu0 0
        %353 = vperm.xlu0 %352, %v323
        %v354 = vpop.permute.xlu0 %353
        %357 = vset.pattern.permute.xlu0 0
        %358 = vperm.xlu0 %357, %v324
        %v359 = vpop.permute.xlu0 %358
        %362 = vset.pattern.permute.xlu0 0
        %363 = vperm.xlu0 %362, %v325
        %v364 = vpop.permute.xlu0 %363
        %367 = vset.pattern.permute.xlu0 0
        %368 = vperm.xlu0 %367, %v326
        %v369 = vpop.permute.xlu0 %368
        %372 = vset.pattern.permute.xlu0 0
        %373 = vperm.xlu0 %372, %v327
        %v374 = vpop.permute.xlu0 %373
        %377 = vset.pattern.permute.xlu0 0
        %378 = vperm.xlu0 %377, %v328
        %v379 = vpop.permute.xlu0 %378
        %382 = vset.pattern.permute.xlu0 0
        %383 = vperm.xlu0 %382, %v329
        %v384 = vpop.permute.xlu0 %383
        %387 = vset.pattern.permute.xlu0 0
        %388 = vperm.xlu0 %387, %v330
        %v389 = vpop.permute.xlu0 %388
        %392 = vset.pattern.permute.xlu0 0
        %393 = vperm.xlu0 %392, %v331
        %v394 = vpop.permute.xlu0 %393
        %397 = vset.pattern.permute.xlu0 0
        %398 = vperm.xlu0 %397, %v332
        %v399 = vpop.permute.xlu0 %398
        %402 = vset.pattern.permute.xlu0 0
        %403 = vperm.xlu0 %402, %v333
        %v404 = vpop.permute.xlu0 %403
        %407 = vset.pattern.permute.xlu0 0
        %408 = vperm.xlu0 %407, %v334
        %v409 = vpop.permute.xlu0 %408
        %412 = vset.pattern.permute.xlu0 0
        %413 = vperm.xlu0 %412, %v335
        %v414 = vpop.permute.xlu0 %413
        %v417 = vlaneseq
        %v418 = vshrl.u32 %v417, 7
        %v419 = vsub.s32 0, %v418
        %v420 = vrot.slane %v315, %v419
        %v422 = vmul.f32 %v339, %v420
        %v423 = vmul.f32 %v344, %v420
        %v424 = vmul.f32 %v349, %v420
        %v425 = vmul.f32 %v354, %v420
        %v426 = vmul.f32 %v359, %v420
        %v427 = vmul.f32 %v364, %v420
        %v428 = vmul.f32 %v369, %v420
        %v429 = vmul.f32 %v374, %v420
        %v430 = vmul.f32 %v379, %v420
        %v431 = vmul.f32 %v384, %v420
        %v432 = vmul.f32 %v389, %v420
        %v433 = vmul.f32 %v394, %v420
        %v434 = vmul.f32 %v399, %v420
        %v435 = vmul.f32 %v404, %v420
        %v436 = vmul.f32 %v409, %v420
        %v437 = vmul.f32 %v414, %v420
        %v438 = vld [vmem:[%s3] sm:$0xff]
        %v439 = vld [vmem:[%s3 + $0x8] sm:$0xff]
        %v440 = vld [vmem:[%s3 + $0x10] sm:$0xff]
        %v441 = vld [vmem:[%s3 + $0x18] sm:$0xff]
        %v442 = vld [vmem:[%s3 + $0x20] sm:$0xff]
        %v443 = vld [vmem:[%s3 + $0x28] sm:$0xff]
        %v444 = vld [vmem:[%s3 + $0x30] sm:$0xff]
        %v445 = vld [vmem:[%s3 + $0x38] sm:$0xff]
        %v446 = vld [vmem:[%s3 + $0x40] sm:$0xff]
        %v447 = vld [vmem:[%s3 + $0x48] sm:$0xff]
        %v448 = vld [vmem:[%s3 + $0x50] sm:$0xff]
        %v449 = vld [vmem:[%s3 + $0x58] sm:$0xff]
        %v450 = vld [vmem:[%s3 + $0x60] sm:$0xff]
        %v451 = vld [vmem:[%s3 + $0x68] sm:$0xff]
        %v452 = vld [vmem:[%s3 + $0x70] sm:$0xff]
        %v453 = vld [vmem:[%s3 + $0x78] sm:$0xff]
        %455 = vset.pattern.permute.xlu0 0
        %456 = vperm.xlu0 %455, %v438
        %v457 = vpop.permute.xlu0 %456
        %460 = vset.pattern.permute.xlu0 0
        %461 = vperm.xlu0 %460, %v439
        %v462 = vpop.permute.xlu0 %461
        %465 = vset.pattern.permute.xlu0 0
        %466 = vperm.xlu0 %465, %v440
        %v467 = vpop.permute.xlu0 %466
        %470 = vset.pattern.permute.xlu0 0
        %471 = vperm.xlu0 %470, %v441
        %v472 = vpop.permute.xlu0 %471
        %475 = vset.pattern.permute.xlu0 0
        %476 = vperm.xlu0 %475, %v442
        %v477 = vpop.permute.xlu0 %476
        %480 = vset.pattern.permute.xlu0 0
        %481 = vperm.xlu0 %480, %v443
        %v482 = vpop.permute.xlu0 %481
        %485 = vset.pattern.permute.xlu0 0
        %486 = vperm.xlu0 %485, %v444
        %v487 = vpop.permute.xlu0 %486
        %490 = vset.pattern.permute.xlu0 0
        %491 = vperm.xlu0 %490, %v445
        %v492 = vpop.permute.xlu0 %491
        %495 = vset.pattern.permute.xlu0 0
        %496 = vperm.xlu0 %495, %v446
        %v497 = vpop.permute.xlu0 %496
        %500 = vset.pattern.permute.xlu0 0
        %501 = vperm.xlu0 %500, %v447
        %v502 = vpop.permute.xlu0 %501
        %505 = vset.pattern.permute.xlu0 0
        %506 = vperm.xlu0 %505, %v448
        %v507 = vpop.permute.xlu0 %506
        %510 = vset.pattern.permute.xlu0 0
        %511 = vperm.xlu0 %510, %v449
        %v512 = vpop.permute.xlu0 %511
        %515 = vset.pattern.permute.xlu0 0
        %516 = vperm.xlu0 %515, %v450
        %v517 = vpop.permute.xlu0 %516
        %520 = vset.pattern.permute.xlu0 0
        %521 = vperm.xlu0 %520, %v451
        %v522 = vpop.permute.xlu0 %521
        %525 = vset.pattern.permute.xlu0 0
        %526 = vperm.xlu0 %525, %v452
        %v527 = vpop.permute.xlu0 %526
        %530 = vset.pattern.permute.xlu0 0
        %531 = vperm.xlu0 %530, %v453
        %v532 = vpop.permute.xlu0 %531
        %v534 = vlaneseq
        %v535 = vshrl.u32 %v534, 7
        %v536 = vsub.s32 0, %v535
        %v537 = vrot.slane %v316, %v536
        %v538 = vmul.f32 %v457, %v537
        %v539 = vmul.f32 %v462, %v537
        %v540 = vmul.f32 %v467, %v537
        %v541 = vmul.f32 %v472, %v537
        %v542 = vmul.f32 %v477, %v537
        %v543 = vmul.f32 %v482, %v537
        %v544 = vmul.f32 %v487, %v537
        %v545 = vmul.f32 %v492, %v537
        %v546 = vmul.f32 %v497, %v537
        %v547 = vmul.f32 %v502, %v537
        %v548 = vmul.f32 %v507, %v537
        %v549 = vmul.f32 %v512, %v537
        %v550 = vmul.f32 %v517, %v537
        %v551 = vmul.f32 %v522, %v537
        %v552 = vmul.f32 %v527, %v537
        %v553 = vmul.f32 %v532, %v537
        %v554 = vadd.f32 %v422, %v538
        %v555 = vadd.f32 %v423, %v539
        %v556 = vadd.f32 %v424, %v540
        %v557 = vadd.f32 %v425, %v541
        %v558 = vadd.f32 %v426, %v542
        %v559 = vadd.f32 %v427, %v543
        %v560 = vadd.f32 %v428, %v544
        %v561 = vadd.f32 %v429, %v545
        %v562 = vadd.f32 %v430, %v546
        %v563 = vadd.f32 %v431, %v547
        %v564 = vadd.f32 %v432, %v548
        %v565 = vadd.f32 %v433, %v549
        %v566 = vadd.f32 %v434, %v550
        %v567 = vadd.f32 %v435, %v551
        %v568 = vadd.f32 %v436, %v552
        %v569 = vadd.f32 %v437, %v553
        %v570 = vld [vmem:[%s4] sm:$0xff]
        %v571 = vld [vmem:[%s4 + $0x8] sm:$0xff]
        %v572 = vld [vmem:[%s4 + $0x10] sm:$0xff]
        %v573 = vld [vmem:[%s4 + $0x18] sm:$0xff]
        %v574 = vld [vmem:[%s4 + $0x20] sm:$0xff]
        %v575 = vld [vmem:[%s4 + $0x28] sm:$0xff]
        %v576 = vld [vmem:[%s4 + $0x30] sm:$0xff]
        %v577 = vld [vmem:[%s4 + $0x38] sm:$0xff]
        %v578 = vld [vmem:[%s4 + $0x40] sm:$0xff]
        %v579 = vld [vmem:[%s4 + $0x48] sm:$0xff]
        %v580 = vld [vmem:[%s4 + $0x50] sm:$0xff]
        %v581 = vld [vmem:[%s4 + $0x58] sm:$0xff]
        %v582 = vld [vmem:[%s4 + $0x60] sm:$0xff]
        %v583 = vld [vmem:[%s4 + $0x68] sm:$0xff]
        %v584 = vld [vmem:[%s4 + $0x70] sm:$0xff]
        %v585 = vld [vmem:[%s4 + $0x78] sm:$0xff]
        %587 = vset.pattern.permute.xlu0 0
        %588 = vperm.xlu0 %587, %v570
        %v589 = vpop.permute.xlu0 %588
        %592 = vset.pattern.permute.xlu0 0
        %593 = vperm.xlu0 %592, %v571
        %v594 = vpop.permute.xlu0 %593
        %597 = vset.pattern.permute.xlu0 0
        %598 = vperm.xlu0 %597, %v572
        %v599 = vpop.permute.xlu0 %598
        %602 = vset.pattern.permute.xlu0 0
        %603 = vperm.xlu0 %602, %v573
        %v604 = vpop.permute.xlu0 %603
        %607 = vset.pattern.permute.xlu0 0
        %608 = vperm.xlu0 %607, %v574
        %v609 = vpop.permute.xlu0 %608
        %612 = vset.pattern.permute.xlu0 0
        %613 = vperm.xlu0 %612, %v575
        %v614 = vpop.permute.xlu0 %613
        %617 = vset.pattern.permute.xlu0 0
        %618 = vperm.xlu0 %617, %v576
        %v619 = vpop.permute.xlu0 %618
        %622 = vset.pattern.permute.xlu0 0
        %623 = vperm.xlu0 %622, %v577
        %v624 = vpop.permute.xlu0 %623
        %627 = vset.pattern.permute.xlu0 0
        %628 = vperm.xlu0 %627, %v578
        %v629 = vpop.permute.xlu0 %628
        %632 = vset.pattern.permute.xlu0 0
        %633 = vperm.xlu0 %632, %v579
        %v634 = vpop.permute.xlu0 %633
        %637 = vset.pattern.permute.xlu0 0
        %638 = vperm.xlu0 %637, %v580
        %v639 = vpop.permute.xlu0 %638
        %642 = vset.pattern.permute.xlu0 0
        %643 = vperm.xlu0 %642, %v581
        %v644 = vpop.permute.xlu0 %643
        %647 = vset.pattern.permute.xlu0 0
        %648 = vperm.xlu0 %647, %v582
        %v649 = vpop.permute.xlu0 %648
        %652 = vset.pattern.permute.xlu0 0
        %653 = vperm.xlu0 %652, %v583
        %v654 = vpop.permute.xlu0 %653
        %657 = vset.pattern.permute.xlu0 0
        %658 = vperm.xlu0 %657, %v584
        %v659 = vpop.permute.xlu0 %658
        %662 = vset.pattern.permute.xlu0 0
        %663 = vperm.xlu0 %662, %v585
        %v664 = vpop.permute.xlu0 %663
        %v666 = vadd.f32 %v554, %v589
        %v667 = vadd.f32 %v555, %v594
        %v668 = vadd.f32 %v556, %v599
        %v669 = vadd.f32 %v557, %v604
        %v670 = vadd.f32 %v558, %v609
        %v671 = vadd.f32 %v559, %v614
        %v672 = vadd.f32 %v560, %v619
        %v673 = vadd.f32 %v561, %v624
        %v674 = vadd.f32 %v562, %v629
        %v675 = vadd.f32 %v563, %v634
        %v676 = vadd.f32 %v564, %v639
        %v677 = vadd.f32 %v565, %v644
        %v678 = vadd.f32 %v566, %v649
        %v679 = vadd.f32 %v567, %v654
        %v680 = vadd.f32 %v568, %v659
        %v681 = vadd.f32 %v569, %v664
        %v682 = vmax.f32 %v666, 0.0
        %v683 = vmax.f32 %v667, 0.0
        %v684 = vmax.f32 %v668, 0.0
        %v685 = vmax.f32 %v669, 0.0
        %v686 = vmax.f32 %v670, 0.0
        %v687 = vmax.f32 %v671, 0.0
        %v688 = vmax.f32 %v672, 0.0
        %v689 = vmax.f32 %v673, 0.0
        %v690 = vmax.f32 %v674, 0.0
        %v691 = vmax.f32 %v675, 0.0
        %v692 = vmax.f32 %v676, 0.0
        %v693 = vmax.f32 %v677, 0.0
        %v694 = vmax.f32 %v678, 0.0
        %v695 = vmax.f32 %v679, 0.0
        %v696 = vmax.f32 %v680, 0.0
        %v697 = vmax.f32 %v681, 0.0
        %v698 = vld [vmem:[%s5] sm:$0xff]
        %v699 = vld [vmem:[%s5 + $0x8] sm:$0xff]
        %v700 = vld [vmem:[%s5 + $0x10] sm:$0xff]
        %v701 = vld [vmem:[%s5 + $0x18] sm:$0xff]
        %v702 = vld [vmem:[%s5 + $0x20] sm:$0xff]
        %v703 = vld [vmem:[%s5 + $0x28] sm:$0xff]
        %v704 = vld [vmem:[%s5 + $0x30] sm:$0xff]
        %v705 = vld [vmem:[%s5 + $0x38] sm:$0xff]
        %v706 = vld [vmem:[%s5 + $0x40] sm:$0xff]
        %v707 = vld [vmem:[%s5 + $0x48] sm:$0xff]
        %v708 = vld [vmem:[%s5 + $0x50] sm:$0xff]
        %v709 = vld [vmem:[%s5 + $0x58] sm:$0xff]
        %v710 = vld [vmem:[%s5 + $0x60] sm:$0xff]
        %v711 = vld [vmem:[%s5 + $0x68] sm:$0xff]
        %v712 = vld [vmem:[%s5 + $0x70] sm:$0xff]
        %v713 = vld [vmem:[%s5 + $0x78] sm:$0xff]
        %715 = vset.pattern.permute.xlu0 0
        %716 = vperm.xlu0 %715, %v698
        %v717 = vpop.permute.xlu0 %716
        %720 = vset.pattern.permute.xlu0 0
        %721 = vperm.xlu0 %720, %v699
        %v722 = vpop.permute.xlu0 %721
        %725 = vset.pattern.permute.xlu0 0
        %726 = vperm.xlu0 %725, %v700
        %v727 = vpop.permute.xlu0 %726
        %730 = vset.pattern.permute.xlu0 0
        %731 = vperm.xlu0 %730, %v701
        %v732 = vpop.permute.xlu0 %731
        %735 = vset.pattern.permute.xlu0 0
        %736 = vperm.xlu0 %735, %v702
        %v737 = vpop.permute.xlu0 %736
        %740 = vset.pattern.permute.xlu0 0
        %741 = vperm.xlu0 %740, %v703
        %v742 = vpop.permute.xlu0 %741
        %745 = vset.pattern.permute.xlu0 0
        %746 = vperm.xlu0 %745, %v704
        %v747 = vpop.permute.xlu0 %746
        %750 = vset.pattern.permute.xlu0 0
        %751 = vperm.xlu0 %750, %v705
        %v752 = vpop.permute.xlu0 %751
        %755 = vset.pattern.permute.xlu0 0
        %756 = vperm.xlu0 %755, %v706
        %v757 = vpop.permute.xlu0 %756
        %760 = vset.pattern.permute.xlu0 0
        %761 = vperm.xlu0 %760, %v707
        %v762 = vpop.permute.xlu0 %761
        %765 = vset.pattern.permute.xlu0 0
        %766 = vperm.xlu0 %765, %v708
        %v767 = vpop.permute.xlu0 %766
        %770 = vset.pattern.permute.xlu0 0
        %771 = vperm.xlu0 %770, %v709
        %v772 = vpop.permute.xlu0 %771
        %775 = vset.pattern.permute.xlu0 0
        %776 = vperm.xlu0 %775, %v710
        %v777 = vpop.permute.xlu0 %776
        %780 = vset.pattern.permute.xlu0 0
        %781 = vperm.xlu0 %780, %v711
        %v782 = vpop.permute.xlu0 %781
        %785 = vset.pattern.permute.xlu0 0
        %786 = vperm.xlu0 %785, %v712
        %v787 = vpop.permute.xlu0 %786
        %790 = vset.pattern.permute.xlu0 0
        %791 = vperm.xlu0 %790, %v713
        %v792 = vpop.permute.xlu0 %791
        %v794 = vmul.f32 %v717, %v682
        %v795 = vmul.f32 %v722, %v683
        %v796 = vmul.f32 %v727, %v684
        %v797 = vmul.f32 %v732, %v685
        %v798 = vmul.f32 %v737, %v686
        %v799 = vmul.f32 %v742, %v687
        %v800 = vmul.f32 %v747, %v688
        %v801 = vmul.f32 %v752, %v689
        %v802 = vmul.f32 %v757, %v690
        %v803 = vmul.f32 %v762, %v691
        %v804 = vmul.f32 %v767, %v692
        %v805 = vmul.f32 %v772, %v693
        %v806 = vmul.f32 %v777, %v694
        %v807 = vmul.f32 %v782, %v695
        %v808 = vmul.f32 %v787, %v696
        %v809 = vmul.f32 %v792, %v697
        %v810 = vadd.f32 %v794, %v795
        %v811 = vadd.f32 %v810, %v796
        %v812 = vadd.f32 %v811, %v797
        %v813 = vadd.f32 %v812, %v798
        %v814 = vadd.f32 %v813, %v799
        %v815 = vadd.f32 %v814, %v800
        %v816 = vadd.f32 %v815, %v801
        %v817 = vadd.f32 %v816, %v802
        %v818 = vadd.f32 %v817, %v803
        %v819 = vadd.f32 %v818, %v804
        %v820 = vadd.f32 %v819, %v805
        %v821 = vadd.f32 %v820, %v806
        %v822 = vadd.f32 %v821, %v807
        %v823 = vadd.f32 %v822, %v808
        %v824 = vadd.f32 %v823, %v809
        %v825 = vrot.slane %v824, 4
        %v826 = vadd.f32 %v824, %v825
        %v827 = vrot.slane %v826, 2
        %v828 = vadd.f32 %v826, %v827
        %v829 = vrot.slane %v828, 1
        %v830 = vadd.f32 %v828, %v829
        %v831 = vld [vmem:[%s7] sm:$0x1]
        %833 = vset.pattern.permute.xlu0 0
        %834 = vperm.xlu0 %833, %v831
        %v835 = vpop.permute.xlu0 %834
        %v837 = vadd.f32 %v830, %v835
        %v838 = vld [vmem:[%s6] sm:$0xff]
        %v839 = vld [vmem:[%s6 + $0x8] sm:$0xff]
        %v840 = vld [vmem:[%s6 + $0x10] sm:$0xff]
        %v841 = vld [vmem:[%s6 + $0x18] sm:$0xff]
        %v842 = vld [vmem:[%s6 + $0x20] sm:$0xff]
        %v843 = vld [vmem:[%s6 + $0x28] sm:$0xff]
        %v844 = vld [vmem:[%s6 + $0x30] sm:$0xff]
        %v845 = vld [vmem:[%s6 + $0x38] sm:$0xff]
        %v846 = vld [vmem:[%s6 + $0x40] sm:$0xff]
        %v847 = vld [vmem:[%s6 + $0x48] sm:$0xff]
        %v848 = vld [vmem:[%s6 + $0x50] sm:$0xff]
        %v849 = vld [vmem:[%s6 + $0x58] sm:$0xff]
        %v850 = vld [vmem:[%s6 + $0x60] sm:$0xff]
        %v851 = vld [vmem:[%s6 + $0x68] sm:$0xff]
        %v852 = vld [vmem:[%s6 + $0x70] sm:$0xff]
        %v853 = vld [vmem:[%s6 + $0x78] sm:$0xff]
        %855 = vset.pattern.permute.xlu0 0
        %856 = vperm.xlu0 %855, %v838
        %v857 = vpop.permute.xlu0 %856
        %860 = vset.pattern.permute.xlu0 0
        %861 = vperm.xlu0 %860, %v839
        %v862 = vpop.permute.xlu0 %861
        %865 = vset.pattern.permute.xlu0 0
        %866 = vperm.xlu0 %865, %v840
        %v867 = vpop.permute.xlu0 %866
        %870 = vset.pattern.permute.xlu0 0
        %871 = vperm.xlu0 %870, %v841
        %v872 = vpop.permute.xlu0 %871
        %875 = vset.pattern.permute.xlu0 0
        %876 = vperm.xlu0 %875, %v842
        %v877 = vpop.permute.xlu0 %876
        %880 = vset.pattern.permute.xlu0 0
        %881 = vperm.xlu0 %880, %v843
        %v882 = vpop.permute.xlu0 %881
        %885 = vset.pattern.permute.xlu0 0
        %886 = vperm.xlu0 %885, %v844
        %v887 = vpop.permute.xlu0 %886
        %890 = vset.pattern.permute.xlu0 0
        %891 = vperm.xlu0 %890, %v845
        %v892 = vpop.permute.xlu0 %891
        %895 = vset.pattern.permute.xlu0 0
        %896 = vperm.xlu0 %895, %v846
        %v897 = vpop.permute.xlu0 %896
        %900 = vset.pattern.permute.xlu0 0
        %901 = vperm.xlu0 %900, %v847
        %v902 = vpop.permute.xlu0 %901
        %905 = vset.pattern.permute.xlu0 0
        %906 = vperm.xlu0 %905, %v848
        %v907 = vpop.permute.xlu0 %906
        %910 = vset.pattern.permute.xlu0 0
        %911 = vperm.xlu0 %910, %v849
        %v912 = vpop.permute.xlu0 %911
        %915 = vset.pattern.permute.xlu0 0
        %916 = vperm.xlu0 %915, %v850
        %v917 = vpop.permute.xlu0 %916
        %920 = vset.pattern.permute.xlu0 0
        %921 = vperm.xlu0 %920, %v851
        %v922 = vpop.permute.xlu0 %921
        %925 = vset.pattern.permute.xlu0 0
        %926 = vperm.xlu0 %925, %v852
        %v927 = vpop.permute.xlu0 %926
        %930 = vset.pattern.permute.xlu0 0
        %931 = vperm.xlu0 %930, %v853
        %v932 = vpop.permute.xlu0 %931
        %v934 = vmul.f32 %v857, %v682
        %v935 = vmul.f32 %v862, %v683
        %v936 = vmul.f32 %v867, %v684
        %v937 = vmul.f32 %v872, %v685
        %v938 = vmul.f32 %v877, %v686
        %v939 = vmul.f32 %v882, %v687
        %v940 = vmul.f32 %v887, %v688
        %v941 = vmul.f32 %v892, %v689
        %v942 = vmul.f32 %v897, %v690
        %v943 = vmul.f32 %v902, %v691
        %v944 = vmul.f32 %v907, %v692
        %v945 = vmul.f32 %v912, %v693
        %v946 = vmul.f32 %v917, %v694
        %v947 = vmul.f32 %v922, %v695
        %v948 = vmul.f32 %v927, %v696
        %v949 = vmul.f32 %v932, %v697
        %v950 = vadd.f32 %v934, %v935
        %v951 = vadd.f32 %v950, %v936
        %v952 = vadd.f32 %v951, %v937
        %v953 = vadd.f32 %v952, %v938
        %v954 = vadd.f32 %v953, %v939
        %v955 = vadd.f32 %v954, %v940
        %v956 = vadd.f32 %v955, %v941
        %v957 = vadd.f32 %v956, %v942
        %v958 = vadd.f32 %v957, %v943
        %v959 = vadd.f32 %v958, %v944
        %v960 = vadd.f32 %v959, %v945
        %v961 = vadd.f32 %v960, %v946
        %v962 = vadd.f32 %v961, %v947
        %v963 = vadd.f32 %v962, %v948
        %v964 = vadd.f32 %v963, %v949
        %v965 = vrot.slane %v964, 4
        %v966 = vadd.f32 %v964, %v965
        %v967 = vrot.slane %v966, 2
        %v968 = vadd.f32 %v966, %v967
        %v969 = vrot.slane %v968, 1
        %v970 = vadd.f32 %v968, %v969
        %v971 = vld [vmem:[%s7 + $0x1] sm:$0x1]
        %973 = vset.pattern.permute.xlu0 0
        %974 = vperm.xlu0 %973, %v971
        %v975 = vpop.permute.xlu0 %974
        %v977 = vadd.f32 %v970, %v975
        %v978 = vmax.f32 %v977, -5.0
        %v979 = vmin.f32 %v978, 3.0
        %v980 = vmul.f32 %v979, 1.442695
        %v981 = vpow.pop %v980
        %v982 = vmul.f32 %v981, %v317
        %v983 = vadd.f32 %v982, %v837
        %984 = vst [vmem:[%s307 + $0x2] sm:$0x1] %v316
        %985 = vst [vmem:[%s307 + $0x3] sm:$0x1] %v983
        %s986 = scalar_lea.vmem %s2, 128
        %v987 = vld [vmem:[%s986] sm:$0xff]
        %v988 = vld [vmem:[%s986 + $0x8] sm:$0xff]
        %v989 = vld [vmem:[%s986 + $0x10] sm:$0xff]
        %v990 = vld [vmem:[%s986 + $0x18] sm:$0xff]
        %v991 = vld [vmem:[%s986 + $0x20] sm:$0xff]
        %v992 = vld [vmem:[%s986 + $0x28] sm:$0xff]
        %v993 = vld [vmem:[%s986 + $0x30] sm:$0xff]
        %v994 = vld [vmem:[%s986 + $0x38] sm:$0xff]
        %v995 = vld [vmem:[%s986 + $0x40] sm:$0xff]
        %v996 = vld [vmem:[%s986 + $0x48] sm:$0xff]
        %v997 = vld [vmem:[%s986 + $0x50] sm:$0xff]
        %v998 = vld [vmem:[%s986 + $0x58] sm:$0xff]
        %v999 = vld [vmem:[%s986 + $0x60] sm:$0xff]
        %v1000 = vld [vmem:[%s986 + $0x68] sm:$0xff]
        %v1001 = vld [vmem:[%s986 + $0x70] sm:$0xff]
        %v1002 = vld [vmem:[%s986 + $0x78] sm:$0xff]
        %1004 = vset.pattern.permute.xlu0 0
        %1005 = vperm.xlu0 %1004, %v987
        %v1006 = vpop.permute.xlu0 %1005
        %1009 = vset.pattern.permute.xlu0 0
        %1010 = vperm.xlu0 %1009, %v988
        %v1011 = vpop.permute.xlu0 %1010
        %1014 = vset.pattern.permute.xlu0 0
        %1015 = vperm.xlu0 %1014, %v989
        %v1016 = vpop.permute.xlu0 %1015
        %1019 = vset.pattern.permute.xlu0 0
        %1020 = vperm.xlu0 %1019, %v990
        %v1021 = vpop.permute.xlu0 %1020
        %1024 = vset.pattern.permute.xlu0 0
        %1025 = vperm.xlu0 %1024, %v991
        %v1026 = vpop.permute.xlu0 %1025
        %1029 = vset.pattern.permute.xlu0 0
        %1030 = vperm.xlu0 %1029, %v992
        %v1031 = vpop.permute.xlu0 %1030
        %1034 = vset.pattern.permute.xlu0 0
        %1035 = vperm.xlu0 %1034, %v993
        %v1036 = vpop.permute.xlu0 %1035
        %1039 = vset.pattern.permute.xlu0 0
        %1040 = vperm.xlu0 %1039, %v994
        %v1041 = vpop.permute.xlu0 %1040
        %1044 = vset.pattern.permute.xlu0 0
        %1045 = vperm.xlu0 %1044, %v995
        %v1046 = vpop.permute.xlu0 %1045
        %1049 = vset.pattern.permute.xlu0 0
        %1050 = vperm.xlu0 %1049, %v996
        %v1051 = vpop.permute.xlu0 %1050
        %1054 = vset.pattern.permute.xlu0 0
        %1055 = vperm.xlu0 %1054, %v997
        %v1056 = vpop.permute.xlu0 %1055
        %1059 = vset.pattern.permute.xlu0 0
        %1060 = vperm.xlu0 %1059, %v998
        %v1061 = vpop.permute.xlu0 %1060
        %1064 = vset.pattern.permute.xlu0 0
        %1065 = vperm.xlu0 %1064, %v999
        %v1066 = vpop.permute.xlu0 %1065
        %1069 = vset.pattern.permute.xlu0 0
        %1070 = vperm.xlu0 %1069, %v1000
        %v1071 = vpop.permute.xlu0 %1070
        %1074 = vset.pattern.permute.xlu0 0
        %1075 = vperm.xlu0 %1074, %v1001
        %v1076 = vpop.permute.xlu0 %1075
        %1079 = vset.pattern.permute.xlu0 0
        %1080 = vperm.xlu0 %1079, %v1002
        %v1081 = vpop.permute.xlu0 %1080
        %v1083 = vmul.f32 %v1006, %v420
        %v1084 = vmul.f32 %v1011, %v420
        %v1085 = vmul.f32 %v1016, %v420
        %v1086 = vmul.f32 %v1021, %v420
        %v1087 = vmul.f32 %v1026, %v420
        %v1088 = vmul.f32 %v1031, %v420
        %v1089 = vmul.f32 %v1036, %v420
        %v1090 = vmul.f32 %v1041, %v420
        %v1091 = vmul.f32 %v1046, %v420
        %v1092 = vmul.f32 %v1051, %v420
        %v1093 = vmul.f32 %v1056, %v420
        %v1094 = vmul.f32 %v1061, %v420
        %v1095 = vmul.f32 %v1066, %v420
        %v1096 = vmul.f32 %v1071, %v420
        %v1097 = vmul.f32 %v1076, %v420
        %v1098 = vmul.f32 %v1081, %v420
        %s1099 = scalar_lea.vmem %s3, 128
        %v1100 = vld [vmem:[%s1099] sm:$0xff]
        %v1101 = vld [vmem:[%s1099 + $0x8] sm:$0xff]
        %v1102 = vld [vmem:[%s1099 + $0x10] sm:$0xff]
        %v1103 = vld [vmem:[%s1099 + $0x18] sm:$0xff]
        %v1104 = vld [vmem:[%s1099 + $0x20] sm:$0xff]
        %v1105 = vld [vmem:[%s1099 + $0x28] sm:$0xff]
        %v1106 = vld [vmem:[%s1099 + $0x30] sm:$0xff]
        %v1107 = vld [vmem:[%s1099 + $0x38] sm:$0xff]
        %v1108 = vld [vmem:[%s1099 + $0x40] sm:$0xff]
        %v1109 = vld [vmem:[%s1099 + $0x48] sm:$0xff]
        %v1110 = vld [vmem:[%s1099 + $0x50] sm:$0xff]
        %v1111 = vld [vmem:[%s1099 + $0x58] sm:$0xff]
        %v1112 = vld [vmem:[%s1099 + $0x60] sm:$0xff]
        %v1113 = vld [vmem:[%s1099 + $0x68] sm:$0xff]
        %v1114 = vld [vmem:[%s1099 + $0x70] sm:$0xff]
        %v1115 = vld [vmem:[%s1099 + $0x78] sm:$0xff]
        %1117 = vset.pattern.permute.xlu0 0
        %1118 = vperm.xlu0 %1117, %v1100
        %v1119 = vpop.permute.xlu0 %1118
        %1122 = vset.pattern.permute.xlu0 0
        %1123 = vperm.xlu0 %1122, %v1101
        %v1124 = vpop.permute.xlu0 %1123
        %1127 = vset.pattern.permute.xlu0 0
        %1128 = vperm.xlu0 %1127, %v1102
        %v1129 = vpop.permute.xlu0 %1128
        %1132 = vset.pattern.permute.xlu0 0
        %1133 = vperm.xlu0 %1132, %v1103
        %v1134 = vpop.permute.xlu0 %1133
        %1137 = vset.pattern.permute.xlu0 0
        %1138 = vperm.xlu0 %1137, %v1104
        %v1139 = vpop.permute.xlu0 %1138
        %1142 = vset.pattern.permute.xlu0 0
        %1143 = vperm.xlu0 %1142, %v1105
        %v1144 = vpop.permute.xlu0 %1143
        %1147 = vset.pattern.permute.xlu0 0
        %1148 = vperm.xlu0 %1147, %v1106
        %v1149 = vpop.permute.xlu0 %1148
        %1152 = vset.pattern.permute.xlu0 0
        %1153 = vperm.xlu0 %1152, %v1107
        %v1154 = vpop.permute.xlu0 %1153
        %1157 = vset.pattern.permute.xlu0 0
        %1158 = vperm.xlu0 %1157, %v1108
        %v1159 = vpop.permute.xlu0 %1158
        %1162 = vset.pattern.permute.xlu0 0
        %1163 = vperm.xlu0 %1162, %v1109
        %v1164 = vpop.permute.xlu0 %1163
        %1167 = vset.pattern.permute.xlu0 0
        %1168 = vperm.xlu0 %1167, %v1110
        %v1169 = vpop.permute.xlu0 %1168
        %1172 = vset.pattern.permute.xlu0 0
        %1173 = vperm.xlu0 %1172, %v1111
        %v1174 = vpop.permute.xlu0 %1173
        %1177 = vset.pattern.permute.xlu0 0
        %1178 = vperm.xlu0 %1177, %v1112
        %v1179 = vpop.permute.xlu0 %1178
        %1182 = vset.pattern.permute.xlu0 0
        %1183 = vperm.xlu0 %1182, %v1113
        %v1184 = vpop.permute.xlu0 %1183
        %1187 = vset.pattern.permute.xlu0 0
        %1188 = vperm.xlu0 %1187, %v1114
        %v1189 = vpop.permute.xlu0 %1188
        %1192 = vset.pattern.permute.xlu0 0
        %1193 = vperm.xlu0 %1192, %v1115
        %v1194 = vpop.permute.xlu0 %1193
        %v1196 = vlaneseq
        %v1197 = vshrl.u32 %v1196, 7
        %v1198 = vsub.s32 0, %v1197
        %v1199 = vrot.slane %v983, %v1198
        %v1200 = vmul.f32 %v1119, %v1199
        %v1201 = vmul.f32 %v1124, %v1199
        %v1202 = vmul.f32 %v1129, %v1199
        %v1203 = vmul.f32 %v1134, %v1199
        %v1204 = vmul.f32 %v1139, %v1199
        %v1205 = vmul.f32 %v1144, %v1199
        %v1206 = vmul.f32 %v1149, %v1199
        %v1207 = vmul.f32 %v1154, %v1199
        %v1208 = vmul.f32 %v1159, %v1199
        %v1209 = vmul.f32 %v1164, %v1199
        %v1210 = vmul.f32 %v1169, %v1199
        %v1211 = vmul.f32 %v1174, %v1199
        %v1212 = vmul.f32 %v1179, %v1199
        %v1213 = vmul.f32 %v1184, %v1199
        %v1214 = vmul.f32 %v1189, %v1199
        %v1215 = vmul.f32 %v1194, %v1199
        %v1216 = vadd.f32 %v1083, %v1200
        %v1217 = vadd.f32 %v1084, %v1201
        %v1218 = vadd.f32 %v1085, %v1202
        %v1219 = vadd.f32 %v1086, %v1203
        %v1220 = vadd.f32 %v1087, %v1204
        %v1221 = vadd.f32 %v1088, %v1205
        %v1222 = vadd.f32 %v1089, %v1206
        %v1223 = vadd.f32 %v1090, %v1207
        %v1224 = vadd.f32 %v1091, %v1208
        %v1225 = vadd.f32 %v1092, %v1209
        %v1226 = vadd.f32 %v1093, %v1210
        %v1227 = vadd.f32 %v1094, %v1211
        %v1228 = vadd.f32 %v1095, %v1212
        %v1229 = vadd.f32 %v1096, %v1213
        %v1230 = vadd.f32 %v1097, %v1214
        %v1231 = vadd.f32 %v1098, %v1215
        %s1232 = scalar_lea.vmem %s4, 128
        %v1233 = vld [vmem:[%s1232] sm:$0xff]
        %v1234 = vld [vmem:[%s1232 + $0x8] sm:$0xff]
        %v1235 = vld [vmem:[%s1232 + $0x10] sm:$0xff]
        %v1236 = vld [vmem:[%s1232 + $0x18] sm:$0xff]
        %v1237 = vld [vmem:[%s1232 + $0x20] sm:$0xff]
        %v1238 = vld [vmem:[%s1232 + $0x28] sm:$0xff]
        %v1239 = vld [vmem:[%s1232 + $0x30] sm:$0xff]
        %v1240 = vld [vmem:[%s1232 + $0x38] sm:$0xff]
        %v1241 = vld [vmem:[%s1232 + $0x40] sm:$0xff]
        %v1242 = vld [vmem:[%s1232 + $0x48] sm:$0xff]
        %v1243 = vld [vmem:[%s1232 + $0x50] sm:$0xff]
        %v1244 = vld [vmem:[%s1232 + $0x58] sm:$0xff]
        %v1245 = vld [vmem:[%s1232 + $0x60] sm:$0xff]
        %v1246 = vld [vmem:[%s1232 + $0x68] sm:$0xff]
        %v1247 = vld [vmem:[%s1232 + $0x70] sm:$0xff]
        %v1248 = vld [vmem:[%s1232 + $0x78] sm:$0xff]
        %1250 = vset.pattern.permute.xlu0 0
        %1251 = vperm.xlu0 %1250, %v1233
        %v1252 = vpop.permute.xlu0 %1251
        %1255 = vset.pattern.permute.xlu0 0
        %1256 = vperm.xlu0 %1255, %v1234
        %v1257 = vpop.permute.xlu0 %1256
        %1260 = vset.pattern.permute.xlu0 0
        %1261 = vperm.xlu0 %1260, %v1235
        %v1262 = vpop.permute.xlu0 %1261
        %1265 = vset.pattern.permute.xlu0 0
        %1266 = vperm.xlu0 %1265, %v1236
        %v1267 = vpop.permute.xlu0 %1266
        %1270 = vset.pattern.permute.xlu0 0
        %1271 = vperm.xlu0 %1270, %v1237
        %v1272 = vpop.permute.xlu0 %1271
        %1275 = vset.pattern.permute.xlu0 0
        %1276 = vperm.xlu0 %1275, %v1238
        %v1277 = vpop.permute.xlu0 %1276
        %1280 = vset.pattern.permute.xlu0 0
        %1281 = vperm.xlu0 %1280, %v1239
        %v1282 = vpop.permute.xlu0 %1281
        %1285 = vset.pattern.permute.xlu0 0
        %1286 = vperm.xlu0 %1285, %v1240
        %v1287 = vpop.permute.xlu0 %1286
        %1290 = vset.pattern.permute.xlu0 0
        %1291 = vperm.xlu0 %1290, %v1241
        %v1292 = vpop.permute.xlu0 %1291
        %1295 = vset.pattern.permute.xlu0 0
        %1296 = vperm.xlu0 %1295, %v1242
        %v1297 = vpop.permute.xlu0 %1296
        %1300 = vset.pattern.permute.xlu0 0
        %1301 = vperm.xlu0 %1300, %v1243
        %v1302 = vpop.permute.xlu0 %1301
        %1305 = vset.pattern.permute.xlu0 0
        %1306 = vperm.xlu0 %1305, %v1244
        %v1307 = vpop.permute.xlu0 %1306
        %1310 = vset.pattern.permute.xlu0 0
        %1311 = vperm.xlu0 %1310, %v1245
        %v1312 = vpop.permute.xlu0 %1311
        %1315 = vset.pattern.permute.xlu0 0
        %1316 = vperm.xlu0 %1315, %v1246
        %v1317 = vpop.permute.xlu0 %1316
        %1320 = vset.pattern.permute.xlu0 0
        %1321 = vperm.xlu0 %1320, %v1247
        %v1322 = vpop.permute.xlu0 %1321
        %1325 = vset.pattern.permute.xlu0 0
        %1326 = vperm.xlu0 %1325, %v1248
        %v1327 = vpop.permute.xlu0 %1326
        %v1329 = vadd.f32 %v1216, %v1252
        %v1330 = vadd.f32 %v1217, %v1257
        %v1331 = vadd.f32 %v1218, %v1262
        %v1332 = vadd.f32 %v1219, %v1267
        %v1333 = vadd.f32 %v1220, %v1272
        %v1334 = vadd.f32 %v1221, %v1277
        %v1335 = vadd.f32 %v1222, %v1282
        %v1336 = vadd.f32 %v1223, %v1287
        %v1337 = vadd.f32 %v1224, %v1292
        %v1338 = vadd.f32 %v1225, %v1297
        %v1339 = vadd.f32 %v1226, %v1302
        %v1340 = vadd.f32 %v1227, %v1307
        %v1341 = vadd.f32 %v1228, %v1312
        %v1342 = vadd.f32 %v1229, %v1317
        %v1343 = vadd.f32 %v1230, %v1322
        %v1344 = vadd.f32 %v1231, %v1327
        %v1345 = vmax.f32 %v1329, 0.0
        %v1346 = vmax.f32 %v1330, 0.0
        %v1347 = vmax.f32 %v1331, 0.0
        %v1348 = vmax.f32 %v1332, 0.0
        %v1349 = vmax.f32 %v1333, 0.0
        %v1350 = vmax.f32 %v1334, 0.0
        %v1351 = vmax.f32 %v1335, 0.0
        %v1352 = vmax.f32 %v1336, 0.0
        %v1353 = vmax.f32 %v1337, 0.0
        %v1354 = vmax.f32 %v1338, 0.0
        %v1355 = vmax.f32 %v1339, 0.0
        %v1356 = vmax.f32 %v1340, 0.0
        %v1357 = vmax.f32 %v1341, 0.0
        %v1358 = vmax.f32 %v1342, 0.0
        %v1359 = vmax.f32 %v1343, 0.0
        %v1360 = vmax.f32 %v1344, 0.0
        %s1361 = scalar_lea.vmem %s5, 128
        %v1362 = vld [vmem:[%s1361] sm:$0xff]
        %v1363 = vld [vmem:[%s1361 + $0x8] sm:$0xff]
        %v1364 = vld [vmem:[%s1361 + $0x10] sm:$0xff]
        %v1365 = vld [vmem:[%s1361 + $0x18] sm:$0xff]
        %v1366 = vld [vmem:[%s1361 + $0x20] sm:$0xff]
        %v1367 = vld [vmem:[%s1361 + $0x28] sm:$0xff]
        %v1368 = vld [vmem:[%s1361 + $0x30] sm:$0xff]
        %v1369 = vld [vmem:[%s1361 + $0x38] sm:$0xff]
        %v1370 = vld [vmem:[%s1361 + $0x40] sm:$0xff]
        %v1371 = vld [vmem:[%s1361 + $0x48] sm:$0xff]
        %v1372 = vld [vmem:[%s1361 + $0x50] sm:$0xff]
        %v1373 = vld [vmem:[%s1361 + $0x58] sm:$0xff]
        %v1374 = vld [vmem:[%s1361 + $0x60] sm:$0xff]
        %v1375 = vld [vmem:[%s1361 + $0x68] sm:$0xff]
        %v1376 = vld [vmem:[%s1361 + $0x70] sm:$0xff]
        %v1377 = vld [vmem:[%s1361 + $0x78] sm:$0xff]
        %1379 = vset.pattern.permute.xlu0 0
        %1380 = vperm.xlu0 %1379, %v1362
        %v1381 = vpop.permute.xlu0 %1380
        %1384 = vset.pattern.permute.xlu0 0
        %1385 = vperm.xlu0 %1384, %v1363
        %v1386 = vpop.permute.xlu0 %1385
        %1389 = vset.pattern.permute.xlu0 0
        %1390 = vperm.xlu0 %1389, %v1364
        %v1391 = vpop.permute.xlu0 %1390
        %1394 = vset.pattern.permute.xlu0 0
        %1395 = vperm.xlu0 %1394, %v1365
        %v1396 = vpop.permute.xlu0 %1395
        %1399 = vset.pattern.permute.xlu0 0
        %1400 = vperm.xlu0 %1399, %v1366
        %v1401 = vpop.permute.xlu0 %1400
        %1404 = vset.pattern.permute.xlu0 0
        %1405 = vperm.xlu0 %1404, %v1367
        %v1406 = vpop.permute.xlu0 %1405
        %1409 = vset.pattern.permute.xlu0 0
        %1410 = vperm.xlu0 %1409, %v1368
        %v1411 = vpop.permute.xlu0 %1410
        %1414 = vset.pattern.permute.xlu0 0
        %1415 = vperm.xlu0 %1414, %v1369
        %v1416 = vpop.permute.xlu0 %1415
        %1419 = vset.pattern.permute.xlu0 0
        %1420 = vperm.xlu0 %1419, %v1370
        %v1421 = vpop.permute.xlu0 %1420
        %1424 = vset.pattern.permute.xlu0 0
        %1425 = vperm.xlu0 %1424, %v1371
        %v1426 = vpop.permute.xlu0 %1425
        %1429 = vset.pattern.permute.xlu0 0
        %1430 = vperm.xlu0 %1429, %v1372
        %v1431 = vpop.permute.xlu0 %1430
        %1434 = vset.pattern.permute.xlu0 0
        %1435 = vperm.xlu0 %1434, %v1373
        %v1436 = vpop.permute.xlu0 %1435
        %1439 = vset.pattern.permute.xlu0 0
        %1440 = vperm.xlu0 %1439, %v1374
        %v1441 = vpop.permute.xlu0 %1440
        %1444 = vset.pattern.permute.xlu0 0
        %1445 = vperm.xlu0 %1444, %v1375
        %v1446 = vpop.permute.xlu0 %1445
        %1449 = vset.pattern.permute.xlu0 0
        %1450 = vperm.xlu0 %1449, %v1376
        %v1451 = vpop.permute.xlu0 %1450
        %1454 = vset.pattern.permute.xlu0 0
        %1455 = vperm.xlu0 %1454, %v1377
        %v1456 = vpop.permute.xlu0 %1455
        %v1458 = vmul.f32 %v1381, %v1345
        %v1459 = vmul.f32 %v1386, %v1346
        %v1460 = vmul.f32 %v1391, %v1347
        %v1461 = vmul.f32 %v1396, %v1348
        %v1462 = vmul.f32 %v1401, %v1349
        %v1463 = vmul.f32 %v1406, %v1350
        %v1464 = vmul.f32 %v1411, %v1351
        %v1465 = vmul.f32 %v1416, %v1352
        %v1466 = vmul.f32 %v1421, %v1353
        %v1467 = vmul.f32 %v1426, %v1354
        %v1468 = vmul.f32 %v1431, %v1355
        %v1469 = vmul.f32 %v1436, %v1356
        %v1470 = vmul.f32 %v1441, %v1357
        %v1471 = vmul.f32 %v1446, %v1358
        %v1472 = vmul.f32 %v1451, %v1359
        %v1473 = vmul.f32 %v1456, %v1360
        %v1474 = vadd.f32 %v1458, %v1459
        %v1475 = vadd.f32 %v1474, %v1460
        %v1476 = vadd.f32 %v1475, %v1461
        %v1477 = vadd.f32 %v1476, %v1462
        %v1478 = vadd.f32 %v1477, %v1463
        %v1479 = vadd.f32 %v1478, %v1464
        %v1480 = vadd.f32 %v1479, %v1465
        %v1481 = vadd.f32 %v1480, %v1466
        %v1482 = vadd.f32 %v1481, %v1467
        %v1483 = vadd.f32 %v1482, %v1468
        %v1484 = vadd.f32 %v1483, %v1469
        %v1485 = vadd.f32 %v1484, %v1470
        %v1486 = vadd.f32 %v1485, %v1471
        %v1487 = vadd.f32 %v1486, %v1472
        %v1488 = vadd.f32 %v1487, %v1473
        %v1489 = vrot.slane %v1488, 4
        %v1490 = vadd.f32 %v1488, %v1489
        %v1491 = vrot.slane %v1490, 2
        %v1492 = vadd.f32 %v1490, %v1491
        %v1493 = vrot.slane %v1492, 1
        %v1494 = vadd.f32 %v1492, %v1493
        %s1495 = scalar_lea.vmem %s7, 2
        %v1496 = vld [vmem:[%s1495] sm:$0x1]
        %1498 = vset.pattern.permute.xlu0 0
        %1499 = vperm.xlu0 %1498, %v1496
        %v1500 = vpop.permute.xlu0 %1499
        %v1502 = vadd.f32 %v1494, %v1500
        %s1503 = scalar_lea.vmem %s6, 128
        %v1504 = vld [vmem:[%s1503] sm:$0xff]
        %v1505 = vld [vmem:[%s1503 + $0x8] sm:$0xff]
        %v1506 = vld [vmem:[%s1503 + $0x10] sm:$0xff]
        %v1507 = vld [vmem:[%s1503 + $0x18] sm:$0xff]
        %v1508 = vld [vmem:[%s1503 + $0x20] sm:$0xff]
        %v1509 = vld [vmem:[%s1503 + $0x28] sm:$0xff]
        %v1510 = vld [vmem:[%s1503 + $0x30] sm:$0xff]
        %v1511 = vld [vmem:[%s1503 + $0x38] sm:$0xff]
        %v1512 = vld [vmem:[%s1503 + $0x40] sm:$0xff]
        %v1513 = vld [vmem:[%s1503 + $0x48] sm:$0xff]
        %v1514 = vld [vmem:[%s1503 + $0x50] sm:$0xff]
        %v1515 = vld [vmem:[%s1503 + $0x58] sm:$0xff]
        %v1516 = vld [vmem:[%s1503 + $0x60] sm:$0xff]
        %v1517 = vld [vmem:[%s1503 + $0x68] sm:$0xff]
        %v1518 = vld [vmem:[%s1503 + $0x70] sm:$0xff]
        %v1519 = vld [vmem:[%s1503 + $0x78] sm:$0xff]
        %1521 = vset.pattern.permute.xlu0 0
        %1522 = vperm.xlu0 %1521, %v1504
        %v1523 = vpop.permute.xlu0 %1522
        %1526 = vset.pattern.permute.xlu0 0
        %1527 = vperm.xlu0 %1526, %v1505
        %v1528 = vpop.permute.xlu0 %1527
        %1531 = vset.pattern.permute.xlu0 0
        %1532 = vperm.xlu0 %1531, %v1506
        %v1533 = vpop.permute.xlu0 %1532
        %1536 = vset.pattern.permute.xlu0 0
        %1537 = vperm.xlu0 %1536, %v1507
        %v1538 = vpop.permute.xlu0 %1537
        %1541 = vset.pattern.permute.xlu0 0
        %1542 = vperm.xlu0 %1541, %v1508
        %v1543 = vpop.permute.xlu0 %1542
        %1546 = vset.pattern.permute.xlu0 0
        %1547 = vperm.xlu0 %1546, %v1509
        %v1548 = vpop.permute.xlu0 %1547
        %1551 = vset.pattern.permute.xlu0 0
        %1552 = vperm.xlu0 %1551, %v1510
        %v1553 = vpop.permute.xlu0 %1552
        %1556 = vset.pattern.permute.xlu0 0
        %1557 = vperm.xlu0 %1556, %v1511
        %v1558 = vpop.permute.xlu0 %1557
        %1561 = vset.pattern.permute.xlu0 0
        %1562 = vperm.xlu0 %1561, %v1512
        %v1563 = vpop.permute.xlu0 %1562
        %1566 = vset.pattern.permute.xlu0 0
        %1567 = vperm.xlu0 %1566, %v1513
        %v1568 = vpop.permute.xlu0 %1567
        %1571 = vset.pattern.permute.xlu0 0
        %1572 = vperm.xlu0 %1571, %v1514
        %v1573 = vpop.permute.xlu0 %1572
        %1576 = vset.pattern.permute.xlu0 0
        %1577 = vperm.xlu0 %1576, %v1515
        %v1578 = vpop.permute.xlu0 %1577
        %1581 = vset.pattern.permute.xlu0 0
        %1582 = vperm.xlu0 %1581, %v1516
        %v1583 = vpop.permute.xlu0 %1582
        %1586 = vset.pattern.permute.xlu0 0
        %1587 = vperm.xlu0 %1586, %v1517
        %v1588 = vpop.permute.xlu0 %1587
        %1591 = vset.pattern.permute.xlu0 0
        %1592 = vperm.xlu0 %1591, %v1518
        %v1593 = vpop.permute.xlu0 %1592
        %1596 = vset.pattern.permute.xlu0 0
        %1597 = vperm.xlu0 %1596, %v1519
        %v1598 = vpop.permute.xlu0 %1597
        %v1600 = vmul.f32 %v1523, %v1345
        %v1601 = vmul.f32 %v1528, %v1346
        %v1602 = vmul.f32 %v1533, %v1347
        %v1603 = vmul.f32 %v1538, %v1348
        %v1604 = vmul.f32 %v1543, %v1349
        %v1605 = vmul.f32 %v1548, %v1350
        %v1606 = vmul.f32 %v1553, %v1351
        %v1607 = vmul.f32 %v1558, %v1352
        %v1608 = vmul.f32 %v1563, %v1353
        %v1609 = vmul.f32 %v1568, %v1354
        %v1610 = vmul.f32 %v1573, %v1355
        %v1611 = vmul.f32 %v1578, %v1356
        %v1612 = vmul.f32 %v1583, %v1357
        %v1613 = vmul.f32 %v1588, %v1358
        %v1614 = vmul.f32 %v1593, %v1359
        %v1615 = vmul.f32 %v1598, %v1360
        %v1616 = vadd.f32 %v1600, %v1601
        %v1617 = vadd.f32 %v1616, %v1602
        %v1618 = vadd.f32 %v1617, %v1603
        %v1619 = vadd.f32 %v1618, %v1604
        %v1620 = vadd.f32 %v1619, %v1605
        %v1621 = vadd.f32 %v1620, %v1606
        %v1622 = vadd.f32 %v1621, %v1607
        %v1623 = vadd.f32 %v1622, %v1608
        %v1624 = vadd.f32 %v1623, %v1609
        %v1625 = vadd.f32 %v1624, %v1610
        %v1626 = vadd.f32 %v1625, %v1611
        %v1627 = vadd.f32 %v1626, %v1612
        %v1628 = vadd.f32 %v1627, %v1613
        %v1629 = vadd.f32 %v1628, %v1614
        %v1630 = vadd.f32 %v1629, %v1615
        %v1631 = vrot.slane %v1630, 4
        %v1632 = vadd.f32 %v1630, %v1631
        %v1633 = vrot.slane %v1632, 2
        %v1634 = vadd.f32 %v1632, %v1633
        %v1635 = vrot.slane %v1634, 1
        %v1636 = vadd.f32 %v1634, %v1635
        %v1637 = vld [vmem:[%s1495 + $0x1] sm:$0x1]
        %1639 = vset.pattern.permute.xlu0 0
        %1640 = vperm.xlu0 %1639, %v1637
        %v1641 = vpop.permute.xlu0 %1640
        %v1643 = vadd.f32 %v1636, %v1641
        %v1644 = vmax.f32 %v1643, -5.0
        %v1645 = vmin.f32 %v1644, 3.0
        %v1646 = vmul.f32 %v1645, 1.442695
        %v1647 = vpow.pop %v1646
        %v1648 = vmul.f32 %v1647, %v316
        %v1649 = vadd.f32 %v1648, %v1502
        %1650 = vst [vmem:[%s307 + $0x4] sm:$0x1] %v983
        %1651 = vst [vmem:[%s307 + $0x5] sm:$0x1] %v1649
        %s1652 = scalar_lea.vmem %s2, 256
        %v1653 = vld [vmem:[%s1652] sm:$0xff]
        %v1654 = vld [vmem:[%s1652 + $0x8] sm:$0xff]
        %v1655 = vld [vmem:[%s1652 + $0x10] sm:$0xff]
        %v1656 = vld [vmem:[%s1652 + $0x18] sm:$0xff]
        %v1657 = vld [vmem:[%s1652 + $0x20] sm:$0xff]
        %v1658 = vld [vmem:[%s1652 + $0x28] sm:$0xff]
        %v1659 = vld [vmem:[%s1652 + $0x30] sm:$0xff]
        %v1660 = vld [vmem:[%s1652 + $0x38] sm:$0xff]
        %v1661 = vld [vmem:[%s1652 + $0x40] sm:$0xff]
        %v1662 = vld [vmem:[%s1652 + $0x48] sm:$0xff]
        %v1663 = vld [vmem:[%s1652 + $0x50] sm:$0xff]
        %v1664 = vld [vmem:[%s1652 + $0x58] sm:$0xff]
        %v1665 = vld [vmem:[%s1652 + $0x60] sm:$0xff]
        %v1666 = vld [vmem:[%s1652 + $0x68] sm:$0xff]
        %v1667 = vld [vmem:[%s1652 + $0x70] sm:$0xff]
        %v1668 = vld [vmem:[%s1652 + $0x78] sm:$0xff]
        %1670 = vset.pattern.permute.xlu0 0
        %1671 = vperm.xlu0 %1670, %v1653
        %v1672 = vpop.permute.xlu0 %1671
        %1675 = vset.pattern.permute.xlu0 0
        %1676 = vperm.xlu0 %1675, %v1654
        %v1677 = vpop.permute.xlu0 %1676
        %1680 = vset.pattern.permute.xlu0 0
        %1681 = vperm.xlu0 %1680, %v1655
        %v1682 = vpop.permute.xlu0 %1681
        %1685 = vset.pattern.permute.xlu0 0
        %1686 = vperm.xlu0 %1685, %v1656
        %v1687 = vpop.permute.xlu0 %1686
        %1690 = vset.pattern.permute.xlu0 0
        %1691 = vperm.xlu0 %1690, %v1657
        %v1692 = vpop.permute.xlu0 %1691
        %1695 = vset.pattern.permute.xlu0 0
        %1696 = vperm.xlu0 %1695, %v1658
        %v1697 = vpop.permute.xlu0 %1696
        %1700 = vset.pattern.permute.xlu0 0
        %1701 = vperm.xlu0 %1700, %v1659
        %v1702 = vpop.permute.xlu0 %1701
        %1705 = vset.pattern.permute.xlu0 0
        %1706 = vperm.xlu0 %1705, %v1660
        %v1707 = vpop.permute.xlu0 %1706
        %1710 = vset.pattern.permute.xlu0 0
        %1711 = vperm.xlu0 %1710, %v1661
        %v1712 = vpop.permute.xlu0 %1711
        %1715 = vset.pattern.permute.xlu0 0
        %1716 = vperm.xlu0 %1715, %v1662
        %v1717 = vpop.permute.xlu0 %1716
        %1720 = vset.pattern.permute.xlu0 0
        %1721 = vperm.xlu0 %1720, %v1663
        %v1722 = vpop.permute.xlu0 %1721
        %1725 = vset.pattern.permute.xlu0 0
        %1726 = vperm.xlu0 %1725, %v1664
        %v1727 = vpop.permute.xlu0 %1726
        %1730 = vset.pattern.permute.xlu0 0
        %1731 = vperm.xlu0 %1730, %v1665
        %v1732 = vpop.permute.xlu0 %1731
        %1735 = vset.pattern.permute.xlu0 0
        %1736 = vperm.xlu0 %1735, %v1666
        %v1737 = vpop.permute.xlu0 %1736
        %1740 = vset.pattern.permute.xlu0 0
        %1741 = vperm.xlu0 %1740, %v1667
        %v1742 = vpop.permute.xlu0 %1741
        %1745 = vset.pattern.permute.xlu0 0
        %1746 = vperm.xlu0 %1745, %v1668
        %v1747 = vpop.permute.xlu0 %1746
        %v1749 = vmul.f32 %v1672, %v420
        %v1750 = vmul.f32 %v1677, %v420
        %v1751 = vmul.f32 %v1682, %v420
        %v1752 = vmul.f32 %v1687, %v420
        %v1753 = vmul.f32 %v1692, %v420
        %v1754 = vmul.f32 %v1697, %v420
        %v1755 = vmul.f32 %v1702, %v420
        %v1756 = vmul.f32 %v1707, %v420
        %v1757 = vmul.f32 %v1712, %v420
        %v1758 = vmul.f32 %v1717, %v420
        %v1759 = vmul.f32 %v1722, %v420
        %v1760 = vmul.f32 %v1727, %v420
        %v1761 = vmul.f32 %v1732, %v420
        %v1762 = vmul.f32 %v1737, %v420
        %v1763 = vmul.f32 %v1742, %v420
        %v1764 = vmul.f32 %v1747, %v420
        %s1765 = scalar_lea.vmem %s3, 256
        %v1766 = vld [vmem:[%s1765] sm:$0xff]
        %v1767 = vld [vmem:[%s1765 + $0x8] sm:$0xff]
        %v1768 = vld [vmem:[%s1765 + $0x10] sm:$0xff]
        %v1769 = vld [vmem:[%s1765 + $0x18] sm:$0xff]
        %v1770 = vld [vmem:[%s1765 + $0x20] sm:$0xff]
        %v1771 = vld [vmem:[%s1765 + $0x28] sm:$0xff]
        %v1772 = vld [vmem:[%s1765 + $0x30] sm:$0xff]
        %v1773 = vld [vmem:[%s1765 + $0x38] sm:$0xff]
        %v1774 = vld [vmem:[%s1765 + $0x40] sm:$0xff]
        %v1775 = vld [vmem:[%s1765 + $0x48] sm:$0xff]
        %v1776 = vld [vmem:[%s1765 + $0x50] sm:$0xff]
        %v1777 = vld [vmem:[%s1765 + $0x58] sm:$0xff]
        %v1778 = vld [vmem:[%s1765 + $0x60] sm:$0xff]
        %v1779 = vld [vmem:[%s1765 + $0x68] sm:$0xff]
        %v1780 = vld [vmem:[%s1765 + $0x70] sm:$0xff]
        %v1781 = vld [vmem:[%s1765 + $0x78] sm:$0xff]
        %1783 = vset.pattern.permute.xlu0 0
        %1784 = vperm.xlu0 %1783, %v1766
        %v1785 = vpop.permute.xlu0 %1784
        %1788 = vset.pattern.permute.xlu0 0
        %1789 = vperm.xlu0 %1788, %v1767
        %v1790 = vpop.permute.xlu0 %1789
        %1793 = vset.pattern.permute.xlu0 0
        %1794 = vperm.xlu0 %1793, %v1768
        %v1795 = vpop.permute.xlu0 %1794
        %1798 = vset.pattern.permute.xlu0 0
        %1799 = vperm.xlu0 %1798, %v1769
        %v1800 = vpop.permute.xlu0 %1799
        %1803 = vset.pattern.permute.xlu0 0
        %1804 = vperm.xlu0 %1803, %v1770
        %v1805 = vpop.permute.xlu0 %1804
        %1808 = vset.pattern.permute.xlu0 0
        %1809 = vperm.xlu0 %1808, %v1771
        %v1810 = vpop.permute.xlu0 %1809
        %1813 = vset.pattern.permute.xlu0 0
        %1814 = vperm.xlu0 %1813, %v1772
        %v1815 = vpop.permute.xlu0 %1814
        %1818 = vset.pattern.permute.xlu0 0
        %1819 = vperm.xlu0 %1818, %v1773
        %v1820 = vpop.permute.xlu0 %1819
        %1823 = vset.pattern.permute.xlu0 0
        %1824 = vperm.xlu0 %1823, %v1774
        %v1825 = vpop.permute.xlu0 %1824
        %1828 = vset.pattern.permute.xlu0 0
        %1829 = vperm.xlu0 %1828, %v1775
        %v1830 = vpop.permute.xlu0 %1829
        %1833 = vset.pattern.permute.xlu0 0
        %1834 = vperm.xlu0 %1833, %v1776
        %v1835 = vpop.permute.xlu0 %1834
        %1838 = vset.pattern.permute.xlu0 0
        %1839 = vperm.xlu0 %1838, %v1777
        %v1840 = vpop.permute.xlu0 %1839
        %1843 = vset.pattern.permute.xlu0 0
        %1844 = vperm.xlu0 %1843, %v1778
        %v1845 = vpop.permute.xlu0 %1844
        %1848 = vset.pattern.permute.xlu0 0
        %1849 = vperm.xlu0 %1848, %v1779
        %v1850 = vpop.permute.xlu0 %1849
        %1853 = vset.pattern.permute.xlu0 0
        %1854 = vperm.xlu0 %1853, %v1780
        %v1855 = vpop.permute.xlu0 %1854
        %1858 = vset.pattern.permute.xlu0 0
        %1859 = vperm.xlu0 %1858, %v1781
        %v1860 = vpop.permute.xlu0 %1859
        %v1862 = vlaneseq
        %v1863 = vshrl.u32 %v1862, 7
        %v1864 = vsub.s32 0, %v1863
        %v1865 = vrot.slane %v1649, %v1864
        %v1866 = vmul.f32 %v1785, %v1865
        %v1867 = vmul.f32 %v1790, %v1865
        %v1868 = vmul.f32 %v1795, %v1865
        %v1869 = vmul.f32 %v1800, %v1865
        %v1870 = vmul.f32 %v1805, %v1865
        %v1871 = vmul.f32 %v1810, %v1865
        %v1872 = vmul.f32 %v1815, %v1865
        %v1873 = vmul.f32 %v1820, %v1865
        %v1874 = vmul.f32 %v1825, %v1865
        %v1875 = vmul.f32 %v1830, %v1865
        %v1876 = vmul.f32 %v1835, %v1865
        %v1877 = vmul.f32 %v1840, %v1865
        %v1878 = vmul.f32 %v1845, %v1865
        %v1879 = vmul.f32 %v1850, %v1865
        %v1880 = vmul.f32 %v1855, %v1865
        %v1881 = vmul.f32 %v1860, %v1865
        %v1882 = vadd.f32 %v1749, %v1866
        %v1883 = vadd.f32 %v1750, %v1867
        %v1884 = vadd.f32 %v1751, %v1868
        %v1885 = vadd.f32 %v1752, %v1869
        %v1886 = vadd.f32 %v1753, %v1870
        %v1887 = vadd.f32 %v1754, %v1871
        %v1888 = vadd.f32 %v1755, %v1872
        %v1889 = vadd.f32 %v1756, %v1873
        %v1890 = vadd.f32 %v1757, %v1874
        %v1891 = vadd.f32 %v1758, %v1875
        %v1892 = vadd.f32 %v1759, %v1876
        %v1893 = vadd.f32 %v1760, %v1877
        %v1894 = vadd.f32 %v1761, %v1878
        %v1895 = vadd.f32 %v1762, %v1879
        %v1896 = vadd.f32 %v1763, %v1880
        %v1897 = vadd.f32 %v1764, %v1881
        %s1898 = scalar_lea.vmem %s4, 256
        %v1899 = vld [vmem:[%s1898] sm:$0xff]
        %v1900 = vld [vmem:[%s1898 + $0x8] sm:$0xff]
        %v1901 = vld [vmem:[%s1898 + $0x10] sm:$0xff]
        %v1902 = vld [vmem:[%s1898 + $0x18] sm:$0xff]
        %v1903 = vld [vmem:[%s1898 + $0x20] sm:$0xff]
        %v1904 = vld [vmem:[%s1898 + $0x28] sm:$0xff]
        %v1905 = vld [vmem:[%s1898 + $0x30] sm:$0xff]
        %v1906 = vld [vmem:[%s1898 + $0x38] sm:$0xff]
        %v1907 = vld [vmem:[%s1898 + $0x40] sm:$0xff]
        %v1908 = vld [vmem:[%s1898 + $0x48] sm:$0xff]
        %v1909 = vld [vmem:[%s1898 + $0x50] sm:$0xff]
        %v1910 = vld [vmem:[%s1898 + $0x58] sm:$0xff]
        %v1911 = vld [vmem:[%s1898 + $0x60] sm:$0xff]
        %v1912 = vld [vmem:[%s1898 + $0x68] sm:$0xff]
        %v1913 = vld [vmem:[%s1898 + $0x70] sm:$0xff]
        %v1914 = vld [vmem:[%s1898 + $0x78] sm:$0xff]
        %1916 = vset.pattern.permute.xlu0 0
        %1917 = vperm.xlu0 %1916, %v1899
        %v1918 = vpop.permute.xlu0 %1917
        %1921 = vset.pattern.permute.xlu0 0
        %1922 = vperm.xlu0 %1921, %v1900
        %v1923 = vpop.permute.xlu0 %1922
        %1926 = vset.pattern.permute.xlu0 0
        %1927 = vperm.xlu0 %1926, %v1901
        %v1928 = vpop.permute.xlu0 %1927
        %1931 = vset.pattern.permute.xlu0 0
        %1932 = vperm.xlu0 %1931, %v1902
        %v1933 = vpop.permute.xlu0 %1932
        %1936 = vset.pattern.permute.xlu0 0
        %1937 = vperm.xlu0 %1936, %v1903
        %v1938 = vpop.permute.xlu0 %1937
        %1941 = vset.pattern.permute.xlu0 0
        %1942 = vperm.xlu0 %1941, %v1904
        %v1943 = vpop.permute.xlu0 %1942
        %1946 = vset.pattern.permute.xlu0 0
        %1947 = vperm.xlu0 %1946, %v1905
        %v1948 = vpop.permute.xlu0 %1947
        %1951 = vset.pattern.permute.xlu0 0
        %1952 = vperm.xlu0 %1951, %v1906
        %v1953 = vpop.permute.xlu0 %1952
        %1956 = vset.pattern.permute.xlu0 0
        %1957 = vperm.xlu0 %1956, %v1907
        %v1958 = vpop.permute.xlu0 %1957
        %1961 = vset.pattern.permute.xlu0 0
        %1962 = vperm.xlu0 %1961, %v1908
        %v1963 = vpop.permute.xlu0 %1962
        %1966 = vset.pattern.permute.xlu0 0
        %1967 = vperm.xlu0 %1966, %v1909
        %v1968 = vpop.permute.xlu0 %1967
        %1971 = vset.pattern.permute.xlu0 0
        %1972 = vperm.xlu0 %1971, %v1910
        %v1973 = vpop.permute.xlu0 %1972
        %1976 = vset.pattern.permute.xlu0 0
        %1977 = vperm.xlu0 %1976, %v1911
        %v1978 = vpop.permute.xlu0 %1977
        %1981 = vset.pattern.permute.xlu0 0
        %1982 = vperm.xlu0 %1981, %v1912
        %v1983 = vpop.permute.xlu0 %1982
        %1986 = vset.pattern.permute.xlu0 0
        %1987 = vperm.xlu0 %1986, %v1913
        %v1988 = vpop.permute.xlu0 %1987
        %1991 = vset.pattern.permute.xlu0 0
        %1992 = vperm.xlu0 %1991, %v1914
        %v1993 = vpop.permute.xlu0 %1992
        %v1995 = vadd.f32 %v1882, %v1918
        %v1996 = vadd.f32 %v1883, %v1923
        %v1997 = vadd.f32 %v1884, %v1928
        %v1998 = vadd.f32 %v1885, %v1933
        %v1999 = vadd.f32 %v1886, %v1938
        %v2000 = vadd.f32 %v1887, %v1943
        %v2001 = vadd.f32 %v1888, %v1948
        %v2002 = vadd.f32 %v1889, %v1953
        %v2003 = vadd.f32 %v1890, %v1958
        %v2004 = vadd.f32 %v1891, %v1963
        %v2005 = vadd.f32 %v1892, %v1968
        %v2006 = vadd.f32 %v1893, %v1973
        %v2007 = vadd.f32 %v1894, %v1978
        %v2008 = vadd.f32 %v1895, %v1983
        %v2009 = vadd.f32 %v1896, %v1988
        %v2010 = vadd.f32 %v1897, %v1993
        %v2011 = vmax.f32 %v1995, 0.0
        %v2012 = vmax.f32 %v1996, 0.0
        %v2013 = vmax.f32 %v1997, 0.0
        %v2014 = vmax.f32 %v1998, 0.0
        %v2015 = vmax.f32 %v1999, 0.0
        %v2016 = vmax.f32 %v2000, 0.0
        %v2017 = vmax.f32 %v2001, 0.0
        %v2018 = vmax.f32 %v2002, 0.0
        %v2019 = vmax.f32 %v2003, 0.0
        %v2020 = vmax.f32 %v2004, 0.0
        %v2021 = vmax.f32 %v2005, 0.0
        %v2022 = vmax.f32 %v2006, 0.0
        %v2023 = vmax.f32 %v2007, 0.0
        %v2024 = vmax.f32 %v2008, 0.0
        %v2025 = vmax.f32 %v2009, 0.0
        %v2026 = vmax.f32 %v2010, 0.0
        %s2027 = scalar_lea.vmem %s5, 256
        %v2028 = vld [vmem:[%s2027] sm:$0xff]
        %v2029 = vld [vmem:[%s2027 + $0x8] sm:$0xff]
        %v2030 = vld [vmem:[%s2027 + $0x10] sm:$0xff]
        %v2031 = vld [vmem:[%s2027 + $0x18] sm:$0xff]
        %v2032 = vld [vmem:[%s2027 + $0x20] sm:$0xff]
        %v2033 = vld [vmem:[%s2027 + $0x28] sm:$0xff]
        %v2034 = vld [vmem:[%s2027 + $0x30] sm:$0xff]
        %v2035 = vld [vmem:[%s2027 + $0x38] sm:$0xff]
        %v2036 = vld [vmem:[%s2027 + $0x40] sm:$0xff]
        %v2037 = vld [vmem:[%s2027 + $0x48] sm:$0xff]
        %v2038 = vld [vmem:[%s2027 + $0x50] sm:$0xff]
        %v2039 = vld [vmem:[%s2027 + $0x58] sm:$0xff]
        %v2040 = vld [vmem:[%s2027 + $0x60] sm:$0xff]
        %v2041 = vld [vmem:[%s2027 + $0x68] sm:$0xff]
        %v2042 = vld [vmem:[%s2027 + $0x70] sm:$0xff]
        %v2043 = vld [vmem:[%s2027 + $0x78] sm:$0xff]
        %2045 = vset.pattern.permute.xlu0 0
        %2046 = vperm.xlu0 %2045, %v2028
        %v2047 = vpop.permute.xlu0 %2046
        %2050 = vset.pattern.permute.xlu0 0
        %2051 = vperm.xlu0 %2050, %v2029
        %v2052 = vpop.permute.xlu0 %2051
        %2055 = vset.pattern.permute.xlu0 0
        %2056 = vperm.xlu0 %2055, %v2030
        %v2057 = vpop.permute.xlu0 %2056
        %2060 = vset.pattern.permute.xlu0 0
        %2061 = vperm.xlu0 %2060, %v2031
        %v2062 = vpop.permute.xlu0 %2061
        %2065 = vset.pattern.permute.xlu0 0
        %2066 = vperm.xlu0 %2065, %v2032
        %v2067 = vpop.permute.xlu0 %2066
        %2070 = vset.pattern.permute.xlu0 0
        %2071 = vperm.xlu0 %2070, %v2033
        %v2072 = vpop.permute.xlu0 %2071
        %2075 = vset.pattern.permute.xlu0 0
        %2076 = vperm.xlu0 %2075, %v2034
        %v2077 = vpop.permute.xlu0 %2076
        %2080 = vset.pattern.permute.xlu0 0
        %2081 = vperm.xlu0 %2080, %v2035
        %v2082 = vpop.permute.xlu0 %2081
        %2085 = vset.pattern.permute.xlu0 0
        %2086 = vperm.xlu0 %2085, %v2036
        %v2087 = vpop.permute.xlu0 %2086
        %2090 = vset.pattern.permute.xlu0 0
        %2091 = vperm.xlu0 %2090, %v2037
        %v2092 = vpop.permute.xlu0 %2091
        %2095 = vset.pattern.permute.xlu0 0
        %2096 = vperm.xlu0 %2095, %v2038
        %v2097 = vpop.permute.xlu0 %2096
        %2100 = vset.pattern.permute.xlu0 0
        %2101 = vperm.xlu0 %2100, %v2039
        %v2102 = vpop.permute.xlu0 %2101
        %2105 = vset.pattern.permute.xlu0 0
        %2106 = vperm.xlu0 %2105, %v2040
        %v2107 = vpop.permute.xlu0 %2106
        %2110 = vset.pattern.permute.xlu0 0
        %2111 = vperm.xlu0 %2110, %v2041
        %v2112 = vpop.permute.xlu0 %2111
        %2115 = vset.pattern.permute.xlu0 0
        %2116 = vperm.xlu0 %2115, %v2042
        %v2117 = vpop.permute.xlu0 %2116
        %2120 = vset.pattern.permute.xlu0 0
        %2121 = vperm.xlu0 %2120, %v2043
        %v2122 = vpop.permute.xlu0 %2121
        %v2124 = vmul.f32 %v2047, %v2011
        %v2125 = vmul.f32 %v2052, %v2012
        %v2126 = vmul.f32 %v2057, %v2013
        %v2127 = vmul.f32 %v2062, %v2014
        %v2128 = vmul.f32 %v2067, %v2015
        %v2129 = vmul.f32 %v2072, %v2016
        %v2130 = vmul.f32 %v2077, %v2017
        %v2131 = vmul.f32 %v2082, %v2018
        %v2132 = vmul.f32 %v2087, %v2019
        %v2133 = vmul.f32 %v2092, %v2020
        %v2134 = vmul.f32 %v2097, %v2021
        %v2135 = vmul.f32 %v2102, %v2022
        %v2136 = vmul.f32 %v2107, %v2023
        %v2137 = vmul.f32 %v2112, %v2024
        %v2138 = vmul.f32 %v2117, %v2025
        %v2139 = vmul.f32 %v2122, %v2026
        %v2140 = vadd.f32 %v2124, %v2125
        %v2141 = vadd.f32 %v2140, %v2126
        %v2142 = vadd.f32 %v2141, %v2127
        %v2143 = vadd.f32 %v2142, %v2128
        %v2144 = vadd.f32 %v2143, %v2129
        %v2145 = vadd.f32 %v2144, %v2130
        %v2146 = vadd.f32 %v2145, %v2131
        %v2147 = vadd.f32 %v2146, %v2132
        %v2148 = vadd.f32 %v2147, %v2133
        %v2149 = vadd.f32 %v2148, %v2134
        %v2150 = vadd.f32 %v2149, %v2135
        %v2151 = vadd.f32 %v2150, %v2136
        %v2152 = vadd.f32 %v2151, %v2137
        %v2153 = vadd.f32 %v2152, %v2138
        %v2154 = vadd.f32 %v2153, %v2139
        %v2155 = vrot.slane %v2154, 4
        %v2156 = vadd.f32 %v2154, %v2155
        %v2157 = vrot.slane %v2156, 2
        %v2158 = vadd.f32 %v2156, %v2157
        %v2159 = vrot.slane %v2158, 1
        %v2160 = vadd.f32 %v2158, %v2159
        %s2161 = scalar_lea.vmem %s7, 4
        %v2162 = vld [vmem:[%s2161] sm:$0x1]
        %2164 = vset.pattern.permute.xlu0 0
        %2165 = vperm.xlu0 %2164, %v2162
        %v2166 = vpop.permute.xlu0 %2165
        %v2168 = vadd.f32 %v2160, %v2166
        %s2169 = scalar_lea.vmem %s6, 256
        %v2170 = vld [vmem:[%s2169] sm:$0xff]
        %v2171 = vld [vmem:[%s2169 + $0x8] sm:$0xff]
        %v2172 = vld [vmem:[%s2169 + $0x10] sm:$0xff]
        %v2173 = vld [vmem:[%s2169 + $0x18] sm:$0xff]
        %v2174 = vld [vmem:[%s2169 + $0x20] sm:$0xff]
        %v2175 = vld [vmem:[%s2169 + $0x28] sm:$0xff]
        %v2176 = vld [vmem:[%s2169 + $0x30] sm:$0xff]
        %v2177 = vld [vmem:[%s2169 + $0x38] sm:$0xff]
        %v2178 = vld [vmem:[%s2169 + $0x40] sm:$0xff]
        %v2179 = vld [vmem:[%s2169 + $0x48] sm:$0xff]
        %v2180 = vld [vmem:[%s2169 + $0x50] sm:$0xff]
        %v2181 = vld [vmem:[%s2169 + $0x58] sm:$0xff]
        %v2182 = vld [vmem:[%s2169 + $0x60] sm:$0xff]
        %v2183 = vld [vmem:[%s2169 + $0x68] sm:$0xff]
        %v2184 = vld [vmem:[%s2169 + $0x70] sm:$0xff]
        %v2185 = vld [vmem:[%s2169 + $0x78] sm:$0xff]
        %2187 = vset.pattern.permute.xlu0 0
        %2188 = vperm.xlu0 %2187, %v2170
        %v2189 = vpop.permute.xlu0 %2188
        %2192 = vset.pattern.permute.xlu0 0
        %2193 = vperm.xlu0 %2192, %v2171
        %v2194 = vpop.permute.xlu0 %2193
        %2197 = vset.pattern.permute.xlu0 0
        %2198 = vperm.xlu0 %2197, %v2172
        %v2199 = vpop.permute.xlu0 %2198
        %2202 = vset.pattern.permute.xlu0 0
        %2203 = vperm.xlu0 %2202, %v2173
        %v2204 = vpop.permute.xlu0 %2203
        %2207 = vset.pattern.permute.xlu0 0
        %2208 = vperm.xlu0 %2207, %v2174
        %v2209 = vpop.permute.xlu0 %2208
        %2212 = vset.pattern.permute.xlu0 0
        %2213 = vperm.xlu0 %2212, %v2175
        %v2214 = vpop.permute.xlu0 %2213
        %2217 = vset.pattern.permute.xlu0 0
        %2218 = vperm.xlu0 %2217, %v2176
        %v2219 = vpop.permute.xlu0 %2218
        %2222 = vset.pattern.permute.xlu0 0
        %2223 = vperm.xlu0 %2222, %v2177
        %v2224 = vpop.permute.xlu0 %2223
        %2227 = vset.pattern.permute.xlu0 0
        %2228 = vperm.xlu0 %2227, %v2178
        %v2229 = vpop.permute.xlu0 %2228
        %2232 = vset.pattern.permute.xlu0 0
        %2233 = vperm.xlu0 %2232, %v2179
        %v2234 = vpop.permute.xlu0 %2233
        %2237 = vset.pattern.permute.xlu0 0
        %2238 = vperm.xlu0 %2237, %v2180
        %v2239 = vpop.permute.xlu0 %2238
        %2242 = vset.pattern.permute.xlu0 0
        %2243 = vperm.xlu0 %2242, %v2181
        %v2244 = vpop.permute.xlu0 %2243
        %2247 = vset.pattern.permute.xlu0 0
        %2248 = vperm.xlu0 %2247, %v2182
        %v2249 = vpop.permute.xlu0 %2248
        %2252 = vset.pattern.permute.xlu0 0
        %2253 = vperm.xlu0 %2252, %v2183
        %v2254 = vpop.permute.xlu0 %2253
        %2257 = vset.pattern.permute.xlu0 0
        %2258 = vperm.xlu0 %2257, %v2184
        %v2259 = vpop.permute.xlu0 %2258
        %2262 = vset.pattern.permute.xlu0 0
        %2263 = vperm.xlu0 %2262, %v2185
        %v2264 = vpop.permute.xlu0 %2263
        %v2266 = vmul.f32 %v2189, %v2011
        %v2267 = vmul.f32 %v2194, %v2012
        %v2268 = vmul.f32 %v2199, %v2013
        %v2269 = vmul.f32 %v2204, %v2014
        %v2270 = vmul.f32 %v2209, %v2015
        %v2271 = vmul.f32 %v2214, %v2016
        %v2272 = vmul.f32 %v2219, %v2017
        %v2273 = vmul.f32 %v2224, %v2018
        %v2274 = vmul.f32 %v2229, %v2019
        %v2275 = vmul.f32 %v2234, %v2020
        %v2276 = vmul.f32 %v2239, %v2021
        %v2277 = vmul.f32 %v2244, %v2022
        %v2278 = vmul.f32 %v2249, %v2023
        %v2279 = vmul.f32 %v2254, %v2024
        %v2280 = vmul.f32 %v2259, %v2025
        %v2281 = vmul.f32 %v2264, %v2026
        %v2282 = vadd.f32 %v2266, %v2267
        %v2283 = vadd.f32 %v2282, %v2268
        %v2284 = vadd.f32 %v2283, %v2269
        %v2285 = vadd.f32 %v2284, %v2270
        %v2286 = vadd.f32 %v2285, %v2271
        %v2287 = vadd.f32 %v2286, %v2272
        %v2288 = vadd.f32 %v2287, %v2273
        %v2289 = vadd.f32 %v2288, %v2274
        %v2290 = vadd.f32 %v2289, %v2275
        %v2291 = vadd.f32 %v2290, %v2276
        %v2292 = vadd.f32 %v2291, %v2277
        %v2293 = vadd.f32 %v2292, %v2278
        %v2294 = vadd.f32 %v2293, %v2279
        %v2295 = vadd.f32 %v2294, %v2280
        %v2296 = vadd.f32 %v2295, %v2281
        %v2297 = vrot.slane %v2296, 4
        %v2298 = vadd.f32 %v2296, %v2297
        %v2299 = vrot.slane %v2298, 2
        %v2300 = vadd.f32 %v2298, %v2299
        %v2301 = vrot.slane %v2300, 1
        %v2302 = vadd.f32 %v2300, %v2301
        %v2303 = vld [vmem:[%s2161 + $0x1] sm:$0x1]
        %2305 = vset.pattern.permute.xlu0 0
        %2306 = vperm.xlu0 %2305, %v2303
        %v2307 = vpop.permute.xlu0 %2306
        %v2309 = vadd.f32 %v2302, %v2307
        %v2310 = vmax.f32 %v2309, -5.0
        %v2311 = vmin.f32 %v2310, 3.0
        %v2312 = vmul.f32 %v2311, 1.442695
        %v2313 = vpow.pop %v2312
        %v2314 = vmul.f32 %v2313, %v983
        %v2315 = vadd.f32 %v2314, %v2168
        %2316 = vst [vmem:[%s307 + $0x6] sm:$0x1] %v1649
        %2317 = vst [vmem:[%s307 + $0x7] sm:$0x1] %v2315
        %s2318 = scalar_lea.vmem %s2, 384
        %v2319 = vld [vmem:[%s2318] sm:$0xff]
        %v2320 = vld [vmem:[%s2318 + $0x8] sm:$0xff]
        %v2321 = vld [vmem:[%s2318 + $0x10] sm:$0xff]
        %v2322 = vld [vmem:[%s2318 + $0x18] sm:$0xff]
        %v2323 = vld [vmem:[%s2318 + $0x20] sm:$0xff]
        %v2324 = vld [vmem:[%s2318 + $0x28] sm:$0xff]
        %v2325 = vld [vmem:[%s2318 + $0x30] sm:$0xff]
        %v2326 = vld [vmem:[%s2318 + $0x38] sm:$0xff]
        %v2327 = vld [vmem:[%s2318 + $0x40] sm:$0xff]
        %v2328 = vld [vmem:[%s2318 + $0x48] sm:$0xff]
        %v2329 = vld [vmem:[%s2318 + $0x50] sm:$0xff]
        %v2330 = vld [vmem:[%s2318 + $0x58] sm:$0xff]
        %v2331 = vld [vmem:[%s2318 + $0x60] sm:$0xff]
        %v2332 = vld [vmem:[%s2318 + $0x68] sm:$0xff]
        %v2333 = vld [vmem:[%s2318 + $0x70] sm:$0xff]
        %v2334 = vld [vmem:[%s2318 + $0x78] sm:$0xff]
        %2336 = vset.pattern.permute.xlu0 0
        %2337 = vperm.xlu0 %2336, %v2319
        %v2338 = vpop.permute.xlu0 %2337
        %2341 = vset.pattern.permute.xlu0 0
        %2342 = vperm.xlu0 %2341, %v2320
        %v2343 = vpop.permute.xlu0 %2342
        %2346 = vset.pattern.permute.xlu0 0
        %2347 = vperm.xlu0 %2346, %v2321
        %v2348 = vpop.permute.xlu0 %2347
        %2351 = vset.pattern.permute.xlu0 0
        %2352 = vperm.xlu0 %2351, %v2322
        %v2353 = vpop.permute.xlu0 %2352
        %2356 = vset.pattern.permute.xlu0 0
        %2357 = vperm.xlu0 %2356, %v2323
        %v2358 = vpop.permute.xlu0 %2357
        %2361 = vset.pattern.permute.xlu0 0
        %2362 = vperm.xlu0 %2361, %v2324
        %v2363 = vpop.permute.xlu0 %2362
        %2366 = vset.pattern.permute.xlu0 0
        %2367 = vperm.xlu0 %2366, %v2325
        %v2368 = vpop.permute.xlu0 %2367
        %2371 = vset.pattern.permute.xlu0 0
        %2372 = vperm.xlu0 %2371, %v2326
        %v2373 = vpop.permute.xlu0 %2372
        %2376 = vset.pattern.permute.xlu0 0
        %2377 = vperm.xlu0 %2376, %v2327
        %v2378 = vpop.permute.xlu0 %2377
        %2381 = vset.pattern.permute.xlu0 0
        %2382 = vperm.xlu0 %2381, %v2328
        %v2383 = vpop.permute.xlu0 %2382
        %2386 = vset.pattern.permute.xlu0 0
        %2387 = vperm.xlu0 %2386, %v2329
        %v2388 = vpop.permute.xlu0 %2387
        %2391 = vset.pattern.permute.xlu0 0
        %2392 = vperm.xlu0 %2391, %v2330
        %v2393 = vpop.permute.xlu0 %2392
        %2396 = vset.pattern.permute.xlu0 0
        %2397 = vperm.xlu0 %2396, %v2331
        %v2398 = vpop.permute.xlu0 %2397
        %2401 = vset.pattern.permute.xlu0 0
        %2402 = vperm.xlu0 %2401, %v2332
        %v2403 = vpop.permute.xlu0 %2402
        %2406 = vset.pattern.permute.xlu0 0
        %2407 = vperm.xlu0 %2406, %v2333
        %v2408 = vpop.permute.xlu0 %2407
        %2411 = vset.pattern.permute.xlu0 0
        %2412 = vperm.xlu0 %2411, %v2334
        %v2413 = vpop.permute.xlu0 %2412
        %v2415 = vmul.f32 %v2338, %v420
        %v2416 = vmul.f32 %v2343, %v420
        %v2417 = vmul.f32 %v2348, %v420
        %v2418 = vmul.f32 %v2353, %v420
        %v2419 = vmul.f32 %v2358, %v420
        %v2420 = vmul.f32 %v2363, %v420
        %v2421 = vmul.f32 %v2368, %v420
        %v2422 = vmul.f32 %v2373, %v420
        %v2423 = vmul.f32 %v2378, %v420
        %v2424 = vmul.f32 %v2383, %v420
        %v2425 = vmul.f32 %v2388, %v420
        %v2426 = vmul.f32 %v2393, %v420
        %v2427 = vmul.f32 %v2398, %v420
        %v2428 = vmul.f32 %v2403, %v420
        %v2429 = vmul.f32 %v2408, %v420
        %v2430 = vmul.f32 %v2413, %v420
        %s2431 = scalar_lea.vmem %s3, 384
        %v2432 = vld [vmem:[%s2431] sm:$0xff]
        %v2433 = vld [vmem:[%s2431 + $0x8] sm:$0xff]
        %v2434 = vld [vmem:[%s2431 + $0x10] sm:$0xff]
        %v2435 = vld [vmem:[%s2431 + $0x18] sm:$0xff]
        %v2436 = vld [vmem:[%s2431 + $0x20] sm:$0xff]
        %v2437 = vld [vmem:[%s2431 + $0x28] sm:$0xff]
        %v2438 = vld [vmem:[%s2431 + $0x30] sm:$0xff]
        %v2439 = vld [vmem:[%s2431 + $0x38] sm:$0xff]
        %v2440 = vld [vmem:[%s2431 + $0x40] sm:$0xff]
        %v2441 = vld [vmem:[%s2431 + $0x48] sm:$0xff]
        %v2442 = vld [vmem:[%s2431 + $0x50] sm:$0xff]
        %v2443 = vld [vmem:[%s2431 + $0x58] sm:$0xff]
        %v2444 = vld [vmem:[%s2431 + $0x60] sm:$0xff]
        %v2445 = vld [vmem:[%s2431 + $0x68] sm:$0xff]
        %v2446 = vld [vmem:[%s2431 + $0x70] sm:$0xff]
        %v2447 = vld [vmem:[%s2431 + $0x78] sm:$0xff]
        %2449 = vset.pattern.permute.xlu0 0
        %2450 = vperm.xlu0 %2449, %v2432
        %v2451 = vpop.permute.xlu0 %2450
        %2454 = vset.pattern.permute.xlu0 0
        %2455 = vperm.xlu0 %2454, %v2433
        %v2456 = vpop.permute.xlu0 %2455
        %2459 = vset.pattern.permute.xlu0 0
        %2460 = vperm.xlu0 %2459, %v2434
        %v2461 = vpop.permute.xlu0 %2460
        %2464 = vset.pattern.permute.xlu0 0
        %2465 = vperm.xlu0 %2464, %v2435
        %v2466 = vpop.permute.xlu0 %2465
        %2469 = vset.pattern.permute.xlu0 0
        %2470 = vperm.xlu0 %2469, %v2436
        %v2471 = vpop.permute.xlu0 %2470
        %2474 = vset.pattern.permute.xlu0 0
        %2475 = vperm.xlu0 %2474, %v2437
        %v2476 = vpop.permute.xlu0 %2475
        %2479 = vset.pattern.permute.xlu0 0
        %2480 = vperm.xlu0 %2479, %v2438
        %v2481 = vpop.permute.xlu0 %2480
        %2484 = vset.pattern.permute.xlu0 0
        %2485 = vperm.xlu0 %2484, %v2439
        %v2486 = vpop.permute.xlu0 %2485
        %2489 = vset.pattern.permute.xlu0 0
        %2490 = vperm.xlu0 %2489, %v2440
        %v2491 = vpop.permute.xlu0 %2490
        %2494 = vset.pattern.permute.xlu0 0
        %2495 = vperm.xlu0 %2494, %v2441
        %v2496 = vpop.permute.xlu0 %2495
        %2499 = vset.pattern.permute.xlu0 0
        %2500 = vperm.xlu0 %2499, %v2442
        %v2501 = vpop.permute.xlu0 %2500
        %2504 = vset.pattern.permute.xlu0 0
        %2505 = vperm.xlu0 %2504, %v2443
        %v2506 = vpop.permute.xlu0 %2505
        %2509 = vset.pattern.permute.xlu0 0
        %2510 = vperm.xlu0 %2509, %v2444
        %v2511 = vpop.permute.xlu0 %2510
        %2514 = vset.pattern.permute.xlu0 0
        %2515 = vperm.xlu0 %2514, %v2445
        %v2516 = vpop.permute.xlu0 %2515
        %2519 = vset.pattern.permute.xlu0 0
        %2520 = vperm.xlu0 %2519, %v2446
        %v2521 = vpop.permute.xlu0 %2520
        %2524 = vset.pattern.permute.xlu0 0
        %2525 = vperm.xlu0 %2524, %v2447
        %v2526 = vpop.permute.xlu0 %2525
        %v2528 = vlaneseq
        %v2529 = vshrl.u32 %v2528, 7
        %v2530 = vsub.s32 0, %v2529
        %v2531 = vrot.slane %v2315, %v2530
        %v2532 = vmul.f32 %v2451, %v2531
        %v2533 = vmul.f32 %v2456, %v2531
        %v2534 = vmul.f32 %v2461, %v2531
        %v2535 = vmul.f32 %v2466, %v2531
        %v2536 = vmul.f32 %v2471, %v2531
        %v2537 = vmul.f32 %v2476, %v2531
        %v2538 = vmul.f32 %v2481, %v2531
        %v2539 = vmul.f32 %v2486, %v2531
        %v2540 = vmul.f32 %v2491, %v2531
        %v2541 = vmul.f32 %v2496, %v2531
        %v2542 = vmul.f32 %v2501, %v2531
        %v2543 = vmul.f32 %v2506, %v2531
        %v2544 = vmul.f32 %v2511, %v2531
        %v2545 = vmul.f32 %v2516, %v2531
        %v2546 = vmul.f32 %v2521, %v2531
        %v2547 = vmul.f32 %v2526, %v2531
        %v2548 = vadd.f32 %v2415, %v2532
        %v2549 = vadd.f32 %v2416, %v2533
        %v2550 = vadd.f32 %v2417, %v2534
        %v2551 = vadd.f32 %v2418, %v2535
        %v2552 = vadd.f32 %v2419, %v2536
        %v2553 = vadd.f32 %v2420, %v2537
        %v2554 = vadd.f32 %v2421, %v2538
        %v2555 = vadd.f32 %v2422, %v2539
        %v2556 = vadd.f32 %v2423, %v2540
        %v2557 = vadd.f32 %v2424, %v2541
        %v2558 = vadd.f32 %v2425, %v2542
        %v2559 = vadd.f32 %v2426, %v2543
        %v2560 = vadd.f32 %v2427, %v2544
        %v2561 = vadd.f32 %v2428, %v2545
        %v2562 = vadd.f32 %v2429, %v2546
        %v2563 = vadd.f32 %v2430, %v2547
        %s2564 = scalar_lea.vmem %s4, 384
        %v2565 = vld [vmem:[%s2564] sm:$0xff]
        %v2566 = vld [vmem:[%s2564 + $0x8] sm:$0xff]
        %v2567 = vld [vmem:[%s2564 + $0x10] sm:$0xff]
        %v2568 = vld [vmem:[%s2564 + $0x18] sm:$0xff]
        %v2569 = vld [vmem:[%s2564 + $0x20] sm:$0xff]
        %v2570 = vld [vmem:[%s2564 + $0x28] sm:$0xff]
        %v2571 = vld [vmem:[%s2564 + $0x30] sm:$0xff]
        %v2572 = vld [vmem:[%s2564 + $0x38] sm:$0xff]
        %v2573 = vld [vmem:[%s2564 + $0x40] sm:$0xff]
        %v2574 = vld [vmem:[%s2564 + $0x48] sm:$0xff]
        %v2575 = vld [vmem:[%s2564 + $0x50] sm:$0xff]
        %v2576 = vld [vmem:[%s2564 + $0x58] sm:$0xff]
        %v2577 = vld [vmem:[%s2564 + $0x60] sm:$0xff]
        %v2578 = vld [vmem:[%s2564 + $0x68] sm:$0xff]
        %v2579 = vld [vmem:[%s2564 + $0x70] sm:$0xff]
        %v2580 = vld [vmem:[%s2564 + $0x78] sm:$0xff]
        %2582 = vset.pattern.permute.xlu0 0
        %2583 = vperm.xlu0 %2582, %v2565
        %v2584 = vpop.permute.xlu0 %2583
        %2587 = vset.pattern.permute.xlu0 0
        %2588 = vperm.xlu0 %2587, %v2566
        %v2589 = vpop.permute.xlu0 %2588
        %2592 = vset.pattern.permute.xlu0 0
        %2593 = vperm.xlu0 %2592, %v2567
        %v2594 = vpop.permute.xlu0 %2593
        %2597 = vset.pattern.permute.xlu0 0
        %2598 = vperm.xlu0 %2597, %v2568
        %v2599 = vpop.permute.xlu0 %2598
        %2602 = vset.pattern.permute.xlu0 0
        %2603 = vperm.xlu0 %2602, %v2569
        %v2604 = vpop.permute.xlu0 %2603
        %2607 = vset.pattern.permute.xlu0 0
        %2608 = vperm.xlu0 %2607, %v2570
        %v2609 = vpop.permute.xlu0 %2608
        %2612 = vset.pattern.permute.xlu0 0
        %2613 = vperm.xlu0 %2612, %v2571
        %v2614 = vpop.permute.xlu0 %2613
        %2617 = vset.pattern.permute.xlu0 0
        %2618 = vperm.xlu0 %2617, %v2572
        %v2619 = vpop.permute.xlu0 %2618
        %2622 = vset.pattern.permute.xlu0 0
        %2623 = vperm.xlu0 %2622, %v2573
        %v2624 = vpop.permute.xlu0 %2623
        %2627 = vset.pattern.permute.xlu0 0
        %2628 = vperm.xlu0 %2627, %v2574
        %v2629 = vpop.permute.xlu0 %2628
        %2632 = vset.pattern.permute.xlu0 0
        %2633 = vperm.xlu0 %2632, %v2575
        %v2634 = vpop.permute.xlu0 %2633
        %2637 = vset.pattern.permute.xlu0 0
        %2638 = vperm.xlu0 %2637, %v2576
        %v2639 = vpop.permute.xlu0 %2638
        %2642 = vset.pattern.permute.xlu0 0
        %2643 = vperm.xlu0 %2642, %v2577
        %v2644 = vpop.permute.xlu0 %2643
        %2647 = vset.pattern.permute.xlu0 0
        %2648 = vperm.xlu0 %2647, %v2578
        %v2649 = vpop.permute.xlu0 %2648
        %2652 = vset.pattern.permute.xlu0 0
        %2653 = vperm.xlu0 %2652, %v2579
        %v2654 = vpop.permute.xlu0 %2653
        %2657 = vset.pattern.permute.xlu0 0
        %2658 = vperm.xlu0 %2657, %v2580
        %v2659 = vpop.permute.xlu0 %2658
        %v2661 = vadd.f32 %v2548, %v2584
        %v2662 = vadd.f32 %v2549, %v2589
        %v2663 = vadd.f32 %v2550, %v2594
        %v2664 = vadd.f32 %v2551, %v2599
        %v2665 = vadd.f32 %v2552, %v2604
        %v2666 = vadd.f32 %v2553, %v2609
        %v2667 = vadd.f32 %v2554, %v2614
        %v2668 = vadd.f32 %v2555, %v2619
        %v2669 = vadd.f32 %v2556, %v2624
        %v2670 = vadd.f32 %v2557, %v2629
        %v2671 = vadd.f32 %v2558, %v2634
        %v2672 = vadd.f32 %v2559, %v2639
        %v2673 = vadd.f32 %v2560, %v2644
        %v2674 = vadd.f32 %v2561, %v2649
        %v2675 = vadd.f32 %v2562, %v2654
        %v2676 = vadd.f32 %v2563, %v2659
        %v2677 = vmax.f32 %v2661, 0.0
        %v2678 = vmax.f32 %v2662, 0.0
        %v2679 = vmax.f32 %v2663, 0.0
        %v2680 = vmax.f32 %v2664, 0.0
        %v2681 = vmax.f32 %v2665, 0.0
        %v2682 = vmax.f32 %v2666, 0.0
        %v2683 = vmax.f32 %v2667, 0.0
        %v2684 = vmax.f32 %v2668, 0.0
        %v2685 = vmax.f32 %v2669, 0.0
        %v2686 = vmax.f32 %v2670, 0.0
        %v2687 = vmax.f32 %v2671, 0.0
        %v2688 = vmax.f32 %v2672, 0.0
        %v2689 = vmax.f32 %v2673, 0.0
        %v2690 = vmax.f32 %v2674, 0.0
        %v2691 = vmax.f32 %v2675, 0.0
        %v2692 = vmax.f32 %v2676, 0.0
        %s2693 = scalar_lea.vmem %s5, 384
        %v2694 = vld [vmem:[%s2693] sm:$0xff]
        %v2695 = vld [vmem:[%s2693 + $0x8] sm:$0xff]
        %v2696 = vld [vmem:[%s2693 + $0x10] sm:$0xff]
        %v2697 = vld [vmem:[%s2693 + $0x18] sm:$0xff]
        %v2698 = vld [vmem:[%s2693 + $0x20] sm:$0xff]
        %v2699 = vld [vmem:[%s2693 + $0x28] sm:$0xff]
        %v2700 = vld [vmem:[%s2693 + $0x30] sm:$0xff]
        %v2701 = vld [vmem:[%s2693 + $0x38] sm:$0xff]
        %v2702 = vld [vmem:[%s2693 + $0x40] sm:$0xff]
        %v2703 = vld [vmem:[%s2693 + $0x48] sm:$0xff]
        %v2704 = vld [vmem:[%s2693 + $0x50] sm:$0xff]
        %v2705 = vld [vmem:[%s2693 + $0x58] sm:$0xff]
        %v2706 = vld [vmem:[%s2693 + $0x60] sm:$0xff]
        %v2707 = vld [vmem:[%s2693 + $0x68] sm:$0xff]
        %v2708 = vld [vmem:[%s2693 + $0x70] sm:$0xff]
        %v2709 = vld [vmem:[%s2693 + $0x78] sm:$0xff]
        %2711 = vset.pattern.permute.xlu0 0
        %2712 = vperm.xlu0 %2711, %v2694
        %v2713 = vpop.permute.xlu0 %2712
        %2716 = vset.pattern.permute.xlu0 0
        %2717 = vperm.xlu0 %2716, %v2695
        %v2718 = vpop.permute.xlu0 %2717
        %2721 = vset.pattern.permute.xlu0 0
        %2722 = vperm.xlu0 %2721, %v2696
        %v2723 = vpop.permute.xlu0 %2722
        %2726 = vset.pattern.permute.xlu0 0
        %2727 = vperm.xlu0 %2726, %v2697
        %v2728 = vpop.permute.xlu0 %2727
        %2731 = vset.pattern.permute.xlu0 0
        %2732 = vperm.xlu0 %2731, %v2698
        %v2733 = vpop.permute.xlu0 %2732
        %2736 = vset.pattern.permute.xlu0 0
        %2737 = vperm.xlu0 %2736, %v2699
        %v2738 = vpop.permute.xlu0 %2737
        %2741 = vset.pattern.permute.xlu0 0
        %2742 = vperm.xlu0 %2741, %v2700
        %v2743 = vpop.permute.xlu0 %2742
        %2746 = vset.pattern.permute.xlu0 0
        %2747 = vperm.xlu0 %2746, %v2701
        %v2748 = vpop.permute.xlu0 %2747
        %2751 = vset.pattern.permute.xlu0 0
        %2752 = vperm.xlu0 %2751, %v2702
        %v2753 = vpop.permute.xlu0 %2752
        %2756 = vset.pattern.permute.xlu0 0
        %2757 = vperm.xlu0 %2756, %v2703
        %v2758 = vpop.permute.xlu0 %2757
        %2761 = vset.pattern.permute.xlu0 0
        %2762 = vperm.xlu0 %2761, %v2704
        %v2763 = vpop.permute.xlu0 %2762
        %2766 = vset.pattern.permute.xlu0 0
        %2767 = vperm.xlu0 %2766, %v2705
        %v2768 = vpop.permute.xlu0 %2767
        %2771 = vset.pattern.permute.xlu0 0
        %2772 = vperm.xlu0 %2771, %v2706
        %v2773 = vpop.permute.xlu0 %2772
        %2776 = vset.pattern.permute.xlu0 0
        %2777 = vperm.xlu0 %2776, %v2707
        %v2778 = vpop.permute.xlu0 %2777
        %2781 = vset.pattern.permute.xlu0 0
        %2782 = vperm.xlu0 %2781, %v2708
        %v2783 = vpop.permute.xlu0 %2782
        %2786 = vset.pattern.permute.xlu0 0
        %2787 = vperm.xlu0 %2786, %v2709
        %v2788 = vpop.permute.xlu0 %2787
        %v2790 = vmul.f32 %v2713, %v2677
        %v2791 = vmul.f32 %v2718, %v2678
        %v2792 = vmul.f32 %v2723, %v2679
        %v2793 = vmul.f32 %v2728, %v2680
        %v2794 = vmul.f32 %v2733, %v2681
        %v2795 = vmul.f32 %v2738, %v2682
        %v2796 = vmul.f32 %v2743, %v2683
        %v2797 = vmul.f32 %v2748, %v2684
        %v2798 = vmul.f32 %v2753, %v2685
        %v2799 = vmul.f32 %v2758, %v2686
        %v2800 = vmul.f32 %v2763, %v2687
        %v2801 = vmul.f32 %v2768, %v2688
        %v2802 = vmul.f32 %v2773, %v2689
        %v2803 = vmul.f32 %v2778, %v2690
        %v2804 = vmul.f32 %v2783, %v2691
        %v2805 = vmul.f32 %v2788, %v2692
        %v2806 = vadd.f32 %v2790, %v2791
        %v2807 = vadd.f32 %v2806, %v2792
        %v2808 = vadd.f32 %v2807, %v2793
        %v2809 = vadd.f32 %v2808, %v2794
        %v2810 = vadd.f32 %v2809, %v2795
        %v2811 = vadd.f32 %v2810, %v2796
        %v2812 = vadd.f32 %v2811, %v2797
        %v2813 = vadd.f32 %v2812, %v2798
        %v2814 = vadd.f32 %v2813, %v2799
        %v2815 = vadd.f32 %v2814, %v2800
        %v2816 = vadd.f32 %v2815, %v2801
        %v2817 = vadd.f32 %v2816, %v2802
        %v2818 = vadd.f32 %v2817, %v2803
        %v2819 = vadd.f32 %v2818, %v2804
        %v2820 = vadd.f32 %v2819, %v2805
        %v2821 = vrot.slane %v2820, 4
        %v2822 = vadd.f32 %v2820, %v2821
        %v2823 = vrot.slane %v2822, 2
        %v2824 = vadd.f32 %v2822, %v2823
        %v2825 = vrot.slane %v2824, 1
        %v2826 = vadd.f32 %v2824, %v2825
        %s2827 = scalar_lea.vmem %s7, 6
        %v2828 = vld [vmem:[%s2827] sm:$0x1]
        %2830 = vset.pattern.permute.xlu0 0
        %2831 = vperm.xlu0 %2830, %v2828
        %v2832 = vpop.permute.xlu0 %2831
        %v2834 = vadd.f32 %v2826, %v2832
        %s2835 = scalar_lea.vmem %s6, 384
        %v2836 = vld [vmem:[%s2835] sm:$0xff]
        %v2837 = vld [vmem:[%s2835 + $0x8] sm:$0xff]
        %v2838 = vld [vmem:[%s2835 + $0x10] sm:$0xff]
        %v2839 = vld [vmem:[%s2835 + $0x18] sm:$0xff]
        %v2840 = vld [vmem:[%s2835 + $0x20] sm:$0xff]
        %v2841 = vld [vmem:[%s2835 + $0x28] sm:$0xff]
        %v2842 = vld [vmem:[%s2835 + $0x30] sm:$0xff]
        %v2843 = vld [vmem:[%s2835 + $0x38] sm:$0xff]
        %v2844 = vld [vmem:[%s2835 + $0x40] sm:$0xff]
        %v2845 = vld [vmem:[%s2835 + $0x48] sm:$0xff]
        %v2846 = vld [vmem:[%s2835 + $0x50] sm:$0xff]
        %v2847 = vld [vmem:[%s2835 + $0x58] sm:$0xff]
        %v2848 = vld [vmem:[%s2835 + $0x60] sm:$0xff]
        %v2849 = vld [vmem:[%s2835 + $0x68] sm:$0xff]
        %v2850 = vld [vmem:[%s2835 + $0x70] sm:$0xff]
        %v2851 = vld [vmem:[%s2835 + $0x78] sm:$0xff]
        %2853 = vset.pattern.permute.xlu0 0
        %2854 = vperm.xlu0 %2853, %v2836
        %v2855 = vpop.permute.xlu0 %2854
        %2858 = vset.pattern.permute.xlu0 0
        %2859 = vperm.xlu0 %2858, %v2837
        %v2860 = vpop.permute.xlu0 %2859
        %2863 = vset.pattern.permute.xlu0 0
        %2864 = vperm.xlu0 %2863, %v2838
        %v2865 = vpop.permute.xlu0 %2864
        %2868 = vset.pattern.permute.xlu0 0
        %2869 = vperm.xlu0 %2868, %v2839
        %v2870 = vpop.permute.xlu0 %2869
        %2873 = vset.pattern.permute.xlu0 0
        %2874 = vperm.xlu0 %2873, %v2840
        %v2875 = vpop.permute.xlu0 %2874
        %2878 = vset.pattern.permute.xlu0 0
        %2879 = vperm.xlu0 %2878, %v2841
        %v2880 = vpop.permute.xlu0 %2879
        %2883 = vset.pattern.permute.xlu0 0
        %2884 = vperm.xlu0 %2883, %v2842
        %v2885 = vpop.permute.xlu0 %2884
        %2888 = vset.pattern.permute.xlu0 0
        %2889 = vperm.xlu0 %2888, %v2843
        %v2890 = vpop.permute.xlu0 %2889
        %2893 = vset.pattern.permute.xlu0 0
        %2894 = vperm.xlu0 %2893, %v2844
        %v2895 = vpop.permute.xlu0 %2894
        %2898 = vset.pattern.permute.xlu0 0
        %2899 = vperm.xlu0 %2898, %v2845
        %v2900 = vpop.permute.xlu0 %2899
        %2903 = vset.pattern.permute.xlu0 0
        %2904 = vperm.xlu0 %2903, %v2846
        %v2905 = vpop.permute.xlu0 %2904
        %2908 = vset.pattern.permute.xlu0 0
        %2909 = vperm.xlu0 %2908, %v2847
        %v2910 = vpop.permute.xlu0 %2909
        %2913 = vset.pattern.permute.xlu0 0
        %2914 = vperm.xlu0 %2913, %v2848
        %v2915 = vpop.permute.xlu0 %2914
        %2918 = vset.pattern.permute.xlu0 0
        %2919 = vperm.xlu0 %2918, %v2849
        %v2920 = vpop.permute.xlu0 %2919
        %2923 = vset.pattern.permute.xlu0 0
        %2924 = vperm.xlu0 %2923, %v2850
        %v2925 = vpop.permute.xlu0 %2924
        %2928 = vset.pattern.permute.xlu0 0
        %2929 = vperm.xlu0 %2928, %v2851
        %v2930 = vpop.permute.xlu0 %2929
        %v2932 = vmul.f32 %v2855, %v2677
        %v2933 = vmul.f32 %v2860, %v2678
        %v2934 = vmul.f32 %v2865, %v2679
        %v2935 = vmul.f32 %v2870, %v2680
        %v2936 = vmul.f32 %v2875, %v2681
        %v2937 = vmul.f32 %v2880, %v2682
        %v2938 = vmul.f32 %v2885, %v2683
        %v2939 = vmul.f32 %v2890, %v2684
        %v2940 = vmul.f32 %v2895, %v2685
        %v2941 = vmul.f32 %v2900, %v2686
        %v2942 = vmul.f32 %v2905, %v2687
        %v2943 = vmul.f32 %v2910, %v2688
        %v2944 = vmul.f32 %v2915, %v2689
        %v2945 = vmul.f32 %v2920, %v2690
        %v2946 = vmul.f32 %v2925, %v2691
        %v2947 = vmul.f32 %v2930, %v2692
        %v2948 = vadd.f32 %v2932, %v2933
        %v2949 = vadd.f32 %v2948, %v2934
        %v2950 = vadd.f32 %v2949, %v2935
        %v2951 = vadd.f32 %v2950, %v2936
        %v2952 = vadd.f32 %v2951, %v2937
        %v2953 = vadd.f32 %v2952, %v2938
        %v2954 = vadd.f32 %v2953, %v2939
        %v2955 = vadd.f32 %v2954, %v2940
        %v2956 = vadd.f32 %v2955, %v2941
        %v2957 = vadd.f32 %v2956, %v2942
        %v2958 = vadd.f32 %v2957, %v2943
        %v2959 = vadd.f32 %v2958, %v2944
        %v2960 = vadd.f32 %v2959, %v2945
        %v2961 = vadd.f32 %v2960, %v2946
        %v2962 = vadd.f32 %v2961, %v2947
        %v2963 = vrot.slane %v2962, 4
        %v2964 = vadd.f32 %v2962, %v2963
        %v2965 = vrot.slane %v2964, 2
        %v2966 = vadd.f32 %v2964, %v2965
        %v2967 = vrot.slane %v2966, 1
        %v2968 = vadd.f32 %v2966, %v2967
        %v2969 = vld [vmem:[%s2827 + $0x1] sm:$0x1]
        %2971 = vset.pattern.permute.xlu0 0
        %2972 = vperm.xlu0 %2971, %v2969
        %v2973 = vpop.permute.xlu0 %2972
        %v2975 = vadd.f32 %v2968, %v2973
        %v2976 = vmax.f32 %v2975, -5.0
        %v2977 = vmin.f32 %v2976, 3.0
        %v2978 = vmul.f32 %v2977, 1.442695
        %v2979 = vpow.pop %v2978
        %v2980 = vmul.f32 %v2979, %v1649
        %v2981 = vadd.f32 %v2980, %v2834
        %2982 = vst [vmem:[%s307 + $0x8] sm:$0x1] %v2315
        %2983 = vst [vmem:[%s307 + $0x9] sm:$0x1] %v2981
        %s2984 = scalar_lea.vmem %s2, 512
        %v2985 = vld [vmem:[%s2984] sm:$0xff]
        %v2986 = vld [vmem:[%s2984 + $0x8] sm:$0xff]
        %v2987 = vld [vmem:[%s2984 + $0x10] sm:$0xff]
        %v2988 = vld [vmem:[%s2984 + $0x18] sm:$0xff]
        %v2989 = vld [vmem:[%s2984 + $0x20] sm:$0xff]
        %v2990 = vld [vmem:[%s2984 + $0x28] sm:$0xff]
        %v2991 = vld [vmem:[%s2984 + $0x30] sm:$0xff]
        %v2992 = vld [vmem:[%s2984 + $0x38] sm:$0xff]
        %v2993 = vld [vmem:[%s2984 + $0x40] sm:$0xff]
        %v2994 = vld [vmem:[%s2984 + $0x48] sm:$0xff]
        %v2995 = vld [vmem:[%s2984 + $0x50] sm:$0xff]
        %v2996 = vld [vmem:[%s2984 + $0x58] sm:$0xff]
        %v2997 = vld [vmem:[%s2984 + $0x60] sm:$0xff]
        %v2998 = vld [vmem:[%s2984 + $0x68] sm:$0xff]
        %v2999 = vld [vmem:[%s2984 + $0x70] sm:$0xff]
        %v3000 = vld [vmem:[%s2984 + $0x78] sm:$0xff]
        %3002 = vset.pattern.permute.xlu0 0
        %3003 = vperm.xlu0 %3002, %v2985
        %v3004 = vpop.permute.xlu0 %3003
        %3007 = vset.pattern.permute.xlu0 0
        %3008 = vperm.xlu0 %3007, %v2986
        %v3009 = vpop.permute.xlu0 %3008
        %3012 = vset.pattern.permute.xlu0 0
        %3013 = vperm.xlu0 %3012, %v2987
        %v3014 = vpop.permute.xlu0 %3013
        %3017 = vset.pattern.permute.xlu0 0
        %3018 = vperm.xlu0 %3017, %v2988
        %v3019 = vpop.permute.xlu0 %3018
        %3022 = vset.pattern.permute.xlu0 0
        %3023 = vperm.xlu0 %3022, %v2989
        %v3024 = vpop.permute.xlu0 %3023
        %3027 = vset.pattern.permute.xlu0 0
        %3028 = vperm.xlu0 %3027, %v2990
        %v3029 = vpop.permute.xlu0 %3028
        %3032 = vset.pattern.permute.xlu0 0
        %3033 = vperm.xlu0 %3032, %v2991
        %v3034 = vpop.permute.xlu0 %3033
        %3037 = vset.pattern.permute.xlu0 0
        %3038 = vperm.xlu0 %3037, %v2992
        %v3039 = vpop.permute.xlu0 %3038
        %3042 = vset.pattern.permute.xlu0 0
        %3043 = vperm.xlu0 %3042, %v2993
        %v3044 = vpop.permute.xlu0 %3043
        %3047 = vset.pattern.permute.xlu0 0
        %3048 = vperm.xlu0 %3047, %v2994
        %v3049 = vpop.permute.xlu0 %3048
        %3052 = vset.pattern.permute.xlu0 0
        %3053 = vperm.xlu0 %3052, %v2995
        %v3054 = vpop.permute.xlu0 %3053
        %3057 = vset.pattern.permute.xlu0 0
        %3058 = vperm.xlu0 %3057, %v2996
        %v3059 = vpop.permute.xlu0 %3058
        %3062 = vset.pattern.permute.xlu0 0
        %3063 = vperm.xlu0 %3062, %v2997
        %v3064 = vpop.permute.xlu0 %3063
        %3067 = vset.pattern.permute.xlu0 0
        %3068 = vperm.xlu0 %3067, %v2998
        %v3069 = vpop.permute.xlu0 %3068
        %3072 = vset.pattern.permute.xlu0 0
        %3073 = vperm.xlu0 %3072, %v2999
        %v3074 = vpop.permute.xlu0 %3073
        %3077 = vset.pattern.permute.xlu0 0
        %3078 = vperm.xlu0 %3077, %v3000
        %v3079 = vpop.permute.xlu0 %3078
        %v3081 = vmul.f32 %v3004, %v420
        %v3082 = vmul.f32 %v3009, %v420
        %v3083 = vmul.f32 %v3014, %v420
        %v3084 = vmul.f32 %v3019, %v420
        %v3085 = vmul.f32 %v3024, %v420
        %v3086 = vmul.f32 %v3029, %v420
        %v3087 = vmul.f32 %v3034, %v420
        %v3088 = vmul.f32 %v3039, %v420
        %v3089 = vmul.f32 %v3044, %v420
        %v3090 = vmul.f32 %v3049, %v420
        %v3091 = vmul.f32 %v3054, %v420
        %v3092 = vmul.f32 %v3059, %v420
        %v3093 = vmul.f32 %v3064, %v420
        %v3094 = vmul.f32 %v3069, %v420
        %v3095 = vmul.f32 %v3074, %v420
        %v3096 = vmul.f32 %v3079, %v420
        %s3097 = scalar_lea.vmem %s3, 512
        %v3098 = vld [vmem:[%s3097] sm:$0xff]
        %v3099 = vld [vmem:[%s3097 + $0x8] sm:$0xff]
        %v3100 = vld [vmem:[%s3097 + $0x10] sm:$0xff]
        %v3101 = vld [vmem:[%s3097 + $0x18] sm:$0xff]
        %v3102 = vld [vmem:[%s3097 + $0x20] sm:$0xff]
        %v3103 = vld [vmem:[%s3097 + $0x28] sm:$0xff]
        %v3104 = vld [vmem:[%s3097 + $0x30] sm:$0xff]
        %v3105 = vld [vmem:[%s3097 + $0x38] sm:$0xff]
        %v3106 = vld [vmem:[%s3097 + $0x40] sm:$0xff]
        %v3107 = vld [vmem:[%s3097 + $0x48] sm:$0xff]
        %v3108 = vld [vmem:[%s3097 + $0x50] sm:$0xff]
        %v3109 = vld [vmem:[%s3097 + $0x58] sm:$0xff]
        %v3110 = vld [vmem:[%s3097 + $0x60] sm:$0xff]
        %v3111 = vld [vmem:[%s3097 + $0x68] sm:$0xff]
        %v3112 = vld [vmem:[%s3097 + $0x70] sm:$0xff]
        %v3113 = vld [vmem:[%s3097 + $0x78] sm:$0xff]
        %3115 = vset.pattern.permute.xlu0 0
        %3116 = vperm.xlu0 %3115, %v3098
        %v3117 = vpop.permute.xlu0 %3116
        %3120 = vset.pattern.permute.xlu0 0
        %3121 = vperm.xlu0 %3120, %v3099
        %v3122 = vpop.permute.xlu0 %3121
        %3125 = vset.pattern.permute.xlu0 0
        %3126 = vperm.xlu0 %3125, %v3100
        %v3127 = vpop.permute.xlu0 %3126
        %3130 = vset.pattern.permute.xlu0 0
        %3131 = vperm.xlu0 %3130, %v3101
        %v3132 = vpop.permute.xlu0 %3131
        %3135 = vset.pattern.permute.xlu0 0
        %3136 = vperm.xlu0 %3135, %v3102
        %v3137 = vpop.permute.xlu0 %3136
        %3140 = vset.pattern.permute.xlu0 0
        %3141 = vperm.xlu0 %3140, %v3103
        %v3142 = vpop.permute.xlu0 %3141
        %3145 = vset.pattern.permute.xlu0 0
        %3146 = vperm.xlu0 %3145, %v3104
        %v3147 = vpop.permute.xlu0 %3146
        %3150 = vset.pattern.permute.xlu0 0
        %3151 = vperm.xlu0 %3150, %v3105
        %v3152 = vpop.permute.xlu0 %3151
        %3155 = vset.pattern.permute.xlu0 0
        %3156 = vperm.xlu0 %3155, %v3106
        %v3157 = vpop.permute.xlu0 %3156
        %3160 = vset.pattern.permute.xlu0 0
        %3161 = vperm.xlu0 %3160, %v3107
        %v3162 = vpop.permute.xlu0 %3161
        %3165 = vset.pattern.permute.xlu0 0
        %3166 = vperm.xlu0 %3165, %v3108
        %v3167 = vpop.permute.xlu0 %3166
        %3170 = vset.pattern.permute.xlu0 0
        %3171 = vperm.xlu0 %3170, %v3109
        %v3172 = vpop.permute.xlu0 %3171
        %3175 = vset.pattern.permute.xlu0 0
        %3176 = vperm.xlu0 %3175, %v3110
        %v3177 = vpop.permute.xlu0 %3176
        %3180 = vset.pattern.permute.xlu0 0
        %3181 = vperm.xlu0 %3180, %v3111
        %v3182 = vpop.permute.xlu0 %3181
        %3185 = vset.pattern.permute.xlu0 0
        %3186 = vperm.xlu0 %3185, %v3112
        %v3187 = vpop.permute.xlu0 %3186
        %3190 = vset.pattern.permute.xlu0 0
        %3191 = vperm.xlu0 %3190, %v3113
        %v3192 = vpop.permute.xlu0 %3191
        %v3194 = vlaneseq
        %v3195 = vshrl.u32 %v3194, 7
        %v3196 = vsub.s32 0, %v3195
        %v3197 = vrot.slane %v2981, %v3196
        %v3198 = vmul.f32 %v3117, %v3197
        %v3199 = vmul.f32 %v3122, %v3197
        %v3200 = vmul.f32 %v3127, %v3197
        %v3201 = vmul.f32 %v3132, %v3197
        %v3202 = vmul.f32 %v3137, %v3197
        %v3203 = vmul.f32 %v3142, %v3197
        %v3204 = vmul.f32 %v3147, %v3197
        %v3205 = vmul.f32 %v3152, %v3197
        %v3206 = vmul.f32 %v3157, %v3197
        %v3207 = vmul.f32 %v3162, %v3197
        %v3208 = vmul.f32 %v3167, %v3197
        %v3209 = vmul.f32 %v3172, %v3197
        %v3210 = vmul.f32 %v3177, %v3197
        %v3211 = vmul.f32 %v3182, %v3197
        %v3212 = vmul.f32 %v3187, %v3197
        %v3213 = vmul.f32 %v3192, %v3197
        %v3214 = vadd.f32 %v3081, %v3198
        %v3215 = vadd.f32 %v3082, %v3199
        %v3216 = vadd.f32 %v3083, %v3200
        %v3217 = vadd.f32 %v3084, %v3201
        %v3218 = vadd.f32 %v3085, %v3202
        %v3219 = vadd.f32 %v3086, %v3203
        %v3220 = vadd.f32 %v3087, %v3204
        %v3221 = vadd.f32 %v3088, %v3205
        %v3222 = vadd.f32 %v3089, %v3206
        %v3223 = vadd.f32 %v3090, %v3207
        %v3224 = vadd.f32 %v3091, %v3208
        %v3225 = vadd.f32 %v3092, %v3209
        %v3226 = vadd.f32 %v3093, %v3210
        %v3227 = vadd.f32 %v3094, %v3211
        %v3228 = vadd.f32 %v3095, %v3212
        %v3229 = vadd.f32 %v3096, %v3213
        %s3230 = scalar_lea.vmem %s4, 512
        %v3231 = vld [vmem:[%s3230] sm:$0xff]
        %v3232 = vld [vmem:[%s3230 + $0x8] sm:$0xff]
        %v3233 = vld [vmem:[%s3230 + $0x10] sm:$0xff]
        %v3234 = vld [vmem:[%s3230 + $0x18] sm:$0xff]
        %v3235 = vld [vmem:[%s3230 + $0x20] sm:$0xff]
        %v3236 = vld [vmem:[%s3230 + $0x28] sm:$0xff]
        %v3237 = vld [vmem:[%s3230 + $0x30] sm:$0xff]
        %v3238 = vld [vmem:[%s3230 + $0x38] sm:$0xff]
        %v3239 = vld [vmem:[%s3230 + $0x40] sm:$0xff]
        %v3240 = vld [vmem:[%s3230 + $0x48] sm:$0xff]
        %v3241 = vld [vmem:[%s3230 + $0x50] sm:$0xff]
        %v3242 = vld [vmem:[%s3230 + $0x58] sm:$0xff]
        %v3243 = vld [vmem:[%s3230 + $0x60] sm:$0xff]
        %v3244 = vld [vmem:[%s3230 + $0x68] sm:$0xff]
        %v3245 = vld [vmem:[%s3230 + $0x70] sm:$0xff]
        %v3246 = vld [vmem:[%s3230 + $0x78] sm:$0xff]
        %3248 = vset.pattern.permute.xlu0 0
        %3249 = vperm.xlu0 %3248, %v3231
        %v3250 = vpop.permute.xlu0 %3249
        %3253 = vset.pattern.permute.xlu0 0
        %3254 = vperm.xlu0 %3253, %v3232
        %v3255 = vpop.permute.xlu0 %3254
        %3258 = vset.pattern.permute.xlu0 0
        %3259 = vperm.xlu0 %3258, %v3233
        %v3260 = vpop.permute.xlu0 %3259
        %3263 = vset.pattern.permute.xlu0 0
        %3264 = vperm.xlu0 %3263, %v3234
        %v3265 = vpop.permute.xlu0 %3264
        %3268 = vset.pattern.permute.xlu0 0
        %3269 = vperm.xlu0 %3268, %v3235
        %v3270 = vpop.permute.xlu0 %3269
        %3273 = vset.pattern.permute.xlu0 0
        %3274 = vperm.xlu0 %3273, %v3236
        %v3275 = vpop.permute.xlu0 %3274
        %3278 = vset.pattern.permute.xlu0 0
        %3279 = vperm.xlu0 %3278, %v3237
        %v3280 = vpop.permute.xlu0 %3279
        %3283 = vset.pattern.permute.xlu0 0
        %3284 = vperm.xlu0 %3283, %v3238
        %v3285 = vpop.permute.xlu0 %3284
        %3288 = vset.pattern.permute.xlu0 0
        %3289 = vperm.xlu0 %3288, %v3239
        %v3290 = vpop.permute.xlu0 %3289
        %3293 = vset.pattern.permute.xlu0 0
        %3294 = vperm.xlu0 %3293, %v3240
        %v3295 = vpop.permute.xlu0 %3294
        %3298 = vset.pattern.permute.xlu0 0
        %3299 = vperm.xlu0 %3298, %v3241
        %v3300 = vpop.permute.xlu0 %3299
        %3303 = vset.pattern.permute.xlu0 0
        %3304 = vperm.xlu0 %3303, %v3242
        %v3305 = vpop.permute.xlu0 %3304
        %3308 = vset.pattern.permute.xlu0 0
        %3309 = vperm.xlu0 %3308, %v3243
        %v3310 = vpop.permute.xlu0 %3309
        %3313 = vset.pattern.permute.xlu0 0
        %3314 = vperm.xlu0 %3313, %v3244
        %v3315 = vpop.permute.xlu0 %3314
        %3318 = vset.pattern.permute.xlu0 0
        %3319 = vperm.xlu0 %3318, %v3245
        %v3320 = vpop.permute.xlu0 %3319
        %3323 = vset.pattern.permute.xlu0 0
        %3324 = vperm.xlu0 %3323, %v3246
        %v3325 = vpop.permute.xlu0 %3324
        %v3327 = vadd.f32 %v3214, %v3250
        %v3328 = vadd.f32 %v3215, %v3255
        %v3329 = vadd.f32 %v3216, %v3260
        %v3330 = vadd.f32 %v3217, %v3265
        %v3331 = vadd.f32 %v3218, %v3270
        %v3332 = vadd.f32 %v3219, %v3275
        %v3333 = vadd.f32 %v3220, %v3280
        %v3334 = vadd.f32 %v3221, %v3285
        %v3335 = vadd.f32 %v3222, %v3290
        %v3336 = vadd.f32 %v3223, %v3295
        %v3337 = vadd.f32 %v3224, %v3300
        %v3338 = vadd.f32 %v3225, %v3305
        %v3339 = vadd.f32 %v3226, %v3310
        %v3340 = vadd.f32 %v3227, %v3315
        %v3341 = vadd.f32 %v3228, %v3320
        %v3342 = vadd.f32 %v3229, %v3325
        %v3343 = vmax.f32 %v3327, 0.0
        %v3344 = vmax.f32 %v3328, 0.0
        %v3345 = vmax.f32 %v3329, 0.0
        %v3346 = vmax.f32 %v3330, 0.0
        %v3347 = vmax.f32 %v3331, 0.0
        %v3348 = vmax.f32 %v3332, 0.0
        %v3349 = vmax.f32 %v3333, 0.0
        %v3350 = vmax.f32 %v3334, 0.0
        %v3351 = vmax.f32 %v3335, 0.0
        %v3352 = vmax.f32 %v3336, 0.0
        %v3353 = vmax.f32 %v3337, 0.0
        %v3354 = vmax.f32 %v3338, 0.0
        %v3355 = vmax.f32 %v3339, 0.0
        %v3356 = vmax.f32 %v3340, 0.0
        %v3357 = vmax.f32 %v3341, 0.0
        %v3358 = vmax.f32 %v3342, 0.0
        %s3359 = scalar_lea.vmem %s5, 512
        %v3360 = vld [vmem:[%s3359] sm:$0xff]
        %v3361 = vld [vmem:[%s3359 + $0x8] sm:$0xff]
        %v3362 = vld [vmem:[%s3359 + $0x10] sm:$0xff]
        %v3363 = vld [vmem:[%s3359 + $0x18] sm:$0xff]
        %v3364 = vld [vmem:[%s3359 + $0x20] sm:$0xff]
        %v3365 = vld [vmem:[%s3359 + $0x28] sm:$0xff]
        %v3366 = vld [vmem:[%s3359 + $0x30] sm:$0xff]
        %v3367 = vld [vmem:[%s3359 + $0x38] sm:$0xff]
        %v3368 = vld [vmem:[%s3359 + $0x40] sm:$0xff]
        %v3369 = vld [vmem:[%s3359 + $0x48] sm:$0xff]
        %v3370 = vld [vmem:[%s3359 + $0x50] sm:$0xff]
        %v3371 = vld [vmem:[%s3359 + $0x58] sm:$0xff]
        %v3372 = vld [vmem:[%s3359 + $0x60] sm:$0xff]
        %v3373 = vld [vmem:[%s3359 + $0x68] sm:$0xff]
        %v3374 = vld [vmem:[%s3359 + $0x70] sm:$0xff]
        %v3375 = vld [vmem:[%s3359 + $0x78] sm:$0xff]
        %3377 = vset.pattern.permute.xlu0 0
        %3378 = vperm.xlu0 %3377, %v3360
        %v3379 = vpop.permute.xlu0 %3378
        %3382 = vset.pattern.permute.xlu0 0
        %3383 = vperm.xlu0 %3382, %v3361
        %v3384 = vpop.permute.xlu0 %3383
        %3387 = vset.pattern.permute.xlu0 0
        %3388 = vperm.xlu0 %3387, %v3362
        %v3389 = vpop.permute.xlu0 %3388
        %3392 = vset.pattern.permute.xlu0 0
        %3393 = vperm.xlu0 %3392, %v3363
        %v3394 = vpop.permute.xlu0 %3393
        %3397 = vset.pattern.permute.xlu0 0
        %3398 = vperm.xlu0 %3397, %v3364
        %v3399 = vpop.permute.xlu0 %3398
        %3402 = vset.pattern.permute.xlu0 0
        %3403 = vperm.xlu0 %3402, %v3365
        %v3404 = vpop.permute.xlu0 %3403
        %3407 = vset.pattern.permute.xlu0 0
        %3408 = vperm.xlu0 %3407, %v3366
        %v3409 = vpop.permute.xlu0 %3408
        %3412 = vset.pattern.permute.xlu0 0
        %3413 = vperm.xlu0 %3412, %v3367
        %v3414 = vpop.permute.xlu0 %3413
        %3417 = vset.pattern.permute.xlu0 0
        %3418 = vperm.xlu0 %3417, %v3368
        %v3419 = vpop.permute.xlu0 %3418
        %3422 = vset.pattern.permute.xlu0 0
        %3423 = vperm.xlu0 %3422, %v3369
        %v3424 = vpop.permute.xlu0 %3423
        %3427 = vset.pattern.permute.xlu0 0
        %3428 = vperm.xlu0 %3427, %v3370
        %v3429 = vpop.permute.xlu0 %3428
        %3432 = vset.pattern.permute.xlu0 0
        %3433 = vperm.xlu0 %3432, %v3371
        %v3434 = vpop.permute.xlu0 %3433
        %3437 = vset.pattern.permute.xlu0 0
        %3438 = vperm.xlu0 %3437, %v3372
        %v3439 = vpop.permute.xlu0 %3438
        %3442 = vset.pattern.permute.xlu0 0
        %3443 = vperm.xlu0 %3442, %v3373
        %v3444 = vpop.permute.xlu0 %3443
        %3447 = vset.pattern.permute.xlu0 0
        %3448 = vperm.xlu0 %3447, %v3374
        %v3449 = vpop.permute.xlu0 %3448
        %3452 = vset.pattern.permute.xlu0 0
        %3453 = vperm.xlu0 %3452, %v3375
        %v3454 = vpop.permute.xlu0 %3453
        %v3456 = vmul.f32 %v3379, %v3343
        %v3457 = vmul.f32 %v3384, %v3344
        %v3458 = vmul.f32 %v3389, %v3345
        %v3459 = vmul.f32 %v3394, %v3346
        %v3460 = vmul.f32 %v3399, %v3347
        %v3461 = vmul.f32 %v3404, %v3348
        %v3462 = vmul.f32 %v3409, %v3349
        %v3463 = vmul.f32 %v3414, %v3350
        %v3464 = vmul.f32 %v3419, %v3351
        %v3465 = vmul.f32 %v3424, %v3352
        %v3466 = vmul.f32 %v3429, %v3353
        %v3467 = vmul.f32 %v3434, %v3354
        %v3468 = vmul.f32 %v3439, %v3355
        %v3469 = vmul.f32 %v3444, %v3356
        %v3470 = vmul.f32 %v3449, %v3357
        %v3471 = vmul.f32 %v3454, %v3358
        %v3472 = vadd.f32 %v3456, %v3457
        %v3473 = vadd.f32 %v3472, %v3458
        %v3474 = vadd.f32 %v3473, %v3459
        %v3475 = vadd.f32 %v3474, %v3460
        %v3476 = vadd.f32 %v3475, %v3461
        %v3477 = vadd.f32 %v3476, %v3462
        %v3478 = vadd.f32 %v3477, %v3463
        %v3479 = vadd.f32 %v3478, %v3464
        %v3480 = vadd.f32 %v3479, %v3465
        %v3481 = vadd.f32 %v3480, %v3466
        %v3482 = vadd.f32 %v3481, %v3467
        %v3483 = vadd.f32 %v3482, %v3468
        %v3484 = vadd.f32 %v3483, %v3469
        %v3485 = vadd.f32 %v3484, %v3470
        %v3486 = vadd.f32 %v3485, %v3471
        %v3487 = vrot.slane %v3486, 4
        %v3488 = vadd.f32 %v3486, %v3487
        %v3489 = vrot.slane %v3488, 2
        %v3490 = vadd.f32 %v3488, %v3489
        %v3491 = vrot.slane %v3490, 1
        %v3492 = vadd.f32 %v3490, %v3491
        %s3493 = scalar_lea.vmem %s7, 8
        %v3494 = vld [vmem:[%s3493] sm:$0x1]
        %3496 = vset.pattern.permute.xlu0 0
        %3497 = vperm.xlu0 %3496, %v3494
        %v3498 = vpop.permute.xlu0 %3497
        %v3500 = vadd.f32 %v3492, %v3498
        %s3501 = scalar_lea.vmem %s6, 512
        %v3502 = vld [vmem:[%s3501] sm:$0xff]
        %v3503 = vld [vmem:[%s3501 + $0x8] sm:$0xff]
        %v3504 = vld [vmem:[%s3501 + $0x10] sm:$0xff]
        %v3505 = vld [vmem:[%s3501 + $0x18] sm:$0xff]
        %v3506 = vld [vmem:[%s3501 + $0x20] sm:$0xff]
        %v3507 = vld [vmem:[%s3501 + $0x28] sm:$0xff]
        %v3508 = vld [vmem:[%s3501 + $0x30] sm:$0xff]
        %v3509 = vld [vmem:[%s3501 + $0x38] sm:$0xff]
        %v3510 = vld [vmem:[%s3501 + $0x40] sm:$0xff]
        %v3511 = vld [vmem:[%s3501 + $0x48] sm:$0xff]
        %v3512 = vld [vmem:[%s3501 + $0x50] sm:$0xff]
        %v3513 = vld [vmem:[%s3501 + $0x58] sm:$0xff]
        %v3514 = vld [vmem:[%s3501 + $0x60] sm:$0xff]
        %v3515 = vld [vmem:[%s3501 + $0x68] sm:$0xff]
        %v3516 = vld [vmem:[%s3501 + $0x70] sm:$0xff]
        %v3517 = vld [vmem:[%s3501 + $0x78] sm:$0xff]
        %3519 = vset.pattern.permute.xlu0 0
        %3520 = vperm.xlu0 %3519, %v3502
        %v3521 = vpop.permute.xlu0 %3520
        %3524 = vset.pattern.permute.xlu0 0
        %3525 = vperm.xlu0 %3524, %v3503
        %v3526 = vpop.permute.xlu0 %3525
        %3529 = vset.pattern.permute.xlu0 0
        %3530 = vperm.xlu0 %3529, %v3504
        %v3531 = vpop.permute.xlu0 %3530
        %3534 = vset.pattern.permute.xlu0 0
        %3535 = vperm.xlu0 %3534, %v3505
        %v3536 = vpop.permute.xlu0 %3535
        %3539 = vset.pattern.permute.xlu0 0
        %3540 = vperm.xlu0 %3539, %v3506
        %v3541 = vpop.permute.xlu0 %3540
        %3544 = vset.pattern.permute.xlu0 0
        %3545 = vperm.xlu0 %3544, %v3507
        %v3546 = vpop.permute.xlu0 %3545
        %3549 = vset.pattern.permute.xlu0 0
        %3550 = vperm.xlu0 %3549, %v3508
        %v3551 = vpop.permute.xlu0 %3550
        %3554 = vset.pattern.permute.xlu0 0
        %3555 = vperm.xlu0 %3554, %v3509
        %v3556 = vpop.permute.xlu0 %3555
        %3559 = vset.pattern.permute.xlu0 0
        %3560 = vperm.xlu0 %3559, %v3510
        %v3561 = vpop.permute.xlu0 %3560
        %3564 = vset.pattern.permute.xlu0 0
        %3565 = vperm.xlu0 %3564, %v3511
        %v3566 = vpop.permute.xlu0 %3565
        %3569 = vset.pattern.permute.xlu0 0
        %3570 = vperm.xlu0 %3569, %v3512
        %v3571 = vpop.permute.xlu0 %3570
        %3574 = vset.pattern.permute.xlu0 0
        %3575 = vperm.xlu0 %3574, %v3513
        %v3576 = vpop.permute.xlu0 %3575
        %3579 = vset.pattern.permute.xlu0 0
        %3580 = vperm.xlu0 %3579, %v3514
        %v3581 = vpop.permute.xlu0 %3580
        %3584 = vset.pattern.permute.xlu0 0
        %3585 = vperm.xlu0 %3584, %v3515
        %v3586 = vpop.permute.xlu0 %3585
        %3589 = vset.pattern.permute.xlu0 0
        %3590 = vperm.xlu0 %3589, %v3516
        %v3591 = vpop.permute.xlu0 %3590
        %3594 = vset.pattern.permute.xlu0 0
        %3595 = vperm.xlu0 %3594, %v3517
        %v3596 = vpop.permute.xlu0 %3595
        %v3598 = vmul.f32 %v3521, %v3343
        %v3599 = vmul.f32 %v3526, %v3344
        %v3600 = vmul.f32 %v3531, %v3345
        %v3601 = vmul.f32 %v3536, %v3346
        %v3602 = vmul.f32 %v3541, %v3347
        %v3603 = vmul.f32 %v3546, %v3348
        %v3604 = vmul.f32 %v3551, %v3349
        %v3605 = vmul.f32 %v3556, %v3350
        %v3606 = vmul.f32 %v3561, %v3351
        %v3607 = vmul.f32 %v3566, %v3352
        %v3608 = vmul.f32 %v3571, %v3353
        %v3609 = vmul.f32 %v3576, %v3354
        %v3610 = vmul.f32 %v3581, %v3355
        %v3611 = vmul.f32 %v3586, %v3356
        %v3612 = vmul.f32 %v3591, %v3357
        %v3613 = vmul.f32 %v3596, %v3358
        %v3614 = vadd.f32 %v3598, %v3599
        %v3615 = vadd.f32 %v3614, %v3600
        %v3616 = vadd.f32 %v3615, %v3601
        %v3617 = vadd.f32 %v3616, %v3602
        %v3618 = vadd.f32 %v3617, %v3603
        %v3619 = vadd.f32 %v3618, %v3604
        %v3620 = vadd.f32 %v3619, %v3605
        %v3621 = vadd.f32 %v3620, %v3606
        %v3622 = vadd.f32 %v3621, %v3607
        %v3623 = vadd.f32 %v3622, %v3608
        %v3624 = vadd.f32 %v3623, %v3609
        %v3625 = vadd.f32 %v3624, %v3610
        %v3626 = vadd.f32 %v3625, %v3611
        %v3627 = vadd.f32 %v3626, %v3612
        %v3628 = vadd.f32 %v3627, %v3613
        %v3629 = vrot.slane %v3628, 4
        %v3630 = vadd.f32 %v3628, %v3629
        %v3631 = vrot.slane %v3630, 2
        %v3632 = vadd.f32 %v3630, %v3631
        %v3633 = vrot.slane %v3632, 1
        %v3634 = vadd.f32 %v3632, %v3633
        %v3635 = vld [vmem:[%s3493 + $0x1] sm:$0x1]
        %3637 = vset.pattern.permute.xlu0 0
        %3638 = vperm.xlu0 %3637, %v3635
        %v3639 = vpop.permute.xlu0 %3638
        %v3641 = vadd.f32 %v3634, %v3639
        %v3642 = vmax.f32 %v3641, -5.0
        %v3643 = vmin.f32 %v3642, 3.0
        %v3644 = vmul.f32 %v3643, 1.442695
        %v3645 = vpow.pop %v3644
        %v3646 = vmul.f32 %v3645, %v2315
        %v3647 = vadd.f32 %v3646, %v3500
        %3648 = vst [vmem:[%s307 + $0xa] sm:$0x1] %v2981
        %3649 = vst [vmem:[%s307 + $0xb] sm:$0x1] %v3647
        %s3650 = scalar_lea.vmem %s2, 640
        %v3651 = vld [vmem:[%s3650] sm:$0xff]
        %v3652 = vld [vmem:[%s3650 + $0x8] sm:$0xff]
        %v3653 = vld [vmem:[%s3650 + $0x10] sm:$0xff]
        %v3654 = vld [vmem:[%s3650 + $0x18] sm:$0xff]
        %v3655 = vld [vmem:[%s3650 + $0x20] sm:$0xff]
        %v3656 = vld [vmem:[%s3650 + $0x28] sm:$0xff]
        %v3657 = vld [vmem:[%s3650 + $0x30] sm:$0xff]
        %v3658 = vld [vmem:[%s3650 + $0x38] sm:$0xff]
        %v3659 = vld [vmem:[%s3650 + $0x40] sm:$0xff]
        %v3660 = vld [vmem:[%s3650 + $0x48] sm:$0xff]
        %v3661 = vld [vmem:[%s3650 + $0x50] sm:$0xff]
        %v3662 = vld [vmem:[%s3650 + $0x58] sm:$0xff]
        %v3663 = vld [vmem:[%s3650 + $0x60] sm:$0xff]
        %v3664 = vld [vmem:[%s3650 + $0x68] sm:$0xff]
        %v3665 = vld [vmem:[%s3650 + $0x70] sm:$0xff]
        %v3666 = vld [vmem:[%s3650 + $0x78] sm:$0xff]
        %3668 = vset.pattern.permute.xlu0 0
        %3669 = vperm.xlu0 %3668, %v3651
        %v3670 = vpop.permute.xlu0 %3669
        %3673 = vset.pattern.permute.xlu0 0
        %3674 = vperm.xlu0 %3673, %v3652
        %v3675 = vpop.permute.xlu0 %3674
        %3678 = vset.pattern.permute.xlu0 0
        %3679 = vperm.xlu0 %3678, %v3653
        %v3680 = vpop.permute.xlu0 %3679
        %3683 = vset.pattern.permute.xlu0 0
        %3684 = vperm.xlu0 %3683, %v3654
        %v3685 = vpop.permute.xlu0 %3684
        %3688 = vset.pattern.permute.xlu0 0
        %3689 = vperm.xlu0 %3688, %v3655
        %v3690 = vpop.permute.xlu0 %3689
        %3693 = vset.pattern.permute.xlu0 0
        %3694 = vperm.xlu0 %3693, %v3656
        %v3695 = vpop.permute.xlu0 %3694
        %3698 = vset.pattern.permute.xlu0 0
        %3699 = vperm.xlu0 %3698, %v3657
        %v3700 = vpop.permute.xlu0 %3699
        %3703 = vset.pattern.permute.xlu0 0
        %3704 = vperm.xlu0 %3703, %v3658
        %v3705 = vpop.permute.xlu0 %3704
        %3708 = vset.pattern.permute.xlu0 0
        %3709 = vperm.xlu0 %3708, %v3659
        %v3710 = vpop.permute.xlu0 %3709
        %3713 = vset.pattern.permute.xlu0 0
        %3714 = vperm.xlu0 %3713, %v3660
        %v3715 = vpop.permute.xlu0 %3714
        %3718 = vset.pattern.permute.xlu0 0
        %3719 = vperm.xlu0 %3718, %v3661
        %v3720 = vpop.permute.xlu0 %3719
        %3723 = vset.pattern.permute.xlu0 0
        %3724 = vperm.xlu0 %3723, %v3662
        %v3725 = vpop.permute.xlu0 %3724
        %3728 = vset.pattern.permute.xlu0 0
        %3729 = vperm.xlu0 %3728, %v3663
        %v3730 = vpop.permute.xlu0 %3729
        %3733 = vset.pattern.permute.xlu0 0
        %3734 = vperm.xlu0 %3733, %v3664
        %v3735 = vpop.permute.xlu0 %3734
        %3738 = vset.pattern.permute.xlu0 0
        %3739 = vperm.xlu0 %3738, %v3665
        %v3740 = vpop.permute.xlu0 %3739
        %3743 = vset.pattern.permute.xlu0 0
        %3744 = vperm.xlu0 %3743, %v3666
        %v3745 = vpop.permute.xlu0 %3744
        %v3747 = vmul.f32 %v3670, %v420
        %v3748 = vmul.f32 %v3675, %v420
        %v3749 = vmul.f32 %v3680, %v420
        %v3750 = vmul.f32 %v3685, %v420
        %v3751 = vmul.f32 %v3690, %v420
        %v3752 = vmul.f32 %v3695, %v420
        %v3753 = vmul.f32 %v3700, %v420
        %v3754 = vmul.f32 %v3705, %v420
        %v3755 = vmul.f32 %v3710, %v420
        %v3756 = vmul.f32 %v3715, %v420
        %v3757 = vmul.f32 %v3720, %v420
        %v3758 = vmul.f32 %v3725, %v420
        %v3759 = vmul.f32 %v3730, %v420
        %v3760 = vmul.f32 %v3735, %v420
        %v3761 = vmul.f32 %v3740, %v420
        %v3762 = vmul.f32 %v3745, %v420
        %s3763 = scalar_lea.vmem %s3, 640
        %v3764 = vld [vmem:[%s3763] sm:$0xff]
        %v3765 = vld [vmem:[%s3763 + $0x8] sm:$0xff]
        %v3766 = vld [vmem:[%s3763 + $0x10] sm:$0xff]
        %v3767 = vld [vmem:[%s3763 + $0x18] sm:$0xff]
        %v3768 = vld [vmem:[%s3763 + $0x20] sm:$0xff]
        %v3769 = vld [vmem:[%s3763 + $0x28] sm:$0xff]
        %v3770 = vld [vmem:[%s3763 + $0x30] sm:$0xff]
        %v3771 = vld [vmem:[%s3763 + $0x38] sm:$0xff]
        %v3772 = vld [vmem:[%s3763 + $0x40] sm:$0xff]
        %v3773 = vld [vmem:[%s3763 + $0x48] sm:$0xff]
        %v3774 = vld [vmem:[%s3763 + $0x50] sm:$0xff]
        %v3775 = vld [vmem:[%s3763 + $0x58] sm:$0xff]
        %v3776 = vld [vmem:[%s3763 + $0x60] sm:$0xff]
        %v3777 = vld [vmem:[%s3763 + $0x68] sm:$0xff]
        %v3778 = vld [vmem:[%s3763 + $0x70] sm:$0xff]
        %v3779 = vld [vmem:[%s3763 + $0x78] sm:$0xff]
        %3781 = vset.pattern.permute.xlu0 0
        %3782 = vperm.xlu0 %3781, %v3764
        %v3783 = vpop.permute.xlu0 %3782
        %3786 = vset.pattern.permute.xlu0 0
        %3787 = vperm.xlu0 %3786, %v3765
        %v3788 = vpop.permute.xlu0 %3787
        %3791 = vset.pattern.permute.xlu0 0
        %3792 = vperm.xlu0 %3791, %v3766
        %v3793 = vpop.permute.xlu0 %3792
        %3796 = vset.pattern.permute.xlu0 0
        %3797 = vperm.xlu0 %3796, %v3767
        %v3798 = vpop.permute.xlu0 %3797
        %3801 = vset.pattern.permute.xlu0 0
        %3802 = vperm.xlu0 %3801, %v3768
        %v3803 = vpop.permute.xlu0 %3802
        %3806 = vset.pattern.permute.xlu0 0
        %3807 = vperm.xlu0 %3806, %v3769
        %v3808 = vpop.permute.xlu0 %3807
        %3811 = vset.pattern.permute.xlu0 0
        %3812 = vperm.xlu0 %3811, %v3770
        %v3813 = vpop.permute.xlu0 %3812
        %3816 = vset.pattern.permute.xlu0 0
        %3817 = vperm.xlu0 %3816, %v3771
        %v3818 = vpop.permute.xlu0 %3817
        %3821 = vset.pattern.permute.xlu0 0
        %3822 = vperm.xlu0 %3821, %v3772
        %v3823 = vpop.permute.xlu0 %3822
        %3826 = vset.pattern.permute.xlu0 0
        %3827 = vperm.xlu0 %3826, %v3773
        %v3828 = vpop.permute.xlu0 %3827
        %3831 = vset.pattern.permute.xlu0 0
        %3832 = vperm.xlu0 %3831, %v3774
        %v3833 = vpop.permute.xlu0 %3832
        %3836 = vset.pattern.permute.xlu0 0
        %3837 = vperm.xlu0 %3836, %v3775
        %v3838 = vpop.permute.xlu0 %3837
        %3841 = vset.pattern.permute.xlu0 0
        %3842 = vperm.xlu0 %3841, %v3776
        %v3843 = vpop.permute.xlu0 %3842
        %3846 = vset.pattern.permute.xlu0 0
        %3847 = vperm.xlu0 %3846, %v3777
        %v3848 = vpop.permute.xlu0 %3847
        %3851 = vset.pattern.permute.xlu0 0
        %3852 = vperm.xlu0 %3851, %v3778
        %v3853 = vpop.permute.xlu0 %3852
        %3856 = vset.pattern.permute.xlu0 0
        %3857 = vperm.xlu0 %3856, %v3779
        %v3858 = vpop.permute.xlu0 %3857
        %v3860 = vlaneseq
        %v3861 = vshrl.u32 %v3860, 7
        %v3862 = vsub.s32 0, %v3861
        %v3863 = vrot.slane %v3647, %v3862
        %v3864 = vmul.f32 %v3783, %v3863
        %v3865 = vmul.f32 %v3788, %v3863
        %v3866 = vmul.f32 %v3793, %v3863
        %v3867 = vmul.f32 %v3798, %v3863
        %v3868 = vmul.f32 %v3803, %v3863
        %v3869 = vmul.f32 %v3808, %v3863
        %v3870 = vmul.f32 %v3813, %v3863
        %v3871 = vmul.f32 %v3818, %v3863
        %v3872 = vmul.f32 %v3823, %v3863
        %v3873 = vmul.f32 %v3828, %v3863
        %v3874 = vmul.f32 %v3833, %v3863
        %v3875 = vmul.f32 %v3838, %v3863
        %v3876 = vmul.f32 %v3843, %v3863
        %v3877 = vmul.f32 %v3848, %v3863
        %v3878 = vmul.f32 %v3853, %v3863
        %v3879 = vmul.f32 %v3858, %v3863
        %v3880 = vadd.f32 %v3747, %v3864
        %v3881 = vadd.f32 %v3748, %v3865
        %v3882 = vadd.f32 %v3749, %v3866
        %v3883 = vadd.f32 %v3750, %v3867
        %v3884 = vadd.f32 %v3751, %v3868
        %v3885 = vadd.f32 %v3752, %v3869
        %v3886 = vadd.f32 %v3753, %v3870
        %v3887 = vadd.f32 %v3754, %v3871
        %v3888 = vadd.f32 %v3755, %v3872
        %v3889 = vadd.f32 %v3756, %v3873
        %v3890 = vadd.f32 %v3757, %v3874
        %v3891 = vadd.f32 %v3758, %v3875
        %v3892 = vadd.f32 %v3759, %v3876
        %v3893 = vadd.f32 %v3760, %v3877
        %v3894 = vadd.f32 %v3761, %v3878
        %v3895 = vadd.f32 %v3762, %v3879
        %s3896 = scalar_lea.vmem %s4, 640
        %v3897 = vld [vmem:[%s3896] sm:$0xff]
        %v3898 = vld [vmem:[%s3896 + $0x8] sm:$0xff]
        %v3899 = vld [vmem:[%s3896 + $0x10] sm:$0xff]
        %v3900 = vld [vmem:[%s3896 + $0x18] sm:$0xff]
        %v3901 = vld [vmem:[%s3896 + $0x20] sm:$0xff]
        %v3902 = vld [vmem:[%s3896 + $0x28] sm:$0xff]
        %v3903 = vld [vmem:[%s3896 + $0x30] sm:$0xff]
        %v3904 = vld [vmem:[%s3896 + $0x38] sm:$0xff]
        %v3905 = vld [vmem:[%s3896 + $0x40] sm:$0xff]
        %v3906 = vld [vmem:[%s3896 + $0x48] sm:$0xff]
        %v3907 = vld [vmem:[%s3896 + $0x50] sm:$0xff]
        %v3908 = vld [vmem:[%s3896 + $0x58] sm:$0xff]
        %v3909 = vld [vmem:[%s3896 + $0x60] sm:$0xff]
        %v3910 = vld [vmem:[%s3896 + $0x68] sm:$0xff]
        %v3911 = vld [vmem:[%s3896 + $0x70] sm:$0xff]
        %v3912 = vld [vmem:[%s3896 + $0x78] sm:$0xff]
        %3914 = vset.pattern.permute.xlu0 0
        %3915 = vperm.xlu0 %3914, %v3897
        %v3916 = vpop.permute.xlu0 %3915
        %3919 = vset.pattern.permute.xlu0 0
        %3920 = vperm.xlu0 %3919, %v3898
        %v3921 = vpop.permute.xlu0 %3920
        %3924 = vset.pattern.permute.xlu0 0
        %3925 = vperm.xlu0 %3924, %v3899
        %v3926 = vpop.permute.xlu0 %3925
        %3929 = vset.pattern.permute.xlu0 0
        %3930 = vperm.xlu0 %3929, %v3900
        %v3931 = vpop.permute.xlu0 %3930
        %3934 = vset.pattern.permute.xlu0 0
        %3935 = vperm.xlu0 %3934, %v3901
        %v3936 = vpop.permute.xlu0 %3935
        %3939 = vset.pattern.permute.xlu0 0
        %3940 = vperm.xlu0 %3939, %v3902
        %v3941 = vpop.permute.xlu0 %3940
        %3944 = vset.pattern.permute.xlu0 0
        %3945 = vperm.xlu0 %3944, %v3903
        %v3946 = vpop.permute.xlu0 %3945
        %3949 = vset.pattern.permute.xlu0 0
        %3950 = vperm.xlu0 %3949, %v3904
        %v3951 = vpop.permute.xlu0 %3950
        %3954 = vset.pattern.permute.xlu0 0
        %3955 = vperm.xlu0 %3954, %v3905
        %v3956 = vpop.permute.xlu0 %3955
        %3959 = vset.pattern.permute.xlu0 0
        %3960 = vperm.xlu0 %3959, %v3906
        %v3961 = vpop.permute.xlu0 %3960
        %3964 = vset.pattern.permute.xlu0 0
        %3965 = vperm.xlu0 %3964, %v3907
        %v3966 = vpop.permute.xlu0 %3965
        %3969 = vset.pattern.permute.xlu0 0
        %3970 = vperm.xlu0 %3969, %v3908
        %v3971 = vpop.permute.xlu0 %3970
        %3974 = vset.pattern.permute.xlu0 0
        %3975 = vperm.xlu0 %3974, %v3909
        %v3976 = vpop.permute.xlu0 %3975
        %3979 = vset.pattern.permute.xlu0 0
        %3980 = vperm.xlu0 %3979, %v3910
        %v3981 = vpop.permute.xlu0 %3980
        %3984 = vset.pattern.permute.xlu0 0
        %3985 = vperm.xlu0 %3984, %v3911
        %v3986 = vpop.permute.xlu0 %3985
        %3989 = vset.pattern.permute.xlu0 0
        %3990 = vperm.xlu0 %3989, %v3912
        %v3991 = vpop.permute.xlu0 %3990
        %v3993 = vadd.f32 %v3880, %v3916
        %v3994 = vadd.f32 %v3881, %v3921
        %v3995 = vadd.f32 %v3882, %v3926
        %v3996 = vadd.f32 %v3883, %v3931
        %v3997 = vadd.f32 %v3884, %v3936
        %v3998 = vadd.f32 %v3885, %v3941
        %v3999 = vadd.f32 %v3886, %v3946
        %v4000 = vadd.f32 %v3887, %v3951
        %v4001 = vadd.f32 %v3888, %v3956
        %v4002 = vadd.f32 %v3889, %v3961
        %v4003 = vadd.f32 %v3890, %v3966
        %v4004 = vadd.f32 %v3891, %v3971
        %v4005 = vadd.f32 %v3892, %v3976
        %v4006 = vadd.f32 %v3893, %v3981
        %v4007 = vadd.f32 %v3894, %v3986
        %v4008 = vadd.f32 %v3895, %v3991
        %v4009 = vmax.f32 %v3993, 0.0
        %v4010 = vmax.f32 %v3994, 0.0
        %v4011 = vmax.f32 %v3995, 0.0
        %v4012 = vmax.f32 %v3996, 0.0
        %v4013 = vmax.f32 %v3997, 0.0
        %v4014 = vmax.f32 %v3998, 0.0
        %v4015 = vmax.f32 %v3999, 0.0
        %v4016 = vmax.f32 %v4000, 0.0
        %v4017 = vmax.f32 %v4001, 0.0
        %v4018 = vmax.f32 %v4002, 0.0
        %v4019 = vmax.f32 %v4003, 0.0
        %v4020 = vmax.f32 %v4004, 0.0
        %v4021 = vmax.f32 %v4005, 0.0
        %v4022 = vmax.f32 %v4006, 0.0
        %v4023 = vmax.f32 %v4007, 0.0
        %v4024 = vmax.f32 %v4008, 0.0
        %s4025 = scalar_lea.vmem %s5, 640
        %v4026 = vld [vmem:[%s4025] sm:$0xff]
        %v4027 = vld [vmem:[%s4025 + $0x8] sm:$0xff]
        %v4028 = vld [vmem:[%s4025 + $0x10] sm:$0xff]
        %v4029 = vld [vmem:[%s4025 + $0x18] sm:$0xff]
        %v4030 = vld [vmem:[%s4025 + $0x20] sm:$0xff]
        %v4031 = vld [vmem:[%s4025 + $0x28] sm:$0xff]
        %v4032 = vld [vmem:[%s4025 + $0x30] sm:$0xff]
        %v4033 = vld [vmem:[%s4025 + $0x38] sm:$0xff]
        %v4034 = vld [vmem:[%s4025 + $0x40] sm:$0xff]
        %v4035 = vld [vmem:[%s4025 + $0x48] sm:$0xff]
        %v4036 = vld [vmem:[%s4025 + $0x50] sm:$0xff]
        %v4037 = vld [vmem:[%s4025 + $0x58] sm:$0xff]
        %v4038 = vld [vmem:[%s4025 + $0x60] sm:$0xff]
        %v4039 = vld [vmem:[%s4025 + $0x68] sm:$0xff]
        %v4040 = vld [vmem:[%s4025 + $0x70] sm:$0xff]
        %v4041 = vld [vmem:[%s4025 + $0x78] sm:$0xff]
        %4043 = vset.pattern.permute.xlu0 0
        %4044 = vperm.xlu0 %4043, %v4026
        %v4045 = vpop.permute.xlu0 %4044
        %4048 = vset.pattern.permute.xlu0 0
        %4049 = vperm.xlu0 %4048, %v4027
        %v4050 = vpop.permute.xlu0 %4049
        %4053 = vset.pattern.permute.xlu0 0
        %4054 = vperm.xlu0 %4053, %v4028
        %v4055 = vpop.permute.xlu0 %4054
        %4058 = vset.pattern.permute.xlu0 0
        %4059 = vperm.xlu0 %4058, %v4029
        %v4060 = vpop.permute.xlu0 %4059
        %4063 = vset.pattern.permute.xlu0 0
        %4064 = vperm.xlu0 %4063, %v4030
        %v4065 = vpop.permute.xlu0 %4064
        %4068 = vset.pattern.permute.xlu0 0
        %4069 = vperm.xlu0 %4068, %v4031
        %v4070 = vpop.permute.xlu0 %4069
        %4073 = vset.pattern.permute.xlu0 0
        %4074 = vperm.xlu0 %4073, %v4032
        %v4075 = vpop.permute.xlu0 %4074
        %4078 = vset.pattern.permute.xlu0 0
        %4079 = vperm.xlu0 %4078, %v4033
        %v4080 = vpop.permute.xlu0 %4079
        %4083 = vset.pattern.permute.xlu0 0
        %4084 = vperm.xlu0 %4083, %v4034
        %v4085 = vpop.permute.xlu0 %4084
        %4088 = vset.pattern.permute.xlu0 0
        %4089 = vperm.xlu0 %4088, %v4035
        %v4090 = vpop.permute.xlu0 %4089
        %4093 = vset.pattern.permute.xlu0 0
        %4094 = vperm.xlu0 %4093, %v4036
        %v4095 = vpop.permute.xlu0 %4094
        %4098 = vset.pattern.permute.xlu0 0
        %4099 = vperm.xlu0 %4098, %v4037
        %v4100 = vpop.permute.xlu0 %4099
        %4103 = vset.pattern.permute.xlu0 0
        %4104 = vperm.xlu0 %4103, %v4038
        %v4105 = vpop.permute.xlu0 %4104
        %4108 = vset.pattern.permute.xlu0 0
        %4109 = vperm.xlu0 %4108, %v4039
        %v4110 = vpop.permute.xlu0 %4109
        %4113 = vset.pattern.permute.xlu0 0
        %4114 = vperm.xlu0 %4113, %v4040
        %v4115 = vpop.permute.xlu0 %4114
        %4118 = vset.pattern.permute.xlu0 0
        %4119 = vperm.xlu0 %4118, %v4041
        %v4120 = vpop.permute.xlu0 %4119
        %v4122 = vmul.f32 %v4045, %v4009
        %v4123 = vmul.f32 %v4050, %v4010
        %v4124 = vmul.f32 %v4055, %v4011
        %v4125 = vmul.f32 %v4060, %v4012
        %v4126 = vmul.f32 %v4065, %v4013
        %v4127 = vmul.f32 %v4070, %v4014
        %v4128 = vmul.f32 %v4075, %v4015
        %v4129 = vmul.f32 %v4080, %v4016
        %v4130 = vmul.f32 %v4085, %v4017
        %v4131 = vmul.f32 %v4090, %v4018
        %v4132 = vmul.f32 %v4095, %v4019
        %v4133 = vmul.f32 %v4100, %v4020
        %v4134 = vmul.f32 %v4105, %v4021
        %v4135 = vmul.f32 %v4110, %v4022
        %v4136 = vmul.f32 %v4115, %v4023
        %v4137 = vmul.f32 %v4120, %v4024
        %v4138 = vadd.f32 %v4122, %v4123
        %v4139 = vadd.f32 %v4138, %v4124
        %v4140 = vadd.f32 %v4139, %v4125
        %v4141 = vadd.f32 %v4140, %v4126
        %v4142 = vadd.f32 %v4141, %v4127
        %v4143 = vadd.f32 %v4142, %v4128
        %v4144 = vadd.f32 %v4143, %v4129
        %v4145 = vadd.f32 %v4144, %v4130
        %v4146 = vadd.f32 %v4145, %v4131
        %v4147 = vadd.f32 %v4146, %v4132
        %v4148 = vadd.f32 %v4147, %v4133
        %v4149 = vadd.f32 %v4148, %v4134
        %v4150 = vadd.f32 %v4149, %v4135
        %v4151 = vadd.f32 %v4150, %v4136
        %v4152 = vadd.f32 %v4151, %v4137
        %v4153 = vrot.slane %v4152, 4
        %v4154 = vadd.f32 %v4152, %v4153
        %v4155 = vrot.slane %v4154, 2
        %v4156 = vadd.f32 %v4154, %v4155
        %v4157 = vrot.slane %v4156, 1
        %v4158 = vadd.f32 %v4156, %v4157
        %s4159 = scalar_lea.vmem %s7, 10
        %v4160 = vld [vmem:[%s4159] sm:$0x1]
        %4162 = vset.pattern.permute.xlu0 0
        %4163 = vperm.xlu0 %4162, %v4160
        %v4164 = vpop.permute.xlu0 %4163
        %v4166 = vadd.f32 %v4158, %v4164
        %s4167 = scalar_lea.vmem %s6, 640
        %v4168 = vld [vmem:[%s4167] sm:$0xff]
        %v4169 = vld [vmem:[%s4167 + $0x8] sm:$0xff]
        %v4170 = vld [vmem:[%s4167 + $0x10] sm:$0xff]
        %v4171 = vld [vmem:[%s4167 + $0x18] sm:$0xff]
        %v4172 = vld [vmem:[%s4167 + $0x20] sm:$0xff]
        %v4173 = vld [vmem:[%s4167 + $0x28] sm:$0xff]
        %v4174 = vld [vmem:[%s4167 + $0x30] sm:$0xff]
        %v4175 = vld [vmem:[%s4167 + $0x38] sm:$0xff]
        %v4176 = vld [vmem:[%s4167 + $0x40] sm:$0xff]
        %v4177 = vld [vmem:[%s4167 + $0x48] sm:$0xff]
        %v4178 = vld [vmem:[%s4167 + $0x50] sm:$0xff]
        %v4179 = vld [vmem:[%s4167 + $0x58] sm:$0xff]
        %v4180 = vld [vmem:[%s4167 + $0x60] sm:$0xff]
        %v4181 = vld [vmem:[%s4167 + $0x68] sm:$0xff]
        %v4182 = vld [vmem:[%s4167 + $0x70] sm:$0xff]
        %v4183 = vld [vmem:[%s4167 + $0x78] sm:$0xff]
        %4185 = vset.pattern.permute.xlu0 0
        %4186 = vperm.xlu0 %4185, %v4168
        %v4187 = vpop.permute.xlu0 %4186
        %4190 = vset.pattern.permute.xlu0 0
        %4191 = vperm.xlu0 %4190, %v4169
        %v4192 = vpop.permute.xlu0 %4191
        %4195 = vset.pattern.permute.xlu0 0
        %4196 = vperm.xlu0 %4195, %v4170
        %v4197 = vpop.permute.xlu0 %4196
        %4200 = vset.pattern.permute.xlu0 0
        %4201 = vperm.xlu0 %4200, %v4171
        %v4202 = vpop.permute.xlu0 %4201
        %4205 = vset.pattern.permute.xlu0 0
        %4206 = vperm.xlu0 %4205, %v4172
        %v4207 = vpop.permute.xlu0 %4206
        %4210 = vset.pattern.permute.xlu0 0
        %4211 = vperm.xlu0 %4210, %v4173
        %v4212 = vpop.permute.xlu0 %4211
        %4215 = vset.pattern.permute.xlu0 0
        %4216 = vperm.xlu0 %4215, %v4174
        %v4217 = vpop.permute.xlu0 %4216
        %4220 = vset.pattern.permute.xlu0 0
        %4221 = vperm.xlu0 %4220, %v4175
        %v4222 = vpop.permute.xlu0 %4221
        %4225 = vset.pattern.permute.xlu0 0
        %4226 = vperm.xlu0 %4225, %v4176
        %v4227 = vpop.permute.xlu0 %4226
        %4230 = vset.pattern.permute.xlu0 0
        %4231 = vperm.xlu0 %4230, %v4177
        %v4232 = vpop.permute.xlu0 %4231
        %4235 = vset.pattern.permute.xlu0 0
        %4236 = vperm.xlu0 %4235, %v4178
        %v4237 = vpop.permute.xlu0 %4236
        %4240 = vset.pattern.permute.xlu0 0
        %4241 = vperm.xlu0 %4240, %v4179
        %v4242 = vpop.permute.xlu0 %4241
        %4245 = vset.pattern.permute.xlu0 0
        %4246 = vperm.xlu0 %4245, %v4180
        %v4247 = vpop.permute.xlu0 %4246
        %4250 = vset.pattern.permute.xlu0 0
        %4251 = vperm.xlu0 %4250, %v4181
        %v4252 = vpop.permute.xlu0 %4251
        %4255 = vset.pattern.permute.xlu0 0
        %4256 = vperm.xlu0 %4255, %v4182
        %v4257 = vpop.permute.xlu0 %4256
        %4260 = vset.pattern.permute.xlu0 0
        %4261 = vperm.xlu0 %4260, %v4183
        %v4262 = vpop.permute.xlu0 %4261
        %v4264 = vmul.f32 %v4187, %v4009
        %v4265 = vmul.f32 %v4192, %v4010
        %v4266 = vmul.f32 %v4197, %v4011
        %v4267 = vmul.f32 %v4202, %v4012
        %v4268 = vmul.f32 %v4207, %v4013
        %v4269 = vmul.f32 %v4212, %v4014
        %v4270 = vmul.f32 %v4217, %v4015
        %v4271 = vmul.f32 %v4222, %v4016
        %v4272 = vmul.f32 %v4227, %v4017
        %v4273 = vmul.f32 %v4232, %v4018
        %v4274 = vmul.f32 %v4237, %v4019
        %v4275 = vmul.f32 %v4242, %v4020
        %v4276 = vmul.f32 %v4247, %v4021
        %v4277 = vmul.f32 %v4252, %v4022
        %v4278 = vmul.f32 %v4257, %v4023
        %v4279 = vmul.f32 %v4262, %v4024
        %v4280 = vadd.f32 %v4264, %v4265
        %v4281 = vadd.f32 %v4280, %v4266
        %v4282 = vadd.f32 %v4281, %v4267
        %v4283 = vadd.f32 %v4282, %v4268
        %v4284 = vadd.f32 %v4283, %v4269
        %v4285 = vadd.f32 %v4284, %v4270
        %v4286 = vadd.f32 %v4285, %v4271
        %v4287 = vadd.f32 %v4286, %v4272
        %v4288 = vadd.f32 %v4287, %v4273
        %v4289 = vadd.f32 %v4288, %v4274
        %v4290 = vadd.f32 %v4289, %v4275
        %v4291 = vadd.f32 %v4290, %v4276
        %v4292 = vadd.f32 %v4291, %v4277
        %v4293 = vadd.f32 %v4292, %v4278
        %v4294 = vadd.f32 %v4293, %v4279
        %v4295 = vrot.slane %v4294, 4
        %v4296 = vadd.f32 %v4294, %v4295
        %v4297 = vrot.slane %v4296, 2
        %v4298 = vadd.f32 %v4296, %v4297
        %v4299 = vrot.slane %v4298, 1
        %v4300 = vadd.f32 %v4298, %v4299
        %v4301 = vld [vmem:[%s4159 + $0x1] sm:$0x1]
        %4303 = vset.pattern.permute.xlu0 0
        %4304 = vperm.xlu0 %4303, %v4301
        %v4305 = vpop.permute.xlu0 %4304
        %v4307 = vadd.f32 %v4300, %v4305
        %v4308 = vmax.f32 %v4307, -5.0
        %v4309 = vmin.f32 %v4308, 3.0
        %v4310 = vmul.f32 %v4309, 1.442695
        %v4311 = vpow.pop %v4310
        %v4312 = vmul.f32 %v4311, %v2981
        %v4313 = vadd.f32 %v4312, %v4166
        %4314 = vst [vmem:[%s307 + $0xc] sm:$0x1] %v3647
        %4315 = vst [vmem:[%s307 + $0xd] sm:$0x1] %v4313
        %s4316 = scalar_lea.vmem %s2, 768
        %v4317 = vld [vmem:[%s4316] sm:$0xff]
        %v4318 = vld [vmem:[%s4316 + $0x8] sm:$0xff]
        %v4319 = vld [vmem:[%s4316 + $0x10] sm:$0xff]
        %v4320 = vld [vmem:[%s4316 + $0x18] sm:$0xff]
        %v4321 = vld [vmem:[%s4316 + $0x20] sm:$0xff]
        %v4322 = vld [vmem:[%s4316 + $0x28] sm:$0xff]
        %v4323 = vld [vmem:[%s4316 + $0x30] sm:$0xff]
        %v4324 = vld [vmem:[%s4316 + $0x38] sm:$0xff]
        %v4325 = vld [vmem:[%s4316 + $0x40] sm:$0xff]
        %v4326 = vld [vmem:[%s4316 + $0x48] sm:$0xff]
        %v4327 = vld [vmem:[%s4316 + $0x50] sm:$0xff]
        %v4328 = vld [vmem:[%s4316 + $0x58] sm:$0xff]
        %v4329 = vld [vmem:[%s4316 + $0x60] sm:$0xff]
        %v4330 = vld [vmem:[%s4316 + $0x68] sm:$0xff]
        %v4331 = vld [vmem:[%s4316 + $0x70] sm:$0xff]
        %v4332 = vld [vmem:[%s4316 + $0x78] sm:$0xff]
        %4334 = vset.pattern.permute.xlu0 0
        %4335 = vperm.xlu0 %4334, %v4317
        %v4336 = vpop.permute.xlu0 %4335
        %4339 = vset.pattern.permute.xlu0 0
        %4340 = vperm.xlu0 %4339, %v4318
        %v4341 = vpop.permute.xlu0 %4340
        %4344 = vset.pattern.permute.xlu0 0
        %4345 = vperm.xlu0 %4344, %v4319
        %v4346 = vpop.permute.xlu0 %4345
        %4349 = vset.pattern.permute.xlu0 0
        %4350 = vperm.xlu0 %4349, %v4320
        %v4351 = vpop.permute.xlu0 %4350
        %4354 = vset.pattern.permute.xlu0 0
        %4355 = vperm.xlu0 %4354, %v4321
        %v4356 = vpop.permute.xlu0 %4355
        %4359 = vset.pattern.permute.xlu0 0
        %4360 = vperm.xlu0 %4359, %v4322
        %v4361 = vpop.permute.xlu0 %4360
        %4364 = vset.pattern.permute.xlu0 0
        %4365 = vperm.xlu0 %4364, %v4323
        %v4366 = vpop.permute.xlu0 %4365
        %4369 = vset.pattern.permute.xlu0 0
        %4370 = vperm.xlu0 %4369, %v4324
        %v4371 = vpop.permute.xlu0 %4370
        %4374 = vset.pattern.permute.xlu0 0
        %4375 = vperm.xlu0 %4374, %v4325
        %v4376 = vpop.permute.xlu0 %4375
        %4379 = vset.pattern.permute.xlu0 0
        %4380 = vperm.xlu0 %4379, %v4326
        %v4381 = vpop.permute.xlu0 %4380
        %4384 = vset.pattern.permute.xlu0 0
        %4385 = vperm.xlu0 %4384, %v4327
        %v4386 = vpop.permute.xlu0 %4385
        %4389 = vset.pattern.permute.xlu0 0
        %4390 = vperm.xlu0 %4389, %v4328
        %v4391 = vpop.permute.xlu0 %4390
        %4394 = vset.pattern.permute.xlu0 0
        %4395 = vperm.xlu0 %4394, %v4329
        %v4396 = vpop.permute.xlu0 %4395
        %4399 = vset.pattern.permute.xlu0 0
        %4400 = vperm.xlu0 %4399, %v4330
        %v4401 = vpop.permute.xlu0 %4400
        %4404 = vset.pattern.permute.xlu0 0
        %4405 = vperm.xlu0 %4404, %v4331
        %v4406 = vpop.permute.xlu0 %4405
        %4409 = vset.pattern.permute.xlu0 0
        %4410 = vperm.xlu0 %4409, %v4332
        %v4411 = vpop.permute.xlu0 %4410
        %v4413 = vmul.f32 %v4336, %v420
        %v4414 = vmul.f32 %v4341, %v420
        %v4415 = vmul.f32 %v4346, %v420
        %v4416 = vmul.f32 %v4351, %v420
        %v4417 = vmul.f32 %v4356, %v420
        %v4418 = vmul.f32 %v4361, %v420
        %v4419 = vmul.f32 %v4366, %v420
        %v4420 = vmul.f32 %v4371, %v420
        %v4421 = vmul.f32 %v4376, %v420
        %v4422 = vmul.f32 %v4381, %v420
        %v4423 = vmul.f32 %v4386, %v420
        %v4424 = vmul.f32 %v4391, %v420
        %v4425 = vmul.f32 %v4396, %v420
        %v4426 = vmul.f32 %v4401, %v420
        %v4427 = vmul.f32 %v4406, %v420
        %v4428 = vmul.f32 %v4411, %v420
        %s4429 = scalar_lea.vmem %s3, 768
        %v4430 = vld [vmem:[%s4429] sm:$0xff]
        %v4431 = vld [vmem:[%s4429 + $0x8] sm:$0xff]
        %v4432 = vld [vmem:[%s4429 + $0x10] sm:$0xff]
        %v4433 = vld [vmem:[%s4429 + $0x18] sm:$0xff]
        %v4434 = vld [vmem:[%s4429 + $0x20] sm:$0xff]
        %v4435 = vld [vmem:[%s4429 + $0x28] sm:$0xff]
        %v4436 = vld [vmem:[%s4429 + $0x30] sm:$0xff]
        %v4437 = vld [vmem:[%s4429 + $0x38] sm:$0xff]
        %v4438 = vld [vmem:[%s4429 + $0x40] sm:$0xff]
        %v4439 = vld [vmem:[%s4429 + $0x48] sm:$0xff]
        %v4440 = vld [vmem:[%s4429 + $0x50] sm:$0xff]
        %v4441 = vld [vmem:[%s4429 + $0x58] sm:$0xff]
        %v4442 = vld [vmem:[%s4429 + $0x60] sm:$0xff]
        %v4443 = vld [vmem:[%s4429 + $0x68] sm:$0xff]
        %v4444 = vld [vmem:[%s4429 + $0x70] sm:$0xff]
        %v4445 = vld [vmem:[%s4429 + $0x78] sm:$0xff]
        %4447 = vset.pattern.permute.xlu0 0
        %4448 = vperm.xlu0 %4447, %v4430
        %v4449 = vpop.permute.xlu0 %4448
        %4452 = vset.pattern.permute.xlu0 0
        %4453 = vperm.xlu0 %4452, %v4431
        %v4454 = vpop.permute.xlu0 %4453
        %4457 = vset.pattern.permute.xlu0 0
        %4458 = vperm.xlu0 %4457, %v4432
        %v4459 = vpop.permute.xlu0 %4458
        %4462 = vset.pattern.permute.xlu0 0
        %4463 = vperm.xlu0 %4462, %v4433
        %v4464 = vpop.permute.xlu0 %4463
        %4467 = vset.pattern.permute.xlu0 0
        %4468 = vperm.xlu0 %4467, %v4434
        %v4469 = vpop.permute.xlu0 %4468
        %4472 = vset.pattern.permute.xlu0 0
        %4473 = vperm.xlu0 %4472, %v4435
        %v4474 = vpop.permute.xlu0 %4473
        %4477 = vset.pattern.permute.xlu0 0
        %4478 = vperm.xlu0 %4477, %v4436
        %v4479 = vpop.permute.xlu0 %4478
        %4482 = vset.pattern.permute.xlu0 0
        %4483 = vperm.xlu0 %4482, %v4437
        %v4484 = vpop.permute.xlu0 %4483
        %4487 = vset.pattern.permute.xlu0 0
        %4488 = vperm.xlu0 %4487, %v4438
        %v4489 = vpop.permute.xlu0 %4488
        %4492 = vset.pattern.permute.xlu0 0
        %4493 = vperm.xlu0 %4492, %v4439
        %v4494 = vpop.permute.xlu0 %4493
        %4497 = vset.pattern.permute.xlu0 0
        %4498 = vperm.xlu0 %4497, %v4440
        %v4499 = vpop.permute.xlu0 %4498
        %4502 = vset.pattern.permute.xlu0 0
        %4503 = vperm.xlu0 %4502, %v4441
        %v4504 = vpop.permute.xlu0 %4503
        %4507 = vset.pattern.permute.xlu0 0
        %4508 = vperm.xlu0 %4507, %v4442
        %v4509 = vpop.permute.xlu0 %4508
        %4512 = vset.pattern.permute.xlu0 0
        %4513 = vperm.xlu0 %4512, %v4443
        %v4514 = vpop.permute.xlu0 %4513
        %4517 = vset.pattern.permute.xlu0 0
        %4518 = vperm.xlu0 %4517, %v4444
        %v4519 = vpop.permute.xlu0 %4518
        %4522 = vset.pattern.permute.xlu0 0
        %4523 = vperm.xlu0 %4522, %v4445
        %v4524 = vpop.permute.xlu0 %4523
        %v4526 = vlaneseq
        %v4527 = vshrl.u32 %v4526, 7
        %v4528 = vsub.s32 0, %v4527
        %v4529 = vrot.slane %v4313, %v4528
        %v4530 = vmul.f32 %v4449, %v4529
        %v4531 = vmul.f32 %v4454, %v4529
        %v4532 = vmul.f32 %v4459, %v4529
        %v4533 = vmul.f32 %v4464, %v4529
        %v4534 = vmul.f32 %v4469, %v4529
        %v4535 = vmul.f32 %v4474, %v4529
        %v4536 = vmul.f32 %v4479, %v4529
        %v4537 = vmul.f32 %v4484, %v4529
        %v4538 = vmul.f32 %v4489, %v4529
        %v4539 = vmul.f32 %v4494, %v4529
        %v4540 = vmul.f32 %v4499, %v4529
        %v4541 = vmul.f32 %v4504, %v4529
        %v4542 = vmul.f32 %v4509, %v4529
        %v4543 = vmul.f32 %v4514, %v4529
        %v4544 = vmul.f32 %v4519, %v4529
        %v4545 = vmul.f32 %v4524, %v4529
        %v4546 = vadd.f32 %v4413, %v4530
        %v4547 = vadd.f32 %v4414, %v4531
        %v4548 = vadd.f32 %v4415, %v4532
        %v4549 = vadd.f32 %v4416, %v4533
        %v4550 = vadd.f32 %v4417, %v4534
        %v4551 = vadd.f32 %v4418, %v4535
        %v4552 = vadd.f32 %v4419, %v4536
        %v4553 = vadd.f32 %v4420, %v4537
        %v4554 = vadd.f32 %v4421, %v4538
        %v4555 = vadd.f32 %v4422, %v4539
        %v4556 = vadd.f32 %v4423, %v4540
        %v4557 = vadd.f32 %v4424, %v4541
        %v4558 = vadd.f32 %v4425, %v4542
        %v4559 = vadd.f32 %v4426, %v4543
        %v4560 = vadd.f32 %v4427, %v4544
        %v4561 = vadd.f32 %v4428, %v4545
        %s4562 = scalar_lea.vmem %s4, 768
        %v4563 = vld [vmem:[%s4562] sm:$0xff]
        %v4564 = vld [vmem:[%s4562 + $0x8] sm:$0xff]
        %v4565 = vld [vmem:[%s4562 + $0x10] sm:$0xff]
        %v4566 = vld [vmem:[%s4562 + $0x18] sm:$0xff]
        %v4567 = vld [vmem:[%s4562 + $0x20] sm:$0xff]
        %v4568 = vld [vmem:[%s4562 + $0x28] sm:$0xff]
        %v4569 = vld [vmem:[%s4562 + $0x30] sm:$0xff]
        %v4570 = vld [vmem:[%s4562 + $0x38] sm:$0xff]
        %v4571 = vld [vmem:[%s4562 + $0x40] sm:$0xff]
        %v4572 = vld [vmem:[%s4562 + $0x48] sm:$0xff]
        %v4573 = vld [vmem:[%s4562 + $0x50] sm:$0xff]
        %v4574 = vld [vmem:[%s4562 + $0x58] sm:$0xff]
        %v4575 = vld [vmem:[%s4562 + $0x60] sm:$0xff]
        %v4576 = vld [vmem:[%s4562 + $0x68] sm:$0xff]
        %v4577 = vld [vmem:[%s4562 + $0x70] sm:$0xff]
        %v4578 = vld [vmem:[%s4562 + $0x78] sm:$0xff]
        %4580 = vset.pattern.permute.xlu0 0
        %4581 = vperm.xlu0 %4580, %v4563
        %v4582 = vpop.permute.xlu0 %4581
        %4585 = vset.pattern.permute.xlu0 0
        %4586 = vperm.xlu0 %4585, %v4564
        %v4587 = vpop.permute.xlu0 %4586
        %4590 = vset.pattern.permute.xlu0 0
        %4591 = vperm.xlu0 %4590, %v4565
        %v4592 = vpop.permute.xlu0 %4591
        %4595 = vset.pattern.permute.xlu0 0
        %4596 = vperm.xlu0 %4595, %v4566
        %v4597 = vpop.permute.xlu0 %4596
        %4600 = vset.pattern.permute.xlu0 0
        %4601 = vperm.xlu0 %4600, %v4567
        %v4602 = vpop.permute.xlu0 %4601
        %4605 = vset.pattern.permute.xlu0 0
        %4606 = vperm.xlu0 %4605, %v4568
        %v4607 = vpop.permute.xlu0 %4606
        %4610 = vset.pattern.permute.xlu0 0
        %4611 = vperm.xlu0 %4610, %v4569
        %v4612 = vpop.permute.xlu0 %4611
        %4615 = vset.pattern.permute.xlu0 0
        %4616 = vperm.xlu0 %4615, %v4570
        %v4617 = vpop.permute.xlu0 %4616
        %4620 = vset.pattern.permute.xlu0 0
        %4621 = vperm.xlu0 %4620, %v4571
        %v4622 = vpop.permute.xlu0 %4621
        %4625 = vset.pattern.permute.xlu0 0
        %4626 = vperm.xlu0 %4625, %v4572
        %v4627 = vpop.permute.xlu0 %4626
        %4630 = vset.pattern.permute.xlu0 0
        %4631 = vperm.xlu0 %4630, %v4573
        %v4632 = vpop.permute.xlu0 %4631
        %4635 = vset.pattern.permute.xlu0 0
        %4636 = vperm.xlu0 %4635, %v4574
        %v4637 = vpop.permute.xlu0 %4636
        %4640 = vset.pattern.permute.xlu0 0
        %4641 = vperm.xlu0 %4640, %v4575
        %v4642 = vpop.permute.xlu0 %4641
        %4645 = vset.pattern.permute.xlu0 0
        %4646 = vperm.xlu0 %4645, %v4576
        %v4647 = vpop.permute.xlu0 %4646
        %4650 = vset.pattern.permute.xlu0 0
        %4651 = vperm.xlu0 %4650, %v4577
        %v4652 = vpop.permute.xlu0 %4651
        %4655 = vset.pattern.permute.xlu0 0
        %4656 = vperm.xlu0 %4655, %v4578
        %v4657 = vpop.permute.xlu0 %4656
        %v4659 = vadd.f32 %v4546, %v4582
        %v4660 = vadd.f32 %v4547, %v4587
        %v4661 = vadd.f32 %v4548, %v4592
        %v4662 = vadd.f32 %v4549, %v4597
        %v4663 = vadd.f32 %v4550, %v4602
        %v4664 = vadd.f32 %v4551, %v4607
        %v4665 = vadd.f32 %v4552, %v4612
        %v4666 = vadd.f32 %v4553, %v4617
        %v4667 = vadd.f32 %v4554, %v4622
        %v4668 = vadd.f32 %v4555, %v4627
        %v4669 = vadd.f32 %v4556, %v4632
        %v4670 = vadd.f32 %v4557, %v4637
        %v4671 = vadd.f32 %v4558, %v4642
        %v4672 = vadd.f32 %v4559, %v4647
        %v4673 = vadd.f32 %v4560, %v4652
        %v4674 = vadd.f32 %v4561, %v4657
        %v4675 = vmax.f32 %v4659, 0.0
        %v4676 = vmax.f32 %v4660, 0.0
        %v4677 = vmax.f32 %v4661, 0.0
        %v4678 = vmax.f32 %v4662, 0.0
        %v4679 = vmax.f32 %v4663, 0.0
        %v4680 = vmax.f32 %v4664, 0.0
        %v4681 = vmax.f32 %v4665, 0.0
        %v4682 = vmax.f32 %v4666, 0.0
        %v4683 = vmax.f32 %v4667, 0.0
        %v4684 = vmax.f32 %v4668, 0.0
        %v4685 = vmax.f32 %v4669, 0.0
        %v4686 = vmax.f32 %v4670, 0.0
        %v4687 = vmax.f32 %v4671, 0.0
        %v4688 = vmax.f32 %v4672, 0.0
        %v4689 = vmax.f32 %v4673, 0.0
        %v4690 = vmax.f32 %v4674, 0.0
        %s4691 = scalar_lea.vmem %s5, 768
        %v4692 = vld [vmem:[%s4691] sm:$0xff]
        %v4693 = vld [vmem:[%s4691 + $0x8] sm:$0xff]
        %v4694 = vld [vmem:[%s4691 + $0x10] sm:$0xff]
        %v4695 = vld [vmem:[%s4691 + $0x18] sm:$0xff]
        %v4696 = vld [vmem:[%s4691 + $0x20] sm:$0xff]
        %v4697 = vld [vmem:[%s4691 + $0x28] sm:$0xff]
        %v4698 = vld [vmem:[%s4691 + $0x30] sm:$0xff]
        %v4699 = vld [vmem:[%s4691 + $0x38] sm:$0xff]
        %v4700 = vld [vmem:[%s4691 + $0x40] sm:$0xff]
        %v4701 = vld [vmem:[%s4691 + $0x48] sm:$0xff]
        %v4702 = vld [vmem:[%s4691 + $0x50] sm:$0xff]
        %v4703 = vld [vmem:[%s4691 + $0x58] sm:$0xff]
        %v4704 = vld [vmem:[%s4691 + $0x60] sm:$0xff]
        %v4705 = vld [vmem:[%s4691 + $0x68] sm:$0xff]
        %v4706 = vld [vmem:[%s4691 + $0x70] sm:$0xff]
        %v4707 = vld [vmem:[%s4691 + $0x78] sm:$0xff]
        %4709 = vset.pattern.permute.xlu0 0
        %4710 = vperm.xlu0 %4709, %v4692
        %v4711 = vpop.permute.xlu0 %4710
        %4714 = vset.pattern.permute.xlu0 0
        %4715 = vperm.xlu0 %4714, %v4693
        %v4716 = vpop.permute.xlu0 %4715
        %4719 = vset.pattern.permute.xlu0 0
        %4720 = vperm.xlu0 %4719, %v4694
        %v4721 = vpop.permute.xlu0 %4720
        %4724 = vset.pattern.permute.xlu0 0
        %4725 = vperm.xlu0 %4724, %v4695
        %v4726 = vpop.permute.xlu0 %4725
        %4729 = vset.pattern.permute.xlu0 0
        %4730 = vperm.xlu0 %4729, %v4696
        %v4731 = vpop.permute.xlu0 %4730
        %4734 = vset.pattern.permute.xlu0 0
        %4735 = vperm.xlu0 %4734, %v4697
        %v4736 = vpop.permute.xlu0 %4735
        %4739 = vset.pattern.permute.xlu0 0
        %4740 = vperm.xlu0 %4739, %v4698
        %v4741 = vpop.permute.xlu0 %4740
        %4744 = vset.pattern.permute.xlu0 0
        %4745 = vperm.xlu0 %4744, %v4699
        %v4746 = vpop.permute.xlu0 %4745
        %4749 = vset.pattern.permute.xlu0 0
        %4750 = vperm.xlu0 %4749, %v4700
        %v4751 = vpop.permute.xlu0 %4750
        %4754 = vset.pattern.permute.xlu0 0
        %4755 = vperm.xlu0 %4754, %v4701
        %v4756 = vpop.permute.xlu0 %4755
        %4759 = vset.pattern.permute.xlu0 0
        %4760 = vperm.xlu0 %4759, %v4702
        %v4761 = vpop.permute.xlu0 %4760
        %4764 = vset.pattern.permute.xlu0 0
        %4765 = vperm.xlu0 %4764, %v4703
        %v4766 = vpop.permute.xlu0 %4765
        %4769 = vset.pattern.permute.xlu0 0
        %4770 = vperm.xlu0 %4769, %v4704
        %v4771 = vpop.permute.xlu0 %4770
        %4774 = vset.pattern.permute.xlu0 0
        %4775 = vperm.xlu0 %4774, %v4705
        %v4776 = vpop.permute.xlu0 %4775
        %4779 = vset.pattern.permute.xlu0 0
        %4780 = vperm.xlu0 %4779, %v4706
        %v4781 = vpop.permute.xlu0 %4780
        %4784 = vset.pattern.permute.xlu0 0
        %4785 = vperm.xlu0 %4784, %v4707
        %v4786 = vpop.permute.xlu0 %4785
        %v4788 = vmul.f32 %v4711, %v4675
        %v4789 = vmul.f32 %v4716, %v4676
        %v4790 = vmul.f32 %v4721, %v4677
        %v4791 = vmul.f32 %v4726, %v4678
        %v4792 = vmul.f32 %v4731, %v4679
        %v4793 = vmul.f32 %v4736, %v4680
        %v4794 = vmul.f32 %v4741, %v4681
        %v4795 = vmul.f32 %v4746, %v4682
        %v4796 = vmul.f32 %v4751, %v4683
        %v4797 = vmul.f32 %v4756, %v4684
        %v4798 = vmul.f32 %v4761, %v4685
        %v4799 = vmul.f32 %v4766, %v4686
        %v4800 = vmul.f32 %v4771, %v4687
        %v4801 = vmul.f32 %v4776, %v4688
        %v4802 = vmul.f32 %v4781, %v4689
        %v4803 = vmul.f32 %v4786, %v4690
        %v4804 = vadd.f32 %v4788, %v4789
        %v4805 = vadd.f32 %v4804, %v4790
        %v4806 = vadd.f32 %v4805, %v4791
        %v4807 = vadd.f32 %v4806, %v4792
        %v4808 = vadd.f32 %v4807, %v4793
        %v4809 = vadd.f32 %v4808, %v4794
        %v4810 = vadd.f32 %v4809, %v4795
        %v4811 = vadd.f32 %v4810, %v4796
        %v4812 = vadd.f32 %v4811, %v4797
        %v4813 = vadd.f32 %v4812, %v4798
        %v4814 = vadd.f32 %v4813, %v4799
        %v4815 = vadd.f32 %v4814, %v4800
        %v4816 = vadd.f32 %v4815, %v4801
        %v4817 = vadd.f32 %v4816, %v4802
        %v4818 = vadd.f32 %v4817, %v4803
        %v4819 = vrot.slane %v4818, 4
        %v4820 = vadd.f32 %v4818, %v4819
        %v4821 = vrot.slane %v4820, 2
        %v4822 = vadd.f32 %v4820, %v4821
        %v4823 = vrot.slane %v4822, 1
        %v4824 = vadd.f32 %v4822, %v4823
        %s4825 = scalar_lea.vmem %s7, 12
        %v4826 = vld [vmem:[%s4825] sm:$0x1]
        %4828 = vset.pattern.permute.xlu0 0
        %4829 = vperm.xlu0 %4828, %v4826
        %v4830 = vpop.permute.xlu0 %4829
        %v4832 = vadd.f32 %v4824, %v4830
        %s4833 = scalar_lea.vmem %s6, 768
        %v4834 = vld [vmem:[%s4833] sm:$0xff]
        %v4835 = vld [vmem:[%s4833 + $0x8] sm:$0xff]
        %v4836 = vld [vmem:[%s4833 + $0x10] sm:$0xff]
        %v4837 = vld [vmem:[%s4833 + $0x18] sm:$0xff]
        %v4838 = vld [vmem:[%s4833 + $0x20] sm:$0xff]
        %v4839 = vld [vmem:[%s4833 + $0x28] sm:$0xff]
        %v4840 = vld [vmem:[%s4833 + $0x30] sm:$0xff]
        %v4841 = vld [vmem:[%s4833 + $0x38] sm:$0xff]
        %v4842 = vld [vmem:[%s4833 + $0x40] sm:$0xff]
        %v4843 = vld [vmem:[%s4833 + $0x48] sm:$0xff]
        %v4844 = vld [vmem:[%s4833 + $0x50] sm:$0xff]
        %v4845 = vld [vmem:[%s4833 + $0x58] sm:$0xff]
        %v4846 = vld [vmem:[%s4833 + $0x60] sm:$0xff]
        %v4847 = vld [vmem:[%s4833 + $0x68] sm:$0xff]
        %v4848 = vld [vmem:[%s4833 + $0x70] sm:$0xff]
        %v4849 = vld [vmem:[%s4833 + $0x78] sm:$0xff]
        %4851 = vset.pattern.permute.xlu0 0
        %4852 = vperm.xlu0 %4851, %v4834
        %v4853 = vpop.permute.xlu0 %4852
        %4856 = vset.pattern.permute.xlu0 0
        %4857 = vperm.xlu0 %4856, %v4835
        %v4858 = vpop.permute.xlu0 %4857
        %4861 = vset.pattern.permute.xlu0 0
        %4862 = vperm.xlu0 %4861, %v4836
        %v4863 = vpop.permute.xlu0 %4862
        %4866 = vset.pattern.permute.xlu0 0
        %4867 = vperm.xlu0 %4866, %v4837
        %v4868 = vpop.permute.xlu0 %4867
        %4871 = vset.pattern.permute.xlu0 0
        %4872 = vperm.xlu0 %4871, %v4838
        %v4873 = vpop.permute.xlu0 %4872
        %4876 = vset.pattern.permute.xlu0 0
        %4877 = vperm.xlu0 %4876, %v4839
        %v4878 = vpop.permute.xlu0 %4877
        %4881 = vset.pattern.permute.xlu0 0
        %4882 = vperm.xlu0 %4881, %v4840
        %v4883 = vpop.permute.xlu0 %4882
        %4886 = vset.pattern.permute.xlu0 0
        %4887 = vperm.xlu0 %4886, %v4841
        %v4888 = vpop.permute.xlu0 %4887
        %4891 = vset.pattern.permute.xlu0 0
        %4892 = vperm.xlu0 %4891, %v4842
        %v4893 = vpop.permute.xlu0 %4892
        %4896 = vset.pattern.permute.xlu0 0
        %4897 = vperm.xlu0 %4896, %v4843
        %v4898 = vpop.permute.xlu0 %4897
        %4901 = vset.pattern.permute.xlu0 0
        %4902 = vperm.xlu0 %4901, %v4844
        %v4903 = vpop.permute.xlu0 %4902
        %4906 = vset.pattern.permute.xlu0 0
        %4907 = vperm.xlu0 %4906, %v4845
        %v4908 = vpop.permute.xlu0 %4907
        %4911 = vset.pattern.permute.xlu0 0
        %4912 = vperm.xlu0 %4911, %v4846
        %v4913 = vpop.permute.xlu0 %4912
        %4916 = vset.pattern.permute.xlu0 0
        %4917 = vperm.xlu0 %4916, %v4847
        %v4918 = vpop.permute.xlu0 %4917
        %4921 = vset.pattern.permute.xlu0 0
        %4922 = vperm.xlu0 %4921, %v4848
        %v4923 = vpop.permute.xlu0 %4922
        %4926 = vset.pattern.permute.xlu0 0
        %4927 = vperm.xlu0 %4926, %v4849
        %v4928 = vpop.permute.xlu0 %4927
        %v4930 = vmul.f32 %v4853, %v4675
        %v4931 = vmul.f32 %v4858, %v4676
        %v4932 = vmul.f32 %v4863, %v4677
        %v4933 = vmul.f32 %v4868, %v4678
        %v4934 = vmul.f32 %v4873, %v4679
        %v4935 = vmul.f32 %v4878, %v4680
        %v4936 = vmul.f32 %v4883, %v4681
        %v4937 = vmul.f32 %v4888, %v4682
        %v4938 = vmul.f32 %v4893, %v4683
        %v4939 = vmul.f32 %v4898, %v4684
        %v4940 = vmul.f32 %v4903, %v4685
        %v4941 = vmul.f32 %v4908, %v4686
        %v4942 = vmul.f32 %v4913, %v4687
        %v4943 = vmul.f32 %v4918, %v4688
        %v4944 = vmul.f32 %v4923, %v4689
        %v4945 = vmul.f32 %v4928, %v4690
        %v4946 = vadd.f32 %v4930, %v4931
        %v4947 = vadd.f32 %v4946, %v4932
        %v4948 = vadd.f32 %v4947, %v4933
        %v4949 = vadd.f32 %v4948, %v4934
        %v4950 = vadd.f32 %v4949, %v4935
        %v4951 = vadd.f32 %v4950, %v4936
        %v4952 = vadd.f32 %v4951, %v4937
        %v4953 = vadd.f32 %v4952, %v4938
        %v4954 = vadd.f32 %v4953, %v4939
        %v4955 = vadd.f32 %v4954, %v4940
        %v4956 = vadd.f32 %v4955, %v4941
        %v4957 = vadd.f32 %v4956, %v4942
        %v4958 = vadd.f32 %v4957, %v4943
        %v4959 = vadd.f32 %v4958, %v4944
        %v4960 = vadd.f32 %v4959, %v4945
        %v4961 = vrot.slane %v4960, 4
        %v4962 = vadd.f32 %v4960, %v4961
        %v4963 = vrot.slane %v4962, 2
        %v4964 = vadd.f32 %v4962, %v4963
        %v4965 = vrot.slane %v4964, 1
        %v4966 = vadd.f32 %v4964, %v4965
        %v4967 = vld [vmem:[%s4825 + $0x1] sm:$0x1]
        %4969 = vset.pattern.permute.xlu0 0
        %4970 = vperm.xlu0 %4969, %v4967
        %v4971 = vpop.permute.xlu0 %4970
        %v4973 = vadd.f32 %v4966, %v4971
        %v4974 = vmax.f32 %v4973, -5.0
        %v4975 = vmin.f32 %v4974, 3.0
        %v4976 = vmul.f32 %v4975, 1.442695
        %v4977 = vpow.pop %v4976
        %v4978 = vmul.f32 %v4977, %v3647
        %v4979 = vadd.f32 %v4978, %v4832
        %4980 = vst [vmem:[%s307 + $0xe] sm:$0x1] %v4313
        %4981 = vst [vmem:[%s307 + $0xf] sm:$0x1] %v4979
        %s4982 = scalar_lea.vmem %s2, 896
        %v4983 = vld [vmem:[%s4982] sm:$0xff]
        %v4984 = vld [vmem:[%s4982 + $0x8] sm:$0xff]
        %v4985 = vld [vmem:[%s4982 + $0x10] sm:$0xff]
        %v4986 = vld [vmem:[%s4982 + $0x18] sm:$0xff]
        %v4987 = vld [vmem:[%s4982 + $0x20] sm:$0xff]
        %v4988 = vld [vmem:[%s4982 + $0x28] sm:$0xff]
        %v4989 = vld [vmem:[%s4982 + $0x30] sm:$0xff]
        %v4990 = vld [vmem:[%s4982 + $0x38] sm:$0xff]
        %v4991 = vld [vmem:[%s4982 + $0x40] sm:$0xff]
        %v4992 = vld [vmem:[%s4982 + $0x48] sm:$0xff]
        %v4993 = vld [vmem:[%s4982 + $0x50] sm:$0xff]
        %v4994 = vld [vmem:[%s4982 + $0x58] sm:$0xff]
        %v4995 = vld [vmem:[%s4982 + $0x60] sm:$0xff]
        %v4996 = vld [vmem:[%s4982 + $0x68] sm:$0xff]
        %v4997 = vld [vmem:[%s4982 + $0x70] sm:$0xff]
        %v4998 = vld [vmem:[%s4982 + $0x78] sm:$0xff]
        %5000 = vset.pattern.permute.xlu0 0
        %5001 = vperm.xlu0 %5000, %v4983
        %v5002 = vpop.permute.xlu0 %5001
        %5005 = vset.pattern.permute.xlu0 0
        %5006 = vperm.xlu0 %5005, %v4984
        %v5007 = vpop.permute.xlu0 %5006
        %5010 = vset.pattern.permute.xlu0 0
        %5011 = vperm.xlu0 %5010, %v4985
        %v5012 = vpop.permute.xlu0 %5011
        %5015 = vset.pattern.permute.xlu0 0
        %5016 = vperm.xlu0 %5015, %v4986
        %v5017 = vpop.permute.xlu0 %5016
        %5020 = vset.pattern.permute.xlu0 0
        %5021 = vperm.xlu0 %5020, %v4987
        %v5022 = vpop.permute.xlu0 %5021
        %5025 = vset.pattern.permute.xlu0 0
        %5026 = vperm.xlu0 %5025, %v4988
        %v5027 = vpop.permute.xlu0 %5026
        %5030 = vset.pattern.permute.xlu0 0
        %5031 = vperm.xlu0 %5030, %v4989
        %v5032 = vpop.permute.xlu0 %5031
        %5035 = vset.pattern.permute.xlu0 0
        %5036 = vperm.xlu0 %5035, %v4990
        %v5037 = vpop.permute.xlu0 %5036
        %5040 = vset.pattern.permute.xlu0 0
        %5041 = vperm.xlu0 %5040, %v4991
        %v5042 = vpop.permute.xlu0 %5041
        %5045 = vset.pattern.permute.xlu0 0
        %5046 = vperm.xlu0 %5045, %v4992
        %v5047 = vpop.permute.xlu0 %5046
        %5050 = vset.pattern.permute.xlu0 0
        %5051 = vperm.xlu0 %5050, %v4993
        %v5052 = vpop.permute.xlu0 %5051
        %5055 = vset.pattern.permute.xlu0 0
        %5056 = vperm.xlu0 %5055, %v4994
        %v5057 = vpop.permute.xlu0 %5056
        %5060 = vset.pattern.permute.xlu0 0
        %5061 = vperm.xlu0 %5060, %v4995
        %v5062 = vpop.permute.xlu0 %5061
        %5065 = vset.pattern.permute.xlu0 0
        %5066 = vperm.xlu0 %5065, %v4996
        %v5067 = vpop.permute.xlu0 %5066
        %5070 = vset.pattern.permute.xlu0 0
        %5071 = vperm.xlu0 %5070, %v4997
        %v5072 = vpop.permute.xlu0 %5071
        %5075 = vset.pattern.permute.xlu0 0
        %5076 = vperm.xlu0 %5075, %v4998
        %v5077 = vpop.permute.xlu0 %5076
        %v5079 = vmul.f32 %v5002, %v420
        %v5080 = vmul.f32 %v5007, %v420
        %v5081 = vmul.f32 %v5012, %v420
        %v5082 = vmul.f32 %v5017, %v420
        %v5083 = vmul.f32 %v5022, %v420
        %v5084 = vmul.f32 %v5027, %v420
        %v5085 = vmul.f32 %v5032, %v420
        %v5086 = vmul.f32 %v5037, %v420
        %v5087 = vmul.f32 %v5042, %v420
        %v5088 = vmul.f32 %v5047, %v420
        %v5089 = vmul.f32 %v5052, %v420
        %v5090 = vmul.f32 %v5057, %v420
        %v5091 = vmul.f32 %v5062, %v420
        %v5092 = vmul.f32 %v5067, %v420
        %v5093 = vmul.f32 %v5072, %v420
        %v5094 = vmul.f32 %v5077, %v420
        %s5095 = scalar_lea.vmem %s3, 896
        %v5096 = vld [vmem:[%s5095] sm:$0xff]
        %v5097 = vld [vmem:[%s5095 + $0x8] sm:$0xff]
        %v5098 = vld [vmem:[%s5095 + $0x10] sm:$0xff]
        %v5099 = vld [vmem:[%s5095 + $0x18] sm:$0xff]
        %v5100 = vld [vmem:[%s5095 + $0x20] sm:$0xff]
        %v5101 = vld [vmem:[%s5095 + $0x28] sm:$0xff]
        %v5102 = vld [vmem:[%s5095 + $0x30] sm:$0xff]
        %v5103 = vld [vmem:[%s5095 + $0x38] sm:$0xff]
        %v5104 = vld [vmem:[%s5095 + $0x40] sm:$0xff]
        %v5105 = vld [vmem:[%s5095 + $0x48] sm:$0xff]
        %v5106 = vld [vmem:[%s5095 + $0x50] sm:$0xff]
        %v5107 = vld [vmem:[%s5095 + $0x58] sm:$0xff]
        %v5108 = vld [vmem:[%s5095 + $0x60] sm:$0xff]
        %v5109 = vld [vmem:[%s5095 + $0x68] sm:$0xff]
        %v5110 = vld [vmem:[%s5095 + $0x70] sm:$0xff]
        %v5111 = vld [vmem:[%s5095 + $0x78] sm:$0xff]
        %5113 = vset.pattern.permute.xlu0 0
        %5114 = vperm.xlu0 %5113, %v5096
        %v5115 = vpop.permute.xlu0 %5114
        %5118 = vset.pattern.permute.xlu0 0
        %5119 = vperm.xlu0 %5118, %v5097
        %v5120 = vpop.permute.xlu0 %5119
        %5123 = vset.pattern.permute.xlu0 0
        %5124 = vperm.xlu0 %5123, %v5098
        %v5125 = vpop.permute.xlu0 %5124
        %5128 = vset.pattern.permute.xlu0 0
        %5129 = vperm.xlu0 %5128, %v5099
        %v5130 = vpop.permute.xlu0 %5129
        %5133 = vset.pattern.permute.xlu0 0
        %5134 = vperm.xlu0 %5133, %v5100
        %v5135 = vpop.permute.xlu0 %5134
        %5138 = vset.pattern.permute.xlu0 0
        %5139 = vperm.xlu0 %5138, %v5101
        %v5140 = vpop.permute.xlu0 %5139
        %5143 = vset.pattern.permute.xlu0 0
        %5144 = vperm.xlu0 %5143, %v5102
        %v5145 = vpop.permute.xlu0 %5144
        %5148 = vset.pattern.permute.xlu0 0
        %5149 = vperm.xlu0 %5148, %v5103
        %v5150 = vpop.permute.xlu0 %5149
        %5153 = vset.pattern.permute.xlu0 0
        %5154 = vperm.xlu0 %5153, %v5104
        %v5155 = vpop.permute.xlu0 %5154
        %5158 = vset.pattern.permute.xlu0 0
        %5159 = vperm.xlu0 %5158, %v5105
        %v5160 = vpop.permute.xlu0 %5159
        %5163 = vset.pattern.permute.xlu0 0
        %5164 = vperm.xlu0 %5163, %v5106
        %v5165 = vpop.permute.xlu0 %5164
        %5168 = vset.pattern.permute.xlu0 0
        %5169 = vperm.xlu0 %5168, %v5107
        %v5170 = vpop.permute.xlu0 %5169
        %5173 = vset.pattern.permute.xlu0 0
        %5174 = vperm.xlu0 %5173, %v5108
        %v5175 = vpop.permute.xlu0 %5174
        %5178 = vset.pattern.permute.xlu0 0
        %5179 = vperm.xlu0 %5178, %v5109
        %v5180 = vpop.permute.xlu0 %5179
        %5183 = vset.pattern.permute.xlu0 0
        %5184 = vperm.xlu0 %5183, %v5110
        %v5185 = vpop.permute.xlu0 %5184
        %5188 = vset.pattern.permute.xlu0 0
        %5189 = vperm.xlu0 %5188, %v5111
        %v5190 = vpop.permute.xlu0 %5189
        %v5192 = vlaneseq
        %v5193 = vshrl.u32 %v5192, 7
        %v5194 = vsub.s32 0, %v5193
        %v5195 = vrot.slane %v4979, %v5194
        %v5196 = vmul.f32 %v5115, %v5195
        %v5197 = vmul.f32 %v5120, %v5195
        %v5198 = vmul.f32 %v5125, %v5195
        %v5199 = vmul.f32 %v5130, %v5195
        %v5200 = vmul.f32 %v5135, %v5195
        %v5201 = vmul.f32 %v5140, %v5195
        %v5202 = vmul.f32 %v5145, %v5195
        %v5203 = vmul.f32 %v5150, %v5195
        %v5204 = vmul.f32 %v5155, %v5195
        %v5205 = vmul.f32 %v5160, %v5195
        %v5206 = vmul.f32 %v5165, %v5195
        %v5207 = vmul.f32 %v5170, %v5195
        %v5208 = vmul.f32 %v5175, %v5195
        %v5209 = vmul.f32 %v5180, %v5195
        %v5210 = vmul.f32 %v5185, %v5195
        %v5211 = vmul.f32 %v5190, %v5195
        %v5212 = vadd.f32 %v5079, %v5196
        %v5213 = vadd.f32 %v5080, %v5197
        %v5214 = vadd.f32 %v5081, %v5198
        %v5215 = vadd.f32 %v5082, %v5199
        %v5216 = vadd.f32 %v5083, %v5200
        %v5217 = vadd.f32 %v5084, %v5201
        %v5218 = vadd.f32 %v5085, %v5202
        %v5219 = vadd.f32 %v5086, %v5203
        %v5220 = vadd.f32 %v5087, %v5204
        %v5221 = vadd.f32 %v5088, %v5205
        %v5222 = vadd.f32 %v5089, %v5206
        %v5223 = vadd.f32 %v5090, %v5207
        %v5224 = vadd.f32 %v5091, %v5208
        %v5225 = vadd.f32 %v5092, %v5209
        %v5226 = vadd.f32 %v5093, %v5210
        %v5227 = vadd.f32 %v5094, %v5211
        %s5228 = scalar_lea.vmem %s4, 896
        %v5229 = vld [vmem:[%s5228] sm:$0xff]
        %v5230 = vld [vmem:[%s5228 + $0x8] sm:$0xff]
        %v5231 = vld [vmem:[%s5228 + $0x10] sm:$0xff]
        %v5232 = vld [vmem:[%s5228 + $0x18] sm:$0xff]
        %v5233 = vld [vmem:[%s5228 + $0x20] sm:$0xff]
        %v5234 = vld [vmem:[%s5228 + $0x28] sm:$0xff]
        %v5235 = vld [vmem:[%s5228 + $0x30] sm:$0xff]
        %v5236 = vld [vmem:[%s5228 + $0x38] sm:$0xff]
        %v5237 = vld [vmem:[%s5228 + $0x40] sm:$0xff]
        %v5238 = vld [vmem:[%s5228 + $0x48] sm:$0xff]
        %v5239 = vld [vmem:[%s5228 + $0x50] sm:$0xff]
        %v5240 = vld [vmem:[%s5228 + $0x58] sm:$0xff]
        %v5241 = vld [vmem:[%s5228 + $0x60] sm:$0xff]
        %v5242 = vld [vmem:[%s5228 + $0x68] sm:$0xff]
        %v5243 = vld [vmem:[%s5228 + $0x70] sm:$0xff]
        %v5244 = vld [vmem:[%s5228 + $0x78] sm:$0xff]
        %5246 = vset.pattern.permute.xlu0 0
        %5247 = vperm.xlu0 %5246, %v5229
        %v5248 = vpop.permute.xlu0 %5247
        %5251 = vset.pattern.permute.xlu0 0
        %5252 = vperm.xlu0 %5251, %v5230
        %v5253 = vpop.permute.xlu0 %5252
        %5256 = vset.pattern.permute.xlu0 0
        %5257 = vperm.xlu0 %5256, %v5231
        %v5258 = vpop.permute.xlu0 %5257
        %5261 = vset.pattern.permute.xlu0 0
        %5262 = vperm.xlu0 %5261, %v5232
        %v5263 = vpop.permute.xlu0 %5262
        %5266 = vset.pattern.permute.xlu0 0
        %5267 = vperm.xlu0 %5266, %v5233
        %v5268 = vpop.permute.xlu0 %5267
        %5271 = vset.pattern.permute.xlu0 0
        %5272 = vperm.xlu0 %5271, %v5234
        %v5273 = vpop.permute.xlu0 %5272
        %5276 = vset.pattern.permute.xlu0 0
        %5277 = vperm.xlu0 %5276, %v5235
        %v5278 = vpop.permute.xlu0 %5277
        %5281 = vset.pattern.permute.xlu0 0
        %5282 = vperm.xlu0 %5281, %v5236
        %v5283 = vpop.permute.xlu0 %5282
        %5286 = vset.pattern.permute.xlu0 0
        %5287 = vperm.xlu0 %5286, %v5237
        %v5288 = vpop.permute.xlu0 %5287
        %5291 = vset.pattern.permute.xlu0 0
        %5292 = vperm.xlu0 %5291, %v5238
        %v5293 = vpop.permute.xlu0 %5292
        %5296 = vset.pattern.permute.xlu0 0
        %5297 = vperm.xlu0 %5296, %v5239
        %v5298 = vpop.permute.xlu0 %5297
        %5301 = vset.pattern.permute.xlu0 0
        %5302 = vperm.xlu0 %5301, %v5240
        %v5303 = vpop.permute.xlu0 %5302
        %5306 = vset.pattern.permute.xlu0 0
        %5307 = vperm.xlu0 %5306, %v5241
        %v5308 = vpop.permute.xlu0 %5307
        %5311 = vset.pattern.permute.xlu0 0
        %5312 = vperm.xlu0 %5311, %v5242
        %v5313 = vpop.permute.xlu0 %5312
        %5316 = vset.pattern.permute.xlu0 0
        %5317 = vperm.xlu0 %5316, %v5243
        %v5318 = vpop.permute.xlu0 %5317
        %5321 = vset.pattern.permute.xlu0 0
        %5322 = vperm.xlu0 %5321, %v5244
        %v5323 = vpop.permute.xlu0 %5322
        %v5325 = vadd.f32 %v5212, %v5248
        %v5326 = vadd.f32 %v5213, %v5253
        %v5327 = vadd.f32 %v5214, %v5258
        %v5328 = vadd.f32 %v5215, %v5263
        %v5329 = vadd.f32 %v5216, %v5268
        %v5330 = vadd.f32 %v5217, %v5273
        %v5331 = vadd.f32 %v5218, %v5278
        %v5332 = vadd.f32 %v5219, %v5283
        %v5333 = vadd.f32 %v5220, %v5288
        %v5334 = vadd.f32 %v5221, %v5293
        %v5335 = vadd.f32 %v5222, %v5298
        %v5336 = vadd.f32 %v5223, %v5303
        %v5337 = vadd.f32 %v5224, %v5308
        %v5338 = vadd.f32 %v5225, %v5313
        %v5339 = vadd.f32 %v5226, %v5318
        %v5340 = vadd.f32 %v5227, %v5323
        %v5341 = vmax.f32 %v5325, 0.0
        %v5342 = vmax.f32 %v5326, 0.0
        %v5343 = vmax.f32 %v5327, 0.0
        %v5344 = vmax.f32 %v5328, 0.0
        %v5345 = vmax.f32 %v5329, 0.0
        %v5346 = vmax.f32 %v5330, 0.0
        %v5347 = vmax.f32 %v5331, 0.0
        %v5348 = vmax.f32 %v5332, 0.0
        %v5349 = vmax.f32 %v5333, 0.0
        %v5350 = vmax.f32 %v5334, 0.0
        %v5351 = vmax.f32 %v5335, 0.0
        %v5352 = vmax.f32 %v5336, 0.0
        %v5353 = vmax.f32 %v5337, 0.0
        %v5354 = vmax.f32 %v5338, 0.0
        %v5355 = vmax.f32 %v5339, 0.0
        %v5356 = vmax.f32 %v5340, 0.0
        %s5357 = scalar_lea.vmem %s5, 896
        %v5358 = vld [vmem:[%s5357] sm:$0xff]
        %v5359 = vld [vmem:[%s5357 + $0x8] sm:$0xff]
        %v5360 = vld [vmem:[%s5357 + $0x10] sm:$0xff]
        %v5361 = vld [vmem:[%s5357 + $0x18] sm:$0xff]
        %v5362 = vld [vmem:[%s5357 + $0x20] sm:$0xff]
        %v5363 = vld [vmem:[%s5357 + $0x28] sm:$0xff]
        %v5364 = vld [vmem:[%s5357 + $0x30] sm:$0xff]
        %v5365 = vld [vmem:[%s5357 + $0x38] sm:$0xff]
        %v5366 = vld [vmem:[%s5357 + $0x40] sm:$0xff]
        %v5367 = vld [vmem:[%s5357 + $0x48] sm:$0xff]
        %v5368 = vld [vmem:[%s5357 + $0x50] sm:$0xff]
        %v5369 = vld [vmem:[%s5357 + $0x58] sm:$0xff]
        %v5370 = vld [vmem:[%s5357 + $0x60] sm:$0xff]
        %v5371 = vld [vmem:[%s5357 + $0x68] sm:$0xff]
        %v5372 = vld [vmem:[%s5357 + $0x70] sm:$0xff]
        %v5373 = vld [vmem:[%s5357 + $0x78] sm:$0xff]
        %5375 = vset.pattern.permute.xlu0 0
        %5376 = vperm.xlu0 %5375, %v5358
        %v5377 = vpop.permute.xlu0 %5376
        %5380 = vset.pattern.permute.xlu0 0
        %5381 = vperm.xlu0 %5380, %v5359
        %v5382 = vpop.permute.xlu0 %5381
        %5385 = vset.pattern.permute.xlu0 0
        %5386 = vperm.xlu0 %5385, %v5360
        %v5387 = vpop.permute.xlu0 %5386
        %5390 = vset.pattern.permute.xlu0 0
        %5391 = vperm.xlu0 %5390, %v5361
        %v5392 = vpop.permute.xlu0 %5391
        %5395 = vset.pattern.permute.xlu0 0
        %5396 = vperm.xlu0 %5395, %v5362
        %v5397 = vpop.permute.xlu0 %5396
        %5400 = vset.pattern.permute.xlu0 0
        %5401 = vperm.xlu0 %5400, %v5363
        %v5402 = vpop.permute.xlu0 %5401
        %5405 = vset.pattern.permute.xlu0 0
        %5406 = vperm.xlu0 %5405, %v5364
        %v5407 = vpop.permute.xlu0 %5406
        %5410 = vset.pattern.permute.xlu0 0
        %5411 = vperm.xlu0 %5410, %v5365
        %v5412 = vpop.permute.xlu0 %5411
        %5415 = vset.pattern.permute.xlu0 0
        %5416 = vperm.xlu0 %5415, %v5366
        %v5417 = vpop.permute.xlu0 %5416
        %5420 = vset.pattern.permute.xlu0 0
        %5421 = vperm.xlu0 %5420, %v5367
        %v5422 = vpop.permute.xlu0 %5421
        %5425 = vset.pattern.permute.xlu0 0
        %5426 = vperm.xlu0 %5425, %v5368
        %v5427 = vpop.permute.xlu0 %5426
        %5430 = vset.pattern.permute.xlu0 0
        %5431 = vperm.xlu0 %5430, %v5369
        %v5432 = vpop.permute.xlu0 %5431
        %5435 = vset.pattern.permute.xlu0 0
        %5436 = vperm.xlu0 %5435, %v5370
        %v5437 = vpop.permute.xlu0 %5436
        %5440 = vset.pattern.permute.xlu0 0
        %5441 = vperm.xlu0 %5440, %v5371
        %v5442 = vpop.permute.xlu0 %5441
        %5445 = vset.pattern.permute.xlu0 0
        %5446 = vperm.xlu0 %5445, %v5372
        %v5447 = vpop.permute.xlu0 %5446
        %5450 = vset.pattern.permute.xlu0 0
        %5451 = vperm.xlu0 %5450, %v5373
        %v5452 = vpop.permute.xlu0 %5451
        %v5454 = vmul.f32 %v5377, %v5341
        %v5455 = vmul.f32 %v5382, %v5342
        %v5456 = vmul.f32 %v5387, %v5343
        %v5457 = vmul.f32 %v5392, %v5344
        %v5458 = vmul.f32 %v5397, %v5345
        %v5459 = vmul.f32 %v5402, %v5346
        %v5460 = vmul.f32 %v5407, %v5347
        %v5461 = vmul.f32 %v5412, %v5348
        %v5462 = vmul.f32 %v5417, %v5349
        %v5463 = vmul.f32 %v5422, %v5350
        %v5464 = vmul.f32 %v5427, %v5351
        %v5465 = vmul.f32 %v5432, %v5352
        %v5466 = vmul.f32 %v5437, %v5353
        %v5467 = vmul.f32 %v5442, %v5354
        %v5468 = vmul.f32 %v5447, %v5355
        %v5469 = vmul.f32 %v5452, %v5356
        %v5470 = vadd.f32 %v5454, %v5455
        %v5471 = vadd.f32 %v5470, %v5456
        %v5472 = vadd.f32 %v5471, %v5457
        %v5473 = vadd.f32 %v5472, %v5458
        %v5474 = vadd.f32 %v5473, %v5459
        %v5475 = vadd.f32 %v5474, %v5460
        %v5476 = vadd.f32 %v5475, %v5461
        %v5477 = vadd.f32 %v5476, %v5462
        %v5478 = vadd.f32 %v5477, %v5463
        %v5479 = vadd.f32 %v5478, %v5464
        %v5480 = vadd.f32 %v5479, %v5465
        %v5481 = vadd.f32 %v5480, %v5466
        %v5482 = vadd.f32 %v5481, %v5467
        %v5483 = vadd.f32 %v5482, %v5468
        %v5484 = vadd.f32 %v5483, %v5469
        %v5485 = vrot.slane %v5484, 4
        %v5486 = vadd.f32 %v5484, %v5485
        %v5487 = vrot.slane %v5486, 2
        %v5488 = vadd.f32 %v5486, %v5487
        %v5489 = vrot.slane %v5488, 1
        %v5490 = vadd.f32 %v5488, %v5489
        %s5491 = scalar_lea.vmem %s7, 14
        %v5492 = vld [vmem:[%s5491] sm:$0x1]
        %5494 = vset.pattern.permute.xlu0 0
        %5495 = vperm.xlu0 %5494, %v5492
        %v5496 = vpop.permute.xlu0 %5495
        %v5498 = vadd.f32 %v5490, %v5496
        %s5499 = scalar_lea.vmem %s6, 896
        %v5500 = vld [vmem:[%s5499] sm:$0xff]
        %v5501 = vld [vmem:[%s5499 + $0x8] sm:$0xff]
        %v5502 = vld [vmem:[%s5499 + $0x10] sm:$0xff]
        %v5503 = vld [vmem:[%s5499 + $0x18] sm:$0xff]
        %v5504 = vld [vmem:[%s5499 + $0x20] sm:$0xff]
        %v5505 = vld [vmem:[%s5499 + $0x28] sm:$0xff]
        %v5506 = vld [vmem:[%s5499 + $0x30] sm:$0xff]
        %v5507 = vld [vmem:[%s5499 + $0x38] sm:$0xff]
        %v5508 = vld [vmem:[%s5499 + $0x40] sm:$0xff]
        %v5509 = vld [vmem:[%s5499 + $0x48] sm:$0xff]
        %v5510 = vld [vmem:[%s5499 + $0x50] sm:$0xff]
        %v5511 = vld [vmem:[%s5499 + $0x58] sm:$0xff]
        %v5512 = vld [vmem:[%s5499 + $0x60] sm:$0xff]
        %v5513 = vld [vmem:[%s5499 + $0x68] sm:$0xff]
        %v5514 = vld [vmem:[%s5499 + $0x70] sm:$0xff]
        %v5515 = vld [vmem:[%s5499 + $0x78] sm:$0xff]
        %5517 = vset.pattern.permute.xlu0 0
        %5518 = vperm.xlu0 %5517, %v5500
        %v5519 = vpop.permute.xlu0 %5518
        %5522 = vset.pattern.permute.xlu0 0
        %5523 = vperm.xlu0 %5522, %v5501
        %v5524 = vpop.permute.xlu0 %5523
        %5527 = vset.pattern.permute.xlu0 0
        %5528 = vperm.xlu0 %5527, %v5502
        %v5529 = vpop.permute.xlu0 %5528
        %5532 = vset.pattern.permute.xlu0 0
        %5533 = vperm.xlu0 %5532, %v5503
        %v5534 = vpop.permute.xlu0 %5533
        %5537 = vset.pattern.permute.xlu0 0
        %5538 = vperm.xlu0 %5537, %v5504
        %v5539 = vpop.permute.xlu0 %5538
        %5542 = vset.pattern.permute.xlu0 0
        %5543 = vperm.xlu0 %5542, %v5505
        %v5544 = vpop.permute.xlu0 %5543
        %5547 = vset.pattern.permute.xlu0 0
        %5548 = vperm.xlu0 %5547, %v5506
        %v5549 = vpop.permute.xlu0 %5548
        %5552 = vset.pattern.permute.xlu0 0
        %5553 = vperm.xlu0 %5552, %v5507
        %v5554 = vpop.permute.xlu0 %5553
        %5557 = vset.pattern.permute.xlu0 0
        %5558 = vperm.xlu0 %5557, %v5508
        %v5559 = vpop.permute.xlu0 %5558
        %5562 = vset.pattern.permute.xlu0 0
        %5563 = vperm.xlu0 %5562, %v5509
        %v5564 = vpop.permute.xlu0 %5563
        %5567 = vset.pattern.permute.xlu0 0
        %5568 = vperm.xlu0 %5567, %v5510
        %v5569 = vpop.permute.xlu0 %5568
        %5572 = vset.pattern.permute.xlu0 0
        %5573 = vperm.xlu0 %5572, %v5511
        %v5574 = vpop.permute.xlu0 %5573
        %5577 = vset.pattern.permute.xlu0 0
        %5578 = vperm.xlu0 %5577, %v5512
        %v5579 = vpop.permute.xlu0 %5578
        %5582 = vset.pattern.permute.xlu0 0
        %5583 = vperm.xlu0 %5582, %v5513
        %v5584 = vpop.permute.xlu0 %5583
        %5587 = vset.pattern.permute.xlu0 0
        %5588 = vperm.xlu0 %5587, %v5514
        %v5589 = vpop.permute.xlu0 %5588
        %5592 = vset.pattern.permute.xlu0 0
        %5593 = vperm.xlu0 %5592, %v5515
        %v5594 = vpop.permute.xlu0 %5593
        %v5596 = vmul.f32 %v5519, %v5341
        %v5597 = vmul.f32 %v5524, %v5342
        %v5598 = vmul.f32 %v5529, %v5343
        %v5599 = vmul.f32 %v5534, %v5344
        %v5600 = vmul.f32 %v5539, %v5345
        %v5601 = vmul.f32 %v5544, %v5346
        %v5602 = vmul.f32 %v5549, %v5347
        %v5603 = vmul.f32 %v5554, %v5348
        %v5604 = vmul.f32 %v5559, %v5349
        %v5605 = vmul.f32 %v5564, %v5350
        %v5606 = vmul.f32 %v5569, %v5351
        %v5607 = vmul.f32 %v5574, %v5352
        %v5608 = vmul.f32 %v5579, %v5353
        %v5609 = vmul.f32 %v5584, %v5354
        %v5610 = vmul.f32 %v5589, %v5355
        %v5611 = vmul.f32 %v5594, %v5356
        %v5612 = vadd.f32 %v5596, %v5597
        %v5613 = vadd.f32 %v5612, %v5598
        %v5614 = vadd.f32 %v5613, %v5599
        %v5615 = vadd.f32 %v5614, %v5600
        %v5616 = vadd.f32 %v5615, %v5601
        %v5617 = vadd.f32 %v5616, %v5602
        %v5618 = vadd.f32 %v5617, %v5603
        %v5619 = vadd.f32 %v5618, %v5604
        %v5620 = vadd.f32 %v5619, %v5605
        %v5621 = vadd.f32 %v5620, %v5606
        %v5622 = vadd.f32 %v5621, %v5607
        %v5623 = vadd.f32 %v5622, %v5608
        %v5624 = vadd.f32 %v5623, %v5609
        %v5625 = vadd.f32 %v5624, %v5610
        %v5626 = vadd.f32 %v5625, %v5611
        %v5627 = vrot.slane %v5626, 4
        %v5628 = vadd.f32 %v5626, %v5627
        %v5629 = vrot.slane %v5628, 2
        %v5630 = vadd.f32 %v5628, %v5629
        %v5631 = vrot.slane %v5630, 1
        %v5632 = vadd.f32 %v5630, %v5631
        %v5633 = vld [vmem:[%s5491 + $0x1] sm:$0x1]
        %5635 = vset.pattern.permute.xlu0 0
        %5636 = vperm.xlu0 %5635, %v5633
        %v5637 = vpop.permute.xlu0 %5636
        %v5639 = vadd.f32 %v5632, %v5637
        %v5640 = vmax.f32 %v5639, -5.0
        %v5641 = vmin.f32 %v5640, 3.0
        %v5642 = vmul.f32 %v5641, 1.442695
        %v5643 = vpow.pop %v5642
        %v5644 = vmul.f32 %v5643, %v4313
        %v5645 = vadd.f32 %v5644, %v5498
        %5646 = vst [vmem:[%s307 + $0x10] sm:$0x1] %v4979
        %5647 = vst [vmem:[%s307 + $0x11] sm:$0x1] %v5645
        %s5648 = scalar_lea.vmem %s2, 1024
        %v5649 = vld [vmem:[%s5648] sm:$0xff]
        %v5650 = vld [vmem:[%s5648 + $0x8] sm:$0xff]
        %v5651 = vld [vmem:[%s5648 + $0x10] sm:$0xff]
        %v5652 = vld [vmem:[%s5648 + $0x18] sm:$0xff]
        %v5653 = vld [vmem:[%s5648 + $0x20] sm:$0xff]
        %v5654 = vld [vmem:[%s5648 + $0x28] sm:$0xff]
        %v5655 = vld [vmem:[%s5648 + $0x30] sm:$0xff]
        %v5656 = vld [vmem:[%s5648 + $0x38] sm:$0xff]
        %v5657 = vld [vmem:[%s5648 + $0x40] sm:$0xff]
        %v5658 = vld [vmem:[%s5648 + $0x48] sm:$0xff]
        %v5659 = vld [vmem:[%s5648 + $0x50] sm:$0xff]
        %v5660 = vld [vmem:[%s5648 + $0x58] sm:$0xff]
        %v5661 = vld [vmem:[%s5648 + $0x60] sm:$0xff]
        %v5662 = vld [vmem:[%s5648 + $0x68] sm:$0xff]
        %v5663 = vld [vmem:[%s5648 + $0x70] sm:$0xff]
        %v5664 = vld [vmem:[%s5648 + $0x78] sm:$0xff]
        %5666 = vset.pattern.permute.xlu0 0
        %5667 = vperm.xlu0 %5666, %v5649
        %v5668 = vpop.permute.xlu0 %5667
        %5671 = vset.pattern.permute.xlu0 0
        %5672 = vperm.xlu0 %5671, %v5650
        %v5673 = vpop.permute.xlu0 %5672
        %5676 = vset.pattern.permute.xlu0 0
        %5677 = vperm.xlu0 %5676, %v5651
        %v5678 = vpop.permute.xlu0 %5677
        %5681 = vset.pattern.permute.xlu0 0
        %5682 = vperm.xlu0 %5681, %v5652
        %v5683 = vpop.permute.xlu0 %5682
        %5686 = vset.pattern.permute.xlu0 0
        %5687 = vperm.xlu0 %5686, %v5653
        %v5688 = vpop.permute.xlu0 %5687
        %5691 = vset.pattern.permute.xlu0 0
        %5692 = vperm.xlu0 %5691, %v5654
        %v5693 = vpop.permute.xlu0 %5692
        %5696 = vset.pattern.permute.xlu0 0
        %5697 = vperm.xlu0 %5696, %v5655
        %v5698 = vpop.permute.xlu0 %5697
        %5701 = vset.pattern.permute.xlu0 0
        %5702 = vperm.xlu0 %5701, %v5656
        %v5703 = vpop.permute.xlu0 %5702
        %5706 = vset.pattern.permute.xlu0 0
        %5707 = vperm.xlu0 %5706, %v5657
        %v5708 = vpop.permute.xlu0 %5707
        %5711 = vset.pattern.permute.xlu0 0
        %5712 = vperm.xlu0 %5711, %v5658
        %v5713 = vpop.permute.xlu0 %5712
        %5716 = vset.pattern.permute.xlu0 0
        %5717 = vperm.xlu0 %5716, %v5659
        %v5718 = vpop.permute.xlu0 %5717
        %5721 = vset.pattern.permute.xlu0 0
        %5722 = vperm.xlu0 %5721, %v5660
        %v5723 = vpop.permute.xlu0 %5722
        %5726 = vset.pattern.permute.xlu0 0
        %5727 = vperm.xlu0 %5726, %v5661
        %v5728 = vpop.permute.xlu0 %5727
        %5731 = vset.pattern.permute.xlu0 0
        %5732 = vperm.xlu0 %5731, %v5662
        %v5733 = vpop.permute.xlu0 %5732
        %5736 = vset.pattern.permute.xlu0 0
        %5737 = vperm.xlu0 %5736, %v5663
        %v5738 = vpop.permute.xlu0 %5737
        %5741 = vset.pattern.permute.xlu0 0
        %5742 = vperm.xlu0 %5741, %v5664
        %v5743 = vpop.permute.xlu0 %5742
        %v5745 = vmul.f32 %v5668, %v420
        %v5746 = vmul.f32 %v5673, %v420
        %v5747 = vmul.f32 %v5678, %v420
        %v5748 = vmul.f32 %v5683, %v420
        %v5749 = vmul.f32 %v5688, %v420
        %v5750 = vmul.f32 %v5693, %v420
        %v5751 = vmul.f32 %v5698, %v420
        %v5752 = vmul.f32 %v5703, %v420
        %v5753 = vmul.f32 %v5708, %v420
        %v5754 = vmul.f32 %v5713, %v420
        %v5755 = vmul.f32 %v5718, %v420
        %v5756 = vmul.f32 %v5723, %v420
        %v5757 = vmul.f32 %v5728, %v420
        %v5758 = vmul.f32 %v5733, %v420
        %v5759 = vmul.f32 %v5738, %v420
        %v5760 = vmul.f32 %v5743, %v420
        %s5761 = scalar_lea.vmem %s3, 1024
        %v5762 = vld [vmem:[%s5761] sm:$0xff]
        %v5763 = vld [vmem:[%s5761 + $0x8] sm:$0xff]
        %v5764 = vld [vmem:[%s5761 + $0x10] sm:$0xff]
        %v5765 = vld [vmem:[%s5761 + $0x18] sm:$0xff]
        %v5766 = vld [vmem:[%s5761 + $0x20] sm:$0xff]
        %v5767 = vld [vmem:[%s5761 + $0x28] sm:$0xff]
        %v5768 = vld [vmem:[%s5761 + $0x30] sm:$0xff]
        %v5769 = vld [vmem:[%s5761 + $0x38] sm:$0xff]
        %v5770 = vld [vmem:[%s5761 + $0x40] sm:$0xff]
        %v5771 = vld [vmem:[%s5761 + $0x48] sm:$0xff]
        %v5772 = vld [vmem:[%s5761 + $0x50] sm:$0xff]
        %v5773 = vld [vmem:[%s5761 + $0x58] sm:$0xff]
        %v5774 = vld [vmem:[%s5761 + $0x60] sm:$0xff]
        %v5775 = vld [vmem:[%s5761 + $0x68] sm:$0xff]
        %v5776 = vld [vmem:[%s5761 + $0x70] sm:$0xff]
        %v5777 = vld [vmem:[%s5761 + $0x78] sm:$0xff]
        %5779 = vset.pattern.permute.xlu0 0
        %5780 = vperm.xlu0 %5779, %v5762
        %v5781 = vpop.permute.xlu0 %5780
        %5784 = vset.pattern.permute.xlu0 0
        %5785 = vperm.xlu0 %5784, %v5763
        %v5786 = vpop.permute.xlu0 %5785
        %5789 = vset.pattern.permute.xlu0 0
        %5790 = vperm.xlu0 %5789, %v5764
        %v5791 = vpop.permute.xlu0 %5790
        %5794 = vset.pattern.permute.xlu0 0
        %5795 = vperm.xlu0 %5794, %v5765
        %v5796 = vpop.permute.xlu0 %5795
        %5799 = vset.pattern.permute.xlu0 0
        %5800 = vperm.xlu0 %5799, %v5766
        %v5801 = vpop.permute.xlu0 %5800
        %5804 = vset.pattern.permute.xlu0 0
        %5805 = vperm.xlu0 %5804, %v5767
        %v5806 = vpop.permute.xlu0 %5805
        %5809 = vset.pattern.permute.xlu0 0
        %5810 = vperm.xlu0 %5809, %v5768
        %v5811 = vpop.permute.xlu0 %5810
        %5814 = vset.pattern.permute.xlu0 0
        %5815 = vperm.xlu0 %5814, %v5769
        %v5816 = vpop.permute.xlu0 %5815
        %5819 = vset.pattern.permute.xlu0 0
        %5820 = vperm.xlu0 %5819, %v5770
        %v5821 = vpop.permute.xlu0 %5820
        %5824 = vset.pattern.permute.xlu0 0
        %5825 = vperm.xlu0 %5824, %v5771
        %v5826 = vpop.permute.xlu0 %5825
        %5829 = vset.pattern.permute.xlu0 0
        %5830 = vperm.xlu0 %5829, %v5772
        %v5831 = vpop.permute.xlu0 %5830
        %5834 = vset.pattern.permute.xlu0 0
        %5835 = vperm.xlu0 %5834, %v5773
        %v5836 = vpop.permute.xlu0 %5835
        %5839 = vset.pattern.permute.xlu0 0
        %5840 = vperm.xlu0 %5839, %v5774
        %v5841 = vpop.permute.xlu0 %5840
        %5844 = vset.pattern.permute.xlu0 0
        %5845 = vperm.xlu0 %5844, %v5775
        %v5846 = vpop.permute.xlu0 %5845
        %5849 = vset.pattern.permute.xlu0 0
        %5850 = vperm.xlu0 %5849, %v5776
        %v5851 = vpop.permute.xlu0 %5850
        %5854 = vset.pattern.permute.xlu0 0
        %5855 = vperm.xlu0 %5854, %v5777
        %v5856 = vpop.permute.xlu0 %5855
        %v5858 = vlaneseq
        %v5859 = vshrl.u32 %v5858, 7
        %v5860 = vsub.s32 0, %v5859
        %v5861 = vrot.slane %v5645, %v5860
        %v5862 = vmul.f32 %v5781, %v5861
        %v5863 = vmul.f32 %v5786, %v5861
        %v5864 = vmul.f32 %v5791, %v5861
        %v5865 = vmul.f32 %v5796, %v5861
        %v5866 = vmul.f32 %v5801, %v5861
        %v5867 = vmul.f32 %v5806, %v5861
        %v5868 = vmul.f32 %v5811, %v5861
        %v5869 = vmul.f32 %v5816, %v5861
        %v5870 = vmul.f32 %v5821, %v5861
        %v5871 = vmul.f32 %v5826, %v5861
        %v5872 = vmul.f32 %v5831, %v5861
        %v5873 = vmul.f32 %v5836, %v5861
        %v5874 = vmul.f32 %v5841, %v5861
        %v5875 = vmul.f32 %v5846, %v5861
        %v5876 = vmul.f32 %v5851, %v5861
        %v5877 = vmul.f32 %v5856, %v5861
        %v5878 = vadd.f32 %v5745, %v5862
        %v5879 = vadd.f32 %v5746, %v5863
        %v5880 = vadd.f32 %v5747, %v5864
        %v5881 = vadd.f32 %v5748, %v5865
        %v5882 = vadd.f32 %v5749, %v5866
        %v5883 = vadd.f32 %v5750, %v5867
        %v5884 = vadd.f32 %v5751, %v5868
        %v5885 = vadd.f32 %v5752, %v5869
        %v5886 = vadd.f32 %v5753, %v5870
        %v5887 = vadd.f32 %v5754, %v5871
        %v5888 = vadd.f32 %v5755, %v5872
        %v5889 = vadd.f32 %v5756, %v5873
        %v5890 = vadd.f32 %v5757, %v5874
        %v5891 = vadd.f32 %v5758, %v5875
        %v5892 = vadd.f32 %v5759, %v5876
        %v5893 = vadd.f32 %v5760, %v5877
        %s5894 = scalar_lea.vmem %s4, 1024
        %v5895 = vld [vmem:[%s5894] sm:$0xff]
        %v5896 = vld [vmem:[%s5894 + $0x8] sm:$0xff]
        %v5897 = vld [vmem:[%s5894 + $0x10] sm:$0xff]
        %v5898 = vld [vmem:[%s5894 + $0x18] sm:$0xff]
        %v5899 = vld [vmem:[%s5894 + $0x20] sm:$0xff]
        %v5900 = vld [vmem:[%s5894 + $0x28] sm:$0xff]
        %v5901 = vld [vmem:[%s5894 + $0x30] sm:$0xff]
        %v5902 = vld [vmem:[%s5894 + $0x38] sm:$0xff]
        %v5903 = vld [vmem:[%s5894 + $0x40] sm:$0xff]
        %v5904 = vld [vmem:[%s5894 + $0x48] sm:$0xff]
        %v5905 = vld [vmem:[%s5894 + $0x50] sm:$0xff]
        %v5906 = vld [vmem:[%s5894 + $0x58] sm:$0xff]
        %v5907 = vld [vmem:[%s5894 + $0x60] sm:$0xff]
        %v5908 = vld [vmem:[%s5894 + $0x68] sm:$0xff]
        %v5909 = vld [vmem:[%s5894 + $0x70] sm:$0xff]
        %v5910 = vld [vmem:[%s5894 + $0x78] sm:$0xff]
        %5912 = vset.pattern.permute.xlu0 0
        %5913 = vperm.xlu0 %5912, %v5895
        %v5914 = vpop.permute.xlu0 %5913
        %5917 = vset.pattern.permute.xlu0 0
        %5918 = vperm.xlu0 %5917, %v5896
        %v5919 = vpop.permute.xlu0 %5918
        %5922 = vset.pattern.permute.xlu0 0
        %5923 = vperm.xlu0 %5922, %v5897
        %v5924 = vpop.permute.xlu0 %5923
        %5927 = vset.pattern.permute.xlu0 0
        %5928 = vperm.xlu0 %5927, %v5898
        %v5929 = vpop.permute.xlu0 %5928
        %5932 = vset.pattern.permute.xlu0 0
        %5933 = vperm.xlu0 %5932, %v5899
        %v5934 = vpop.permute.xlu0 %5933
        %5937 = vset.pattern.permute.xlu0 0
        %5938 = vperm.xlu0 %5937, %v5900
        %v5939 = vpop.permute.xlu0 %5938
        %5942 = vset.pattern.permute.xlu0 0
        %5943 = vperm.xlu0 %5942, %v5901
        %v5944 = vpop.permute.xlu0 %5943
        %5947 = vset.pattern.permute.xlu0 0
        %5948 = vperm.xlu0 %5947, %v5902
        %v5949 = vpop.permute.xlu0 %5948
        %5952 = vset.pattern.permute.xlu0 0
        %5953 = vperm.xlu0 %5952, %v5903
        %v5954 = vpop.permute.xlu0 %5953
        %5957 = vset.pattern.permute.xlu0 0
        %5958 = vperm.xlu0 %5957, %v5904
        %v5959 = vpop.permute.xlu0 %5958
        %5962 = vset.pattern.permute.xlu0 0
        %5963 = vperm.xlu0 %5962, %v5905
        %v5964 = vpop.permute.xlu0 %5963
        %5967 = vset.pattern.permute.xlu0 0
        %5968 = vperm.xlu0 %5967, %v5906
        %v5969 = vpop.permute.xlu0 %5968
        %5972 = vset.pattern.permute.xlu0 0
        %5973 = vperm.xlu0 %5972, %v5907
        %v5974 = vpop.permute.xlu0 %5973
        %5977 = vset.pattern.permute.xlu0 0
        %5978 = vperm.xlu0 %5977, %v5908
        %v5979 = vpop.permute.xlu0 %5978
        %5982 = vset.pattern.permute.xlu0 0
        %5983 = vperm.xlu0 %5982, %v5909
        %v5984 = vpop.permute.xlu0 %5983
        %5987 = vset.pattern.permute.xlu0 0
        %5988 = vperm.xlu0 %5987, %v5910
        %v5989 = vpop.permute.xlu0 %5988
        %v5991 = vadd.f32 %v5878, %v5914
        %v5992 = vadd.f32 %v5879, %v5919
        %v5993 = vadd.f32 %v5880, %v5924
        %v5994 = vadd.f32 %v5881, %v5929
        %v5995 = vadd.f32 %v5882, %v5934
        %v5996 = vadd.f32 %v5883, %v5939
        %v5997 = vadd.f32 %v5884, %v5944
        %v5998 = vadd.f32 %v5885, %v5949
        %v5999 = vadd.f32 %v5886, %v5954
        %v6000 = vadd.f32 %v5887, %v5959
        %v6001 = vadd.f32 %v5888, %v5964
        %v6002 = vadd.f32 %v5889, %v5969
        %v6003 = vadd.f32 %v5890, %v5974
        %v6004 = vadd.f32 %v5891, %v5979
        %v6005 = vadd.f32 %v5892, %v5984
        %v6006 = vadd.f32 %v5893, %v5989
        %v6007 = vmax.f32 %v5991, 0.0
        %v6008 = vmax.f32 %v5992, 0.0
        %v6009 = vmax.f32 %v5993, 0.0
        %v6010 = vmax.f32 %v5994, 0.0
        %v6011 = vmax.f32 %v5995, 0.0
        %v6012 = vmax.f32 %v5996, 0.0
        %v6013 = vmax.f32 %v5997, 0.0
        %v6014 = vmax.f32 %v5998, 0.0
        %v6015 = vmax.f32 %v5999, 0.0
        %v6016 = vmax.f32 %v6000, 0.0
        %v6017 = vmax.f32 %v6001, 0.0
        %v6018 = vmax.f32 %v6002, 0.0
        %v6019 = vmax.f32 %v6003, 0.0
        %v6020 = vmax.f32 %v6004, 0.0
        %v6021 = vmax.f32 %v6005, 0.0
        %v6022 = vmax.f32 %v6006, 0.0
        %s6023 = scalar_lea.vmem %s5, 1024
        %v6024 = vld [vmem:[%s6023] sm:$0xff]
        %v6025 = vld [vmem:[%s6023 + $0x8] sm:$0xff]
        %v6026 = vld [vmem:[%s6023 + $0x10] sm:$0xff]
        %v6027 = vld [vmem:[%s6023 + $0x18] sm:$0xff]
        %v6028 = vld [vmem:[%s6023 + $0x20] sm:$0xff]
        %v6029 = vld [vmem:[%s6023 + $0x28] sm:$0xff]
        %v6030 = vld [vmem:[%s6023 + $0x30] sm:$0xff]
        %v6031 = vld [vmem:[%s6023 + $0x38] sm:$0xff]
        %v6032 = vld [vmem:[%s6023 + $0x40] sm:$0xff]
        %v6033 = vld [vmem:[%s6023 + $0x48] sm:$0xff]
        %v6034 = vld [vmem:[%s6023 + $0x50] sm:$0xff]
        %v6035 = vld [vmem:[%s6023 + $0x58] sm:$0xff]
        %v6036 = vld [vmem:[%s6023 + $0x60] sm:$0xff]
        %v6037 = vld [vmem:[%s6023 + $0x68] sm:$0xff]
        %v6038 = vld [vmem:[%s6023 + $0x70] sm:$0xff]
        %v6039 = vld [vmem:[%s6023 + $0x78] sm:$0xff]
        %6041 = vset.pattern.permute.xlu0 0
        %6042 = vperm.xlu0 %6041, %v6024
        %v6043 = vpop.permute.xlu0 %6042
        %6046 = vset.pattern.permute.xlu0 0
        %6047 = vperm.xlu0 %6046, %v6025
        %v6048 = vpop.permute.xlu0 %6047
        %6051 = vset.pattern.permute.xlu0 0
        %6052 = vperm.xlu0 %6051, %v6026
        %v6053 = vpop.permute.xlu0 %6052
        %6056 = vset.pattern.permute.xlu0 0
        %6057 = vperm.xlu0 %6056, %v6027
        %v6058 = vpop.permute.xlu0 %6057
        %6061 = vset.pattern.permute.xlu0 0
        %6062 = vperm.xlu0 %6061, %v6028
        %v6063 = vpop.permute.xlu0 %6062
        %6066 = vset.pattern.permute.xlu0 0
        %6067 = vperm.xlu0 %6066, %v6029
        %v6068 = vpop.permute.xlu0 %6067
        %6071 = vset.pattern.permute.xlu0 0
        %6072 = vperm.xlu0 %6071, %v6030
        %v6073 = vpop.permute.xlu0 %6072
        %6076 = vset.pattern.permute.xlu0 0
        %6077 = vperm.xlu0 %6076, %v6031
        %v6078 = vpop.permute.xlu0 %6077
        %6081 = vset.pattern.permute.xlu0 0
        %6082 = vperm.xlu0 %6081, %v6032
        %v6083 = vpop.permute.xlu0 %6082
        %6086 = vset.pattern.permute.xlu0 0
        %6087 = vperm.xlu0 %6086, %v6033
        %v6088 = vpop.permute.xlu0 %6087
        %6091 = vset.pattern.permute.xlu0 0
        %6092 = vperm.xlu0 %6091, %v6034
        %v6093 = vpop.permute.xlu0 %6092
        %6096 = vset.pattern.permute.xlu0 0
        %6097 = vperm.xlu0 %6096, %v6035
        %v6098 = vpop.permute.xlu0 %6097
        %6101 = vset.pattern.permute.xlu0 0
        %6102 = vperm.xlu0 %6101, %v6036
        %v6103 = vpop.permute.xlu0 %6102
        %6106 = vset.pattern.permute.xlu0 0
        %6107 = vperm.xlu0 %6106, %v6037
        %v6108 = vpop.permute.xlu0 %6107
        %6111 = vset.pattern.permute.xlu0 0
        %6112 = vperm.xlu0 %6111, %v6038
        %v6113 = vpop.permute.xlu0 %6112
        %6116 = vset.pattern.permute.xlu0 0
        %6117 = vperm.xlu0 %6116, %v6039
        %v6118 = vpop.permute.xlu0 %6117
        %v6120 = vmul.f32 %v6043, %v6007
        %v6121 = vmul.f32 %v6048, %v6008
        %v6122 = vmul.f32 %v6053, %v6009
        %v6123 = vmul.f32 %v6058, %v6010
        %v6124 = vmul.f32 %v6063, %v6011
        %v6125 = vmul.f32 %v6068, %v6012
        %v6126 = vmul.f32 %v6073, %v6013
        %v6127 = vmul.f32 %v6078, %v6014
        %v6128 = vmul.f32 %v6083, %v6015
        %v6129 = vmul.f32 %v6088, %v6016
        %v6130 = vmul.f32 %v6093, %v6017
        %v6131 = vmul.f32 %v6098, %v6018
        %v6132 = vmul.f32 %v6103, %v6019
        %v6133 = vmul.f32 %v6108, %v6020
        %v6134 = vmul.f32 %v6113, %v6021
        %v6135 = vmul.f32 %v6118, %v6022
        %v6136 = vadd.f32 %v6120, %v6121
        %v6137 = vadd.f32 %v6136, %v6122
        %v6138 = vadd.f32 %v6137, %v6123
        %v6139 = vadd.f32 %v6138, %v6124
        %v6140 = vadd.f32 %v6139, %v6125
        %v6141 = vadd.f32 %v6140, %v6126
        %v6142 = vadd.f32 %v6141, %v6127
        %v6143 = vadd.f32 %v6142, %v6128
        %v6144 = vadd.f32 %v6143, %v6129
        %v6145 = vadd.f32 %v6144, %v6130
        %v6146 = vadd.f32 %v6145, %v6131
        %v6147 = vadd.f32 %v6146, %v6132
        %v6148 = vadd.f32 %v6147, %v6133
        %v6149 = vadd.f32 %v6148, %v6134
        %v6150 = vadd.f32 %v6149, %v6135
        %v6151 = vrot.slane %v6150, 4
        %v6152 = vadd.f32 %v6150, %v6151
        %v6153 = vrot.slane %v6152, 2
        %v6154 = vadd.f32 %v6152, %v6153
        %v6155 = vrot.slane %v6154, 1
        %v6156 = vadd.f32 %v6154, %v6155
        %s6157 = scalar_lea.vmem %s7, 16
        %v6158 = vld [vmem:[%s6157] sm:$0x1]
        %6160 = vset.pattern.permute.xlu0 0
        %6161 = vperm.xlu0 %6160, %v6158
        %v6162 = vpop.permute.xlu0 %6161
        %v6164 = vadd.f32 %v6156, %v6162
        %s6165 = scalar_lea.vmem %s6, 1024
        %v6166 = vld [vmem:[%s6165] sm:$0xff]
        %v6167 = vld [vmem:[%s6165 + $0x8] sm:$0xff]
        %v6168 = vld [vmem:[%s6165 + $0x10] sm:$0xff]
        %v6169 = vld [vmem:[%s6165 + $0x18] sm:$0xff]
        %v6170 = vld [vmem:[%s6165 + $0x20] sm:$0xff]
        %v6171 = vld [vmem:[%s6165 + $0x28] sm:$0xff]
        %v6172 = vld [vmem:[%s6165 + $0x30] sm:$0xff]
        %v6173 = vld [vmem:[%s6165 + $0x38] sm:$0xff]
        %v6174 = vld [vmem:[%s6165 + $0x40] sm:$0xff]
        %v6175 = vld [vmem:[%s6165 + $0x48] sm:$0xff]
        %v6176 = vld [vmem:[%s6165 + $0x50] sm:$0xff]
        %v6177 = vld [vmem:[%s6165 + $0x58] sm:$0xff]
        %v6178 = vld [vmem:[%s6165 + $0x60] sm:$0xff]
        %v6179 = vld [vmem:[%s6165 + $0x68] sm:$0xff]
        %v6180 = vld [vmem:[%s6165 + $0x70] sm:$0xff]
        %v6181 = vld [vmem:[%s6165 + $0x78] sm:$0xff]
        %6183 = vset.pattern.permute.xlu0 0
        %6184 = vperm.xlu0 %6183, %v6166
        %v6185 = vpop.permute.xlu0 %6184
        %6188 = vset.pattern.permute.xlu0 0
        %6189 = vperm.xlu0 %6188, %v6167
        %v6190 = vpop.permute.xlu0 %6189
        %6193 = vset.pattern.permute.xlu0 0
        %6194 = vperm.xlu0 %6193, %v6168
        %v6195 = vpop.permute.xlu0 %6194
        %6198 = vset.pattern.permute.xlu0 0
        %6199 = vperm.xlu0 %6198, %v6169
        %v6200 = vpop.permute.xlu0 %6199
        %6203 = vset.pattern.permute.xlu0 0
        %6204 = vperm.xlu0 %6203, %v6170
        %v6205 = vpop.permute.xlu0 %6204
        %6208 = vset.pattern.permute.xlu0 0
        %6209 = vperm.xlu0 %6208, %v6171
        %v6210 = vpop.permute.xlu0 %6209
        %6213 = vset.pattern.permute.xlu0 0
        %6214 = vperm.xlu0 %6213, %v6172
        %v6215 = vpop.permute.xlu0 %6214
        %6218 = vset.pattern.permute.xlu0 0
        %6219 = vperm.xlu0 %6218, %v6173
        %v6220 = vpop.permute.xlu0 %6219
        %6223 = vset.pattern.permute.xlu0 0
        %6224 = vperm.xlu0 %6223, %v6174
        %v6225 = vpop.permute.xlu0 %6224
        %6228 = vset.pattern.permute.xlu0 0
        %6229 = vperm.xlu0 %6228, %v6175
        %v6230 = vpop.permute.xlu0 %6229
        %6233 = vset.pattern.permute.xlu0 0
        %6234 = vperm.xlu0 %6233, %v6176
        %v6235 = vpop.permute.xlu0 %6234
        %6238 = vset.pattern.permute.xlu0 0
        %6239 = vperm.xlu0 %6238, %v6177
        %v6240 = vpop.permute.xlu0 %6239
        %6243 = vset.pattern.permute.xlu0 0
        %6244 = vperm.xlu0 %6243, %v6178
        %v6245 = vpop.permute.xlu0 %6244
        %6248 = vset.pattern.permute.xlu0 0
        %6249 = vperm.xlu0 %6248, %v6179
        %v6250 = vpop.permute.xlu0 %6249
        %6253 = vset.pattern.permute.xlu0 0
        %6254 = vperm.xlu0 %6253, %v6180
        %v6255 = vpop.permute.xlu0 %6254
        %6258 = vset.pattern.permute.xlu0 0
        %6259 = vperm.xlu0 %6258, %v6181
        %v6260 = vpop.permute.xlu0 %6259
        %v6262 = vmul.f32 %v6185, %v6007
        %v6263 = vmul.f32 %v6190, %v6008
        %v6264 = vmul.f32 %v6195, %v6009
        %v6265 = vmul.f32 %v6200, %v6010
        %v6266 = vmul.f32 %v6205, %v6011
        %v6267 = vmul.f32 %v6210, %v6012
        %v6268 = vmul.f32 %v6215, %v6013
        %v6269 = vmul.f32 %v6220, %v6014
        %v6270 = vmul.f32 %v6225, %v6015
        %v6271 = vmul.f32 %v6230, %v6016
        %v6272 = vmul.f32 %v6235, %v6017
        %v6273 = vmul.f32 %v6240, %v6018
        %v6274 = vmul.f32 %v6245, %v6019
        %v6275 = vmul.f32 %v6250, %v6020
        %v6276 = vmul.f32 %v6255, %v6021
        %v6277 = vmul.f32 %v6260, %v6022
        %v6278 = vadd.f32 %v6262, %v6263
        %v6279 = vadd.f32 %v6278, %v6264
        %v6280 = vadd.f32 %v6279, %v6265
        %v6281 = vadd.f32 %v6280, %v6266
        %v6282 = vadd.f32 %v6281, %v6267
        %v6283 = vadd.f32 %v6282, %v6268
        %v6284 = vadd.f32 %v6283, %v6269
        %v6285 = vadd.f32 %v6284, %v6270
        %v6286 = vadd.f32 %v6285, %v6271
        %v6287 = vadd.f32 %v6286, %v6272
        %v6288 = vadd.f32 %v6287, %v6273
        %v6289 = vadd.f32 %v6288, %v6274
        %v6290 = vadd.f32 %v6289, %v6275
        %v6291 = vadd.f32 %v6290, %v6276
        %v6292 = vadd.f32 %v6291, %v6277
        %v6293 = vrot.slane %v6292, 4
        %v6294 = vadd.f32 %v6292, %v6293
        %v6295 = vrot.slane %v6294, 2
        %v6296 = vadd.f32 %v6294, %v6295
        %v6297 = vrot.slane %v6296, 1
        %v6298 = vadd.f32 %v6296, %v6297
        %v6299 = vld [vmem:[%s6157 + $0x1] sm:$0x1]
        %6301 = vset.pattern.permute.xlu0 0
        %6302 = vperm.xlu0 %6301, %v6299
        %v6303 = vpop.permute.xlu0 %6302
        %v6305 = vadd.f32 %v6298, %v6303
        %v6306 = vmax.f32 %v6305, -5.0
        %v6307 = vmin.f32 %v6306, 3.0
        %v6308 = vmul.f32 %v6307, 1.442695
        %v6309 = vpow.pop %v6308
        %v6310 = vmul.f32 %v6309, %v4979
        %v6311 = vadd.f32 %v6310, %v6164
        %6312 = vst [vmem:[%s307 + $0x12] sm:$0x1] %v5645
        %6313 = vst [vmem:[%s307 + $0x13] sm:$0x1] %v6311
        %s6314 = scalar_lea.vmem %s2, 1152
        %v6315 = vld [vmem:[%s6314] sm:$0xff]
        %v6316 = vld [vmem:[%s6314 + $0x8] sm:$0xff]
        %v6317 = vld [vmem:[%s6314 + $0x10] sm:$0xff]
        %v6318 = vld [vmem:[%s6314 + $0x18] sm:$0xff]
        %v6319 = vld [vmem:[%s6314 + $0x20] sm:$0xff]
        %v6320 = vld [vmem:[%s6314 + $0x28] sm:$0xff]
        %v6321 = vld [vmem:[%s6314 + $0x30] sm:$0xff]
        %v6322 = vld [vmem:[%s6314 + $0x38] sm:$0xff]
        %v6323 = vld [vmem:[%s6314 + $0x40] sm:$0xff]
        %v6324 = vld [vmem:[%s6314 + $0x48] sm:$0xff]
        %v6325 = vld [vmem:[%s6314 + $0x50] sm:$0xff]
        %v6326 = vld [vmem:[%s6314 + $0x58] sm:$0xff]
        %v6327 = vld [vmem:[%s6314 + $0x60] sm:$0xff]
        %v6328 = vld [vmem:[%s6314 + $0x68] sm:$0xff]
        %v6329 = vld [vmem:[%s6314 + $0x70] sm:$0xff]
        %v6330 = vld [vmem:[%s6314 + $0x78] sm:$0xff]
        %6332 = vset.pattern.permute.xlu0 0
        %6333 = vperm.xlu0 %6332, %v6315
        %v6334 = vpop.permute.xlu0 %6333
        %6337 = vset.pattern.permute.xlu0 0
        %6338 = vperm.xlu0 %6337, %v6316
        %v6339 = vpop.permute.xlu0 %6338
        %6342 = vset.pattern.permute.xlu0 0
        %6343 = vperm.xlu0 %6342, %v6317
        %v6344 = vpop.permute.xlu0 %6343
        %6347 = vset.pattern.permute.xlu0 0
        %6348 = vperm.xlu0 %6347, %v6318
        %v6349 = vpop.permute.xlu0 %6348
        %6352 = vset.pattern.permute.xlu0 0
        %6353 = vperm.xlu0 %6352, %v6319
        %v6354 = vpop.permute.xlu0 %6353
        %6357 = vset.pattern.permute.xlu0 0
        %6358 = vperm.xlu0 %6357, %v6320
        %v6359 = vpop.permute.xlu0 %6358
        %6362 = vset.pattern.permute.xlu0 0
        %6363 = vperm.xlu0 %6362, %v6321
        %v6364 = vpop.permute.xlu0 %6363
        %6367 = vset.pattern.permute.xlu0 0
        %6368 = vperm.xlu0 %6367, %v6322
        %v6369 = vpop.permute.xlu0 %6368
        %6372 = vset.pattern.permute.xlu0 0
        %6373 = vperm.xlu0 %6372, %v6323
        %v6374 = vpop.permute.xlu0 %6373
        %6377 = vset.pattern.permute.xlu0 0
        %6378 = vperm.xlu0 %6377, %v6324
        %v6379 = vpop.permute.xlu0 %6378
        %6382 = vset.pattern.permute.xlu0 0
        %6383 = vperm.xlu0 %6382, %v6325
        %v6384 = vpop.permute.xlu0 %6383
        %6387 = vset.pattern.permute.xlu0 0
        %6388 = vperm.xlu0 %6387, %v6326
        %v6389 = vpop.permute.xlu0 %6388
        %6392 = vset.pattern.permute.xlu0 0
        %6393 = vperm.xlu0 %6392, %v6327
        %v6394 = vpop.permute.xlu0 %6393
        %6397 = vset.pattern.permute.xlu0 0
        %6398 = vperm.xlu0 %6397, %v6328
        %v6399 = vpop.permute.xlu0 %6398
        %6402 = vset.pattern.permute.xlu0 0
        %6403 = vperm.xlu0 %6402, %v6329
        %v6404 = vpop.permute.xlu0 %6403
        %6407 = vset.pattern.permute.xlu0 0
        %6408 = vperm.xlu0 %6407, %v6330
        %v6409 = vpop.permute.xlu0 %6408
        %v6411 = vmul.f32 %v6334, %v420
        %v6412 = vmul.f32 %v6339, %v420
        %v6413 = vmul.f32 %v6344, %v420
        %v6414 = vmul.f32 %v6349, %v420
        %v6415 = vmul.f32 %v6354, %v420
        %v6416 = vmul.f32 %v6359, %v420
        %v6417 = vmul.f32 %v6364, %v420
        %v6418 = vmul.f32 %v6369, %v420
        %v6419 = vmul.f32 %v6374, %v420
        %v6420 = vmul.f32 %v6379, %v420
        %v6421 = vmul.f32 %v6384, %v420
        %v6422 = vmul.f32 %v6389, %v420
        %v6423 = vmul.f32 %v6394, %v420
        %v6424 = vmul.f32 %v6399, %v420
        %v6425 = vmul.f32 %v6404, %v420
        %v6426 = vmul.f32 %v6409, %v420
        %s6427 = scalar_lea.vmem %s3, 1152
        %v6428 = vld [vmem:[%s6427] sm:$0xff]
        %v6429 = vld [vmem:[%s6427 + $0x8] sm:$0xff]
        %v6430 = vld [vmem:[%s6427 + $0x10] sm:$0xff]
        %v6431 = vld [vmem:[%s6427 + $0x18] sm:$0xff]
        %v6432 = vld [vmem:[%s6427 + $0x20] sm:$0xff]
        %v6433 = vld [vmem:[%s6427 + $0x28] sm:$0xff]
        %v6434 = vld [vmem:[%s6427 + $0x30] sm:$0xff]
        %v6435 = vld [vmem:[%s6427 + $0x38] sm:$0xff]
        %v6436 = vld [vmem:[%s6427 + $0x40] sm:$0xff]
        %v6437 = vld [vmem:[%s6427 + $0x48] sm:$0xff]
        %v6438 = vld [vmem:[%s6427 + $0x50] sm:$0xff]
        %v6439 = vld [vmem:[%s6427 + $0x58] sm:$0xff]
        %v6440 = vld [vmem:[%s6427 + $0x60] sm:$0xff]
        %v6441 = vld [vmem:[%s6427 + $0x68] sm:$0xff]
        %v6442 = vld [vmem:[%s6427 + $0x70] sm:$0xff]
        %v6443 = vld [vmem:[%s6427 + $0x78] sm:$0xff]
        %6445 = vset.pattern.permute.xlu0 0
        %6446 = vperm.xlu0 %6445, %v6428
        %v6447 = vpop.permute.xlu0 %6446
        %6450 = vset.pattern.permute.xlu0 0
        %6451 = vperm.xlu0 %6450, %v6429
        %v6452 = vpop.permute.xlu0 %6451
        %6455 = vset.pattern.permute.xlu0 0
        %6456 = vperm.xlu0 %6455, %v6430
        %v6457 = vpop.permute.xlu0 %6456
        %6460 = vset.pattern.permute.xlu0 0
        %6461 = vperm.xlu0 %6460, %v6431
        %v6462 = vpop.permute.xlu0 %6461
        %6465 = vset.pattern.permute.xlu0 0
        %6466 = vperm.xlu0 %6465, %v6432
        %v6467 = vpop.permute.xlu0 %6466
        %6470 = vset.pattern.permute.xlu0 0
        %6471 = vperm.xlu0 %6470, %v6433
        %v6472 = vpop.permute.xlu0 %6471
        %6475 = vset.pattern.permute.xlu0 0
        %6476 = vperm.xlu0 %6475, %v6434
        %v6477 = vpop.permute.xlu0 %6476
        %6480 = vset.pattern.permute.xlu0 0
        %6481 = vperm.xlu0 %6480, %v6435
        %v6482 = vpop.permute.xlu0 %6481
        %6485 = vset.pattern.permute.xlu0 0
        %6486 = vperm.xlu0 %6485, %v6436
        %v6487 = vpop.permute.xlu0 %6486
        %6490 = vset.pattern.permute.xlu0 0
        %6491 = vperm.xlu0 %6490, %v6437
        %v6492 = vpop.permute.xlu0 %6491
        %6495 = vset.pattern.permute.xlu0 0
        %6496 = vperm.xlu0 %6495, %v6438
        %v6497 = vpop.permute.xlu0 %6496
        %6500 = vset.pattern.permute.xlu0 0
        %6501 = vperm.xlu0 %6500, %v6439
        %v6502 = vpop.permute.xlu0 %6501
        %6505 = vset.pattern.permute.xlu0 0
        %6506 = vperm.xlu0 %6505, %v6440
        %v6507 = vpop.permute.xlu0 %6506
        %6510 = vset.pattern.permute.xlu0 0
        %6511 = vperm.xlu0 %6510, %v6441
        %v6512 = vpop.permute.xlu0 %6511
        %6515 = vset.pattern.permute.xlu0 0
        %6516 = vperm.xlu0 %6515, %v6442
        %v6517 = vpop.permute.xlu0 %6516
        %6520 = vset.pattern.permute.xlu0 0
        %6521 = vperm.xlu0 %6520, %v6443
        %v6522 = vpop.permute.xlu0 %6521
        %v6524 = vlaneseq
        %v6525 = vshrl.u32 %v6524, 7
        %v6526 = vsub.s32 0, %v6525
        %v6527 = vrot.slane %v6311, %v6526
        %v6528 = vmul.f32 %v6447, %v6527
        %v6529 = vmul.f32 %v6452, %v6527
        %v6530 = vmul.f32 %v6457, %v6527
        %v6531 = vmul.f32 %v6462, %v6527
        %v6532 = vmul.f32 %v6467, %v6527
        %v6533 = vmul.f32 %v6472, %v6527
        %v6534 = vmul.f32 %v6477, %v6527
        %v6535 = vmul.f32 %v6482, %v6527
        %v6536 = vmul.f32 %v6487, %v6527
        %v6537 = vmul.f32 %v6492, %v6527
        %v6538 = vmul.f32 %v6497, %v6527
        %v6539 = vmul.f32 %v6502, %v6527
        %v6540 = vmul.f32 %v6507, %v6527
        %v6541 = vmul.f32 %v6512, %v6527
        %v6542 = vmul.f32 %v6517, %v6527
        %v6543 = vmul.f32 %v6522, %v6527
        %v6544 = vadd.f32 %v6411, %v6528
        %v6545 = vadd.f32 %v6412, %v6529
        %v6546 = vadd.f32 %v6413, %v6530
        %v6547 = vadd.f32 %v6414, %v6531
        %v6548 = vadd.f32 %v6415, %v6532
        %v6549 = vadd.f32 %v6416, %v6533
        %v6550 = vadd.f32 %v6417, %v6534
        %v6551 = vadd.f32 %v6418, %v6535
        %v6552 = vadd.f32 %v6419, %v6536
        %v6553 = vadd.f32 %v6420, %v6537
        %v6554 = vadd.f32 %v6421, %v6538
        %v6555 = vadd.f32 %v6422, %v6539
        %v6556 = vadd.f32 %v6423, %v6540
        %v6557 = vadd.f32 %v6424, %v6541
        %v6558 = vadd.f32 %v6425, %v6542
        %v6559 = vadd.f32 %v6426, %v6543
        %s6560 = scalar_lea.vmem %s4, 1152
        %v6561 = vld [vmem:[%s6560] sm:$0xff]
        %v6562 = vld [vmem:[%s6560 + $0x8] sm:$0xff]
        %v6563 = vld [vmem:[%s6560 + $0x10] sm:$0xff]
        %v6564 = vld [vmem:[%s6560 + $0x18] sm:$0xff]
        %v6565 = vld [vmem:[%s6560 + $0x20] sm:$0xff]
        %v6566 = vld [vmem:[%s6560 + $0x28] sm:$0xff]
        %v6567 = vld [vmem:[%s6560 + $0x30] sm:$0xff]
        %v6568 = vld [vmem:[%s6560 + $0x38] sm:$0xff]
        %v6569 = vld [vmem:[%s6560 + $0x40] sm:$0xff]
        %v6570 = vld [vmem:[%s6560 + $0x48] sm:$0xff]
        %v6571 = vld [vmem:[%s6560 + $0x50] sm:$0xff]
        %v6572 = vld [vmem:[%s6560 + $0x58] sm:$0xff]
        %v6573 = vld [vmem:[%s6560 + $0x60] sm:$0xff]
        %v6574 = vld [vmem:[%s6560 + $0x68] sm:$0xff]
        %v6575 = vld [vmem:[%s6560 + $0x70] sm:$0xff]
        %v6576 = vld [vmem:[%s6560 + $0x78] sm:$0xff]
        %6578 = vset.pattern.permute.xlu0 0
        %6579 = vperm.xlu0 %6578, %v6561
        %v6580 = vpop.permute.xlu0 %6579
        %6583 = vset.pattern.permute.xlu0 0
        %6584 = vperm.xlu0 %6583, %v6562
        %v6585 = vpop.permute.xlu0 %6584
        %6588 = vset.pattern.permute.xlu0 0
        %6589 = vperm.xlu0 %6588, %v6563
        %v6590 = vpop.permute.xlu0 %6589
        %6593 = vset.pattern.permute.xlu0 0
        %6594 = vperm.xlu0 %6593, %v6564
        %v6595 = vpop.permute.xlu0 %6594
        %6598 = vset.pattern.permute.xlu0 0
        %6599 = vperm.xlu0 %6598, %v6565
        %v6600 = vpop.permute.xlu0 %6599
        %6603 = vset.pattern.permute.xlu0 0
        %6604 = vperm.xlu0 %6603, %v6566
        %v6605 = vpop.permute.xlu0 %6604
        %6608 = vset.pattern.permute.xlu0 0
        %6609 = vperm.xlu0 %6608, %v6567
        %v6610 = vpop.permute.xlu0 %6609
        %6613 = vset.pattern.permute.xlu0 0
        %6614 = vperm.xlu0 %6613, %v6568
        %v6615 = vpop.permute.xlu0 %6614
        %6618 = vset.pattern.permute.xlu0 0
        %6619 = vperm.xlu0 %6618, %v6569
        %v6620 = vpop.permute.xlu0 %6619
        %6623 = vset.pattern.permute.xlu0 0
        %6624 = vperm.xlu0 %6623, %v6570
        %v6625 = vpop.permute.xlu0 %6624
        %6628 = vset.pattern.permute.xlu0 0
        %6629 = vperm.xlu0 %6628, %v6571
        %v6630 = vpop.permute.xlu0 %6629
        %6633 = vset.pattern.permute.xlu0 0
        %6634 = vperm.xlu0 %6633, %v6572
        %v6635 = vpop.permute.xlu0 %6634
        %6638 = vset.pattern.permute.xlu0 0
        %6639 = vperm.xlu0 %6638, %v6573
        %v6640 = vpop.permute.xlu0 %6639
        %6643 = vset.pattern.permute.xlu0 0
        %6644 = vperm.xlu0 %6643, %v6574
        %v6645 = vpop.permute.xlu0 %6644
        %6648 = vset.pattern.permute.xlu0 0
        %6649 = vperm.xlu0 %6648, %v6575
        %v6650 = vpop.permute.xlu0 %6649
        %6653 = vset.pattern.permute.xlu0 0
        %6654 = vperm.xlu0 %6653, %v6576
        %v6655 = vpop.permute.xlu0 %6654
        %v6657 = vadd.f32 %v6544, %v6580
        %v6658 = vadd.f32 %v6545, %v6585
        %v6659 = vadd.f32 %v6546, %v6590
        %v6660 = vadd.f32 %v6547, %v6595
        %v6661 = vadd.f32 %v6548, %v6600
        %v6662 = vadd.f32 %v6549, %v6605
        %v6663 = vadd.f32 %v6550, %v6610
        %v6664 = vadd.f32 %v6551, %v6615
        %v6665 = vadd.f32 %v6552, %v6620
        %v6666 = vadd.f32 %v6553, %v6625
        %v6667 = vadd.f32 %v6554, %v6630
        %v6668 = vadd.f32 %v6555, %v6635
        %v6669 = vadd.f32 %v6556, %v6640
        %v6670 = vadd.f32 %v6557, %v6645
        %v6671 = vadd.f32 %v6558, %v6650
        %v6672 = vadd.f32 %v6559, %v6655
        %v6673 = vmax.f32 %v6657, 0.0
        %v6674 = vmax.f32 %v6658, 0.0
        %v6675 = vmax.f32 %v6659, 0.0
        %v6676 = vmax.f32 %v6660, 0.0
        %v6677 = vmax.f32 %v6661, 0.0
        %v6678 = vmax.f32 %v6662, 0.0
        %v6679 = vmax.f32 %v6663, 0.0
        %v6680 = vmax.f32 %v6664, 0.0
        %v6681 = vmax.f32 %v6665, 0.0
        %v6682 = vmax.f32 %v6666, 0.0
        %v6683 = vmax.f32 %v6667, 0.0
        %v6684 = vmax.f32 %v6668, 0.0
        %v6685 = vmax.f32 %v6669, 0.0
        %v6686 = vmax.f32 %v6670, 0.0
        %v6687 = vmax.f32 %v6671, 0.0
        %v6688 = vmax.f32 %v6672, 0.0
        %s6689 = scalar_lea.vmem %s5, 1152
        %v6690 = vld [vmem:[%s6689] sm:$0xff]
        %v6691 = vld [vmem:[%s6689 + $0x8] sm:$0xff]
        %v6692 = vld [vmem:[%s6689 + $0x10] sm:$0xff]
        %v6693 = vld [vmem:[%s6689 + $0x18] sm:$0xff]
        %v6694 = vld [vmem:[%s6689 + $0x20] sm:$0xff]
        %v6695 = vld [vmem:[%s6689 + $0x28] sm:$0xff]
        %v6696 = vld [vmem:[%s6689 + $0x30] sm:$0xff]
        %v6697 = vld [vmem:[%s6689 + $0x38] sm:$0xff]
        %v6698 = vld [vmem:[%s6689 + $0x40] sm:$0xff]
        %v6699 = vld [vmem:[%s6689 + $0x48] sm:$0xff]
        %v6700 = vld [vmem:[%s6689 + $0x50] sm:$0xff]
        %v6701 = vld [vmem:[%s6689 + $0x58] sm:$0xff]
        %v6702 = vld [vmem:[%s6689 + $0x60] sm:$0xff]
        %v6703 = vld [vmem:[%s6689 + $0x68] sm:$0xff]
        %v6704 = vld [vmem:[%s6689 + $0x70] sm:$0xff]
        %v6705 = vld [vmem:[%s6689 + $0x78] sm:$0xff]
        %6707 = vset.pattern.permute.xlu0 0
        %6708 = vperm.xlu0 %6707, %v6690
        %v6709 = vpop.permute.xlu0 %6708
        %6712 = vset.pattern.permute.xlu0 0
        %6713 = vperm.xlu0 %6712, %v6691
        %v6714 = vpop.permute.xlu0 %6713
        %6717 = vset.pattern.permute.xlu0 0
        %6718 = vperm.xlu0 %6717, %v6692
        %v6719 = vpop.permute.xlu0 %6718
        %6722 = vset.pattern.permute.xlu0 0
        %6723 = vperm.xlu0 %6722, %v6693
        %v6724 = vpop.permute.xlu0 %6723
        %6727 = vset.pattern.permute.xlu0 0
        %6728 = vperm.xlu0 %6727, %v6694
        %v6729 = vpop.permute.xlu0 %6728
        %6732 = vset.pattern.permute.xlu0 0
        %6733 = vperm.xlu0 %6732, %v6695
        %v6734 = vpop.permute.xlu0 %6733
        %6737 = vset.pattern.permute.xlu0 0
        %6738 = vperm.xlu0 %6737, %v6696
        %v6739 = vpop.permute.xlu0 %6738
        %6742 = vset.pattern.permute.xlu0 0
        %6743 = vperm.xlu0 %6742, %v6697
        %v6744 = vpop.permute.xlu0 %6743
        %6747 = vset.pattern.permute.xlu0 0
        %6748 = vperm.xlu0 %6747, %v6698
        %v6749 = vpop.permute.xlu0 %6748
        %6752 = vset.pattern.permute.xlu0 0
        %6753 = vperm.xlu0 %6752, %v6699
        %v6754 = vpop.permute.xlu0 %6753
        %6757 = vset.pattern.permute.xlu0 0
        %6758 = vperm.xlu0 %6757, %v6700
        %v6759 = vpop.permute.xlu0 %6758
        %6762 = vset.pattern.permute.xlu0 0
        %6763 = vperm.xlu0 %6762, %v6701
        %v6764 = vpop.permute.xlu0 %6763
        %6767 = vset.pattern.permute.xlu0 0
        %6768 = vperm.xlu0 %6767, %v6702
        %v6769 = vpop.permute.xlu0 %6768
        %6772 = vset.pattern.permute.xlu0 0
        %6773 = vperm.xlu0 %6772, %v6703
        %v6774 = vpop.permute.xlu0 %6773
        %6777 = vset.pattern.permute.xlu0 0
        %6778 = vperm.xlu0 %6777, %v6704
        %v6779 = vpop.permute.xlu0 %6778
        %6782 = vset.pattern.permute.xlu0 0
        %6783 = vperm.xlu0 %6782, %v6705
        %v6784 = vpop.permute.xlu0 %6783
        %v6786 = vmul.f32 %v6709, %v6673
        %v6787 = vmul.f32 %v6714, %v6674
        %v6788 = vmul.f32 %v6719, %v6675
        %v6789 = vmul.f32 %v6724, %v6676
        %v6790 = vmul.f32 %v6729, %v6677
        %v6791 = vmul.f32 %v6734, %v6678
        %v6792 = vmul.f32 %v6739, %v6679
        %v6793 = vmul.f32 %v6744, %v6680
        %v6794 = vmul.f32 %v6749, %v6681
        %v6795 = vmul.f32 %v6754, %v6682
        %v6796 = vmul.f32 %v6759, %v6683
        %v6797 = vmul.f32 %v6764, %v6684
        %v6798 = vmul.f32 %v6769, %v6685
        %v6799 = vmul.f32 %v6774, %v6686
        %v6800 = vmul.f32 %v6779, %v6687
        %v6801 = vmul.f32 %v6784, %v6688
        %v6802 = vadd.f32 %v6786, %v6787
        %v6803 = vadd.f32 %v6802, %v6788
        %v6804 = vadd.f32 %v6803, %v6789
        %v6805 = vadd.f32 %v6804, %v6790
        %v6806 = vadd.f32 %v6805, %v6791
        %v6807 = vadd.f32 %v6806, %v6792
        %v6808 = vadd.f32 %v6807, %v6793
        %v6809 = vadd.f32 %v6808, %v6794
        %v6810 = vadd.f32 %v6809, %v6795
        %v6811 = vadd.f32 %v6810, %v6796
        %v6812 = vadd.f32 %v6811, %v6797
        %v6813 = vadd.f32 %v6812, %v6798
        %v6814 = vadd.f32 %v6813, %v6799
        %v6815 = vadd.f32 %v6814, %v6800
        %v6816 = vadd.f32 %v6815, %v6801
        %v6817 = vrot.slane %v6816, 4
        %v6818 = vadd.f32 %v6816, %v6817
        %v6819 = vrot.slane %v6818, 2
        %v6820 = vadd.f32 %v6818, %v6819
        %v6821 = vrot.slane %v6820, 1
        %v6822 = vadd.f32 %v6820, %v6821
        %s6823 = scalar_lea.vmem %s7, 18
        %v6824 = vld [vmem:[%s6823] sm:$0x1]
        %6826 = vset.pattern.permute.xlu0 0
        %6827 = vperm.xlu0 %6826, %v6824
        %v6828 = vpop.permute.xlu0 %6827
        %v6830 = vadd.f32 %v6822, %v6828
        %s6831 = scalar_lea.vmem %s6, 1152
        %v6832 = vld [vmem:[%s6831] sm:$0xff]
        %v6833 = vld [vmem:[%s6831 + $0x8] sm:$0xff]
        %v6834 = vld [vmem:[%s6831 + $0x10] sm:$0xff]
        %v6835 = vld [vmem:[%s6831 + $0x18] sm:$0xff]
        %v6836 = vld [vmem:[%s6831 + $0x20] sm:$0xff]
        %v6837 = vld [vmem:[%s6831 + $0x28] sm:$0xff]
        %v6838 = vld [vmem:[%s6831 + $0x30] sm:$0xff]
        %v6839 = vld [vmem:[%s6831 + $0x38] sm:$0xff]
        %v6840 = vld [vmem:[%s6831 + $0x40] sm:$0xff]
        %v6841 = vld [vmem:[%s6831 + $0x48] sm:$0xff]
        %v6842 = vld [vmem:[%s6831 + $0x50] sm:$0xff]
        %v6843 = vld [vmem:[%s6831 + $0x58] sm:$0xff]
        %v6844 = vld [vmem:[%s6831 + $0x60] sm:$0xff]
        %v6845 = vld [vmem:[%s6831 + $0x68] sm:$0xff]
        %v6846 = vld [vmem:[%s6831 + $0x70] sm:$0xff]
        %v6847 = vld [vmem:[%s6831 + $0x78] sm:$0xff]
        %6849 = vset.pattern.permute.xlu0 0
        %6850 = vperm.xlu0 %6849, %v6832
        %v6851 = vpop.permute.xlu0 %6850
        %6854 = vset.pattern.permute.xlu0 0
        %6855 = vperm.xlu0 %6854, %v6833
        %v6856 = vpop.permute.xlu0 %6855
        %6859 = vset.pattern.permute.xlu0 0
        %6860 = vperm.xlu0 %6859, %v6834
        %v6861 = vpop.permute.xlu0 %6860
        %6864 = vset.pattern.permute.xlu0 0
        %6865 = vperm.xlu0 %6864, %v6835
        %v6866 = vpop.permute.xlu0 %6865
        %6869 = vset.pattern.permute.xlu0 0
        %6870 = vperm.xlu0 %6869, %v6836
        %v6871 = vpop.permute.xlu0 %6870
        %6874 = vset.pattern.permute.xlu0 0
        %6875 = vperm.xlu0 %6874, %v6837
        %v6876 = vpop.permute.xlu0 %6875
        %6879 = vset.pattern.permute.xlu0 0
        %6880 = vperm.xlu0 %6879, %v6838
        %v6881 = vpop.permute.xlu0 %6880
        %6884 = vset.pattern.permute.xlu0 0
        %6885 = vperm.xlu0 %6884, %v6839
        %v6886 = vpop.permute.xlu0 %6885
        %6889 = vset.pattern.permute.xlu0 0
        %6890 = vperm.xlu0 %6889, %v6840
        %v6891 = vpop.permute.xlu0 %6890
        %6894 = vset.pattern.permute.xlu0 0
        %6895 = vperm.xlu0 %6894, %v6841
        %v6896 = vpop.permute.xlu0 %6895
        %6899 = vset.pattern.permute.xlu0 0
        %6900 = vperm.xlu0 %6899, %v6842
        %v6901 = vpop.permute.xlu0 %6900
        %6904 = vset.pattern.permute.xlu0 0
        %6905 = vperm.xlu0 %6904, %v6843
        %v6906 = vpop.permute.xlu0 %6905
        %6909 = vset.pattern.permute.xlu0 0
        %6910 = vperm.xlu0 %6909, %v6844
        %v6911 = vpop.permute.xlu0 %6910
        %6914 = vset.pattern.permute.xlu0 0
        %6915 = vperm.xlu0 %6914, %v6845
        %v6916 = vpop.permute.xlu0 %6915
        %6919 = vset.pattern.permute.xlu0 0
        %6920 = vperm.xlu0 %6919, %v6846
        %v6921 = vpop.permute.xlu0 %6920
        %6924 = vset.pattern.permute.xlu0 0
        %6925 = vperm.xlu0 %6924, %v6847
        %v6926 = vpop.permute.xlu0 %6925
        %v6928 = vmul.f32 %v6851, %v6673
        %v6929 = vmul.f32 %v6856, %v6674
        %v6930 = vmul.f32 %v6861, %v6675
        %v6931 = vmul.f32 %v6866, %v6676
        %v6932 = vmul.f32 %v6871, %v6677
        %v6933 = vmul.f32 %v6876, %v6678
        %v6934 = vmul.f32 %v6881, %v6679
        %v6935 = vmul.f32 %v6886, %v6680
        %v6936 = vmul.f32 %v6891, %v6681
        %v6937 = vmul.f32 %v6896, %v6682
        %v6938 = vmul.f32 %v6901, %v6683
        %v6939 = vmul.f32 %v6906, %v6684
        %v6940 = vmul.f32 %v6911, %v6685
        %v6941 = vmul.f32 %v6916, %v6686
        %v6942 = vmul.f32 %v6921, %v6687
        %v6943 = vmul.f32 %v6926, %v6688
        %v6944 = vadd.f32 %v6928, %v6929
        %v6945 = vadd.f32 %v6944, %v6930
        %v6946 = vadd.f32 %v6945, %v6931
        %v6947 = vadd.f32 %v6946, %v6932
        %v6948 = vadd.f32 %v6947, %v6933
        %v6949 = vadd.f32 %v6948, %v6934
        %v6950 = vadd.f32 %v6949, %v6935
        %v6951 = vadd.f32 %v6950, %v6936
        %v6952 = vadd.f32 %v6951, %v6937
        %v6953 = vadd.f32 %v6952, %v6938
        %v6954 = vadd.f32 %v6953, %v6939
        %v6955 = vadd.f32 %v6954, %v6940
        %v6956 = vadd.f32 %v6955, %v6941
        %v6957 = vadd.f32 %v6956, %v6942
        %v6958 = vadd.f32 %v6957, %v6943
        %v6959 = vrot.slane %v6958, 4
        %v6960 = vadd.f32 %v6958, %v6959
        %v6961 = vrot.slane %v6960, 2
        %v6962 = vadd.f32 %v6960, %v6961
        %v6963 = vrot.slane %v6962, 1
        %v6964 = vadd.f32 %v6962, %v6963
        %v6965 = vld [vmem:[%s6823 + $0x1] sm:$0x1]
        %6967 = vset.pattern.permute.xlu0 0
        %6968 = vperm.xlu0 %6967, %v6965
        %v6969 = vpop.permute.xlu0 %6968
        %v6971 = vadd.f32 %v6964, %v6969
        %v6972 = vmax.f32 %v6971, -5.0
        %v6973 = vmin.f32 %v6972, 3.0
        %v6974 = vmul.f32 %v6973, 1.442695
        %v6975 = vpow.pop %v6974
        %v6976 = vmul.f32 %v6975, %v5645
        %v6977 = vadd.f32 %v6976, %v6830
        %6978 = vst [vmem:[%s307 + $0x14] sm:$0x1] %v6311
        %6979 = vst [vmem:[%s307 + $0x15] sm:$0x1] %v6977
        %s6980 = sand.u32 %s208, 1
        %s6981 = scalar_lea.sflag [#allocation3], %s6980
        %s6982 = sand.u32 %s208, 1
        %s6983 = smul.addr %s6982, 24
        %s6984 = scalar_lea.vmem [#allocation2], %s6983
        // Predicated region
        $region53: #{tpu_custom_call.1} parent=51 // pred_check
          %p6985 = pneg %p218
        $region54: #{tpu_custom_call.1} parent=51 // pred_check_branch
          %6987 = sbr.rel (%p6985) target = $region56
        $region55: #{tpu_custom_call.1} parent=51 // pred_region
          %s6989 = ssub.s32 384, 384
          %6990 = vsyncadd %s6981, %s6989
          %s6991 = smul.addr %s22, 128
          %s6992 = scalar_lea.hbm %s8, %s6991
          %s6993 = sshll.u32 %s6984, 4
          %s6994 = int_to_ptr.vmem [resolvable:$true] %s6993
          %6999 = dma.vmem_to_hbm [thread:$0]  %s6994, 384, %s6992, %s6981, 128, 256, 8
        $region56: #{tpu_custom_call.1} parent=51 // pred_fallthru
          _
      $region52: #{tpu_custom_call.1} parent=5 // pred_fallthru
        _
      %p7000 = scmp.le.s32.totalorder 2, %s17
      // Predicated region
      $region57: #{tpu_custom_call.1} parent=5 // pred_check
        %p7001 = pneg %p7000
      $region58: #{tpu_custom_call.1} parent=5 // pred_check_branch
        %7003 = sbr.rel (%p7001) target = $region60
      $region59: #{tpu_custom_call.1} parent=5 // pred_region
        %s7004 = ssub.s32 %s17, 2
        // Predicated region
        $region61: #{tpu_custom_call.1} parent=59 // pred_check
          %p7005 = pneg %p224
        $region62: #{tpu_custom_call.1} parent=59 // pred_check_branch
          %7007 = sbr.rel (%p7005) target = $region64
        $region63: #{tpu_custom_call.1} parent=59 // pred_region
          %s7008 = sand.u32 %s209, 1
          %s7009 = scalar_lea.sflag [#allocation3], %s7008
          %s7010 = sand.u32 %s209, 1
          %s7011 = smul.addr %s7010, 24
          %s7012 = scalar_lea.vmem [#allocation2], %s7011
          %7013 = dma.done %s7009, 384
        $region64: #{tpu_custom_call.1} parent=59 // pred_fallthru
          _
      $region60: #{tpu_custom_call.1} parent=5 // pred_fallthru
        _
    $region6: #{tpu_custom_call.1} parent=1 // loop_footer
      %s21 = sadd.s32 1, %s17
    $region7: #{tpu_custom_call.1} parent=1 // loop_footer_branch
      %16 = sbr.rel target = $region3
    $region8: #{tpu_custom_call.1} parent=1 // loop_exit
      _
    %7014 = vsyncpa [#allocation3], 1
    %s7015 = scalar_lea.sflag [#allocation3], 1
    %7016 = vsyncpa %s7015, 1

</llo_original>
